<compile_context>
chip_gen: v7x
topology: tpu7x:2x2x1
jax: 0.10.0
libtpu: 0.0.40
codegen_flags: <defaults>
</compile_context>

<pallas_src>
import jax
import jax.numpy as jnp
from jax.experimental import pallas as pl
from jax.experimental.pallas import tpu as pltpu

S = 8        # sequence length
H = 32       # hidden size
F = 128      # FFN intermediate size
V = 50       # synthetic vocab size
NTYPES = 2   # token-type vocab
TB = 32      # sequences per grid step (TB*S = 256 rows per MXU matmul)

LN_EPS = 1e-12
MASK_NEG = 1e9


def _ln(x, gamma, beta):
    mu = jnp.mean(x, axis=-1, keepdims=True)
    var = jnp.mean((x - mu) ** 2, axis=-1, keepdims=True)
    return (x - mu) * jax.lax.rsqrt(var + LN_EPS) * gamma + beta


def encoder_pool_kernel(x_ref, mask_ref, wqkv_ref, bqkv_ref, wo_ref,
                        w1_ref, b1_ref, w2_ref, vec_ref, out_ref):
    tb = mask_ref.shape[0]          # sequences handled by this grid step
    m = tb * S                      # flattened token rows

    xr = x_ref[...]                 # (m, H) raw word+pos+type embedding sums
    mask = mask_ref[...]            # (tb, S) float attention mask

    vecs = vec_ref[...]             # (8, H) packed small vectors
    emb_g, emb_b = vecs[0:1], vecs[1:2]
    bo, g1, be1 = vecs[2:3], vecs[3:4], vecs[4:5]
    b2, g2, be2 = vecs[5:6], vecs[6:7], vecs[7:8]

    # --- embedding layernorm (folded in from the JAX glue) ---
    x = _ln(xr, emb_g, emb_b)                                            # (m, H)

    # --- fused QKV projection: one (m, H) @ (H, 3H) MXU matmul ---
    qkv = jnp.dot(x, wqkv_ref[...], preferred_element_type=jnp.float32) + bqkv_ref[...]
    q = qkv[:, 0 * H:1 * H].reshape(tb, S, H)
    k = qkv[:, 1 * H:2 * H].reshape(tb, S, H)
    v = qkv[:, 2 * H:3 * H].reshape(tb, S, H)

    # --- per-sequence single-head self-attention ---
    scores = jnp.einsum("bsd,btd->bst", q, k,
                        preferred_element_type=jnp.float32)              # (tb, S, S)
    scores = scores * (1.0 / jnp.sqrt(jnp.float32(H)))
    scores = scores + (mask[:, None, :] - 1.0) * MASK_NEG
    smax = jnp.max(scores, axis=-1, keepdims=True)
    e = jnp.exp(scores - smax)
    p = e * pl.reciprocal(jnp.sum(e, axis=-1, keepdims=True), approx=True)
    attn = jnp.einsum("bst,btd->bsd", p, v,
                      preferred_element_type=jnp.float32)                # (tb, S, H)

    attn = attn.reshape(m, H)
    attn = jnp.dot(attn, wo_ref[...], preferred_element_type=jnp.float32) + bo
    h = _ln(x + attn, g1, be1)

    # --- FFN ---
    ffn = jnp.dot(h, w1_ref[...], preferred_element_type=jnp.float32) + b1_ref[...]
    ffn = jax.nn.gelu(ffn, approximate=True)
    ffn = jnp.dot(ffn, w2_ref[...], preferred_element_type=jnp.float32) + b2
    tok = _ln(h + ffn, g2, be2)                                          # (m, H)

    # --- masked mean pooling: sum(tok*mask, seq) / clamp(sum(mask), 1e-9) ---
    tok3 = tok.reshape(tb, S, H)
    pooled = jnp.sum(tok3 * mask[:, :, None], axis=1)                    # (tb, H)
    denom = jnp.maximum(jnp.sum(mask, axis=-1, keepdims=True), 1e-9)     # (tb, 1)
    pooled = pooled * pl.reciprocal(denom, approx=True)

    # --- F.normalize(p=2, dim=1) applied twice (mode == 'query') ---
    def l2n(vec):
        ssq = jnp.sum(vec * vec, axis=-1, keepdims=True)
        return vec * jax.lax.rsqrt(jnp.maximum(ssq, 1e-24))

    out_ref[...] = l2n(l2n(pooled))                                      # dense (tb, H) store


def sentence_encoder_forward(params, input_ids, attention_mask, token_type_ids, *, tb=TB):
    B = input_ids.shape[0]
    nblk = pl.cdiv(B, tb)
    Bp = nblk * tb

    # Glue: embedding gather + positional/type adds (embedding LN runs in-kernel).
    x = (params["word_emb"][input_ids]
         + params["pos_emb"][None, :S, :]
         + params["type_emb"][token_type_ids]).astype(jnp.float32)       # (B, S, H)
    mask_f = attention_mask.astype(jnp.float32)                          # (B, S)

    if Bp != B:   # pad batch to a multiple of tb; padded rows have mask=0 and are sliced off
        x = jnp.pad(x, ((0, Bp - B), (0, 0), (0, 0)))
        mask_f = jnp.pad(mask_f, ((0, Bp - B), (0, 0)))

    x_flat = x.reshape(Bp * S, H)

    # Fuse QKV weights/biases and pack the small per-feature vectors.
    wqkv = jnp.concatenate([params["wq"], params["wk"], params["wv"]], axis=1)   # (H, 3H)
    bqkv = jnp.concatenate([params["bq"], params["bk"], params["bv"]], axis=1)   # (1, 3H)
    vecs = jnp.concatenate([params["emb_g"], params["emb_b"], params["bo"],
                            params["g1"], params["be1"], params["b2"],
                            params["g2"], params["be2"]], axis=0)                # (8, H)

    def const_spec(shape):
        return pl.BlockSpec(shape, lambda b, _n=len(shape): (0,) * _n)

    out = pl.pallas_call(
        encoder_pool_kernel,
        out_shape=jax.ShapeDtypeStruct((Bp, H), jnp.float32),
        grid_spec=pltpu.PrefetchScalarGridSpec(
            num_scalar_prefetch=0,
            grid=(nblk,),
            in_specs=[pl.BlockSpec((tb * S, H), lambda b: (b, 0)),
                      pl.BlockSpec((tb, S), lambda b: (b, 0)),
                      const_spec(wqkv.shape), const_spec(bqkv.shape),
                      const_spec(params["wo"].shape),
                      const_spec(params["w1"].shape), const_spec(params["b1"].shape),
                      const_spec(params["w2"].shape), const_spec(vecs.shape)],
            out_specs=pl.BlockSpec((tb, H), lambda b: (b, 0)),
        ),
        compiler_params=pltpu.CompilerParams(dimension_semantics=("parallel",)),
    )(x_flat, mask_f, wqkv, bqkv, params["wo"], params["w1"], params["b1"],
      params["w2"], vecs)
    return out[:B]


# ------------------------------ pure-JAX reference ------------------------------

def _embed(params, input_ids, token_type_ids):
    x = (params["word_emb"][input_ids]
         + params["pos_emb"][None, :S, :]
         + params["type_emb"][token_type_ids])
    return _ln(x, params["emb_g"], params["emb_b"]).astype(jnp.float32)


def reference_forward(params, input_ids, attention_mask, token_type_ids):
    x = _embed(params, input_ids, token_type_ids)                        # (B, S, H)
    mask = attention_mask.astype(jnp.float32)                            # (B, S)

    q = x @ params["wq"] + params["bq"]
    k = x @ params["wk"] + params["bk"]
    v = x @ params["wv"] + params["bv"]
    scores = jnp.einsum("bsd,btd->bst", q, k) / jnp.sqrt(jnp.float32(H))
    scores = scores + (mask[:, None, :] - 1.0) * MASK_NEG
    p = jax.nn.softmax(scores, axis=-1)
    attn = jnp.einsum("bst,btd->bsd", p, v) @ params["wo"] + params["bo"]
    h = _ln(x + attn, params["g1"], params["be1"])
    ffn = jax.nn.gelu(h @ params["w1"] + params["b1"], approximate=True)
    ffn = ffn @ params["w2"] + params["b2"]
    tok = _ln(h + ffn, params["g2"], params["be2"])

    m = mask[..., None]
    pooled = jnp.sum(tok * m, axis=1) / jnp.maximum(jnp.sum(m, axis=1), 1e-9)

    def l2norm(vec):
        n = jnp.linalg.norm(vec, axis=1, keepdims=True)
        return vec / jnp.maximum(n, 1e-12)

    return l2norm(l2norm(pooled))


def init_params(key):
    ks = jax.random.split(key, 12)
    std = 0.02
    n = lambda k, shape: (std * jax.random.normal(k, shape)).astype(jnp.float32)
    return {
        "word_emb": n(ks[0], (V, H)),
        "pos_emb": n(ks[1], (S, H)),
        "type_emb": n(ks[2], (NTYPES, H)),
        "emb_g": jnp.ones((1, H), jnp.float32),
        "emb_b": jnp.zeros((1, H), jnp.float32),
        "wq": n(ks[3], (H, H)), "bq": jnp.zeros((1, H), jnp.float32),
        "wk": n(ks[4], (H, H)), "bk": jnp.zeros((1, H), jnp.float32),
        "wv": n(ks[5], (H, H)), "bv": jnp.zeros((1, H), jnp.float32),
        "wo": n(ks[6], (H, H)), "bo": jnp.zeros((1, H), jnp.float32),
        "g1": jnp.ones((1, H), jnp.float32), "be1": jnp.zeros((1, H), jnp.float32),
        "w1": n(ks[7], (H, F)), "b1": jnp.zeros((1, F), jnp.float32),
        "w2": n(ks[8], (F, H)), "b2": jnp.zeros((1, H), jnp.float32),
        "g2": jnp.ones((1, H), jnp.float32), "be2": jnp.zeros((1, H), jnp.float32),
    }


if __name__ == "__main__":
    key = jax.random.PRNGKey(0)
    kp, kid, klen = jax.random.split(key, 3)
    params = init_params(kp)

    B = 64   # -> grid of 2 steps with TB=32 (keeps both v7x TensorCores busy)
    input_ids = jax.random.randint(kid, (B, S), 0, V, dtype=jnp.int32)
    token_type_ids = jnp.zeros((B, S), jnp.int32)
    lengths = jax.random.randint(klen, (B,), 1, S + 1, dtype=jnp.int32)   # padded sequences
    attention_mask = (jnp.arange(S)[None, :] < lengths[:, None]).astype(jnp.int32)

    emb = sentence_encoder_forward(params, input_ids, attention_mask, token_type_ids)
    emb = jax.block_until_ready(emb)

    ref = reference_forward(params, input_ids, attention_mask, token_type_ids)
    assert emb.shape == (B, H)
    # approx-reciprocal (EUP) is used in-kernel for softmax/pooling denominators,
    # so compare with a correspondingly relaxed (but bug-catching) tolerance.
    assert jnp.allclose(emb, ref, atol=1e-3, rtol=1e-3), \
        f"kernel/reference mismatch, max abs err {float(jnp.max(jnp.abs(emb - ref)))}"
    # embeddings are L2-normalized rows
    assert jnp.allclose(jnp.linalg.norm(emb, axis=1), 1.0, atol=1e-3)

    print("KERNEL_OK")
</pallas_src>

<mosaic_0001>
module attributes {stable_mosaic.version = 11 : i64} {
  func.func @encoder_pool_kernel(%arg0: i32, %arg1: memref<256x32xf32, #tpu.memory_space<vmem>>, %arg2: memref<32x8xf32, #tpu.memory_space<vmem>>, %arg3: memref<32x96xf32, #tpu.memory_space<vmem>>, %arg4: memref<1x96xf32, #tpu.memory_space<vmem>>, %arg5: memref<32x32xf32, #tpu.memory_space<vmem>>, %arg6: memref<32x128xf32, #tpu.memory_space<vmem>>, %arg7: memref<1x128xf32, #tpu.memory_space<vmem>>, %arg8: memref<128x32xf32, #tpu.memory_space<vmem>>, %arg9: memref<8x32xf32, #tpu.memory_space<vmem>>, %arg10: memref<32x32xf32, #tpu.memory_space<vmem>>) attributes {dimension_semantics = [#tpu.dimension_semantics<parallel>], iteration_bounds = array<i64: 2>, scalar_prefetch = 0 : i64, scratch_operands = 0 : i64, tpu.core_type = #tpu.core_type<tc>, window_params = [{transform_indices = @transform_0, window_bounds = array<i64: 256, 32>}, {transform_indices = @transform_1, window_bounds = array<i64: 32, 8>}, {pipeline_mode = #tpu.pipeline_mode<synchronous>, transform_indices = @transform_2, window_bounds = array<i64: 32, 96>}, {pipeline_mode = #tpu.pipeline_mode<synchronous>, transform_indices = @transform_3, window_bounds = array<i64: 1, 96>}, {pipeline_mode = #tpu.pipeline_mode<synchronous>, transform_indices = @transform_4, window_bounds = array<i64: 32, 32>}, {pipeline_mode = #tpu.pipeline_mode<synchronous>, transform_indices = @transform_5, window_bounds = array<i64: 32, 128>}, {pipeline_mode = #tpu.pipeline_mode<synchronous>, transform_indices = @transform_6, window_bounds = array<i64: 1, 128>}, {pipeline_mode = #tpu.pipeline_mode<synchronous>, transform_indices = @transform_7, window_bounds = array<i64: 128, 32>}, {pipeline_mode = #tpu.pipeline_mode<synchronous>, transform_indices = @transform_8, window_bounds = array<i64: 8, 32>}, {transform_indices = @transform_9, window_bounds = array<i64: 32, 32>}]} {
    %c0 = arith.constant 0 : index
    %c0_0 = arith.constant 0 : index
    %0 = vector.load %arg1[%c0, %c0_0] : memref<256x32xf32, #tpu.memory_space<vmem>>, vector<256x32xf32>
    %c0_1 = arith.constant 0 : index
    %c0_2 = arith.constant 0 : index
    %1 = vector.load %arg2[%c0_1, %c0_2] : memref<32x8xf32, #tpu.memory_space<vmem>>, vector<32x8xf32>
    %c0_3 = arith.constant 0 : index
    %c0_4 = arith.constant 0 : index
    %2 = vector.load %arg9[%c0_3, %c0_4] : memref<8x32xf32, #tpu.memory_space<vmem>>, vector<8x32xf32>
    %3 = vector.extract_strided_slice %2 {offsets = [0, 0], sizes = [1, 32], strides = [1, 1]} : vector<8x32xf32> to vector<1x32xf32>
    %4 = vector.extract_strided_slice %2 {offsets = [1, 0], sizes = [1, 32], strides = [1, 1]} : vector<8x32xf32> to vector<1x32xf32>
    %5 = vector.extract_strided_slice %2 {offsets = [2, 0], sizes = [1, 32], strides = [1, 1]} : vector<8x32xf32> to vector<1x32xf32>
    %6 = vector.extract_strided_slice %2 {offsets = [3, 0], sizes = [1, 32], strides = [1, 1]} : vector<8x32xf32> to vector<1x32xf32>
    %7 = vector.extract_strided_slice %2 {offsets = [4, 0], sizes = [1, 32], strides = [1, 1]} : vector<8x32xf32> to vector<1x32xf32>
    %8 = vector.extract_strided_slice %2 {offsets = [5, 0], sizes = [1, 32], strides = [1, 1]} : vector<8x32xf32> to vector<1x32xf32>
    %9 = vector.extract_strided_slice %2 {offsets = [6, 0], sizes = [1, 32], strides = [1, 1]} : vector<8x32xf32> to vector<1x32xf32>
    %10 = vector.extract_strided_slice %2 {offsets = [7, 0], sizes = [1, 32], strides = [1, 1]} : vector<8x32xf32> to vector<1x32xf32>
    %cst = arith.constant dense<0.000000e+00> : vector<256xf32>
    %11 = vector.multi_reduction <add>, %0, %cst [1] : vector<256x32xf32> to vector<256xf32>
    %12 = vector.shape_cast %11 : vector<256xf32> to vector<256x1xf32>
    %cst_5 = arith.constant 3.200000e+01 : f32
    %13 = vector.broadcast %cst_5 : f32 to vector<256x1xf32>
    %14 = arith.divf %12, %13 : vector<256x1xf32>
    %15 = vector.broadcast %14 : vector<256x1xf32> to vector<256x32xf32>
    %16 = arith.subf %0, %15 : vector<256x32xf32>
    %17 = arith.mulf %16, %16 : vector<256x32xf32>
    %cst_6 = arith.constant dense<0.000000e+00> : vector<256xf32>
    %18 = vector.multi_reduction <add>, %17, %cst_6 [1] : vector<256x32xf32> to vector<256xf32>
    %19 = vector.shape_cast %18 : vector<256xf32> to vector<256x1xf32>
    %cst_7 = arith.constant 3.200000e+01 : f32
    %20 = vector.broadcast %cst_7 : f32 to vector<256x1xf32>
    %21 = arith.divf %19, %20 : vector<256x1xf32>
    %22 = vector.broadcast %14 : vector<256x1xf32> to vector<256x32xf32>
    %23 = arith.subf %0, %22 : vector<256x32xf32>
    %cst_8 = arith.constant 9.99999996E-13 : f32
    %24 = vector.broadcast %cst_8 : f32 to vector<256x1xf32>
    %25 = arith.addf %21, %24 : vector<256x1xf32>
    %26 = math.rsqrt %25 : vector<256x1xf32>
    %27 = vector.broadcast %26 : vector<256x1xf32> to vector<256x32xf32>
    %28 = arith.mulf %23, %27 : vector<256x32xf32>
    %29 = vector.broadcast %3 : vector<1x32xf32> to vector<256x32xf32>
    %30 = arith.mulf %28, %29 : vector<256x32xf32>
    %31 = vector.broadcast %4 : vector<1x32xf32> to vector<256x32xf32>
    %32 = arith.addf %30, %31 : vector<256x32xf32>
    %c0_9 = arith.constant 0 : index
    %c0_10 = arith.constant 0 : index
    %33 = vector.load %arg3[%c0_9, %c0_10] : memref<32x96xf32, #tpu.memory_space<vmem>>, vector<32x96xf32>
    %cst_11 = arith.constant dense<0.000000e+00> : vector<256x96xf32>
    %34 = tpu.matmul %32, %33, %cst_11 {dimension_numbers = #tpu.dot_dimension_numbers<[1], [0], [0], [1], [0, 0, 1, 1], [], []>} : vector<256x32xf32>, vector<32x96xf32>, vector<256x96xf32> -> vector<256x96xf32>
    %c0_12 = arith.constant 0 : index
    %c0_13 = arith.constant 0 : index
    %35 = vector.load %arg4[%c0_12, %c0_13] : memref<1x96xf32, #tpu.memory_space<vmem>>, vector<1x96xf32>
    %36 = vector.broadcast %35 : vector<1x96xf32> to vector<256x96xf32>
    %37 = arith.addf %34, %36 : vector<256x96xf32>
    %38 = vector.extract_strided_slice %37 {offsets = [0, 0], sizes = [256, 32], strides = [1, 1]} : vector<256x96xf32> to vector<256x32xf32>
    %39 = vector.shape_cast %38 : vector<256x32xf32> to vector<32x8x32xf32>
    %40 = vector.extract_strided_slice %37 {offsets = [0, 32], sizes = [256, 32], strides = [1, 1]} : vector<256x96xf32> to vector<256x32xf32>
    %41 = vector.shape_cast %40 : vector<256x32xf32> to vector<32x8x32xf32>
    %42 = vector.extract_strided_slice %37 {offsets = [0, 64], sizes = [256, 32], strides = [1, 1]} : vector<256x96xf32> to vector<256x32xf32>
    %43 = vector.shape_cast %42 : vector<256x32xf32> to vector<32x8x32xf32>
    "tpu.trace_start"() <{level = 10 : i32, message = "bsd,btd->bst"}> : () -> ()
    %cst_14 = arith.constant dense<0.000000e+00> : vector<32x8x8xf32>
    %44 = tpu.matmul %39, %41, %cst_14 {dimension_numbers = #tpu.dot_dimension_numbers<[2], [2], [1], [1], [0, 0, 0, 1, 1, 1], [0], [0]>} : vector<32x8x32xf32>, vector<32x8x32xf32>, vector<32x8x8xf32> -> vector<32x8x8xf32>
    %cst_15 = arith.constant 3.200000e+01 : f32
    "tpu.trace_stop"() : () -> ()
    %45 = math.sqrt %cst_15 : f32
    %cst_16 = arith.constant 1.000000e+00 : f32
    %46 = arith.divf %cst_16, %45 : f32
    %47 = vector.broadcast %46 : f32 to vector<32x8x8xf32>
    %48 = arith.mulf %44, %47 : vector<32x8x8xf32>
    %49 = vector.shape_cast %1 : vector<32x8xf32> to vector<32x1x8xf32>
    %cst_17 = arith.constant 1.000000e+00 : f32
    %50 = vector.broadcast %cst_17 : f32 to vector<32x1x8xf32>
    %51 = arith.subf %49, %50 : vector<32x1x8xf32>
    %cst_18 = arith.constant 1.000000e+09 : f32
    %52 = vector.broadcast %cst_18 : f32 to vector<32x1x8xf32>
    %53 = arith.mulf %51, %52 : vector<32x1x8xf32>
    %54 = vector.broadcast %53 : vector<32x1x8xf32> to vector<32x8x8xf32>
    %55 = arith.addf %48, %54 : vector<32x8x8xf32>
    %cst_19 = arith.constant dense<0xFF800000> : vector<32x8xf32>
    %56 = vector.multi_reduction <maximumf>, %55, %cst_19 [2] : vector<32x8x8xf32> to vector<32x8xf32>
    %57 = vector.shape_cast %56 : vector<32x8xf32> to vector<32x8x1xf32>
    %58 = vector.broadcast %57 : vector<32x8x1xf32> to vector<32x8x8xf32>
    %59 = arith.subf %55, %58 : vector<32x8x8xf32>
    %60 = math.exp %59 : vector<32x8x8xf32>
    %cst_20 = arith.constant dense<0.000000e+00> : vector<32x8xf32>
    %61 = vector.multi_reduction <add>, %60, %cst_20 [2] : vector<32x8x8xf32> to vector<32x8xf32>
    %62 = vector.shape_cast %61 : vector<32x8xf32> to vector<32x8x1xf32>
    %63 = tpu.reciprocal %62 {approx = true} : vector<32x8x1xf32> -> vector<32x8x1xf32>
    %64 = vector.broadcast %63 : vector<32x8x1xf32> to vector<32x8x8xf32>
    %65 = arith.mulf %60, %64 : vector<32x8x8xf32>
    "tpu.trace_start"() <{level = 10 : i32, message = "bst,btd->bsd"}> : () -> ()
    %cst_21 = arith.constant dense<0.000000e+00> : vector<32x8x32xf32>
    %66 = tpu.matmul %65, %43, %cst_21 {dimension_numbers = #tpu.dot_dimension_numbers<[2], [1], [1], [2], [0, 0, 0, 1, 1, 2], [0], [0]>} : vector<32x8x8xf32>, vector<32x8x32xf32>, vector<32x8x32xf32> -> vector<32x8x32xf32>
    "tpu.trace_stop"() : () -> ()
    %67 = vector.shape_cast %66 : vector<32x8x32xf32> to vector<256x32xf32>
    %c0_22 = arith.constant 0 : index
    %c0_23 = arith.constant 0 : index
    %68 = vector.load %arg5[%c0_22, %c0_23] : memref<32x32xf32, #tpu.memory_space<vmem>>, vector<32x32xf32>
    %cst_24 = arith.constant dense<0.000000e+00> : vector<256x32xf32>
    %69 = tpu.matmul %67, %68, %cst_24 {dimension_numbers = #tpu.dot_dimension_numbers<[1], [0], [0], [1], [0, 0, 1, 1], [], []>} : vector<256x32xf32>, vector<32x32xf32>, vector<256x32xf32> -> vector<256x32xf32>
    %70 = vector.broadcast %5 : vector<1x32xf32> to vector<256x32xf32>
    %71 = arith.addf %69, %70 : vector<256x32xf32>
    %72 = arith.addf %32, %71 : vector<256x32xf32>
    %cst_25 = arith.constant dense<0.000000e+00> : vector<256xf32>
    %73 = vector.multi_reduction <add>, %72, %cst_25 [1] : vector<256x32xf32> to vector<256xf32>
    %74 = vector.shape_cast %73 : vector<256xf32> to vector<256x1xf32>
    %cst_26 = arith.constant 3.200000e+01 : f32
    %75 = vector.broadcast %cst_26 : f32 to vector<256x1xf32>
    %76 = arith.divf %74, %75 : vector<256x1xf32>
    %77 = vector.broadcast %76 : vector<256x1xf32> to vector<256x32xf32>
    %78 = arith.subf %72, %77 : vector<256x32xf32>
    %79 = arith.mulf %78, %78 : vector<256x32xf32>
    %cst_27 = arith.constant dense<0.000000e+00> : vector<256xf32>
    %80 = vector.multi_reduction <add>, %79, %cst_27 [1] : vector<256x32xf32> to vector<256xf32>
    %81 = vector.shape_cast %80 : vector<256xf32> to vector<256x1xf32>
    %cst_28 = arith.constant 3.200000e+01 : f32
    %82 = vector.broadcast %cst_28 : f32 to vector<256x1xf32>
    %83 = arith.divf %81, %82 : vector<256x1xf32>
    %84 = vector.broadcast %76 : vector<256x1xf32> to vector<256x32xf32>
    %85 = arith.subf %72, %84 : vector<256x32xf32>
    %cst_29 = arith.constant 9.99999996E-13 : f32
    %86 = vector.broadcast %cst_29 : f32 to vector<256x1xf32>
    %87 = arith.addf %83, %86 : vector<256x1xf32>
    %88 = math.rsqrt %87 : vector<256x1xf32>
    %89 = vector.broadcast %88 : vector<256x1xf32> to vector<256x32xf32>
    %90 = arith.mulf %85, %89 : vector<256x32xf32>
    %91 = vector.broadcast %6 : vector<1x32xf32> to vector<256x32xf32>
    %92 = arith.mulf %90, %91 : vector<256x32xf32>
    %93 = vector.broadcast %7 : vector<1x32xf32> to vector<256x32xf32>
    %94 = arith.addf %92, %93 : vector<256x32xf32>
    %c0_30 = arith.constant 0 : index
    %c0_31 = arith.constant 0 : index
    %95 = vector.load %arg6[%c0_30, %c0_31] : memref<32x128xf32, #tpu.memory_space<vmem>>, vector<32x128xf32>
    %cst_32 = arith.constant dense<0.000000e+00> : vector<256x128xf32>
    %96 = tpu.matmul %94, %95, %cst_32 {dimension_numbers = #tpu.dot_dimension_numbers<[1], [0], [0], [1], [0, 0, 1, 1], [], []>} : vector<256x32xf32>, vector<32x128xf32>, vector<256x128xf32> -> vector<256x128xf32>
    %c0_33 = arith.constant 0 : index
    %c0_34 = arith.constant 0 : index
    %97 = vector.load %arg7[%c0_33, %c0_34] : memref<1x128xf32, #tpu.memory_space<vmem>>, vector<1x128xf32>
    %98 = vector.broadcast %97 : vector<1x128xf32> to vector<256x128xf32>
    %99 = arith.addf %96, %98 : vector<256x128xf32>
    %100 = arith.mulf %99, %99 : vector<256x128xf32>
    %101 = arith.mulf %99, %100 : vector<256x128xf32>
    %cst_35 = arith.constant 4.471500e-02 : f32
    %102 = vector.broadcast %cst_35 : f32 to vector<256x128xf32>
    %103 = arith.mulf %102, %101 : vector<256x128xf32>
    %104 = arith.addf %99, %103 : vector<256x128xf32>
    %cst_36 = arith.constant 0.797884583 : f32
    %105 = vector.broadcast %cst_36 : f32 to vector<256x128xf32>
    %106 = arith.mulf %105, %104 : vector<256x128xf32>
    %107 = math.tanh %106 : vector<256x128xf32>
    %cst_37 = arith.constant 1.000000e+00 : f32
    %108 = vector.broadcast %cst_37 : f32 to vector<256x128xf32>
    %109 = arith.addf %108, %107 : vector<256x128xf32>
    %cst_38 = arith.constant 5.000000e-01 : f32
    %110 = vector.broadcast %cst_38 : f32 to vector<256x128xf32>
    %111 = arith.mulf %110, %109 : vector<256x128xf32>
    %112 = arith.mulf %99, %111 : vector<256x128xf32>
    %c0_39 = arith.constant 0 : index
    %c0_40 = arith.constant 0 : index
    %113 = vector.load %arg8[%c0_39, %c0_40] : memref<128x32xf32, #tpu.memory_space<vmem>>, vector<128x32xf32>
    %cst_41 = arith.constant dense<0.000000e+00> : vector<256x32xf32>
    %114 = tpu.matmul %112, %113, %cst_41 {dimension_numbers = #tpu.dot_dimension_numbers<[1], [0], [0], [1], [0, 0, 1, 1], [], []>} : vector<256x128xf32>, vector<128x32xf32>, vector<256x32xf32> -> vector<256x32xf32>
    %115 = vector.broadcast %8 : vector<1x32xf32> to vector<256x32xf32>
    %116 = arith.addf %114, %115 : vector<256x32xf32>
    %117 = arith.addf %94, %116 : vector<256x32xf32>
    %cst_42 = arith.constant dense<0.000000e+00> : vector<256xf32>
    %118 = vector.multi_reduction <add>, %117, %cst_42 [1] : vector<256x32xf32> to vector<256xf32>
    %119 = vector.shape_cast %118 : vector<256xf32> to vector<256x1xf32>
    %cst_43 = arith.constant 3.200000e+01 : f32
    %120 = vector.broadcast %cst_43 : f32 to vector<256x1xf32>
    %121 = arith.divf %119, %120 : vector<256x1xf32>
    %122 = vector.broadcast %121 : vector<256x1xf32> to vector<256x32xf32>
    %123 = arith.subf %117, %122 : vector<256x32xf32>
    %124 = arith.mulf %123, %123 : vector<256x32xf32>
    %cst_44 = arith.constant dense<0.000000e+00> : vector<256xf32>
    %125 = vector.multi_reduction <add>, %124, %cst_44 [1] : vector<256x32xf32> to vector<256xf32>
    %126 = vector.shape_cast %125 : vector<256xf32> to vector<256x1xf32>
    %cst_45 = arith.constant 3.200000e+01 : f32
    %127 = vector.broadcast %cst_45 : f32 to vector<256x1xf32>
    %128 = arith.divf %126, %127 : vector<256x1xf32>
    %129 = vector.broadcast %121 : vector<256x1xf32> to vector<256x32xf32>
    %130 = arith.subf %117, %129 : vector<256x32xf32>
    %cst_46 = arith.constant 9.99999996E-13 : f32
    %131 = vector.broadcast %cst_46 : f32 to vector<256x1xf32>
    %132 = arith.addf %128, %131 : vector<256x1xf32>
    %133 = math.rsqrt %132 : vector<256x1xf32>
    %134 = vector.broadcast %133 : vector<256x1xf32> to vector<256x32xf32>
    %135 = arith.mulf %130, %134 : vector<256x32xf32>
    %136 = vector.broadcast %9 : vector<1x32xf32> to vector<256x32xf32>
    %137 = arith.mulf %135, %136 : vector<256x32xf32>
    %138 = vector.broadcast %10 : vector<1x32xf32> to vector<256x32xf32>
    %139 = arith.addf %137, %138 : vector<256x32xf32>
    %140 = vector.shape_cast %139 : vector<256x32xf32> to vector<32x8x32xf32>
    %141 = vector.shape_cast %1 : vector<32x8xf32> to vector<32x8x1xf32>
    %142 = vector.broadcast %141 : vector<32x8x1xf32> to vector<32x8x32xf32>
    %143 = arith.mulf %140, %142 : vector<32x8x32xf32>
    %cst_47 = arith.constant dense<0.000000e+00> : vector<32x32xf32>
    %144 = vector.multi_reduction <add>, %143, %cst_47 [1] : vector<32x8x32xf32> to vector<32x32xf32>
    %cst_48 = arith.constant dense<0.000000e+00> : vector<32xf32>
    %145 = vector.multi_reduction <add>, %1, %cst_48 [1] : vector<32x8xf32> to vector<32xf32>
    %146 = vector.shape_cast %145 : vector<32xf32> to vector<32x1xf32>
    %cst_49 = arith.constant 9.99999971E-10 : f32
    %147 = vector.broadcast %cst_49 : f32 to vector<32x1xf32>
    %148 = arith.maximumf %146, %147 : vector<32x1xf32>
    %149 = tpu.reciprocal %148 {approx = true} : vector<32x1xf32> -> vector<32x1xf32>
    %150 = vector.broadcast %149 : vector<32x1xf32> to vector<32x32xf32>
    %151 = arith.mulf %144, %150 : vector<32x32xf32>
    %152 = arith.mulf %151, %151 : vector<32x32xf32>
    %cst_50 = arith.constant dense<0.000000e+00> : vector<32xf32>
    %153 = vector.multi_reduction <add>, %152, %cst_50 [1] : vector<32x32xf32> to vector<32xf32>
    %154 = vector.shape_cast %153 : vector<32xf32> to vector<32x1xf32>
    %cst_51 = arith.constant 1.000000e-24 : f32
    %155 = vector.broadcast %cst_51 : f32 to vector<32x1xf32>
    %156 = arith.maximumf %154, %155 : vector<32x1xf32>
    %157 = math.rsqrt %156 : vector<32x1xf32>
    %158 = vector.broadcast %157 : vector<32x1xf32> to vector<32x32xf32>
    %159 = arith.mulf %151, %158 : vector<32x32xf32>
    %160 = arith.mulf %159, %159 : vector<32x32xf32>
    %cst_52 = arith.constant dense<0.000000e+00> : vector<32xf32>
    %161 = vector.multi_reduction <add>, %160, %cst_52 [1] : vector<32x32xf32> to vector<32xf32>
    %162 = vector.shape_cast %161 : vector<32xf32> to vector<32x1xf32>
    %cst_53 = arith.constant 1.000000e-24 : f32
    %163 = vector.broadcast %cst_53 : f32 to vector<32x1xf32>
    %164 = arith.maximumf %162, %163 : vector<32x1xf32>
    %165 = math.rsqrt %164 : vector<32x1xf32>
    %166 = vector.broadcast %165 : vector<32x1xf32> to vector<32x32xf32>
    %167 = arith.mulf %159, %166 : vector<32x32xf32>
    %c0_54 = arith.constant 0 : index
    %c0_55 = arith.constant 0 : index
    %168 = vector.load %arg10[%c0_54, %c0_55] : memref<32x32xf32, #tpu.memory_space<vmem>>, vector<32x32xf32>
    tpu.vector_store %arg10[%c0_54, %c0_55], %167 {strides = array<i32>} : memref<32x32xf32, #tpu.memory_space<vmem>>, vector<32x32xf32>,
    return
  }
  func.func @transform_0(%arg0: i32) -> (i32, i32) {
    %c0_i32 = arith.constant 0 : i32
    %c0_i32_0 = arith.constant 0 : i32
    return %arg0, %c0_i32 : i32, i32
  }
  func.func @transform_1(%arg0: i32) -> (i32, i32) {
    %c0_i32 = arith.constant 0 : i32
    %c0_i32_0 = arith.constant 0 : i32
    return %arg0, %c0_i32 : i32, i32
  }
  func.func @transform_2(%arg0: i32) -> (i32, i32) {
    %c0_i32 = arith.constant 0 : i32
    %c0_i32_0 = arith.constant 0 : i32
    %c0_i32_1 = arith.constant 0 : i32
    return %c0_i32, %c0_i32_0 : i32, i32
  }
  func.func @transform_3(%arg0: i32) -> (i32, i32) {
    %c0_i32 = arith.constant 0 : i32
    %c0_i32_0 = arith.constant 0 : i32
    %c0_i32_1 = arith.constant 0 : i32
    return %c0_i32, %c0_i32_0 : i32, i32
  }
  func.func @transform_4(%arg0: i32) -> (i32, i32) {
    %c0_i32 = arith.constant 0 : i32
    %c0_i32_0 = arith.constant 0 : i32
    %c0_i32_1 = arith.constant 0 : i32
    return %c0_i32, %c0_i32_0 : i32, i32
  }
  func.func @transform_5(%arg0: i32) -> (i32, i32) {
    %c0_i32 = arith.constant 0 : i32
    %c0_i32_0 = arith.constant 0 : i32
    %c0_i32_1 = arith.constant 0 : i32
    return %c0_i32, %c0_i32_0 : i32, i32
  }
  func.func @transform_6(%arg0: i32) -> (i32, i32) {
    %c0_i32 = arith.constant 0 : i32
    %c0_i32_0 = arith.constant 0 : i32
    %c0_i32_1 = arith.constant 0 : i32
    return %c0_i32, %c0_i32_0 : i32, i32
  }
  func.func @transform_7(%arg0: i32) -> (i32, i32) {
    %c0_i32 = arith.constant 0 : i32
    %c0_i32_0 = arith.constant 0 : i32
    %c0_i32_1 = arith.constant 0 : i32
    return %c0_i32, %c0_i32_0 : i32, i32
  }
  func.func @transform_8(%arg0: i32) -> (i32, i32) {
    %c0_i32 = arith.constant 0 : i32
    %c0_i32_0 = arith.constant 0 : i32
    %c0_i32_1 = arith.constant 0 : i32
    return %c0_i32, %c0_i32_0 : i32, i32
  }
  func.func @transform_9(%arg0: i32) -> (i32, i32) {
    %c0_i32 = arith.constant 0 : i32
    %c0_i32_0 = arith.constant 0 : i32
    return %arg0, %c0_i32 : i32, i32
  }
}

</mosaic_0001>

<llo_original>
// kernel: tpu_custom_call.1
$region0: #{tpu_custom_call.1}
  #allocation0 [shape = 'u32[]', space=smem, size = 0x4, offset = 0x4, fixed_abs, tag = 'smem constant byte address 0x4 - core index']
  #allocation1 [shape = 'u32[144,128]{1,0:T(1,128)}', space=vmem, size = 0x12000, scoped, tag = 'internal scratch']
  %s0 = inlined_call_operand.vmem [shape: f32[512,32], index: 0, kind: input, shape index: {}]
  %s1 = inlined_call_operand.vmem [shape: f32[64,8], index: 1, kind: input, shape index: {}]
  %s2 = inlined_call_operand.vmem [shape: f32[32,96], index: 2, kind: input, shape index: {}]
  %s3 = inlined_call_operand.vmem [shape: f32[1,96], index: 3, kind: input, shape index: {}]
  %s4 = inlined_call_operand.vmem [shape: f32[32,32], index: 4, kind: input, shape index: {}]
  %s5 = inlined_call_operand.vmem [shape: f32[32,128], index: 5, kind: input, shape index: {}]
  %s6 = inlined_call_operand.vmem [shape: f32[1,128], index: 6, kind: input, shape index: {}]
  %s7 = inlined_call_operand.vmem [shape: f32[128,32], index: 7, kind: input, shape index: {}]
  %s8 = inlined_call_operand.vmem [shape: f32[8,32], index: 8, kind: input, shape index: {}]
  %s9 = inlined_call_operand.vmem [shape: f32[64,32], index: 9, kind: output, shape index: {}]
  %s10 = sld [smem:[#allocation0]]
  $region69: #{tpu_custom_call.1} parent=0
    _
  %s12 = ssub.s32 1, %s10
  %s13 = scalar_select 0, %s12, %s10
  loop: start=0, step=1, limit=4
  $region2: #{tpu_custom_call.1} parent=0 // loop_pre_header
    _
  $region3: #{tpu_custom_call.1} parent=0 // loop_header
    %s15 = sphi 0, %s19
    %p16 = scmp.ge.s32.totalorder %s15, 4
    %s25 = sphi 0, %s27
    %s28 = sphi 0, %s25
    %s29 = sphi 0, %s28
    %s45 = sphi 0, %s29
    %s51 = sphi 0, %s53
    %s54 = sphi 0, %s51
    %s55 = sphi 0, %s54
    %s71 = sphi 0, %s55
    %s75 = sphi 0, %s75
    %s77 = sphi 0, %s75
    %s78 = sphi 0, %s77
    %s92 = sphi 0, %s78
    %s96 = sphi 0, %s96
    %s98 = sphi 0, %s96
    %s99 = sphi 0, %s98
    %s113 = sphi 0, %s99
    %s117 = sphi 0, %s117
    %s119 = sphi 0, %s117
    %s120 = sphi 0, %s119
    %s134 = sphi 0, %s120
    %s138 = sphi 0, %s138
    %s140 = sphi 0, %s138
    %s141 = sphi 0, %s140
    %s155 = sphi 0, %s141
    %s159 = sphi 0, %s159
    %s161 = sphi 0, %s159
    %s162 = sphi 0, %s161
    %s176 = sphi 0, %s162
    %s180 = sphi 0, %s180
    %s182 = sphi 0, %s180
    %s183 = sphi 0, %s182
    %s197 = sphi 0, %s183
    %s201 = sphi 0, %s201
    %s203 = sphi 0, %s201
    %s204 = sphi 0, %s203
    %s218 = sphi 0, %s204
    %s224 = sphi 0, %s226
    %s227 = sphi 0, %s224
    %s228 = sphi 0, %s227
    %s244 = sphi 0, %s228
  $region4: #{tpu_custom_call.1} parent=0 // loop_header_branch
    %18 = sbr.rel (%p16) target = $region8
  $region5: #{tpu_custom_call.1} parent=0 // loop_body
    %s20 = ssub.s32 %s15, 1
    %s21 = ssub.s32 %s15, 2
    %s22 = sadd.s32 %s15, 1
    %s23 = ssub.s32 %s15, %s22
    %p24 = scmp.eq.s32.totalorder %s23, 0
    %s26 = sadd.s32 %s25, 1
    %s27 = scalar_select %p24, %s25, %s26
    %p30 = pneg %p24
    %p31 = scmp.eq.s32.totalorder %s15, 1
    %p32 = por %p30, %p31
    %p33 = scmp.ne.s32.totalorder %s25, %s28
    %p34 = scmp.eq.s32.totalorder %s15, 0
    %p35 = por %p33, %p34
    %p36 = scmp.ne.s32.totalorder %s25, %s28
    %p37 = scmp.eq.s32.totalorder %s20, 1
    %p38 = por %p36, %p37
    %p39 = scmp.ne.s32.totalorder %s28, %s29
    %p40 = scmp.eq.s32.totalorder %s20, 0
    %p41 = por %p39, %p40
    %p42 = scmp.ne.s32.totalorder %s28, %s29
    %p43 = scmp.eq.s32.totalorder %s21, 1
    %p44 = por %p42, %p43
    %p46 = scmp.ne.s32.totalorder %s29, %s45
    %p47 = scmp.eq.s32.totalorder %s21, 0
    %p48 = por %p46, %p47
    %s49 = ssub.s32 %s15, %s22
    %p50 = scmp.eq.s32.totalorder %s49, 0
    %s52 = sadd.s32 %s51, 1
    %s53 = scalar_select %p50, %s51, %s52
    %p56 = pneg %p50
    %p57 = scmp.eq.s32.totalorder %s15, 1
    %p58 = por %p56, %p57
    %p59 = scmp.ne.s32.totalorder %s51, %s54
    %p60 = scmp.eq.s32.totalorder %s15, 0
    %p61 = por %p59, %p60
    %p62 = scmp.ne.s32.totalorder %s51, %s54
    %p63 = scmp.eq.s32.totalorder %s20, 1
    %p64 = por %p62, %p63
    %p65 = scmp.ne.s32.totalorder %s54, %s55
    %p66 = scmp.eq.s32.totalorder %s20, 0
    %p67 = por %p65, %p66
    %p68 = scmp.ne.s32.totalorder %s54, %s55
    %p69 = scmp.eq.s32.totalorder %s21, 1
    %p70 = por %p68, %p69
    %p72 = scmp.ne.s32.totalorder %s55, %s71
    %p73 = scmp.eq.s32.totalorder %s21, 0
    %p74 = por %p72, %p73
    %s76 = sadd.s32 %s75, 1
    %p79 = scmp.eq.s32.totalorder %s15, 1
    %p80 = scmp.ne.s32.totalorder %s75, %s77
    %p81 = scmp.eq.s32.totalorder %s15, 0
    %p82 = por %p80, %p81
    %p83 = scmp.ne.s32.totalorder %s75, %s77
    %p84 = scmp.eq.s32.totalorder %s20, 1
    %p85 = por %p83, %p84
    %p86 = scmp.ne.s32.totalorder %s77, %s78
    %p87 = scmp.eq.s32.totalorder %s20, 0
    %p88 = por %p86, %p87
    %p89 = scmp.ne.s32.totalorder %s77, %s78
    %p90 = scmp.eq.s32.totalorder %s21, 1
    %p91 = por %p89, %p90
    %p93 = scmp.ne.s32.totalorder %s78, %s92
    %p94 = scmp.eq.s32.totalorder %s21, 0
    %p95 = por %p93, %p94
    %s97 = sadd.s32 %s96, 1
    %p100 = scmp.eq.s32.totalorder %s15, 1
    %p101 = scmp.ne.s32.totalorder %s96, %s98
    %p102 = scmp.eq.s32.totalorder %s15, 0
    %p103 = por %p101, %p102
    %p104 = scmp.ne.s32.totalorder %s96, %s98
    %p105 = scmp.eq.s32.totalorder %s20, 1
    %p106 = por %p104, %p105
    %p107 = scmp.ne.s32.totalorder %s98, %s99
    %p108 = scmp.eq.s32.totalorder %s20, 0
    %p109 = por %p107, %p108
    %p110 = scmp.ne.s32.totalorder %s98, %s99
    %p111 = scmp.eq.s32.totalorder %s21, 1
    %p112 = por %p110, %p111
    %p114 = scmp.ne.s32.totalorder %s99, %s113
    %p115 = scmp.eq.s32.totalorder %s21, 0
    %p116 = por %p114, %p115
    %s118 = sadd.s32 %s117, 1
    %p121 = scmp.eq.s32.totalorder %s15, 1
    %p122 = scmp.ne.s32.totalorder %s117, %s119
    %p123 = scmp.eq.s32.totalorder %s15, 0
    %p124 = por %p122, %p123
    %p125 = scmp.ne.s32.totalorder %s117, %s119
    %p126 = scmp.eq.s32.totalorder %s20, 1
    %p127 = por %p125, %p126
    %p128 = scmp.ne.s32.totalorder %s119, %s120
    %p129 = scmp.eq.s32.totalorder %s20, 0
    %p130 = por %p128, %p129
    %p131 = scmp.ne.s32.totalorder %s119, %s120
    %p132 = scmp.eq.s32.totalorder %s21, 1
    %p133 = por %p131, %p132
    %p135 = scmp.ne.s32.totalorder %s120, %s134
    %p136 = scmp.eq.s32.totalorder %s21, 0
    %p137 = por %p135, %p136
    %s139 = sadd.s32 %s138, 1
    %p142 = scmp.eq.s32.totalorder %s15, 1
    %p143 = scmp.ne.s32.totalorder %s138, %s140
    %p144 = scmp.eq.s32.totalorder %s15, 0
    %p145 = por %p143, %p144
    %p146 = scmp.ne.s32.totalorder %s138, %s140
    %p147 = scmp.eq.s32.totalorder %s20, 1
    %p148 = por %p146, %p147
    %p149 = scmp.ne.s32.totalorder %s140, %s141
    %p150 = scmp.eq.s32.totalorder %s20, 0
    %p151 = por %p149, %p150
    %p152 = scmp.ne.s32.totalorder %s140, %s141
    %p153 = scmp.eq.s32.totalorder %s21, 1
    %p154 = por %p152, %p153
    %p156 = scmp.ne.s32.totalorder %s141, %s155
    %p157 = scmp.eq.s32.totalorder %s21, 0
    %p158 = por %p156, %p157
    %s160 = sadd.s32 %s159, 1
    %p163 = scmp.eq.s32.totalorder %s15, 1
    %p164 = scmp.ne.s32.totalorder %s159, %s161
    %p165 = scmp.eq.s32.totalorder %s15, 0
    %p166 = por %p164, %p165
    %p167 = scmp.ne.s32.totalorder %s159, %s161
    %p168 = scmp.eq.s32.totalorder %s20, 1
    %p169 = por %p167, %p168
    %p170 = scmp.ne.s32.totalorder %s161, %s162
    %p171 = scmp.eq.s32.totalorder %s20, 0
    %p172 = por %p170, %p171
    %p173 = scmp.ne.s32.totalorder %s161, %s162
    %p174 = scmp.eq.s32.totalorder %s21, 1
    %p175 = por %p173, %p174
    %p177 = scmp.ne.s32.totalorder %s162, %s176
    %p178 = scmp.eq.s32.totalorder %s21, 0
    %p179 = por %p177, %p178
    %s181 = sadd.s32 %s180, 1
    %p184 = scmp.eq.s32.totalorder %s15, 1
    %p185 = scmp.ne.s32.totalorder %s180, %s182
    %p186 = scmp.eq.s32.totalorder %s15, 0
    %p187 = por %p185, %p186
    %p188 = scmp.ne.s32.totalorder %s180, %s182
    %p189 = scmp.eq.s32.totalorder %s20, 1
    %p190 = por %p188, %p189
    %p191 = scmp.ne.s32.totalorder %s182, %s183
    %p192 = scmp.eq.s32.totalorder %s20, 0
    %p193 = por %p191, %p192
    %p194 = scmp.ne.s32.totalorder %s182, %s183
    %p195 = scmp.eq.s32.totalorder %s21, 1
    %p196 = por %p194, %p195
    %p198 = scmp.ne.s32.totalorder %s183, %s197
    %p199 = scmp.eq.s32.totalorder %s21, 0
    %p200 = por %p198, %p199
    %s202 = sadd.s32 %s201, 1
    %p205 = scmp.eq.s32.totalorder %s15, 1
    %p206 = scmp.ne.s32.totalorder %s201, %s203
    %p207 = scmp.eq.s32.totalorder %s15, 0
    %p208 = por %p206, %p207
    %p209 = scmp.ne.s32.totalorder %s201, %s203
    %p210 = scmp.eq.s32.totalorder %s20, 1
    %p211 = por %p209, %p210
    %p212 = scmp.ne.s32.totalorder %s203, %s204
    %p213 = scmp.eq.s32.totalorder %s20, 0
    %p214 = por %p212, %p213
    %p215 = scmp.ne.s32.totalorder %s203, %s204
    %p216 = scmp.eq.s32.totalorder %s21, 1
    %p217 = por %p215, %p216
    %p219 = scmp.ne.s32.totalorder %s204, %s218
    %p220 = scmp.eq.s32.totalorder %s21, 0
    %p221 = por %p219, %p220
    %s222 = ssub.s32 %s15, %s22
    %p223 = scmp.eq.s32.totalorder %s222, 0
    %s225 = sadd.s32 %s224, 1
    %s226 = scalar_select %p223, %s224, %s225
    %p229 = pneg %p223
    %p230 = scmp.eq.s32.totalorder %s15, 1
    %p231 = por %p229, %p230
    %p232 = scmp.ne.s32.totalorder %s224, %s227
    %p233 = scmp.eq.s32.totalorder %s15, 0
    %p234 = por %p232, %p233
    %p235 = scmp.ne.s32.totalorder %s224, %s227
    %p236 = scmp.eq.s32.totalorder %s20, 1
    %p237 = por %p235, %p236
    %p238 = scmp.ne.s32.totalorder %s227, %s228
    %p239 = scmp.eq.s32.totalorder %s20, 0
    %p240 = por %p238, %p239
    %p241 = scmp.ne.s32.totalorder %s227, %s228
    %p242 = scmp.eq.s32.totalorder %s21, 1
    %p243 = por %p241, %p242
    %p245 = scmp.ne.s32.totalorder %s228, %s244
    %p246 = scmp.eq.s32.totalorder %s21, 0
    %p247 = por %p245, %p246
    %p248 = scmp.le.s32.totalorder 1, %s15
    %p249 = scmp.lt.s32.totalorder %s15, 3
    %p250 = pnand %p248, %p249
    %p251 = pneg %p250
    // Predicated region
    $region9: #{tpu_custom_call.1} parent=5 // pred_check
      _
    $region10: #{tpu_custom_call.1} parent=5 // pred_check_branch
      %253 = sbr.rel (%p250) target = $region12
    $region11: #{tpu_custom_call.1} parent=5 // pred_region
      %s254 = ssub.s32 %s15, 1
      // Predicated region
      $region13: #{tpu_custom_call.1} parent=11 // pred_check
        %p255 = pneg %p88
      $region14: #{tpu_custom_call.1} parent=11 // pred_check_branch
        %257 = sbr.rel (%p255) target = $region16
      $region15: #{tpu_custom_call.1} parent=11 // pred_region
        _
      $region16: #{tpu_custom_call.1} parent=11 // pred_fallthru
        _
      // Predicated region
      $region17: #{tpu_custom_call.1} parent=11 // pred_check
        %p258 = pneg %p109
      $region18: #{tpu_custom_call.1} parent=11 // pred_check_branch
        %260 = sbr.rel (%p258) target = $region20
      $region19: #{tpu_custom_call.1} parent=11 // pred_region
        _
      $region20: #{tpu_custom_call.1} parent=11 // pred_fallthru
        _
      // Predicated region
      $region21: #{tpu_custom_call.1} parent=11 // pred_check
        %p261 = pneg %p130
      $region22: #{tpu_custom_call.1} parent=11 // pred_check_branch
        %263 = sbr.rel (%p261) target = $region24
      $region23: #{tpu_custom_call.1} parent=11 // pred_region
        _
      $region24: #{tpu_custom_call.1} parent=11 // pred_fallthru
        _
      // Predicated region
      $region25: #{tpu_custom_call.1} parent=11 // pred_check
        %p264 = pneg %p151
      $region26: #{tpu_custom_call.1} parent=11 // pred_check_branch
        %266 = sbr.rel (%p264) target = $region28
      $region27: #{tpu_custom_call.1} parent=11 // pred_region
        _
      $region28: #{tpu_custom_call.1} parent=11 // pred_fallthru
        _
      // Predicated region
      $region29: #{tpu_custom_call.1} parent=11 // pred_check
        %p267 = pneg %p172
      $region30: #{tpu_custom_call.1} parent=11 // pred_check_branch
        %269 = sbr.rel (%p267) target = $region32
      $region31: #{tpu_custom_call.1} parent=11 // pred_region
        _
      $region32: #{tpu_custom_call.1} parent=11 // pred_fallthru
        _
      // Predicated region
      $region33: #{tpu_custom_call.1} parent=11 // pred_check
        %p270 = pneg %p193
      $region34: #{tpu_custom_call.1} parent=11 // pred_check_branch
        %272 = sbr.rel (%p270) target = $region36
      $region35: #{tpu_custom_call.1} parent=11 // pred_region
        _
      $region36: #{tpu_custom_call.1} parent=11 // pred_fallthru
        _
      // Predicated region
      $region37: #{tpu_custom_call.1} parent=11 // pred_check
        %p273 = pneg %p214
      $region38: #{tpu_custom_call.1} parent=11 // pred_check_branch
        %275 = sbr.rel (%p273) target = $region40
      $region39: #{tpu_custom_call.1} parent=11 // pred_region
        _
      $region40: #{tpu_custom_call.1} parent=11 // pred_fallthru
        _
    $region12: #{tpu_custom_call.1} parent=5 // pred_fallthru
      _
    %p276 = scmp.lt.s32.totalorder %s15, 2
    // Predicated region
    $region41: #{tpu_custom_call.1} parent=5 // pred_check
      %p277 = pneg %p276
    $region42: #{tpu_custom_call.1} parent=5 // pred_check_branch
      %279 = sbr.rel (%p277) target = $region44
    $region43: #{tpu_custom_call.1} parent=5 // pred_region
      // Predicated region
      $region45: #{tpu_custom_call.1} parent=43 // pred_check
        %p280 = pneg %p35
      $region46: #{tpu_custom_call.1} parent=43 // pred_check_branch
        %282 = sbr.rel (%p280) target = $region48
      $region47: #{tpu_custom_call.1} parent=43 // pred_region
        %s283 = smul.u32 32, %s15
        %p284 = scmp.lt.s32.totalorder %s283, 63
        %s285 = scalar_select %p284, %s283, 63
        %s286 = smul.addr %s285, 8
        %s287 = scalar_lea.vmem %s0, %s286
        %s288 = smul.u32 32, %s15
      $region48: #{tpu_custom_call.1} parent=43 // pred_fallthru
        _
      // Predicated region
      $region49: #{tpu_custom_call.1} parent=43 // pred_check
        %p289 = pneg %p61
      $region50: #{tpu_custom_call.1} parent=43 // pred_check_branch
        %291 = sbr.rel (%p289) target = $region52
      $region51: #{tpu_custom_call.1} parent=43 // pred_region
        %s292 = smul.u32 4, %s15
        %p293 = scmp.lt.s32.totalorder %s292, 7
        %s294 = scalar_select %p293, %s292, 7
        %s295 = smul.addr %s294, 8
        %s296 = scalar_lea.vmem %s1, %s295
        %s297 = smul.u32 4, %s15
      $region52: #{tpu_custom_call.1} parent=43 // pred_fallthru
        _
    $region44: #{tpu_custom_call.1} parent=5 // pred_fallthru
      _
    %p298 = scmp.le.s32.totalorder 1, %s15
    %p299 = scmp.lt.s32.totalorder %s15, 3
    %p300 = pnand %p298, %p299
    %p301 = pneg %p300
    // Predicated region
    $region53: #{tpu_custom_call.1} parent=5 // pred_check
      _
    $region54: #{tpu_custom_call.1} parent=5 // pred_check_branch
      %303 = sbr.rel (%p300) target = $region56
    $region55: #{tpu_custom_call.1} parent=5 // pred_region
      %s304 = ssub.s32 %s15, 1
      %s305 = smul.u32 32, %s20
      %p306 = scmp.lt.s32.totalorder %s305, 63
      %s307 = scalar_select %p306, %s305, 63
      %s308 = smul.addr %s307, 8
      %s309 = scalar_lea.vmem %s0, %s308
      %p310 = pneg %p41
      %p311 = pneg %p38
      %s312 = smul.u32 4, %s20
      %p313 = scmp.lt.s32.totalorder %s312, 7
      %s314 = scalar_select %p313, %s312, 7
      %s315 = smul.addr %s314, 8
      %s316 = scalar_lea.vmem %s1, %s315
      %p317 = pneg %p67
      %p318 = pneg %p64
      %p319 = pneg %p88
      %p320 = pneg %p85
      %p321 = pneg %p109
      %p322 = pneg %p106
      %p323 = pneg %p130
      %p324 = pneg %p127
      %p325 = pneg %p151
      %p326 = pneg %p148
      %p327 = pneg %p172
      %p328 = pneg %p169
      %p329 = pneg %p193
      %p330 = pneg %p190
      %p331 = pneg %p214
      %p332 = pneg %p211
      %p333 = pneg %p240
      %p334 = pneg %p237
      %s335 = smul.u32 4, %s20
      %p336 = scmp.lt.s32.totalorder %s335, 7
      %s337 = scalar_select %p336, %s335, 7
      %s338 = smul.addr %s337, 8
      %s339 = scalar_lea.vmem %s9, %s338
      %s340 = smul.u32 32, %s20
      %p341 = scmp.lt.s32.totalorder %s340, 63
      %s342 = scalar_select %p341, %s340, 63
      %s343 = smul.addr %s342, 8
      %s344 = scalar_lea.vmem %s0, %s343
      %s345 = smul.u32 32, %s20
      %s346 = smul.u32 4, %s20
      %p347 = scmp.lt.s32.totalorder %s346, 7
      %s348 = scalar_select %p347, %s346, 7
      %s349 = smul.addr %s348, 8
      %s350 = scalar_lea.vmem %s1, %s349
      %s351 = smul.u32 4, %s20
      %s352 = smul.u32 4, %s20
      %p353 = scmp.lt.s32.totalorder %s352, 7
      %s354 = scalar_select %p353, %s352, 7
      %s355 = smul.addr %s354, 8
      %s356 = scalar_lea.vmem %s9, %s355
      %s357 = smul.u32 4, %s20
      %v358 = vld [vmem:[%s344] sm:$0xff]
      %v359 = vld [vmem:[%s344 + $0x8] sm:$0xff]
      %v360 = vld [vmem:[%s344 + $0x10] sm:$0xff]
      %v361 = vld [vmem:[%s344 + $0x18] sm:$0xff]
      %v362 = vld [vmem:[%s344 + $0x20] sm:$0xff]
      %v363 = vld [vmem:[%s344 + $0x28] sm:$0xff]
      %v364 = vld [vmem:[%s344 + $0x30] sm:$0xff]
      %v365 = vld [vmem:[%s344 + $0x38] sm:$0xff]
      %v366 = vld [vmem:[%s344 + $0x40] sm:$0xff]
      %v367 = vld [vmem:[%s344 + $0x48] sm:$0xff]
      %v368 = vld [vmem:[%s344 + $0x50] sm:$0xff]
      %v369 = vld [vmem:[%s344 + $0x58] sm:$0xff]
      %v370 = vld [vmem:[%s344 + $0x60] sm:$0xff]
      %v371 = vld [vmem:[%s344 + $0x68] sm:$0xff]
      %v372 = vld [vmem:[%s344 + $0x70] sm:$0xff]
      %v373 = vld [vmem:[%s344 + $0x78] sm:$0xff]
      %v374 = vld [vmem:[%s344 + $0x80] sm:$0xff]
      %v375 = vld [vmem:[%s344 + $0x88] sm:$0xff]
      %v376 = vld [vmem:[%s344 + $0x90] sm:$0xff]
      %v377 = vld [vmem:[%s344 + $0x98] sm:$0xff]
      %v378 = vld [vmem:[%s344 + $0xa0] sm:$0xff]
      %v379 = vld [vmem:[%s344 + $0xa8] sm:$0xff]
      %v380 = vld [vmem:[%s344 + $0xb0] sm:$0xff]
      %v381 = vld [vmem:[%s344 + $0xb8] sm:$0xff]
      %v382 = vld [vmem:[%s344 + $0xc0] sm:$0xff]
      %v383 = vld [vmem:[%s344 + $0xc8] sm:$0xff]
      %v384 = vld [vmem:[%s344 + $0xd0] sm:$0xff]
      %v385 = vld [vmem:[%s344 + $0xd8] sm:$0xff]
      %v386 = vld [vmem:[%s344 + $0xe0] sm:$0xff]
      %v387 = vld [vmem:[%s344 + $0xe8] sm:$0xff]
      %v388 = vld [vmem:[%s344 + $0xf0] sm:$0xff]
      %v389 = vld [vmem:[%s344 + $0xf8] sm:$0xff]
      %v390 = vld [vmem:[%s350] sm:$0xff]
      %v391 = vld [vmem:[%s350 + $0x8] sm:$0xff]
      %v392 = vld [vmem:[%s350 + $0x10] sm:$0xff]
      %v393 = vld [vmem:[%s350 + $0x18] sm:$0xff]
      %v394 = vld [vmem:[%s8] sm:$0xff]
      %vm395 = vcmask 261120
      %v396 = vsel %vm395, %v358, 0.0
      %397 = vadd.xlane.f32.xlu0 %v396
      %v398 = vpop.xlane.xlu0 %397
      %v399 = vsel %vm395, %v359, 0.0
      %400 = vadd.xlane.f32.xlu0 %v399
      %v401 = vpop.xlane.xlu0 %400
      %v402 = vsel %vm395, %v360, 0.0
      %403 = vadd.xlane.f32.xlu0 %v402
      %v404 = vpop.xlane.xlu0 %403
      %v405 = vsel %vm395, %v361, 0.0
      %406 = vadd.xlane.f32.xlu0 %v405
      %v407 = vpop.xlane.xlu0 %406
      %v408 = vsel %vm395, %v362, 0.0
      %409 = vadd.xlane.f32.xlu0 %v408
      %v410 = vpop.xlane.xlu0 %409
      %v411 = vsel %vm395, %v363, 0.0
      %412 = vadd.xlane.f32.xlu0 %v411
      %v413 = vpop.xlane.xlu0 %412
      %v414 = vsel %vm395, %v364, 0.0
      %415 = vadd.xlane.f32.xlu0 %v414
      %v416 = vpop.xlane.xlu0 %415
      %v417 = vsel %vm395, %v365, 0.0
      %418 = vadd.xlane.f32.xlu0 %v417
      %v419 = vpop.xlane.xlu0 %418
      %v420 = vsel %vm395, %v366, 0.0
      %421 = vadd.xlane.f32.xlu0 %v420
      %v422 = vpop.xlane.xlu0 %421
      %v423 = vsel %vm395, %v367, 0.0
      %424 = vadd.xlane.f32.xlu0 %v423
      %v425 = vpop.xlane.xlu0 %424
      %v426 = vsel %vm395, %v368, 0.0
      %427 = vadd.xlane.f32.xlu0 %v426
      %v428 = vpop.xlane.xlu0 %427
      %v429 = vsel %vm395, %v369, 0.0
      %430 = vadd.xlane.f32.xlu0 %v429
      %v431 = vpop.xlane.xlu0 %430
      %v432 = vsel %vm395, %v370, 0.0
      %433 = vadd.xlane.f32.xlu0 %v432
      %v434 = vpop.xlane.xlu0 %433
      %v435 = vsel %vm395, %v371, 0.0
      %436 = vadd.xlane.f32.xlu0 %v435
      %v437 = vpop.xlane.xlu0 %436
      %v438 = vsel %vm395, %v372, 0.0
      %439 = vadd.xlane.f32.xlu0 %v438
      %v440 = vpop.xlane.xlu0 %439
      %v441 = vsel %vm395, %v373, 0.0
      %442 = vadd.xlane.f32.xlu0 %v441
      %v443 = vpop.xlane.xlu0 %442
      %v444 = vsel %vm395, %v374, 0.0
      %445 = vadd.xlane.f32.xlu0 %v444
      %v446 = vpop.xlane.xlu0 %445
      %v447 = vsel %vm395, %v375, 0.0
      %448 = vadd.xlane.f32.xlu0 %v447
      %v449 = vpop.xlane.xlu0 %448
      %v450 = vsel %vm395, %v376, 0.0
      %451 = vadd.xlane.f32.xlu0 %v450
      %v452 = vpop.xlane.xlu0 %451
      %v453 = vsel %vm395, %v377, 0.0
      %454 = vadd.xlane.f32.xlu0 %v453
      %v455 = vpop.xlane.xlu0 %454
      %v456 = vsel %vm395, %v378, 0.0
      %457 = vadd.xlane.f32.xlu0 %v456
      %v458 = vpop.xlane.xlu0 %457
      %v459 = vsel %vm395, %v379, 0.0
      %460 = vadd.xlane.f32.xlu0 %v459
      %v461 = vpop.xlane.xlu0 %460
      %v462 = vsel %vm395, %v380, 0.0
      %463 = vadd.xlane.f32.xlu0 %v462
      %v464 = vpop.xlane.xlu0 %463
      %v465 = vsel %vm395, %v381, 0.0
      %466 = vadd.xlane.f32.xlu0 %v465
      %v467 = vpop.xlane.xlu0 %466
      %v468 = vsel %vm395, %v382, 0.0
      %469 = vadd.xlane.f32.xlu0 %v468
      %v470 = vpop.xlane.xlu0 %469
      %v471 = vsel %vm395, %v383, 0.0
      %472 = vadd.xlane.f32.xlu0 %v471
      %v473 = vpop.xlane.xlu0 %472
      %v474 = vsel %vm395, %v384, 0.0
      %475 = vadd.xlane.f32.xlu0 %v474
      %v476 = vpop.xlane.xlu0 %475
      %v477 = vsel %vm395, %v385, 0.0
      %478 = vadd.xlane.f32.xlu0 %v477
      %v479 = vpop.xlane.xlu0 %478
      %v480 = vsel %vm395, %v386, 0.0
      %481 = vadd.xlane.f32.xlu0 %v480
      %v482 = vpop.xlane.xlu0 %481
      %v483 = vsel %vm395, %v387, 0.0
      %484 = vadd.xlane.f32.xlu0 %v483
      %v485 = vpop.xlane.xlu0 %484
      %v486 = vsel %vm395, %v388, 0.0
      %487 = vadd.xlane.f32.xlu0 %v486
      %v488 = vpop.xlane.xlu0 %487
      %v489 = vsel %vm395, %v389, 0.0
      %490 = vadd.xlane.f32.xlu0 %v489
      %v491 = vpop.xlane.xlu0 %490
      %v492 = vrcp.pop 32.0
      %v493 = vmul.f32 %v398, %v492
      %v494 = vmul.f32 %v401, %v492
      %v495 = vmul.f32 %v404, %v492
      %v496 = vmul.f32 %v407, %v492
      %v497 = vmul.f32 %v410, %v492
      %v498 = vmul.f32 %v413, %v492
      %v499 = vmul.f32 %v416, %v492
      %v500 = vmul.f32 %v419, %v492
      %v501 = vmul.f32 %v422, %v492
      %v502 = vmul.f32 %v425, %v492
      %v503 = vmul.f32 %v428, %v492
      %v504 = vmul.f32 %v431, %v492
      %v505 = vmul.f32 %v434, %v492
      %v506 = vmul.f32 %v437, %v492
      %v507 = vmul.f32 %v440, %v492
      %v508 = vmul.f32 %v443, %v492
      %v509 = vmul.f32 %v446, %v492
      %v510 = vmul.f32 %v449, %v492
      %v511 = vmul.f32 %v452, %v492
      %v512 = vmul.f32 %v455, %v492
      %v513 = vmul.f32 %v458, %v492
      %v514 = vmul.f32 %v461, %v492
      %v515 = vmul.f32 %v464, %v492
      %v516 = vmul.f32 %v467, %v492
      %v517 = vmul.f32 %v470, %v492
      %v518 = vmul.f32 %v473, %v492
      %v519 = vmul.f32 %v476, %v492
      %v520 = vmul.f32 %v479, %v492
      %v521 = vmul.f32 %v482, %v492
      %v522 = vmul.f32 %v485, %v492
      %v523 = vmul.f32 %v488, %v492
      %v524 = vmul.f32 %v491, %v492
      %v525 = vsub.f32 %v358, %v493
      %v526 = vsub.f32 %v359, %v494
      %v527 = vsub.f32 %v360, %v495
      %v528 = vsub.f32 %v361, %v496
      %v529 = vsub.f32 %v362, %v497
      %v530 = vsub.f32 %v363, %v498
      %v531 = vsub.f32 %v364, %v499
      %v532 = vsub.f32 %v365, %v500
      %v533 = vsub.f32 %v366, %v501
      %v534 = vsub.f32 %v367, %v502
      %v535 = vsub.f32 %v368, %v503
      %v536 = vsub.f32 %v369, %v504
      %v537 = vsub.f32 %v370, %v505
      %v538 = vsub.f32 %v371, %v506
      %v539 = vsub.f32 %v372, %v507
      %v540 = vsub.f32 %v373, %v508
      %v541 = vsub.f32 %v374, %v509
      %v542 = vsub.f32 %v375, %v510
      %v543 = vsub.f32 %v376, %v511
      %v544 = vsub.f32 %v377, %v512
      %v545 = vsub.f32 %v378, %v513
      %v546 = vsub.f32 %v379, %v514
      %v547 = vsub.f32 %v380, %v515
      %v548 = vsub.f32 %v381, %v516
      %v549 = vsub.f32 %v382, %v517
      %v550 = vsub.f32 %v383, %v518
      %v551 = vsub.f32 %v384, %v519
      %v552 = vsub.f32 %v385, %v520
      %v553 = vsub.f32 %v386, %v521
      %v554 = vsub.f32 %v387, %v522
      %v555 = vsub.f32 %v388, %v523
      %v556 = vsub.f32 %v389, %v524
      %v557 = vmul.f32 %v525, %v525
      %v558 = vmul.f32 %v526, %v526
      %v559 = vmul.f32 %v527, %v527
      %v560 = vmul.f32 %v528, %v528
      %v561 = vmul.f32 %v529, %v529
      %v562 = vmul.f32 %v530, %v530
      %v563 = vmul.f32 %v531, %v531
      %v564 = vmul.f32 %v532, %v532
      %v565 = vmul.f32 %v533, %v533
      %v566 = vmul.f32 %v534, %v534
      %v567 = vmul.f32 %v535, %v535
      %v568 = vmul.f32 %v536, %v536
      %v569 = vmul.f32 %v537, %v537
      %v570 = vmul.f32 %v538, %v538
      %v571 = vmul.f32 %v539, %v539
      %v572 = vmul.f32 %v540, %v540
      %v573 = vmul.f32 %v541, %v541
      %v574 = vmul.f32 %v542, %v542
      %v575 = vmul.f32 %v543, %v543
      %v576 = vmul.f32 %v544, %v544
      %v577 = vmul.f32 %v545, %v545
      %v578 = vmul.f32 %v546, %v546
      %v579 = vmul.f32 %v547, %v547
      %v580 = vmul.f32 %v548, %v548
      %v581 = vmul.f32 %v549, %v549
      %v582 = vmul.f32 %v550, %v550
      %v583 = vmul.f32 %v551, %v551
      %v584 = vmul.f32 %v552, %v552
      %v585 = vmul.f32 %v553, %v553
      %v586 = vmul.f32 %v554, %v554
      %v587 = vmul.f32 %v555, %v555
      %v588 = vmul.f32 %v556, %v556
      %v589 = vsel %vm395, %v557, 0.0
      %590 = vadd.xlane.f32.xlu0 %v589
      %v591 = vpop.xlane.xlu0 %590
      %v592 = vsel %vm395, %v558, 0.0
      %593 = vadd.xlane.f32.xlu0 %v592
      %v594 = vpop.xlane.xlu0 %593
      %v595 = vsel %vm395, %v559, 0.0
      %596 = vadd.xlane.f32.xlu0 %v595
      %v597 = vpop.xlane.xlu0 %596
      %v598 = vsel %vm395, %v560, 0.0
      %599 = vadd.xlane.f32.xlu0 %v598
      %v600 = vpop.xlane.xlu0 %599
      %v601 = vsel %vm395, %v561, 0.0
      %602 = vadd.xlane.f32.xlu0 %v601
      %v603 = vpop.xlane.xlu0 %602
      %v604 = vsel %vm395, %v562, 0.0
      %605 = vadd.xlane.f32.xlu0 %v604
      %v606 = vpop.xlane.xlu0 %605
      %v607 = vsel %vm395, %v563, 0.0
      %608 = vadd.xlane.f32.xlu0 %v607
      %v609 = vpop.xlane.xlu0 %608
      %v610 = vsel %vm395, %v564, 0.0
      %611 = vadd.xlane.f32.xlu0 %v610
      %v612 = vpop.xlane.xlu0 %611
      %v613 = vsel %vm395, %v565, 0.0
      %614 = vadd.xlane.f32.xlu0 %v613
      %v615 = vpop.xlane.xlu0 %614
      %v616 = vsel %vm395, %v566, 0.0
      %617 = vadd.xlane.f32.xlu0 %v616
      %v618 = vpop.xlane.xlu0 %617
      %v619 = vsel %vm395, %v567, 0.0
      %620 = vadd.xlane.f32.xlu0 %v619
      %v621 = vpop.xlane.xlu0 %620
      %v622 = vsel %vm395, %v568, 0.0
      %623 = vadd.xlane.f32.xlu0 %v622
      %v624 = vpop.xlane.xlu0 %623
      %v625 = vsel %vm395, %v569, 0.0
      %626 = vadd.xlane.f32.xlu0 %v625
      %v627 = vpop.xlane.xlu0 %626
      %v628 = vsel %vm395, %v570, 0.0
      %629 = vadd.xlane.f32.xlu0 %v628
      %v630 = vpop.xlane.xlu0 %629
      %v631 = vsel %vm395, %v571, 0.0
      %632 = vadd.xlane.f32.xlu0 %v631
      %v633 = vpop.xlane.xlu0 %632
      %v634 = vsel %vm395, %v572, 0.0
      %635 = vadd.xlane.f32.xlu0 %v634
      %v636 = vpop.xlane.xlu0 %635
      %v637 = vsel %vm395, %v573, 0.0
      %638 = vadd.xlane.f32.xlu0 %v637
      %v639 = vpop.xlane.xlu0 %638
      %v640 = vsel %vm395, %v574, 0.0
      %641 = vadd.xlane.f32.xlu0 %v640
      %v642 = vpop.xlane.xlu0 %641
      %v643 = vsel %vm395, %v575, 0.0
      %644 = vadd.xlane.f32.xlu0 %v643
      %v645 = vpop.xlane.xlu0 %644
      %v646 = vsel %vm395, %v576, 0.0
      %647 = vadd.xlane.f32.xlu0 %v646
      %v648 = vpop.xlane.xlu0 %647
      %v649 = vsel %vm395, %v577, 0.0
      %650 = vadd.xlane.f32.xlu0 %v649
      %v651 = vpop.xlane.xlu0 %650
      %v652 = vsel %vm395, %v578, 0.0
      %653 = vadd.xlane.f32.xlu0 %v652
      %v654 = vpop.xlane.xlu0 %653
      %v655 = vsel %vm395, %v579, 0.0
      %656 = vadd.xlane.f32.xlu0 %v655
      %v657 = vpop.xlane.xlu0 %656
      %v658 = vsel %vm395, %v580, 0.0
      %659 = vadd.xlane.f32.xlu0 %v658
      %v660 = vpop.xlane.xlu0 %659
      %v661 = vsel %vm395, %v581, 0.0
      %662 = vadd.xlane.f32.xlu0 %v661
      %v663 = vpop.xlane.xlu0 %662
      %v664 = vsel %vm395, %v582, 0.0
      %665 = vadd.xlane.f32.xlu0 %v664
      %v666 = vpop.xlane.xlu0 %665
      %v667 = vsel %vm395, %v583, 0.0
      %668 = vadd.xlane.f32.xlu0 %v667
      %v669 = vpop.xlane.xlu0 %668
      %v670 = vsel %vm395, %v584, 0.0
      %671 = vadd.xlane.f32.xlu0 %v670
      %v672 = vpop.xlane.xlu0 %671
      %v673 = vsel %vm395, %v585, 0.0
      %674 = vadd.xlane.f32.xlu0 %v673
      %v675 = vpop.xlane.xlu0 %674
      %v676 = vsel %vm395, %v586, 0.0
      %677 = vadd.xlane.f32.xlu0 %v676
      %v678 = vpop.xlane.xlu0 %677
      %v679 = vsel %vm395, %v587, 0.0
      %680 = vadd.xlane.f32.xlu0 %v679
      %v681 = vpop.xlane.xlu0 %680
      %v682 = vsel %vm395, %v588, 0.0
      %683 = vadd.xlane.f32.xlu0 %v682
      %v684 = vpop.xlane.xlu0 %683
      %v685 = vmul.f32 %v591, %v492
      %v686 = vmul.f32 %v594, %v492
      %v687 = vmul.f32 %v597, %v492
      %v688 = vmul.f32 %v600, %v492
      %v689 = vmul.f32 %v603, %v492
      %v690 = vmul.f32 %v606, %v492
      %v691 = vmul.f32 %v609, %v492
      %v692 = vmul.f32 %v612, %v492
      %v693 = vmul.f32 %v615, %v492
      %v694 = vmul.f32 %v618, %v492
      %v695 = vmul.f32 %v621, %v492
      %v696 = vmul.f32 %v624, %v492
      %v697 = vmul.f32 %v627, %v492
      %v698 = vmul.f32 %v630, %v492
      %v699 = vmul.f32 %v633, %v492
      %v700 = vmul.f32 %v636, %v492
      %v701 = vmul.f32 %v639, %v492
      %v702 = vmul.f32 %v642, %v492
      %v703 = vmul.f32 %v645, %v492
      %v704 = vmul.f32 %v648, %v492
      %v705 = vmul.f32 %v651, %v492
      %v706 = vmul.f32 %v654, %v492
      %v707 = vmul.f32 %v657, %v492
      %v708 = vmul.f32 %v660, %v492
      %v709 = vmul.f32 %v663, %v492
      %v710 = vmul.f32 %v666, %v492
      %v711 = vmul.f32 %v669, %v492
      %v712 = vmul.f32 %v672, %v492
      %v713 = vmul.f32 %v675, %v492
      %v714 = vmul.f32 %v678, %v492
      %v715 = vmul.f32 %v681, %v492
      %v716 = vmul.f32 %v684, %v492
      %v717 = vadd.f32 %v685, 1e-12
      %v718 = vadd.f32 %v686, 1e-12
      %v719 = vadd.f32 %v687, 1e-12
      %v720 = vadd.f32 %v688, 1e-12
      %v721 = vadd.f32 %v689, 1e-12
      %v722 = vadd.f32 %v690, 1e-12
      %v723 = vadd.f32 %v691, 1e-12
      %v724 = vadd.f32 %v692, 1e-12
      %v725 = vadd.f32 %v693, 1e-12
      %v726 = vadd.f32 %v694, 1e-12
      %v727 = vadd.f32 %v695, 1e-12
      %v728 = vadd.f32 %v696, 1e-12
      %v729 = vadd.f32 %v697, 1e-12
      %v730 = vadd.f32 %v698, 1e-12
      %v731 = vadd.f32 %v699, 1e-12
      %v732 = vadd.f32 %v700, 1e-12
      %v733 = vadd.f32 %v701, 1e-12
      %v734 = vadd.f32 %v702, 1e-12
      %v735 = vadd.f32 %v703, 1e-12
      %v736 = vadd.f32 %v704, 1e-12
      %v737 = vadd.f32 %v705, 1e-12
      %v738 = vadd.f32 %v706, 1e-12
      %v739 = vadd.f32 %v707, 1e-12
      %v740 = vadd.f32 %v708, 1e-12
      %v741 = vadd.f32 %v709, 1e-12
      %v742 = vadd.f32 %v710, 1e-12
      %v743 = vadd.f32 %v711, 1e-12
      %v744 = vadd.f32 %v712, 1e-12
      %v745 = vadd.f32 %v713, 1e-12
      %v746 = vadd.f32 %v714, 1e-12
      %v747 = vadd.f32 %v715, 1e-12
      %v748 = vadd.f32 %v716, 1e-12
      %v749 = vrsqrt.pop %v717
      %v750 = vrsqrt.pop %v718
      %v751 = vrsqrt.pop %v719
      %v752 = vrsqrt.pop %v720
      %v753 = vrsqrt.pop %v721
      %v754 = vrsqrt.pop %v722
      %v755 = vrsqrt.pop %v723
      %v756 = vrsqrt.pop %v724
      %v757 = vrsqrt.pop %v725
      %v758 = vrsqrt.pop %v726
      %v759 = vrsqrt.pop %v727
      %v760 = vrsqrt.pop %v728
      %v761 = vrsqrt.pop %v729
      %v762 = vrsqrt.pop %v730
      %v763 = vrsqrt.pop %v731
      %v764 = vrsqrt.pop %v732
      %v765 = vrsqrt.pop %v733
      %v766 = vrsqrt.pop %v734
      %v767 = vrsqrt.pop %v735
      %v768 = vrsqrt.pop %v736
      %v769 = vrsqrt.pop %v737
      %v770 = vrsqrt.pop %v738
      %v771 = vrsqrt.pop %v739
      %v772 = vrsqrt.pop %v740
      %v773 = vrsqrt.pop %v741
      %v774 = vrsqrt.pop %v742
      %v775 = vrsqrt.pop %v743
      %v776 = vrsqrt.pop %v744
      %v777 = vrsqrt.pop %v745
      %v778 = vrsqrt.pop %v746
      %v779 = vrsqrt.pop %v747
      %v780 = vrsqrt.pop %v748
      %v781 = vmul.f32 %v525, %v749
      %v782 = vmul.f32 %v526, %v750
      %v783 = vmul.f32 %v527, %v751
      %v784 = vmul.f32 %v528, %v752
      %v785 = vmul.f32 %v529, %v753
      %v786 = vmul.f32 %v530, %v754
      %v787 = vmul.f32 %v531, %v755
      %v788 = vmul.f32 %v532, %v756
      %v789 = vmul.f32 %v533, %v757
      %v790 = vmul.f32 %v534, %v758
      %v791 = vmul.f32 %v535, %v759
      %v792 = vmul.f32 %v536, %v760
      %v793 = vmul.f32 %v537, %v761
      %v794 = vmul.f32 %v538, %v762
      %v795 = vmul.f32 %v539, %v763
      %v796 = vmul.f32 %v540, %v764
      %v797 = vmul.f32 %v541, %v765
      %v798 = vmul.f32 %v542, %v766
      %v799 = vmul.f32 %v543, %v767
      %v800 = vmul.f32 %v544, %v768
      %v801 = vmul.f32 %v545, %v769
      %v802 = vmul.f32 %v546, %v770
      %v803 = vmul.f32 %v547, %v771
      %v804 = vmul.f32 %v548, %v772
      %v805 = vmul.f32 %v549, %v773
      %v806 = vmul.f32 %v550, %v774
      %v807 = vmul.f32 %v551, %v775
      %v808 = vmul.f32 %v552, %v776
      %v809 = vmul.f32 %v553, %v777
      %v810 = vmul.f32 %v554, %v778
      %v811 = vmul.f32 %v555, %v779
      %v812 = vmul.f32 %v556, %v780
      %v813 = vlaneseq
      %v814 = vshrl.u32 %v813, 7
      %v815 = vsub.s32 0, %v814
      %v816 = vrot.slane %v394, %v815
      %v817 = vmul.f32 %v781, %v816
      %v818 = vmul.f32 %v782, %v816
      %v819 = vmul.f32 %v783, %v816
      %v820 = vmul.f32 %v784, %v816
      %v821 = vmul.f32 %v785, %v816
      %v822 = vmul.f32 %v786, %v816
      %v823 = vmul.f32 %v787, %v816
      %v824 = vmul.f32 %v788, %v816
      %v825 = vmul.f32 %v789, %v816
      %v826 = vmul.f32 %v790, %v816
      %v827 = vmul.f32 %v791, %v816
      %v828 = vmul.f32 %v792, %v816
      %v829 = vmul.f32 %v793, %v816
      %v830 = vmul.f32 %v794, %v816
      %v831 = vmul.f32 %v795, %v816
      %v832 = vmul.f32 %v796, %v816
      %v833 = vmul.f32 %v797, %v816
      %v834 = vmul.f32 %v798, %v816
      %v835 = vmul.f32 %v799, %v816
      %v836 = vmul.f32 %v800, %v816
      %v837 = vmul.f32 %v801, %v816
      %v838 = vmul.f32 %v802, %v816
      %v839 = vmul.f32 %v803, %v816
      %v840 = vmul.f32 %v804, %v816
      %v841 = vmul.f32 %v805, %v816
      %v842 = vmul.f32 %v806, %v816
      %v843 = vmul.f32 %v807, %v816
      %v844 = vmul.f32 %v808, %v816
      %v845 = vmul.f32 %v809, %v816
      %v846 = vmul.f32 %v810, %v816
      %v847 = vmul.f32 %v811, %v816
      %v848 = vmul.f32 %v812, %v816
      %v849 = vlaneseq
      %v850 = vshrl.u32 %v849, 7
      %v851 = vsub.s32 1, %v850
      %v852 = vrot.slane %v394, %v851
      %v853 = vadd.f32 %v817, %v852
      %v854 = vadd.f32 %v818, %v852
      %v855 = vadd.f32 %v819, %v852
      %v856 = vadd.f32 %v820, %v852
      %v857 = vadd.f32 %v821, %v852
      %v858 = vadd.f32 %v822, %v852
      %v859 = vadd.f32 %v823, %v852
      %v860 = vadd.f32 %v824, %v852
      %v861 = vadd.f32 %v825, %v852
      %v862 = vadd.f32 %v826, %v852
      %v863 = vadd.f32 %v827, %v852
      %v864 = vadd.f32 %v828, %v852
      %v865 = vadd.f32 %v829, %v852
      %v866 = vadd.f32 %v830, %v852
      %v867 = vadd.f32 %v831, %v852
      %v868 = vadd.f32 %v832, %v852
      %v869 = vadd.f32 %v833, %v852
      %v870 = vadd.f32 %v834, %v852
      %v871 = vadd.f32 %v835, %v852
      %v872 = vadd.f32 %v836, %v852
      %v873 = vadd.f32 %v837, %v852
      %v874 = vadd.f32 %v838, %v852
      %v875 = vadd.f32 %v839, %v852
      %v876 = vadd.f32 %v840, %v852
      %v877 = vadd.f32 %v841, %v852
      %v878 = vadd.f32 %v842, %v852
      %v879 = vadd.f32 %v843, %v852
      %v880 = vadd.f32 %v844, %v852
      %v881 = vadd.f32 %v845, %v852
      %v882 = vadd.f32 %v846, %v852
      %v883 = vadd.f32 %v847, %v852
      %v884 = vadd.f32 %v848, %v852
      %v885 = vld [vmem:[%s2] sm:$0xff]
      %v886 = vld [vmem:[%s2 + $0x8] sm:$0xff]
      %v887 = vld [vmem:[%s2 + $0x10] sm:$0xff]
      %v888 = vld [vmem:[%s2 + $0x18] sm:$0xff]
      %v889 = vld [vmem:[%s3] sm:$0x1]
      %v891 = vlaneseq
      %v892 = vshrl.u32 %v891, 7
      %v893 = vsub.s32 0, %v892
      %v894 = vrot.slane %v889, %v893
      %v897 = vsel %vm395, %v853, 0
      %v900 = vsel %vm395, %v854, 0
      %v903 = vsel %vm395, %v855, 0
      %v906 = vsel %vm395, %v856, 0
      %v909 = vsel %vm395, %v857, 0
      %v912 = vsel %vm395, %v858, 0
      %v915 = vsel %vm395, %v859, 0
      %v918 = vsel %vm395, %v860, 0
      %v921 = vsel %vm395, %v861, 0
      %v924 = vsel %vm395, %v862, 0
      %v927 = vsel %vm395, %v863, 0
      %v930 = vsel %vm395, %v864, 0
      %v933 = vsel %vm395, %v865, 0
      %v936 = vsel %vm395, %v866, 0
      %v939 = vsel %vm395, %v867, 0
      %v942 = vsel %vm395, %v868, 0
      %v945 = vsel %vm395, %v869, 0
      %v948 = vsel %vm395, %v870, 0
      %v951 = vsel %vm395, %v871, 0
      %v954 = vsel %vm395, %v872, 0
      %v957 = vsel %vm395, %v873, 0
      %v960 = vsel %vm395, %v874, 0
      %v963 = vsel %vm395, %v875, 0
      %v966 = vsel %vm395, %v876, 0
      %v969 = vsel %vm395, %v877, 0
      %v972 = vsel %vm395, %v878, 0
      %v975 = vsel %vm395, %v879, 0
      %v978 = vsel %vm395, %v880, 0
      %v981 = vsel %vm395, %v881, 0
      %v984 = vsel %vm395, %v882, 0
      %v987 = vsel %vm395, %v883, 0
      %v990 = vsel %vm395, %v884, 0
      %992 = vmatprep.subr.mxu0 0.0
      %993 = vmatpush1.msra.mxu0 %v885
      %994 = vmatprep.subr.mxu0 0.0
      %995 = vmatpush1.msra.mxu0 %v886
      %996 = vmatprep.subr.mxu0 0.0
      %997 = vmatpush1.msra.mxu0 %v887
      %998 = vmatprep.subr.mxu0 0.0
      %999 = vmatpush1.msra.mxu0 %v888
      %1000 = vmatprep.subr.mxu0 0.0
      %1001 = vmatpush1.msra.mxu0 0.0
      %1002 = vmatprep.subr.mxu0 0.0
      %1003 = vmatpush1.msra.mxu0 0.0
      %1004 = vmatprep.subr.mxu0 0.0
      %1005 = vmatpush1.msra.mxu0 0.0
      %1006 = vmatprep.subr.mxu0 0.0
      %1007 = vmatpush1.msra.mxu0 0.0
      %1008 = vmatprep.subr.mxu0 0.0
      %1009 = vmatpush1.msra.mxu0 0.0
      %1010 = vmatprep.subr.mxu0 0.0
      %1011 = vmatpush1.msra.mxu0 0.0
      %1012 = vmatprep.subr.mxu0 0.0
      %1013 = vmatpush1.msra.mxu0 0.0
      %1014 = vmatprep.subr.mxu0 0.0
      %1015 = vmatpush1.msra.mxu0 0.0
      %1016 = vmatprep.subr.mxu0 0.0
      %1017 = vmatpush1.msra.mxu0 0.0
      %1018 = vmatprep.subr.mxu0 0.0
      %1019 = vmatpush1.msra.mxu0 0.0
      %1020 = vmatprep.subr.mxu0 0.0
      %1021 = vmatpush1.msra.mxu0 0.0
      %1022 = vmatprep.subr.mxu0 0.0
      %1023 = vmatpush1.msra.mxu0 0.0
      %1024 = vmatprep.subr.mxu0 0.0
      %1025 = vmatpush1.msra.mxu0 0.0
      %1026 = vmatprep.subr.mxu0 0.0
      %1027 = vmatpush1.msra.mxu0 0.0
      %1028 = vmatprep.subr.mxu0 0.0
      %1029 = vmatpush1.msra.mxu0 0.0
      %1030 = vmatprep.subr.mxu0 0.0
      %1031 = vmatpush1.msra.mxu0 0.0
      %1032 = vmatprep.subr.mxu0 0.0
      %1033 = vmatpush1.msra.mxu0 0.0
      %1034 = vmatprep.subr.mxu0 0.0
      %1035 = vmatpush1.msra.mxu0 0.0
      %1036 = vmatprep.subr.mxu0 0.0
      %1037 = vmatpush1.msra.mxu0 0.0
      %1038 = vmatprep.subr.mxu0 0.0
      %1039 = vmatpush1.msra.mxu0 0.0
      %1040 = vmatprep.subr.mxu0 0.0
      %1041 = vmatpush1.msra.mxu0 0.0
      %1042 = vmatprep.subr.mxu0 0.0
      %1043 = vmatpush1.msra.mxu0 0.0
      %1044 = vmatprep.subr.mxu0 0.0
      %1045 = vmatpush1.msra.mxu0 0.0
      %1046 = vmatprep.subr.mxu0 0.0
      %1047 = vmatpush1.msra.mxu0 0.0
      %1048 = vmatprep.subr.mxu0 0.0
      %1049 = vmatpush1.msra.mxu0 0.0
      %1050 = vmatprep.subr.mxu0 0.0
      %1051 = vmatpush1.msra.mxu0 0.0
      %1052 = vmatprep.subr.mxu0 0.0
      %1053 = vmatpush1.msra.mxu0 0.0
      %1054 = vmatprep.subr.mxu0 0.0
      %1055 = vmatpush1.msra.mxu0 0.0
      %1056 = vmatprep.mubr.f32.mxu0 0.0
      %1057 = vmatmul.mubr.f32.gmra.mrb[0].mxu0 %v897
      %v1058 = vpop.f32.mrb[0].mxu0
      %v1059 = vadd.f32 %v894, %v1058
      %v1060 = vpop.f32.mrb[0].mxu0
      %1061 = vmatprep.mubr.f32.mxu0 0.0
      %1062 = vmatmul.mubr.f32.gmra.mrb[0].mxu0 %v900
      %v1063 = vpop.f32.mrb[0].mxu0
      %v1064 = vadd.f32 %v894, %v1063
      %v1065 = vpop.f32.mrb[0].mxu0
      %1066 = vmatprep.mubr.f32.mxu0 0.0
      %1067 = vmatmul.mubr.f32.gmra.mrb[0].mxu0 %v903
      %v1068 = vpop.f32.mrb[0].mxu0
      %v1069 = vadd.f32 %v894, %v1068
      %v1070 = vpop.f32.mrb[0].mxu0
      %1071 = vmatprep.mubr.f32.mxu0 0.0
      %1072 = vmatmul.mubr.f32.gmra.mrb[0].mxu0 %v906
      %v1073 = vpop.f32.mrb[0].mxu0
      %v1074 = vadd.f32 %v894, %v1073
      %v1075 = vpop.f32.mrb[0].mxu0
      %1076 = vmatprep.mubr.f32.mxu0 0.0
      %1077 = vmatmul.mubr.f32.gmra.mrb[0].mxu0 %v909
      %v1078 = vpop.f32.mrb[0].mxu0
      %v1079 = vadd.f32 %v894, %v1078
      %v1080 = vpop.f32.mrb[0].mxu0
      %1081 = vmatprep.mubr.f32.mxu0 0.0
      %1082 = vmatmul.mubr.f32.gmra.mrb[0].mxu0 %v912
      %v1083 = vpop.f32.mrb[0].mxu0
      %v1084 = vadd.f32 %v894, %v1083
      %v1085 = vpop.f32.mrb[0].mxu0
      %1086 = vmatprep.mubr.f32.mxu0 0.0
      %1087 = vmatmul.mubr.f32.gmra.mrb[0].mxu0 %v915
      %v1088 = vpop.f32.mrb[0].mxu0
      %v1089 = vadd.f32 %v894, %v1088
      %v1090 = vpop.f32.mrb[0].mxu0
      %1091 = vmatprep.mubr.f32.mxu0 0.0
      %1092 = vmatmul.mubr.f32.gmra.mrb[0].mxu0 %v918
      %v1093 = vpop.f32.mrb[0].mxu0
      %v1094 = vadd.f32 %v894, %v1093
      %v1095 = vpop.f32.mrb[0].mxu0
      %1096 = vmatprep.mubr.f32.mxu0 0.0
      %1097 = vmatmul.mubr.f32.gmra.mrb[0].mxu0 %v921
      %v1098 = vpop.f32.mrb[0].mxu0
      %v1099 = vadd.f32 %v894, %v1098
      %v1100 = vpop.f32.mrb[0].mxu0
      %1101 = vmatprep.mubr.f32.mxu0 0.0
      %1102 = vmatmul.mubr.f32.gmra.mrb[0].mxu0 %v924
      %v1103 = vpop.f32.mrb[0].mxu0
      %v1104 = vadd.f32 %v894, %v1103
      %v1105 = vpop.f32.mrb[0].mxu0
      %1106 = vmatprep.mubr.f32.mxu0 0.0
      %1107 = vmatmul.mubr.f32.gmra.mrb[0].mxu0 %v927
      %v1108 = vpop.f32.mrb[0].mxu0
      %v1109 = vadd.f32 %v894, %v1108
      %v1110 = vpop.f32.mrb[0].mxu0
      %1111 = vmatprep.mubr.f32.mxu0 0.0
      %1112 = vmatmul.mubr.f32.gmra.mrb[0].mxu0 %v930
      %v1113 = vpop.f32.mrb[0].mxu0
      %v1114 = vadd.f32 %v894, %v1113
      %v1115 = vpop.f32.mrb[0].mxu0
      %1116 = vmatprep.mubr.f32.mxu0 0.0
      %1117 = vmatmul.mubr.f32.gmra.mrb[0].mxu0 %v933
      %v1118 = vpop.f32.mrb[0].mxu0
      %v1119 = vadd.f32 %v894, %v1118
      %v1120 = vpop.f32.mrb[0].mxu0
      %1121 = vmatprep.mubr.f32.mxu0 0.0
      %1122 = vmatmul.mubr.f32.gmra.mrb[0].mxu0 %v936
      %v1123 = vpop.f32.mrb[0].mxu0
      %v1124 = vadd.f32 %v894, %v1123
      %v1125 = vpop.f32.mrb[0].mxu0
      %1126 = vmatprep.mubr.f32.mxu0 0.0
      %1127 = vmatmul.mubr.f32.gmra.mrb[0].mxu0 %v939
      %v1128 = vpop.f32.mrb[0].mxu0
      %v1129 = vadd.f32 %v894, %v1128
      %v1130 = vpop.f32.mrb[0].mxu0
      %1131 = vmatprep.mubr.f32.mxu0 0.0
      %1132 = vmatmul.mubr.f32.gmra.mrb[0].mxu0 %v942
      %v1133 = vpop.f32.mrb[0].mxu0
      %v1134 = vadd.f32 %v894, %v1133
      %v1135 = vpop.f32.mrb[0].mxu0
      %1136 = vmatprep.mubr.f32.mxu0 0.0
      %1137 = vmatmul.mubr.f32.gmra.mrb[0].mxu0 %v945
      %v1138 = vpop.f32.mrb[0].mxu0
      %v1139 = vadd.f32 %v894, %v1138
      %v1140 = vpop.f32.mrb[0].mxu0
      %1141 = vmatprep.mubr.f32.mxu0 0.0
      %1142 = vmatmul.mubr.f32.gmra.mrb[0].mxu0 %v948
      %v1143 = vpop.f32.mrb[0].mxu0
      %v1144 = vadd.f32 %v894, %v1143
      %v1145 = vpop.f32.mrb[0].mxu0
      %1146 = vmatprep.mubr.f32.mxu0 0.0
      %1147 = vmatmul.mubr.f32.gmra.mrb[0].mxu0 %v951
      %v1148 = vpop.f32.mrb[0].mxu0
      %v1149 = vadd.f32 %v894, %v1148
      %v1150 = vpop.f32.mrb[0].mxu0
      %1151 = vmatprep.mubr.f32.mxu0 0.0
      %1152 = vmatmul.mubr.f32.gmra.mrb[0].mxu0 %v954
      %v1153 = vpop.f32.mrb[0].mxu0
      %v1154 = vadd.f32 %v894, %v1153
      %v1155 = vpop.f32.mrb[0].mxu0
      %1156 = vmatprep.mubr.f32.mxu0 0.0
      %1157 = vmatmul.mubr.f32.gmra.mrb[0].mxu0 %v957
      %v1158 = vpop.f32.mrb[0].mxu0
      %v1159 = vadd.f32 %v894, %v1158
      %v1160 = vpop.f32.mrb[0].mxu0
      %1161 = vmatprep.mubr.f32.mxu0 0.0
      %1162 = vmatmul.mubr.f32.gmra.mrb[0].mxu0 %v960
      %v1163 = vpop.f32.mrb[0].mxu0
      %v1164 = vadd.f32 %v894, %v1163
      %v1165 = vpop.f32.mrb[0].mxu0
      %1166 = vmatprep.mubr.f32.mxu0 0.0
      %1167 = vmatmul.mubr.f32.gmra.mrb[0].mxu0 %v963
      %v1168 = vpop.f32.mrb[0].mxu0
      %v1169 = vadd.f32 %v894, %v1168
      %v1170 = vpop.f32.mrb[0].mxu0
      %1171 = vmatprep.mubr.f32.mxu0 0.0
      %1172 = vmatmul.mubr.f32.gmra.mrb[0].mxu0 %v966
      %v1173 = vpop.f32.mrb[0].mxu0
      %v1174 = vadd.f32 %v894, %v1173
      %v1175 = vpop.f32.mrb[0].mxu0
      %1176 = vmatprep.mubr.f32.mxu0 0.0
      %1177 = vmatmul.mubr.f32.gmra.mrb[0].mxu0 %v969
      %v1178 = vpop.f32.mrb[0].mxu0
      %v1179 = vadd.f32 %v894, %v1178
      %v1180 = vpop.f32.mrb[0].mxu0
      %1181 = vmatprep.mubr.f32.mxu0 0.0
      %1182 = vmatmul.mubr.f32.gmra.mrb[0].mxu0 %v972
      %v1183 = vpop.f32.mrb[0].mxu0
      %v1184 = vadd.f32 %v894, %v1183
      %v1185 = vpop.f32.mrb[0].mxu0
      %1186 = vmatprep.mubr.f32.mxu0 0.0
      %1187 = vmatmul.mubr.f32.gmra.mrb[0].mxu0 %v975
      %v1188 = vpop.f32.mrb[0].mxu0
      %v1189 = vadd.f32 %v894, %v1188
      %v1190 = vpop.f32.mrb[0].mxu0
      %1191 = vmatprep.mubr.f32.mxu0 0.0
      %1192 = vmatmul.mubr.f32.gmra.mrb[0].mxu0 %v978
      %v1193 = vpop.f32.mrb[0].mxu0
      %v1194 = vadd.f32 %v894, %v1193
      %v1195 = vpop.f32.mrb[0].mxu0
      %1196 = vmatprep.mubr.f32.mxu0 0.0
      %1197 = vmatmul.mubr.f32.gmra.mrb[0].mxu0 %v981
      %v1198 = vpop.f32.mrb[0].mxu0
      %v1199 = vadd.f32 %v894, %v1198
      %v1200 = vpop.f32.mrb[0].mxu0
      %1201 = vmatprep.mubr.f32.mxu0 0.0
      %1202 = vmatmul.mubr.f32.gmra.mrb[0].mxu0 %v984
      %v1203 = vpop.f32.mrb[0].mxu0
      %v1204 = vadd.f32 %v894, %v1203
      %v1205 = vpop.f32.mrb[0].mxu0
      %1206 = vmatprep.mubr.f32.mxu0 0.0
      %1207 = vmatmul.mubr.f32.gmra.mrb[0].mxu0 %v987
      %v1208 = vpop.f32.mrb[0].mxu0
      %v1209 = vadd.f32 %v894, %v1208
      %v1210 = vpop.f32.mrb[0].mxu0
      %1211 = vmatprep.mubr.f32.mxu0 0.0
      %1212 = vmatmul.mubr.f32.gmra.mrb[0].mxu0 %v990
      %v1213 = vpop.f32.mrb[0].mxu0
      %v1214 = vadd.f32 %v894, %v1213
      %v1215 = vpop.f32.mrb[0].mxu0
      %1216 = vdwg.mxu0
      %1218 = vrot.lane.b32.xlu0 %v1059, 96
      %v1219 = vpop.permute.xlu0 %1218
      %v1220 = vsel %vm395, %v1059, 0
      %v1222 = vsel %vm395, %v1219, 0
      %1224 = vmatprep.subr.mxu0 0.0
      %1225 = vmatpush1.xpose.msra.mxu0 %v1222
      %1226 = vmatprep.subr.mxu0 0.0
      %1227 = vmatpush1.xpose.msra.mxu0 0.0
      %1228 = vmatprep.subr.mxu0 0.0
      %1229 = vmatpush1.xpose.msra.mxu0 0.0
      %1230 = vmatprep.subr.mxu0 0.0
      %1231 = vmatpush1.xpose.msra.mxu0 0.0
      %1232 = vmatprep.subr.mxu0 0.0
      %1233 = vmatpush1.xpose.msra.mxu0 0.0
      %1234 = vmatprep.subr.mxu0 0.0
      %1235 = vmatpush1.xpose.msra.mxu0 0.0
      %1236 = vmatprep.subr.mxu0 0.0
      %1237 = vmatpush1.xpose.msra.mxu0 0.0
      %1238 = vmatprep.subr.mxu0 0.0
      %1239 = vmatpush1.xpose.msra.mxu0 0.0
      %1240 = vmatprep.subr.mxu0 0.0
      %1241 = vmatpush1.xpose.msra.mxu0 0.0
      %1242 = vmatprep.subr.mxu0 0.0
      %1243 = vmatpush1.xpose.msra.mxu0 0.0
      %1244 = vmatprep.subr.mxu0 0.0
      %1245 = vmatpush1.xpose.msra.mxu0 0.0
      %1246 = vmatprep.subr.mxu0 0.0
      %1247 = vmatpush1.xpose.msra.mxu0 0.0
      %1248 = vmatprep.subr.mxu0 0.0
      %1249 = vmatpush1.xpose.msra.mxu0 0.0
      %1250 = vmatprep.subr.mxu0 0.0
      %1251 = vmatpush1.xpose.msra.mxu0 0.0
      %1252 = vmatprep.subr.mxu0 0.0
      %1253 = vmatpush1.xpose.msra.mxu0 0.0
      %1254 = vmatprep.subr.mxu0 0.0
      %1255 = vmatpush1.xpose.msra.mxu0 0.0
      %1256 = vmatprep.subr.mxu0 0.0
      %1257 = vmatpush1.xpose.msra.mxu0 0.0
      %1258 = vmatprep.subr.mxu0 0.0
      %1259 = vmatpush1.xpose.msra.mxu0 0.0
      %1260 = vmatprep.subr.mxu0 0.0
      %1261 = vmatpush1.xpose.msra.mxu0 0.0
      %1262 = vmatprep.subr.mxu0 0.0
      %1263 = vmatpush1.xpose.msra.mxu0 0.0
      %1264 = vmatprep.subr.mxu0 0.0
      %1265 = vmatpush1.xpose.msra.mxu0 0.0
      %1266 = vmatprep.subr.mxu0 0.0
      %1267 = vmatpush1.xpose.msra.mxu0 0.0
      %1268 = vmatprep.subr.mxu0 0.0
      %1269 = vmatpush1.xpose.msra.mxu0 0.0
      %1270 = vmatprep.subr.mxu0 0.0
      %1271 = vmatpush1.xpose.msra.mxu0 0.0
      %1272 = vmatprep.subr.mxu0 0.0
      %1273 = vmatpush1.xpose.msra.mxu0 0.0
      %1274 = vmatprep.subr.mxu0 0.0
      %1275 = vmatpush1.xpose.msra.mxu0 0.0
      %1276 = vmatprep.subr.mxu0 0.0
      %1277 = vmatpush1.xpose.msra.mxu0 0.0
      %1278 = vmatprep.subr.mxu0 0.0
      %1279 = vmatpush1.xpose.msra.mxu0 0.0
      %1280 = vmatprep.subr.mxu0 0.0
      %1281 = vmatpush1.xpose.msra.mxu0 0.0
      %1282 = vmatprep.subr.mxu0 0.0
      %1283 = vmatpush1.xpose.msra.mxu0 0.0
      %1284 = vmatprep.subr.mxu0 0.0
      %1285 = vmatpush1.xpose.msra.mxu0 0.0
      %1286 = vmatprep.subr.mxu0 0.0
      %1287 = vmatpush1.xpose.msra.mxu0 0.0
      %1288 = vmatprep.mubr.f32.mxu0 0.0
      %1289 = vmatmul.mubr.f32.gmra.mrb[0].mxu0 %v1220
      %v1290 = vpop.f32.mrb[0].mxu0
      %v1291 = vadd.f32 0.0, %v1290
      %v1292 = vpop.f32.mrb[0].mxu0
      %1293 = vdwg.mxu0
      %1295 = vrot.lane.b32.xlu0 %v1064, 96
      %v1296 = vpop.permute.xlu0 %1295
      %v1297 = vsel %vm395, %v1064, 0
      %v1299 = vsel %vm395, %v1296, 0
      %1301 = vmatprep.subr.mxu0 0.0
      %1302 = vmatpush1.xpose.msra.mxu0 %v1299
      %1303 = vmatprep.subr.mxu0 0.0
      %1304 = vmatpush1.xpose.msra.mxu0 0.0
      %1305 = vmatprep.subr.mxu0 0.0
      %1306 = vmatpush1.xpose.msra.mxu0 0.0
      %1307 = vmatprep.subr.mxu0 0.0
      %1308 = vmatpush1.xpose.msra.mxu0 0.0
      %1309 = vmatprep.subr.mxu0 0.0
      %1310 = vmatpush1.xpose.msra.mxu0 0.0
      %1311 = vmatprep.subr.mxu0 0.0
      %1312 = vmatpush1.xpose.msra.mxu0 0.0
      %1313 = vmatprep.subr.mxu0 0.0
      %1314 = vmatpush1.xpose.msra.mxu0 0.0
      %1315 = vmatprep.subr.mxu0 0.0
      %1316 = vmatpush1.xpose.msra.mxu0 0.0
      %1317 = vmatprep.subr.mxu0 0.0
      %1318 = vmatpush1.xpose.msra.mxu0 0.0
      %1319 = vmatprep.subr.mxu0 0.0
      %1320 = vmatpush1.xpose.msra.mxu0 0.0
      %1321 = vmatprep.subr.mxu0 0.0
      %1322 = vmatpush1.xpose.msra.mxu0 0.0
      %1323 = vmatprep.subr.mxu0 0.0
      %1324 = vmatpush1.xpose.msra.mxu0 0.0
      %1325 = vmatprep.subr.mxu0 0.0
      %1326 = vmatpush1.xpose.msra.mxu0 0.0
      %1327 = vmatprep.subr.mxu0 0.0
      %1328 = vmatpush1.xpose.msra.mxu0 0.0
      %1329 = vmatprep.subr.mxu0 0.0
      %1330 = vmatpush1.xpose.msra.mxu0 0.0
      %1331 = vmatprep.subr.mxu0 0.0
      %1332 = vmatpush1.xpose.msra.mxu0 0.0
      %1333 = vmatprep.subr.mxu0 0.0
      %1334 = vmatpush1.xpose.msra.mxu0 0.0
      %1335 = vmatprep.subr.mxu0 0.0
      %1336 = vmatpush1.xpose.msra.mxu0 0.0
      %1337 = vmatprep.subr.mxu0 0.0
      %1338 = vmatpush1.xpose.msra.mxu0 0.0
      %1339 = vmatprep.subr.mxu0 0.0
      %1340 = vmatpush1.xpose.msra.mxu0 0.0
      %1341 = vmatprep.subr.mxu0 0.0
      %1342 = vmatpush1.xpose.msra.mxu0 0.0
      %1343 = vmatprep.subr.mxu0 0.0
      %1344 = vmatpush1.xpose.msra.mxu0 0.0
      %1345 = vmatprep.subr.mxu0 0.0
      %1346 = vmatpush1.xpose.msra.mxu0 0.0
      %1347 = vmatprep.subr.mxu0 0.0
      %1348 = vmatpush1.xpose.msra.mxu0 0.0
      %1349 = vmatprep.subr.mxu0 0.0
      %1350 = vmatpush1.xpose.msra.mxu0 0.0
      %1351 = vmatprep.subr.mxu0 0.0
      %1352 = vmatpush1.xpose.msra.mxu0 0.0
      %1353 = vmatprep.subr.mxu0 0.0
      %1354 = vmatpush1.xpose.msra.mxu0 0.0
      %1355 = vmatprep.subr.mxu0 0.0
      %1356 = vmatpush1.xpose.msra.mxu0 0.0
      %1357 = vmatprep.subr.mxu0 0.0
      %1358 = vmatpush1.xpose.msra.mxu0 0.0
      %1359 = vmatprep.subr.mxu0 0.0
      %1360 = vmatpush1.xpose.msra.mxu0 0.0
      %1361 = vmatprep.subr.mxu0 0.0
      %1362 = vmatpush1.xpose.msra.mxu0 0.0
      %1363 = vmatprep.subr.mxu0 0.0
      %1364 = vmatpush1.xpose.msra.mxu0 0.0
      %1365 = vmatprep.mubr.f32.mxu0 0.0
      %1366 = vmatmul.mubr.f32.gmra.mrb[0].mxu0 %v1297
      %v1367 = vpop.f32.mrb[0].mxu0
      %v1368 = vadd.f32 0.0, %v1367
      %v1369 = vpop.f32.mrb[0].mxu0
      %1370 = vdwg.mxu0
      %1372 = vrot.lane.b32.xlu0 %v1069, 96
      %v1373 = vpop.permute.xlu0 %1372
      %v1374 = vsel %vm395, %v1069, 0
      %v1376 = vsel %vm395, %v1373, 0
      %1378 = vmatprep.subr.mxu0 0.0
      %1379 = vmatpush1.xpose.msra.mxu0 %v1376
      %1380 = vmatprep.subr.mxu0 0.0
      %1381 = vmatpush1.xpose.msra.mxu0 0.0
      %1382 = vmatprep.subr.mxu0 0.0
      %1383 = vmatpush1.xpose.msra.mxu0 0.0
      %1384 = vmatprep.subr.mxu0 0.0
      %1385 = vmatpush1.xpose.msra.mxu0 0.0
      %1386 = vmatprep.subr.mxu0 0.0
      %1387 = vmatpush1.xpose.msra.mxu0 0.0
      %1388 = vmatprep.subr.mxu0 0.0
      %1389 = vmatpush1.xpose.msra.mxu0 0.0
      %1390 = vmatprep.subr.mxu0 0.0
      %1391 = vmatpush1.xpose.msra.mxu0 0.0
      %1392 = vmatprep.subr.mxu0 0.0
      %1393 = vmatpush1.xpose.msra.mxu0 0.0
      %1394 = vmatprep.subr.mxu0 0.0
      %1395 = vmatpush1.xpose.msra.mxu0 0.0
      %1396 = vmatprep.subr.mxu0 0.0
      %1397 = vmatpush1.xpose.msra.mxu0 0.0
      %1398 = vmatprep.subr.mxu0 0.0
      %1399 = vmatpush1.xpose.msra.mxu0 0.0
      %1400 = vmatprep.subr.mxu0 0.0
      %1401 = vmatpush1.xpose.msra.mxu0 0.0
      %1402 = vmatprep.subr.mxu0 0.0
      %1403 = vmatpush1.xpose.msra.mxu0 0.0
      %1404 = vmatprep.subr.mxu0 0.0
      %1405 = vmatpush1.xpose.msra.mxu0 0.0
      %1406 = vmatprep.subr.mxu0 0.0
      %1407 = vmatpush1.xpose.msra.mxu0 0.0
      %1408 = vmatprep.subr.mxu0 0.0
      %1409 = vmatpush1.xpose.msra.mxu0 0.0
      %1410 = vmatprep.subr.mxu0 0.0
      %1411 = vmatpush1.xpose.msra.mxu0 0.0
      %1412 = vmatprep.subr.mxu0 0.0
      %1413 = vmatpush1.xpose.msra.mxu0 0.0
      %1414 = vmatprep.subr.mxu0 0.0
      %1415 = vmatpush1.xpose.msra.mxu0 0.0
      %1416 = vmatprep.subr.mxu0 0.0
      %1417 = vmatpush1.xpose.msra.mxu0 0.0
      %1418 = vmatprep.subr.mxu0 0.0
      %1419 = vmatpush1.xpose.msra.mxu0 0.0
      %1420 = vmatprep.subr.mxu0 0.0
      %1421 = vmatpush1.xpose.msra.mxu0 0.0
      %1422 = vmatprep.subr.mxu0 0.0
      %1423 = vmatpush1.xpose.msra.mxu0 0.0
      %1424 = vmatprep.subr.mxu0 0.0
      %1425 = vmatpush1.xpose.msra.mxu0 0.0
      %1426 = vmatprep.subr.mxu0 0.0
      %1427 = vmatpush1.xpose.msra.mxu0 0.0
      %1428 = vmatprep.subr.mxu0 0.0
      %1429 = vmatpush1.xpose.msra.mxu0 0.0
      %1430 = vmatprep.subr.mxu0 0.0
      %1431 = vmatpush1.xpose.msra.mxu0 0.0
      %1432 = vmatprep.subr.mxu0 0.0
      %1433 = vmatpush1.xpose.msra.mxu0 0.0
      %1434 = vmatprep.subr.mxu0 0.0
      %1435 = vmatpush1.xpose.msra.mxu0 0.0
      %1436 = vmatprep.subr.mxu0 0.0
      %1437 = vmatpush1.xpose.msra.mxu0 0.0
      %1438 = vmatprep.subr.mxu0 0.0
      %1439 = vmatpush1.xpose.msra.mxu0 0.0
      %1440 = vmatprep.subr.mxu0 0.0
      %1441 = vmatpush1.xpose.msra.mxu0 0.0
      %1442 = vmatprep.mubr.f32.mxu0 0.0
      %1443 = vmatmul.mubr.f32.gmra.mrb[0].mxu0 %v1374
      %v1444 = vpop.f32.mrb[0].mxu0
      %v1445 = vadd.f32 0.0, %v1444
      %v1446 = vpop.f32.mrb[0].mxu0
      %1447 = vdwg.mxu0
      %1449 = vrot.lane.b32.xlu0 %v1074, 96
      %v1450 = vpop.permute.xlu0 %1449
      %v1451 = vsel %vm395, %v1074, 0
      %v1453 = vsel %vm395, %v1450, 0
      %1455 = vmatprep.subr.mxu0 0.0
      %1456 = vmatpush1.xpose.msra.mxu0 %v1453
      %1457 = vmatprep.subr.mxu0 0.0
      %1458 = vmatpush1.xpose.msra.mxu0 0.0
      %1459 = vmatprep.subr.mxu0 0.0
      %1460 = vmatpush1.xpose.msra.mxu0 0.0
      %1461 = vmatprep.subr.mxu0 0.0
      %1462 = vmatpush1.xpose.msra.mxu0 0.0
      %1463 = vmatprep.subr.mxu0 0.0
      %1464 = vmatpush1.xpose.msra.mxu0 0.0
      %1465 = vmatprep.subr.mxu0 0.0
      %1466 = vmatpush1.xpose.msra.mxu0 0.0
      %1467 = vmatprep.subr.mxu0 0.0
      %1468 = vmatpush1.xpose.msra.mxu0 0.0
      %1469 = vmatprep.subr.mxu0 0.0
      %1470 = vmatpush1.xpose.msra.mxu0 0.0
      %1471 = vmatprep.subr.mxu0 0.0
      %1472 = vmatpush1.xpose.msra.mxu0 0.0
      %1473 = vmatprep.subr.mxu0 0.0
      %1474 = vmatpush1.xpose.msra.mxu0 0.0
      %1475 = vmatprep.subr.mxu0 0.0
      %1476 = vmatpush1.xpose.msra.mxu0 0.0
      %1477 = vmatprep.subr.mxu0 0.0
      %1478 = vmatpush1.xpose.msra.mxu0 0.0
      %1479 = vmatprep.subr.mxu0 0.0
      %1480 = vmatpush1.xpose.msra.mxu0 0.0
      %1481 = vmatprep.subr.mxu0 0.0
      %1482 = vmatpush1.xpose.msra.mxu0 0.0
      %1483 = vmatprep.subr.mxu0 0.0
      %1484 = vmatpush1.xpose.msra.mxu0 0.0
      %1485 = vmatprep.subr.mxu0 0.0
      %1486 = vmatpush1.xpose.msra.mxu0 0.0
      %1487 = vmatprep.subr.mxu0 0.0
      %1488 = vmatpush1.xpose.msra.mxu0 0.0
      %1489 = vmatprep.subr.mxu0 0.0
      %1490 = vmatpush1.xpose.msra.mxu0 0.0
      %1491 = vmatprep.subr.mxu0 0.0
      %1492 = vmatpush1.xpose.msra.mxu0 0.0
      %1493 = vmatprep.subr.mxu0 0.0
      %1494 = vmatpush1.xpose.msra.mxu0 0.0
      %1495 = vmatprep.subr.mxu0 0.0
      %1496 = vmatpush1.xpose.msra.mxu0 0.0
      %1497 = vmatprep.subr.mxu0 0.0
      %1498 = vmatpush1.xpose.msra.mxu0 0.0
      %1499 = vmatprep.subr.mxu0 0.0
      %1500 = vmatpush1.xpose.msra.mxu0 0.0
      %1501 = vmatprep.subr.mxu0 0.0
      %1502 = vmatpush1.xpose.msra.mxu0 0.0
      %1503 = vmatprep.subr.mxu0 0.0
      %1504 = vmatpush1.xpose.msra.mxu0 0.0
      %1505 = vmatprep.subr.mxu0 0.0
      %1506 = vmatpush1.xpose.msra.mxu0 0.0
      %1507 = vmatprep.subr.mxu0 0.0
      %1508 = vmatpush1.xpose.msra.mxu0 0.0
      %1509 = vmatprep.subr.mxu0 0.0
      %1510 = vmatpush1.xpose.msra.mxu0 0.0
      %1511 = vmatprep.subr.mxu0 0.0
      %1512 = vmatpush1.xpose.msra.mxu0 0.0
      %1513 = vmatprep.subr.mxu0 0.0
      %1514 = vmatpush1.xpose.msra.mxu0 0.0
      %1515 = vmatprep.subr.mxu0 0.0
      %1516 = vmatpush1.xpose.msra.mxu0 0.0
      %1517 = vmatprep.subr.mxu0 0.0
      %1518 = vmatpush1.xpose.msra.mxu0 0.0
      %1519 = vmatprep.mubr.f32.mxu0 0.0
      %1520 = vmatmul.mubr.f32.gmra.mrb[0].mxu0 %v1451
      %v1521 = vpop.f32.mrb[0].mxu0
      %v1522 = vadd.f32 0.0, %v1521
      %v1523 = vpop.f32.mrb[0].mxu0
      %1524 = vdwg.mxu0
      %1526 = vrot.lane.b32.xlu0 %v1079, 96
      %v1527 = vpop.permute.xlu0 %1526
      %v1528 = vsel %vm395, %v1079, 0
      %v1530 = vsel %vm395, %v1527, 0
      %1532 = vmatprep.subr.mxu0 0.0
      %1533 = vmatpush1.xpose.msra.mxu0 %v1530
      %1534 = vmatprep.subr.mxu0 0.0
      %1535 = vmatpush1.xpose.msra.mxu0 0.0
      %1536 = vmatprep.subr.mxu0 0.0
      %1537 = vmatpush1.xpose.msra.mxu0 0.0
      %1538 = vmatprep.subr.mxu0 0.0
      %1539 = vmatpush1.xpose.msra.mxu0 0.0
      %1540 = vmatprep.subr.mxu0 0.0
      %1541 = vmatpush1.xpose.msra.mxu0 0.0
      %1542 = vmatprep.subr.mxu0 0.0
      %1543 = vmatpush1.xpose.msra.mxu0 0.0
      %1544 = vmatprep.subr.mxu0 0.0
      %1545 = vmatpush1.xpose.msra.mxu0 0.0
      %1546 = vmatprep.subr.mxu0 0.0
      %1547 = vmatpush1.xpose.msra.mxu0 0.0
      %1548 = vmatprep.subr.mxu0 0.0
      %1549 = vmatpush1.xpose.msra.mxu0 0.0
      %1550 = vmatprep.subr.mxu0 0.0
      %1551 = vmatpush1.xpose.msra.mxu0 0.0
      %1552 = vmatprep.subr.mxu0 0.0
      %1553 = vmatpush1.xpose.msra.mxu0 0.0
      %1554 = vmatprep.subr.mxu0 0.0
      %1555 = vmatpush1.xpose.msra.mxu0 0.0
      %1556 = vmatprep.subr.mxu0 0.0
      %1557 = vmatpush1.xpose.msra.mxu0 0.0
      %1558 = vmatprep.subr.mxu0 0.0
      %1559 = vmatpush1.xpose.msra.mxu0 0.0
      %1560 = vmatprep.subr.mxu0 0.0
      %1561 = vmatpush1.xpose.msra.mxu0 0.0
      %1562 = vmatprep.subr.mxu0 0.0
      %1563 = vmatpush1.xpose.msra.mxu0 0.0
      %1564 = vmatprep.subr.mxu0 0.0
      %1565 = vmatpush1.xpose.msra.mxu0 0.0
      %1566 = vmatprep.subr.mxu0 0.0
      %1567 = vmatpush1.xpose.msra.mxu0 0.0
      %1568 = vmatprep.subr.mxu0 0.0
      %1569 = vmatpush1.xpose.msra.mxu0 0.0
      %1570 = vmatprep.subr.mxu0 0.0
      %1571 = vmatpush1.xpose.msra.mxu0 0.0
      %1572 = vmatprep.subr.mxu0 0.0
      %1573 = vmatpush1.xpose.msra.mxu0 0.0
      %1574 = vmatprep.subr.mxu0 0.0
      %1575 = vmatpush1.xpose.msra.mxu0 0.0
      %1576 = vmatprep.subr.mxu0 0.0
      %1577 = vmatpush1.xpose.msra.mxu0 0.0
      %1578 = vmatprep.subr.mxu0 0.0
      %1579 = vmatpush1.xpose.msra.mxu0 0.0
      %1580 = vmatprep.subr.mxu0 0.0
      %1581 = vmatpush1.xpose.msra.mxu0 0.0
      %1582 = vmatprep.subr.mxu0 0.0
      %1583 = vmatpush1.xpose.msra.mxu0 0.0
      %1584 = vmatprep.subr.mxu0 0.0
      %1585 = vmatpush1.xpose.msra.mxu0 0.0
      %1586 = vmatprep.subr.mxu0 0.0
      %1587 = vmatpush1.xpose.msra.mxu0 0.0
      %1588 = vmatprep.subr.mxu0 0.0
      %1589 = vmatpush1.xpose.msra.mxu0 0.0
      %1590 = vmatprep.subr.mxu0 0.0
      %1591 = vmatpush1.xpose.msra.mxu0 0.0
      %1592 = vmatprep.subr.mxu0 0.0
      %1593 = vmatpush1.xpose.msra.mxu0 0.0
      %1594 = vmatprep.subr.mxu0 0.0
      %1595 = vmatpush1.xpose.msra.mxu0 0.0
      %1596 = vmatprep.mubr.f32.mxu0 0.0
      %1597 = vmatmul.mubr.f32.gmra.mrb[0].mxu0 %v1528
      %v1598 = vpop.f32.mrb[0].mxu0
      %v1599 = vadd.f32 0.0, %v1598
      %v1600 = vpop.f32.mrb[0].mxu0
      %1601 = vdwg.mxu0
      %1603 = vrot.lane.b32.xlu0 %v1084, 96
      %v1604 = vpop.permute.xlu0 %1603
      %v1605 = vsel %vm395, %v1084, 0
      %v1607 = vsel %vm395, %v1604, 0
      %1609 = vmatprep.subr.mxu0 0.0
      %1610 = vmatpush1.xpose.msra.mxu0 %v1607
      %1611 = vmatprep.subr.mxu0 0.0
      %1612 = vmatpush1.xpose.msra.mxu0 0.0
      %1613 = vmatprep.subr.mxu0 0.0
      %1614 = vmatpush1.xpose.msra.mxu0 0.0
      %1615 = vmatprep.subr.mxu0 0.0
      %1616 = vmatpush1.xpose.msra.mxu0 0.0
      %1617 = vmatprep.subr.mxu0 0.0
      %1618 = vmatpush1.xpose.msra.mxu0 0.0
      %1619 = vmatprep.subr.mxu0 0.0
      %1620 = vmatpush1.xpose.msra.mxu0 0.0
      %1621 = vmatprep.subr.mxu0 0.0
      %1622 = vmatpush1.xpose.msra.mxu0 0.0
      %1623 = vmatprep.subr.mxu0 0.0
      %1624 = vmatpush1.xpose.msra.mxu0 0.0
      %1625 = vmatprep.subr.mxu0 0.0
      %1626 = vmatpush1.xpose.msra.mxu0 0.0
      %1627 = vmatprep.subr.mxu0 0.0
      %1628 = vmatpush1.xpose.msra.mxu0 0.0
      %1629 = vmatprep.subr.mxu0 0.0
      %1630 = vmatpush1.xpose.msra.mxu0 0.0
      %1631 = vmatprep.subr.mxu0 0.0
      %1632 = vmatpush1.xpose.msra.mxu0 0.0
      %1633 = vmatprep.subr.mxu0 0.0
      %1634 = vmatpush1.xpose.msra.mxu0 0.0
      %1635 = vmatprep.subr.mxu0 0.0
      %1636 = vmatpush1.xpose.msra.mxu0 0.0
      %1637 = vmatprep.subr.mxu0 0.0
      %1638 = vmatpush1.xpose.msra.mxu0 0.0
      %1639 = vmatprep.subr.mxu0 0.0
      %1640 = vmatpush1.xpose.msra.mxu0 0.0
      %1641 = vmatprep.subr.mxu0 0.0
      %1642 = vmatpush1.xpose.msra.mxu0 0.0
      %1643 = vmatprep.subr.mxu0 0.0
      %1644 = vmatpush1.xpose.msra.mxu0 0.0
      %1645 = vmatprep.subr.mxu0 0.0
      %1646 = vmatpush1.xpose.msra.mxu0 0.0
      %1647 = vmatprep.subr.mxu0 0.0
      %1648 = vmatpush1.xpose.msra.mxu0 0.0
      %1649 = vmatprep.subr.mxu0 0.0
      %1650 = vmatpush1.xpose.msra.mxu0 0.0
      %1651 = vmatprep.subr.mxu0 0.0
      %1652 = vmatpush1.xpose.msra.mxu0 0.0
      %1653 = vmatprep.subr.mxu0 0.0
      %1654 = vmatpush1.xpose.msra.mxu0 0.0
      %1655 = vmatprep.subr.mxu0 0.0
      %1656 = vmatpush1.xpose.msra.mxu0 0.0
      %1657 = vmatprep.subr.mxu0 0.0
      %1658 = vmatpush1.xpose.msra.mxu0 0.0
      %1659 = vmatprep.subr.mxu0 0.0
      %1660 = vmatpush1.xpose.msra.mxu0 0.0
      %1661 = vmatprep.subr.mxu0 0.0
      %1662 = vmatpush1.xpose.msra.mxu0 0.0
      %1663 = vmatprep.subr.mxu0 0.0
      %1664 = vmatpush1.xpose.msra.mxu0 0.0
      %1665 = vmatprep.subr.mxu0 0.0
      %1666 = vmatpush1.xpose.msra.mxu0 0.0
      %1667 = vmatprep.subr.mxu0 0.0
      %1668 = vmatpush1.xpose.msra.mxu0 0.0
      %1669 = vmatprep.subr.mxu0 0.0
      %1670 = vmatpush1.xpose.msra.mxu0 0.0
      %1671 = vmatprep.subr.mxu0 0.0
      %1672 = vmatpush1.xpose.msra.mxu0 0.0
      %1673 = vmatprep.mubr.f32.mxu0 0.0
      %1674 = vmatmul.mubr.f32.gmra.mrb[0].mxu0 %v1605
      %v1675 = vpop.f32.mrb[0].mxu0
      %v1676 = vadd.f32 0.0, %v1675
      %v1677 = vpop.f32.mrb[0].mxu0
      %1678 = vdwg.mxu0
      %1680 = vrot.lane.b32.xlu0 %v1089, 96
      %v1681 = vpop.permute.xlu0 %1680
      %v1682 = vsel %vm395, %v1089, 0
      %v1684 = vsel %vm395, %v1681, 0
      %1686 = vmatprep.subr.mxu0 0.0
      %1687 = vmatpush1.xpose.msra.mxu0 %v1684
      %1688 = vmatprep.subr.mxu0 0.0
      %1689 = vmatpush1.xpose.msra.mxu0 0.0
      %1690 = vmatprep.subr.mxu0 0.0
      %1691 = vmatpush1.xpose.msra.mxu0 0.0
      %1692 = vmatprep.subr.mxu0 0.0
      %1693 = vmatpush1.xpose.msra.mxu0 0.0
      %1694 = vmatprep.subr.mxu0 0.0
      %1695 = vmatpush1.xpose.msra.mxu0 0.0
      %1696 = vmatprep.subr.mxu0 0.0
      %1697 = vmatpush1.xpose.msra.mxu0 0.0
      %1698 = vmatprep.subr.mxu0 0.0
      %1699 = vmatpush1.xpose.msra.mxu0 0.0
      %1700 = vmatprep.subr.mxu0 0.0
      %1701 = vmatpush1.xpose.msra.mxu0 0.0
      %1702 = vmatprep.subr.mxu0 0.0
      %1703 = vmatpush1.xpose.msra.mxu0 0.0
      %1704 = vmatprep.subr.mxu0 0.0
      %1705 = vmatpush1.xpose.msra.mxu0 0.0
      %1706 = vmatprep.subr.mxu0 0.0
      %1707 = vmatpush1.xpose.msra.mxu0 0.0
      %1708 = vmatprep.subr.mxu0 0.0
      %1709 = vmatpush1.xpose.msra.mxu0 0.0
      %1710 = vmatprep.subr.mxu0 0.0
      %1711 = vmatpush1.xpose.msra.mxu0 0.0
      %1712 = vmatprep.subr.mxu0 0.0
      %1713 = vmatpush1.xpose.msra.mxu0 0.0
      %1714 = vmatprep.subr.mxu0 0.0
      %1715 = vmatpush1.xpose.msra.mxu0 0.0
      %1716 = vmatprep.subr.mxu0 0.0
      %1717 = vmatpush1.xpose.msra.mxu0 0.0
      %1718 = vmatprep.subr.mxu0 0.0
      %1719 = vmatpush1.xpose.msra.mxu0 0.0
      %1720 = vmatprep.subr.mxu0 0.0
      %1721 = vmatpush1.xpose.msra.mxu0 0.0
      %1722 = vmatprep.subr.mxu0 0.0
      %1723 = vmatpush1.xpose.msra.mxu0 0.0
      %1724 = vmatprep.subr.mxu0 0.0
      %1725 = vmatpush1.xpose.msra.mxu0 0.0
      %1726 = vmatprep.subr.mxu0 0.0
      %1727 = vmatpush1.xpose.msra.mxu0 0.0
      %1728 = vmatprep.subr.mxu0 0.0
      %1729 = vmatpush1.xpose.msra.mxu0 0.0
      %1730 = vmatprep.subr.mxu0 0.0
      %1731 = vmatpush1.xpose.msra.mxu0 0.0
      %1732 = vmatprep.subr.mxu0 0.0
      %1733 = vmatpush1.xpose.msra.mxu0 0.0
      %1734 = vmatprep.subr.mxu0 0.0
      %1735 = vmatpush1.xpose.msra.mxu0 0.0
      %1736 = vmatprep.subr.mxu0 0.0
      %1737 = vmatpush1.xpose.msra.mxu0 0.0
      %1738 = vmatprep.subr.mxu0 0.0
      %1739 = vmatpush1.xpose.msra.mxu0 0.0
      %1740 = vmatprep.subr.mxu0 0.0
      %1741 = vmatpush1.xpose.msra.mxu0 0.0
      %1742 = vmatprep.subr.mxu0 0.0
      %1743 = vmatpush1.xpose.msra.mxu0 0.0
      %1744 = vmatprep.subr.mxu0 0.0
      %1745 = vmatpush1.xpose.msra.mxu0 0.0
      %1746 = vmatprep.subr.mxu0 0.0
      %1747 = vmatpush1.xpose.msra.mxu0 0.0
      %1748 = vmatprep.subr.mxu0 0.0
      %1749 = vmatpush1.xpose.msra.mxu0 0.0
      %1750 = vmatprep.mubr.f32.mxu0 0.0
      %1751 = vmatmul.mubr.f32.gmra.mrb[0].mxu0 %v1682
      %v1752 = vpop.f32.mrb[0].mxu0
      %v1753 = vadd.f32 0.0, %v1752
      %v1754 = vpop.f32.mrb[0].mxu0
      %1755 = vdwg.mxu0
      %1757 = vrot.lane.b32.xlu0 %v1094, 96
      %v1758 = vpop.permute.xlu0 %1757
      %v1759 = vsel %vm395, %v1094, 0
      %v1761 = vsel %vm395, %v1758, 0
      %1763 = vmatprep.subr.mxu0 0.0
      %1764 = vmatpush1.xpose.msra.mxu0 %v1761
      %1765 = vmatprep.subr.mxu0 0.0
      %1766 = vmatpush1.xpose.msra.mxu0 0.0
      %1767 = vmatprep.subr.mxu0 0.0
      %1768 = vmatpush1.xpose.msra.mxu0 0.0
      %1769 = vmatprep.subr.mxu0 0.0
      %1770 = vmatpush1.xpose.msra.mxu0 0.0
      %1771 = vmatprep.subr.mxu0 0.0
      %1772 = vmatpush1.xpose.msra.mxu0 0.0
      %1773 = vmatprep.subr.mxu0 0.0
      %1774 = vmatpush1.xpose.msra.mxu0 0.0
      %1775 = vmatprep.subr.mxu0 0.0
      %1776 = vmatpush1.xpose.msra.mxu0 0.0
      %1777 = vmatprep.subr.mxu0 0.0
      %1778 = vmatpush1.xpose.msra.mxu0 0.0
      %1779 = vmatprep.subr.mxu0 0.0
      %1780 = vmatpush1.xpose.msra.mxu0 0.0
      %1781 = vmatprep.subr.mxu0 0.0
      %1782 = vmatpush1.xpose.msra.mxu0 0.0
      %1783 = vmatprep.subr.mxu0 0.0
      %1784 = vmatpush1.xpose.msra.mxu0 0.0
      %1785 = vmatprep.subr.mxu0 0.0
      %1786 = vmatpush1.xpose.msra.mxu0 0.0
      %1787 = vmatprep.subr.mxu0 0.0
      %1788 = vmatpush1.xpose.msra.mxu0 0.0
      %1789 = vmatprep.subr.mxu0 0.0
      %1790 = vmatpush1.xpose.msra.mxu0 0.0
      %1791 = vmatprep.subr.mxu0 0.0
      %1792 = vmatpush1.xpose.msra.mxu0 0.0
      %1793 = vmatprep.subr.mxu0 0.0
      %1794 = vmatpush1.xpose.msra.mxu0 0.0
      %1795 = vmatprep.subr.mxu0 0.0
      %1796 = vmatpush1.xpose.msra.mxu0 0.0
      %1797 = vmatprep.subr.mxu0 0.0
      %1798 = vmatpush1.xpose.msra.mxu0 0.0
      %1799 = vmatprep.subr.mxu0 0.0
      %1800 = vmatpush1.xpose.msra.mxu0 0.0
      %1801 = vmatprep.subr.mxu0 0.0
      %1802 = vmatpush1.xpose.msra.mxu0 0.0
      %1803 = vmatprep.subr.mxu0 0.0
      %1804 = vmatpush1.xpose.msra.mxu0 0.0
      %1805 = vmatprep.subr.mxu0 0.0
      %1806 = vmatpush1.xpose.msra.mxu0 0.0
      %1807 = vmatprep.subr.mxu0 0.0
      %1808 = vmatpush1.xpose.msra.mxu0 0.0
      %1809 = vmatprep.subr.mxu0 0.0
      %1810 = vmatpush1.xpose.msra.mxu0 0.0
      %1811 = vmatprep.subr.mxu0 0.0
      %1812 = vmatpush1.xpose.msra.mxu0 0.0
      %1813 = vmatprep.subr.mxu0 0.0
      %1814 = vmatpush1.xpose.msra.mxu0 0.0
      %1815 = vmatprep.subr.mxu0 0.0
      %1816 = vmatpush1.xpose.msra.mxu0 0.0
      %1817 = vmatprep.subr.mxu0 0.0
      %1818 = vmatpush1.xpose.msra.mxu0 0.0
      %1819 = vmatprep.subr.mxu0 0.0
      %1820 = vmatpush1.xpose.msra.mxu0 0.0
      %1821 = vmatprep.subr.mxu0 0.0
      %1822 = vmatpush1.xpose.msra.mxu0 0.0
      %1823 = vmatprep.subr.mxu0 0.0
      %1824 = vmatpush1.xpose.msra.mxu0 0.0
      %1825 = vmatprep.subr.mxu0 0.0
      %1826 = vmatpush1.xpose.msra.mxu0 0.0
      %1827 = vmatprep.mubr.f32.mxu0 0.0
      %1828 = vmatmul.mubr.f32.gmra.mrb[0].mxu0 %v1759
      %v1829 = vpop.f32.mrb[0].mxu0
      %v1830 = vadd.f32 0.0, %v1829
      %v1831 = vpop.f32.mrb[0].mxu0
      %1832 = vdwg.mxu0
      %1834 = vrot.lane.b32.xlu0 %v1099, 96
      %v1835 = vpop.permute.xlu0 %1834
      %v1836 = vsel %vm395, %v1099, 0
      %v1838 = vsel %vm395, %v1835, 0
      %1840 = vmatprep.subr.mxu0 0.0
      %1841 = vmatpush1.xpose.msra.mxu0 %v1838
      %1842 = vmatprep.subr.mxu0 0.0
      %1843 = vmatpush1.xpose.msra.mxu0 0.0
      %1844 = vmatprep.subr.mxu0 0.0
      %1845 = vmatpush1.xpose.msra.mxu0 0.0
      %1846 = vmatprep.subr.mxu0 0.0
      %1847 = vmatpush1.xpose.msra.mxu0 0.0
      %1848 = vmatprep.subr.mxu0 0.0
      %1849 = vmatpush1.xpose.msra.mxu0 0.0
      %1850 = vmatprep.subr.mxu0 0.0
      %1851 = vmatpush1.xpose.msra.mxu0 0.0
      %1852 = vmatprep.subr.mxu0 0.0
      %1853 = vmatpush1.xpose.msra.mxu0 0.0
      %1854 = vmatprep.subr.mxu0 0.0
      %1855 = vmatpush1.xpose.msra.mxu0 0.0
      %1856 = vmatprep.subr.mxu0 0.0
      %1857 = vmatpush1.xpose.msra.mxu0 0.0
      %1858 = vmatprep.subr.mxu0 0.0
      %1859 = vmatpush1.xpose.msra.mxu0 0.0
      %1860 = vmatprep.subr.mxu0 0.0
      %1861 = vmatpush1.xpose.msra.mxu0 0.0
      %1862 = vmatprep.subr.mxu0 0.0
      %1863 = vmatpush1.xpose.msra.mxu0 0.0
      %1864 = vmatprep.subr.mxu0 0.0
      %1865 = vmatpush1.xpose.msra.mxu0 0.0
      %1866 = vmatprep.subr.mxu0 0.0
      %1867 = vmatpush1.xpose.msra.mxu0 0.0
      %1868 = vmatprep.subr.mxu0 0.0
      %1869 = vmatpush1.xpose.msra.mxu0 0.0
      %1870 = vmatprep.subr.mxu0 0.0
      %1871 = vmatpush1.xpose.msra.mxu0 0.0
      %1872 = vmatprep.subr.mxu0 0.0
      %1873 = vmatpush1.xpose.msra.mxu0 0.0
      %1874 = vmatprep.subr.mxu0 0.0
      %1875 = vmatpush1.xpose.msra.mxu0 0.0
      %1876 = vmatprep.subr.mxu0 0.0
      %1877 = vmatpush1.xpose.msra.mxu0 0.0
      %1878 = vmatprep.subr.mxu0 0.0
      %1879 = vmatpush1.xpose.msra.mxu0 0.0
      %1880 = vmatprep.subr.mxu0 0.0
      %1881 = vmatpush1.xpose.msra.mxu0 0.0
      %1882 = vmatprep.subr.mxu0 0.0
      %1883 = vmatpush1.xpose.msra.mxu0 0.0
      %1884 = vmatprep.subr.mxu0 0.0
      %1885 = vmatpush1.xpose.msra.mxu0 0.0
      %1886 = vmatprep.subr.mxu0 0.0
      %1887 = vmatpush1.xpose.msra.mxu0 0.0
      %1888 = vmatprep.subr.mxu0 0.0
      %1889 = vmatpush1.xpose.msra.mxu0 0.0
      %1890 = vmatprep.subr.mxu0 0.0
      %1891 = vmatpush1.xpose.msra.mxu0 0.0
      %1892 = vmatprep.subr.mxu0 0.0
      %1893 = vmatpush1.xpose.msra.mxu0 0.0
      %1894 = vmatprep.subr.mxu0 0.0
      %1895 = vmatpush1.xpose.msra.mxu0 0.0
      %1896 = vmatprep.subr.mxu0 0.0
      %1897 = vmatpush1.xpose.msra.mxu0 0.0
      %1898 = vmatprep.subr.mxu0 0.0
      %1899 = vmatpush1.xpose.msra.mxu0 0.0
      %1900 = vmatprep.subr.mxu0 0.0
      %1901 = vmatpush1.xpose.msra.mxu0 0.0
      %1902 = vmatprep.subr.mxu0 0.0
      %1903 = vmatpush1.xpose.msra.mxu0 0.0
      %1904 = vmatprep.mubr.f32.mxu0 0.0
      %1905 = vmatmul.mubr.f32.gmra.mrb[0].mxu0 %v1836
      %v1906 = vpop.f32.mrb[0].mxu0
      %v1907 = vadd.f32 0.0, %v1906
      %v1908 = vpop.f32.mrb[0].mxu0
      %1909 = vdwg.mxu0
      %1911 = vrot.lane.b32.xlu0 %v1104, 96
      %v1912 = vpop.permute.xlu0 %1911
      %v1913 = vsel %vm395, %v1104, 0
      %v1915 = vsel %vm395, %v1912, 0
      %1917 = vmatprep.subr.mxu0 0.0
      %1918 = vmatpush1.xpose.msra.mxu0 %v1915
      %1919 = vmatprep.subr.mxu0 0.0
      %1920 = vmatpush1.xpose.msra.mxu0 0.0
      %1921 = vmatprep.subr.mxu0 0.0
      %1922 = vmatpush1.xpose.msra.mxu0 0.0
      %1923 = vmatprep.subr.mxu0 0.0
      %1924 = vmatpush1.xpose.msra.mxu0 0.0
      %1925 = vmatprep.subr.mxu0 0.0
      %1926 = vmatpush1.xpose.msra.mxu0 0.0
      %1927 = vmatprep.subr.mxu0 0.0
      %1928 = vmatpush1.xpose.msra.mxu0 0.0
      %1929 = vmatprep.subr.mxu0 0.0
      %1930 = vmatpush1.xpose.msra.mxu0 0.0
      %1931 = vmatprep.subr.mxu0 0.0
      %1932 = vmatpush1.xpose.msra.mxu0 0.0
      %1933 = vmatprep.subr.mxu0 0.0
      %1934 = vmatpush1.xpose.msra.mxu0 0.0
      %1935 = vmatprep.subr.mxu0 0.0
      %1936 = vmatpush1.xpose.msra.mxu0 0.0
      %1937 = vmatprep.subr.mxu0 0.0
      %1938 = vmatpush1.xpose.msra.mxu0 0.0
      %1939 = vmatprep.subr.mxu0 0.0
      %1940 = vmatpush1.xpose.msra.mxu0 0.0
      %1941 = vmatprep.subr.mxu0 0.0
      %1942 = vmatpush1.xpose.msra.mxu0 0.0
      %1943 = vmatprep.subr.mxu0 0.0
      %1944 = vmatpush1.xpose.msra.mxu0 0.0
      %1945 = vmatprep.subr.mxu0 0.0
      %1946 = vmatpush1.xpose.msra.mxu0 0.0
      %1947 = vmatprep.subr.mxu0 0.0
      %1948 = vmatpush1.xpose.msra.mxu0 0.0
      %1949 = vmatprep.subr.mxu0 0.0
      %1950 = vmatpush1.xpose.msra.mxu0 0.0
      %1951 = vmatprep.subr.mxu0 0.0
      %1952 = vmatpush1.xpose.msra.mxu0 0.0
      %1953 = vmatprep.subr.mxu0 0.0
      %1954 = vmatpush1.xpose.msra.mxu0 0.0
      %1955 = vmatprep.subr.mxu0 0.0
      %1956 = vmatpush1.xpose.msra.mxu0 0.0
      %1957 = vmatprep.subr.mxu0 0.0
      %1958 = vmatpush1.xpose.msra.mxu0 0.0
      %1959 = vmatprep.subr.mxu0 0.0
      %1960 = vmatpush1.xpose.msra.mxu0 0.0
      %1961 = vmatprep.subr.mxu0 0.0
      %1962 = vmatpush1.xpose.msra.mxu0 0.0
      %1963 = vmatprep.subr.mxu0 0.0
      %1964 = vmatpush1.xpose.msra.mxu0 0.0
      %1965 = vmatprep.subr.mxu0 0.0
      %1966 = vmatpush1.xpose.msra.mxu0 0.0
      %1967 = vmatprep.subr.mxu0 0.0
      %1968 = vmatpush1.xpose.msra.mxu0 0.0
      %1969 = vmatprep.subr.mxu0 0.0
      %1970 = vmatpush1.xpose.msra.mxu0 0.0
      %1971 = vmatprep.subr.mxu0 0.0
      %1972 = vmatpush1.xpose.msra.mxu0 0.0
      %1973 = vmatprep.subr.mxu0 0.0
      %1974 = vmatpush1.xpose.msra.mxu0 0.0
      %1975 = vmatprep.subr.mxu0 0.0
      %1976 = vmatpush1.xpose.msra.mxu0 0.0
      %1977 = vmatprep.subr.mxu0 0.0
      %1978 = vmatpush1.xpose.msra.mxu0 0.0
      %1979 = vmatprep.subr.mxu0 0.0
      %1980 = vmatpush1.xpose.msra.mxu0 0.0
      %1981 = vmatprep.mubr.f32.mxu0 0.0
      %1982 = vmatmul.mubr.f32.gmra.mrb[0].mxu0 %v1913
      %v1983 = vpop.f32.mrb[0].mxu0
      %v1984 = vadd.f32 0.0, %v1983
      %v1985 = vpop.f32.mrb[0].mxu0
      %1986 = vdwg.mxu0
      %1988 = vrot.lane.b32.xlu0 %v1109, 96
      %v1989 = vpop.permute.xlu0 %1988
      %v1990 = vsel %vm395, %v1109, 0
      %v1992 = vsel %vm395, %v1989, 0
      %1994 = vmatprep.subr.mxu0 0.0
      %1995 = vmatpush1.xpose.msra.mxu0 %v1992
      %1996 = vmatprep.subr.mxu0 0.0
      %1997 = vmatpush1.xpose.msra.mxu0 0.0
      %1998 = vmatprep.subr.mxu0 0.0
      %1999 = vmatpush1.xpose.msra.mxu0 0.0
      %2000 = vmatprep.subr.mxu0 0.0
      %2001 = vmatpush1.xpose.msra.mxu0 0.0
      %2002 = vmatprep.subr.mxu0 0.0
      %2003 = vmatpush1.xpose.msra.mxu0 0.0
      %2004 = vmatprep.subr.mxu0 0.0
      %2005 = vmatpush1.xpose.msra.mxu0 0.0
      %2006 = vmatprep.subr.mxu0 0.0
      %2007 = vmatpush1.xpose.msra.mxu0 0.0
      %2008 = vmatprep.subr.mxu0 0.0
      %2009 = vmatpush1.xpose.msra.mxu0 0.0
      %2010 = vmatprep.subr.mxu0 0.0
      %2011 = vmatpush1.xpose.msra.mxu0 0.0
      %2012 = vmatprep.subr.mxu0 0.0
      %2013 = vmatpush1.xpose.msra.mxu0 0.0
      %2014 = vmatprep.subr.mxu0 0.0
      %2015 = vmatpush1.xpose.msra.mxu0 0.0
      %2016 = vmatprep.subr.mxu0 0.0
      %2017 = vmatpush1.xpose.msra.mxu0 0.0
      %2018 = vmatprep.subr.mxu0 0.0
      %2019 = vmatpush1.xpose.msra.mxu0 0.0
      %2020 = vmatprep.subr.mxu0 0.0
      %2021 = vmatpush1.xpose.msra.mxu0 0.0
      %2022 = vmatprep.subr.mxu0 0.0
      %2023 = vmatpush1.xpose.msra.mxu0 0.0
      %2024 = vmatprep.subr.mxu0 0.0
      %2025 = vmatpush1.xpose.msra.mxu0 0.0
      %2026 = vmatprep.subr.mxu0 0.0
      %2027 = vmatpush1.xpose.msra.mxu0 0.0
      %2028 = vmatprep.subr.mxu0 0.0
      %2029 = vmatpush1.xpose.msra.mxu0 0.0
      %2030 = vmatprep.subr.mxu0 0.0
      %2031 = vmatpush1.xpose.msra.mxu0 0.0
      %2032 = vmatprep.subr.mxu0 0.0
      %2033 = vmatpush1.xpose.msra.mxu0 0.0
      %2034 = vmatprep.subr.mxu0 0.0
      %2035 = vmatpush1.xpose.msra.mxu0 0.0
      %2036 = vmatprep.subr.mxu0 0.0
      %2037 = vmatpush1.xpose.msra.mxu0 0.0
      %2038 = vmatprep.subr.mxu0 0.0
      %2039 = vmatpush1.xpose.msra.mxu0 0.0
      %2040 = vmatprep.subr.mxu0 0.0
      %2041 = vmatpush1.xpose.msra.mxu0 0.0
      %2042 = vmatprep.subr.mxu0 0.0
      %2043 = vmatpush1.xpose.msra.mxu0 0.0
      %2044 = vmatprep.subr.mxu0 0.0
      %2045 = vmatpush1.xpose.msra.mxu0 0.0
      %2046 = vmatprep.subr.mxu0 0.0
      %2047 = vmatpush1.xpose.msra.mxu0 0.0
      %2048 = vmatprep.subr.mxu0 0.0
      %2049 = vmatpush1.xpose.msra.mxu0 0.0
      %2050 = vmatprep.subr.mxu0 0.0
      %2051 = vmatpush1.xpose.msra.mxu0 0.0
      %2052 = vmatprep.subr.mxu0 0.0
      %2053 = vmatpush1.xpose.msra.mxu0 0.0
      %2054 = vmatprep.subr.mxu0 0.0
      %2055 = vmatpush1.xpose.msra.mxu0 0.0
      %2056 = vmatprep.subr.mxu0 0.0
      %2057 = vmatpush1.xpose.msra.mxu0 0.0
      %2058 = vmatprep.mubr.f32.mxu0 0.0
      %2059 = vmatmul.mubr.f32.gmra.mrb[0].mxu0 %v1990
      %v2060 = vpop.f32.mrb[0].mxu0
      %v2061 = vadd.f32 0.0, %v2060
      %v2062 = vpop.f32.mrb[0].mxu0
      %2063 = vdwg.mxu0
      %2065 = vrot.lane.b32.xlu0 %v1114, 96
      %v2066 = vpop.permute.xlu0 %2065
      %v2067 = vsel %vm395, %v1114, 0
      %v2069 = vsel %vm395, %v2066, 0
      %2071 = vmatprep.subr.mxu0 0.0
      %2072 = vmatpush1.xpose.msra.mxu0 %v2069
      %2073 = vmatprep.subr.mxu0 0.0
      %2074 = vmatpush1.xpose.msra.mxu0 0.0
      %2075 = vmatprep.subr.mxu0 0.0
      %2076 = vmatpush1.xpose.msra.mxu0 0.0
      %2077 = vmatprep.subr.mxu0 0.0
      %2078 = vmatpush1.xpose.msra.mxu0 0.0
      %2079 = vmatprep.subr.mxu0 0.0
      %2080 = vmatpush1.xpose.msra.mxu0 0.0
      %2081 = vmatprep.subr.mxu0 0.0
      %2082 = vmatpush1.xpose.msra.mxu0 0.0
      %2083 = vmatprep.subr.mxu0 0.0
      %2084 = vmatpush1.xpose.msra.mxu0 0.0
      %2085 = vmatprep.subr.mxu0 0.0
      %2086 = vmatpush1.xpose.msra.mxu0 0.0
      %2087 = vmatprep.subr.mxu0 0.0
      %2088 = vmatpush1.xpose.msra.mxu0 0.0
      %2089 = vmatprep.subr.mxu0 0.0
      %2090 = vmatpush1.xpose.msra.mxu0 0.0
      %2091 = vmatprep.subr.mxu0 0.0
      %2092 = vmatpush1.xpose.msra.mxu0 0.0
      %2093 = vmatprep.subr.mxu0 0.0
      %2094 = vmatpush1.xpose.msra.mxu0 0.0
      %2095 = vmatprep.subr.mxu0 0.0
      %2096 = vmatpush1.xpose.msra.mxu0 0.0
      %2097 = vmatprep.subr.mxu0 0.0
      %2098 = vmatpush1.xpose.msra.mxu0 0.0
      %2099 = vmatprep.subr.mxu0 0.0
      %2100 = vmatpush1.xpose.msra.mxu0 0.0
      %2101 = vmatprep.subr.mxu0 0.0
      %2102 = vmatpush1.xpose.msra.mxu0 0.0
      %2103 = vmatprep.subr.mxu0 0.0
      %2104 = vmatpush1.xpose.msra.mxu0 0.0
      %2105 = vmatprep.subr.mxu0 0.0
      %2106 = vmatpush1.xpose.msra.mxu0 0.0
      %2107 = vmatprep.subr.mxu0 0.0
      %2108 = vmatpush1.xpose.msra.mxu0 0.0
      %2109 = vmatprep.subr.mxu0 0.0
      %2110 = vmatpush1.xpose.msra.mxu0 0.0
      %2111 = vmatprep.subr.mxu0 0.0
      %2112 = vmatpush1.xpose.msra.mxu0 0.0
      %2113 = vmatprep.subr.mxu0 0.0
      %2114 = vmatpush1.xpose.msra.mxu0 0.0
      %2115 = vmatprep.subr.mxu0 0.0
      %2116 = vmatpush1.xpose.msra.mxu0 0.0
      %2117 = vmatprep.subr.mxu0 0.0
      %2118 = vmatpush1.xpose.msra.mxu0 0.0
      %2119 = vmatprep.subr.mxu0 0.0
      %2120 = vmatpush1.xpose.msra.mxu0 0.0
      %2121 = vmatprep.subr.mxu0 0.0
      %2122 = vmatpush1.xpose.msra.mxu0 0.0
      %2123 = vmatprep.subr.mxu0 0.0
      %2124 = vmatpush1.xpose.msra.mxu0 0.0
      %2125 = vmatprep.subr.mxu0 0.0
      %2126 = vmatpush1.xpose.msra.mxu0 0.0
      %2127 = vmatprep.subr.mxu0 0.0
      %2128 = vmatpush1.xpose.msra.mxu0 0.0
      %2129 = vmatprep.subr.mxu0 0.0
      %2130 = vmatpush1.xpose.msra.mxu0 0.0
      %2131 = vmatprep.subr.mxu0 0.0
      %2132 = vmatpush1.xpose.msra.mxu0 0.0
      %2133 = vmatprep.subr.mxu0 0.0
      %2134 = vmatpush1.xpose.msra.mxu0 0.0
      %2135 = vmatprep.mubr.f32.mxu0 0.0
      %2136 = vmatmul.mubr.f32.gmra.mrb[0].mxu0 %v2067
      %v2137 = vpop.f32.mrb[0].mxu0
      %v2138 = vadd.f32 0.0, %v2137
      %v2139 = vpop.f32.mrb[0].mxu0
      %2140 = vdwg.mxu0
      %2142 = vrot.lane.b32.xlu0 %v1119, 96
      %v2143 = vpop.permute.xlu0 %2142
      %v2144 = vsel %vm395, %v1119, 0
      %v2146 = vsel %vm395, %v2143, 0
      %2148 = vmatprep.subr.mxu0 0.0
      %2149 = vmatpush1.xpose.msra.mxu0 %v2146
      %2150 = vmatprep.subr.mxu0 0.0
      %2151 = vmatpush1.xpose.msra.mxu0 0.0
      %2152 = vmatprep.subr.mxu0 0.0
      %2153 = vmatpush1.xpose.msra.mxu0 0.0
      %2154 = vmatprep.subr.mxu0 0.0
      %2155 = vmatpush1.xpose.msra.mxu0 0.0
      %2156 = vmatprep.subr.mxu0 0.0
      %2157 = vmatpush1.xpose.msra.mxu0 0.0
      %2158 = vmatprep.subr.mxu0 0.0
      %2159 = vmatpush1.xpose.msra.mxu0 0.0
      %2160 = vmatprep.subr.mxu0 0.0
      %2161 = vmatpush1.xpose.msra.mxu0 0.0
      %2162 = vmatprep.subr.mxu0 0.0
      %2163 = vmatpush1.xpose.msra.mxu0 0.0
      %2164 = vmatprep.subr.mxu0 0.0
      %2165 = vmatpush1.xpose.msra.mxu0 0.0
      %2166 = vmatprep.subr.mxu0 0.0
      %2167 = vmatpush1.xpose.msra.mxu0 0.0
      %2168 = vmatprep.subr.mxu0 0.0
      %2169 = vmatpush1.xpose.msra.mxu0 0.0
      %2170 = vmatprep.subr.mxu0 0.0
      %2171 = vmatpush1.xpose.msra.mxu0 0.0
      %2172 = vmatprep.subr.mxu0 0.0
      %2173 = vmatpush1.xpose.msra.mxu0 0.0
      %2174 = vmatprep.subr.mxu0 0.0
      %2175 = vmatpush1.xpose.msra.mxu0 0.0
      %2176 = vmatprep.subr.mxu0 0.0
      %2177 = vmatpush1.xpose.msra.mxu0 0.0
      %2178 = vmatprep.subr.mxu0 0.0
      %2179 = vmatpush1.xpose.msra.mxu0 0.0
      %2180 = vmatprep.subr.mxu0 0.0
      %2181 = vmatpush1.xpose.msra.mxu0 0.0
      %2182 = vmatprep.subr.mxu0 0.0
      %2183 = vmatpush1.xpose.msra.mxu0 0.0
      %2184 = vmatprep.subr.mxu0 0.0
      %2185 = vmatpush1.xpose.msra.mxu0 0.0
      %2186 = vmatprep.subr.mxu0 0.0
      %2187 = vmatpush1.xpose.msra.mxu0 0.0
      %2188 = vmatprep.subr.mxu0 0.0
      %2189 = vmatpush1.xpose.msra.mxu0 0.0
      %2190 = vmatprep.subr.mxu0 0.0
      %2191 = vmatpush1.xpose.msra.mxu0 0.0
      %2192 = vmatprep.subr.mxu0 0.0
      %2193 = vmatpush1.xpose.msra.mxu0 0.0
      %2194 = vmatprep.subr.mxu0 0.0
      %2195 = vmatpush1.xpose.msra.mxu0 0.0
      %2196 = vmatprep.subr.mxu0 0.0
      %2197 = vmatpush1.xpose.msra.mxu0 0.0
      %2198 = vmatprep.subr.mxu0 0.0
      %2199 = vmatpush1.xpose.msra.mxu0 0.0
      %2200 = vmatprep.subr.mxu0 0.0
      %2201 = vmatpush1.xpose.msra.mxu0 0.0
      %2202 = vmatprep.subr.mxu0 0.0
      %2203 = vmatpush1.xpose.msra.mxu0 0.0
      %2204 = vmatprep.subr.mxu0 0.0
      %2205 = vmatpush1.xpose.msra.mxu0 0.0
      %2206 = vmatprep.subr.mxu0 0.0
      %2207 = vmatpush1.xpose.msra.mxu0 0.0
      %2208 = vmatprep.subr.mxu0 0.0
      %2209 = vmatpush1.xpose.msra.mxu0 0.0
      %2210 = vmatprep.subr.mxu0 0.0
      %2211 = vmatpush1.xpose.msra.mxu0 0.0
      %2212 = vmatprep.mubr.f32.mxu0 0.0
      %2213 = vmatmul.mubr.f32.gmra.mrb[0].mxu0 %v2144
      %v2214 = vpop.f32.mrb[0].mxu0
      %v2215 = vadd.f32 0.0, %v2214
      %v2216 = vpop.f32.mrb[0].mxu0
      %2217 = vdwg.mxu0
      %2219 = vrot.lane.b32.xlu0 %v1124, 96
      %v2220 = vpop.permute.xlu0 %2219
      %v2221 = vsel %vm395, %v1124, 0
      %v2223 = vsel %vm395, %v2220, 0
      %2225 = vmatprep.subr.mxu0 0.0
      %2226 = vmatpush1.xpose.msra.mxu0 %v2223
      %2227 = vmatprep.subr.mxu0 0.0
      %2228 = vmatpush1.xpose.msra.mxu0 0.0
      %2229 = vmatprep.subr.mxu0 0.0
      %2230 = vmatpush1.xpose.msra.mxu0 0.0
      %2231 = vmatprep.subr.mxu0 0.0
      %2232 = vmatpush1.xpose.msra.mxu0 0.0
      %2233 = vmatprep.subr.mxu0 0.0
      %2234 = vmatpush1.xpose.msra.mxu0 0.0
      %2235 = vmatprep.subr.mxu0 0.0
      %2236 = vmatpush1.xpose.msra.mxu0 0.0
      %2237 = vmatprep.subr.mxu0 0.0
      %2238 = vmatpush1.xpose.msra.mxu0 0.0
      %2239 = vmatprep.subr.mxu0 0.0
      %2240 = vmatpush1.xpose.msra.mxu0 0.0
      %2241 = vmatprep.subr.mxu0 0.0
      %2242 = vmatpush1.xpose.msra.mxu0 0.0
      %2243 = vmatprep.subr.mxu0 0.0
      %2244 = vmatpush1.xpose.msra.mxu0 0.0
      %2245 = vmatprep.subr.mxu0 0.0
      %2246 = vmatpush1.xpose.msra.mxu0 0.0
      %2247 = vmatprep.subr.mxu0 0.0
      %2248 = vmatpush1.xpose.msra.mxu0 0.0
      %2249 = vmatprep.subr.mxu0 0.0
      %2250 = vmatpush1.xpose.msra.mxu0 0.0
      %2251 = vmatprep.subr.mxu0 0.0
      %2252 = vmatpush1.xpose.msra.mxu0 0.0
      %2253 = vmatprep.subr.mxu0 0.0
      %2254 = vmatpush1.xpose.msra.mxu0 0.0
      %2255 = vmatprep.subr.mxu0 0.0
      %2256 = vmatpush1.xpose.msra.mxu0 0.0
      %2257 = vmatprep.subr.mxu0 0.0
      %2258 = vmatpush1.xpose.msra.mxu0 0.0
      %2259 = vmatprep.subr.mxu0 0.0
      %2260 = vmatpush1.xpose.msra.mxu0 0.0
      %2261 = vmatprep.subr.mxu0 0.0
      %2262 = vmatpush1.xpose.msra.mxu0 0.0
      %2263 = vmatprep.subr.mxu0 0.0
      %2264 = vmatpush1.xpose.msra.mxu0 0.0
      %2265 = vmatprep.subr.mxu0 0.0
      %2266 = vmatpush1.xpose.msra.mxu0 0.0
      %2267 = vmatprep.subr.mxu0 0.0
      %2268 = vmatpush1.xpose.msra.mxu0 0.0
      %2269 = vmatprep.subr.mxu0 0.0
      %2270 = vmatpush1.xpose.msra.mxu0 0.0
      %2271 = vmatprep.subr.mxu0 0.0
      %2272 = vmatpush1.xpose.msra.mxu0 0.0
      %2273 = vmatprep.subr.mxu0 0.0
      %2274 = vmatpush1.xpose.msra.mxu0 0.0
      %2275 = vmatprep.subr.mxu0 0.0
      %2276 = vmatpush1.xpose.msra.mxu0 0.0
      %2277 = vmatprep.subr.mxu0 0.0
      %2278 = vmatpush1.xpose.msra.mxu0 0.0
      %2279 = vmatprep.subr.mxu0 0.0
      %2280 = vmatpush1.xpose.msra.mxu0 0.0
      %2281 = vmatprep.subr.mxu0 0.0
      %2282 = vmatpush1.xpose.msra.mxu0 0.0
      %2283 = vmatprep.subr.mxu0 0.0
      %2284 = vmatpush1.xpose.msra.mxu0 0.0
      %2285 = vmatprep.subr.mxu0 0.0
      %2286 = vmatpush1.xpose.msra.mxu0 0.0
      %2287 = vmatprep.subr.mxu0 0.0
      %2288 = vmatpush1.xpose.msra.mxu0 0.0
      %2289 = vmatprep.mubr.f32.mxu0 0.0
      %2290 = vmatmul.mubr.f32.gmra.mrb[0].mxu0 %v2221
      %v2291 = vpop.f32.mrb[0].mxu0
      %v2292 = vadd.f32 0.0, %v2291
      %v2293 = vpop.f32.mrb[0].mxu0
      %2294 = vdwg.mxu0
      %2296 = vrot.lane.b32.xlu0 %v1129, 96
      %v2297 = vpop.permute.xlu0 %2296
      %v2298 = vsel %vm395, %v1129, 0
      %v2300 = vsel %vm395, %v2297, 0
      %2302 = vmatprep.subr.mxu0 0.0
      %2303 = vmatpush1.xpose.msra.mxu0 %v2300
      %2304 = vmatprep.subr.mxu0 0.0
      %2305 = vmatpush1.xpose.msra.mxu0 0.0
      %2306 = vmatprep.subr.mxu0 0.0
      %2307 = vmatpush1.xpose.msra.mxu0 0.0
      %2308 = vmatprep.subr.mxu0 0.0
      %2309 = vmatpush1.xpose.msra.mxu0 0.0
      %2310 = vmatprep.subr.mxu0 0.0
      %2311 = vmatpush1.xpose.msra.mxu0 0.0
      %2312 = vmatprep.subr.mxu0 0.0
      %2313 = vmatpush1.xpose.msra.mxu0 0.0
      %2314 = vmatprep.subr.mxu0 0.0
      %2315 = vmatpush1.xpose.msra.mxu0 0.0
      %2316 = vmatprep.subr.mxu0 0.0
      %2317 = vmatpush1.xpose.msra.mxu0 0.0
      %2318 = vmatprep.subr.mxu0 0.0
      %2319 = vmatpush1.xpose.msra.mxu0 0.0
      %2320 = vmatprep.subr.mxu0 0.0
      %2321 = vmatpush1.xpose.msra.mxu0 0.0
      %2322 = vmatprep.subr.mxu0 0.0
      %2323 = vmatpush1.xpose.msra.mxu0 0.0
      %2324 = vmatprep.subr.mxu0 0.0
      %2325 = vmatpush1.xpose.msra.mxu0 0.0
      %2326 = vmatprep.subr.mxu0 0.0
      %2327 = vmatpush1.xpose.msra.mxu0 0.0
      %2328 = vmatprep.subr.mxu0 0.0
      %2329 = vmatpush1.xpose.msra.mxu0 0.0
      %2330 = vmatprep.subr.mxu0 0.0
      %2331 = vmatpush1.xpose.msra.mxu0 0.0
      %2332 = vmatprep.subr.mxu0 0.0
      %2333 = vmatpush1.xpose.msra.mxu0 0.0
      %2334 = vmatprep.subr.mxu0 0.0
      %2335 = vmatpush1.xpose.msra.mxu0 0.0
      %2336 = vmatprep.subr.mxu0 0.0
      %2337 = vmatpush1.xpose.msra.mxu0 0.0
      %2338 = vmatprep.subr.mxu0 0.0
      %2339 = vmatpush1.xpose.msra.mxu0 0.0
      %2340 = vmatprep.subr.mxu0 0.0
      %2341 = vmatpush1.xpose.msra.mxu0 0.0
      %2342 = vmatprep.subr.mxu0 0.0
      %2343 = vmatpush1.xpose.msra.mxu0 0.0
      %2344 = vmatprep.subr.mxu0 0.0
      %2345 = vmatpush1.xpose.msra.mxu0 0.0
      %2346 = vmatprep.subr.mxu0 0.0
      %2347 = vmatpush1.xpose.msra.mxu0 0.0
      %2348 = vmatprep.subr.mxu0 0.0
      %2349 = vmatpush1.xpose.msra.mxu0 0.0
      %2350 = vmatprep.subr.mxu0 0.0
      %2351 = vmatpush1.xpose.msra.mxu0 0.0
      %2352 = vmatprep.subr.mxu0 0.0
      %2353 = vmatpush1.xpose.msra.mxu0 0.0
      %2354 = vmatprep.subr.mxu0 0.0
      %2355 = vmatpush1.xpose.msra.mxu0 0.0
      %2356 = vmatprep.subr.mxu0 0.0
      %2357 = vmatpush1.xpose.msra.mxu0 0.0
      %2358 = vmatprep.subr.mxu0 0.0
      %2359 = vmatpush1.xpose.msra.mxu0 0.0
      %2360 = vmatprep.subr.mxu0 0.0
      %2361 = vmatpush1.xpose.msra.mxu0 0.0
      %2362 = vmatprep.subr.mxu0 0.0
      %2363 = vmatpush1.xpose.msra.mxu0 0.0
      %2364 = vmatprep.subr.mxu0 0.0
      %2365 = vmatpush1.xpose.msra.mxu0 0.0
      %2366 = vmatprep.mubr.f32.mxu0 0.0
      %2367 = vmatmul.mubr.f32.gmra.mrb[0].mxu0 %v2298
      %v2368 = vpop.f32.mrb[0].mxu0
      %v2369 = vadd.f32 0.0, %v2368
      %v2370 = vpop.f32.mrb[0].mxu0
      %2371 = vdwg.mxu0
      %2373 = vrot.lane.b32.xlu0 %v1134, 96
      %v2374 = vpop.permute.xlu0 %2373
      %v2375 = vsel %vm395, %v1134, 0
      %v2377 = vsel %vm395, %v2374, 0
      %2379 = vmatprep.subr.mxu0 0.0
      %2380 = vmatpush1.xpose.msra.mxu0 %v2377
      %2381 = vmatprep.subr.mxu0 0.0
      %2382 = vmatpush1.xpose.msra.mxu0 0.0
      %2383 = vmatprep.subr.mxu0 0.0
      %2384 = vmatpush1.xpose.msra.mxu0 0.0
      %2385 = vmatprep.subr.mxu0 0.0
      %2386 = vmatpush1.xpose.msra.mxu0 0.0
      %2387 = vmatprep.subr.mxu0 0.0
      %2388 = vmatpush1.xpose.msra.mxu0 0.0
      %2389 = vmatprep.subr.mxu0 0.0
      %2390 = vmatpush1.xpose.msra.mxu0 0.0
      %2391 = vmatprep.subr.mxu0 0.0
      %2392 = vmatpush1.xpose.msra.mxu0 0.0
      %2393 = vmatprep.subr.mxu0 0.0
      %2394 = vmatpush1.xpose.msra.mxu0 0.0
      %2395 = vmatprep.subr.mxu0 0.0
      %2396 = vmatpush1.xpose.msra.mxu0 0.0
      %2397 = vmatprep.subr.mxu0 0.0
      %2398 = vmatpush1.xpose.msra.mxu0 0.0
      %2399 = vmatprep.subr.mxu0 0.0
      %2400 = vmatpush1.xpose.msra.mxu0 0.0
      %2401 = vmatprep.subr.mxu0 0.0
      %2402 = vmatpush1.xpose.msra.mxu0 0.0
      %2403 = vmatprep.subr.mxu0 0.0
      %2404 = vmatpush1.xpose.msra.mxu0 0.0
      %2405 = vmatprep.subr.mxu0 0.0
      %2406 = vmatpush1.xpose.msra.mxu0 0.0
      %2407 = vmatprep.subr.mxu0 0.0
      %2408 = vmatpush1.xpose.msra.mxu0 0.0
      %2409 = vmatprep.subr.mxu0 0.0
      %2410 = vmatpush1.xpose.msra.mxu0 0.0
      %2411 = vmatprep.subr.mxu0 0.0
      %2412 = vmatpush1.xpose.msra.mxu0 0.0
      %2413 = vmatprep.subr.mxu0 0.0
      %2414 = vmatpush1.xpose.msra.mxu0 0.0
      %2415 = vmatprep.subr.mxu0 0.0
      %2416 = vmatpush1.xpose.msra.mxu0 0.0
      %2417 = vmatprep.subr.mxu0 0.0
      %2418 = vmatpush1.xpose.msra.mxu0 0.0
      %2419 = vmatprep.subr.mxu0 0.0
      %2420 = vmatpush1.xpose.msra.mxu0 0.0
      %2421 = vmatprep.subr.mxu0 0.0
      %2422 = vmatpush1.xpose.msra.mxu0 0.0
      %2423 = vmatprep.subr.mxu0 0.0
      %2424 = vmatpush1.xpose.msra.mxu0 0.0
      %2425 = vmatprep.subr.mxu0 0.0
      %2426 = vmatpush1.xpose.msra.mxu0 0.0
      %2427 = vmatprep.subr.mxu0 0.0
      %2428 = vmatpush1.xpose.msra.mxu0 0.0
      %2429 = vmatprep.subr.mxu0 0.0
      %2430 = vmatpush1.xpose.msra.mxu0 0.0
      %2431 = vmatprep.subr.mxu0 0.0
      %2432 = vmatpush1.xpose.msra.mxu0 0.0
      %2433 = vmatprep.subr.mxu0 0.0
      %2434 = vmatpush1.xpose.msra.mxu0 0.0
      %2435 = vmatprep.subr.mxu0 0.0
      %2436 = vmatpush1.xpose.msra.mxu0 0.0
      %2437 = vmatprep.subr.mxu0 0.0
      %2438 = vmatpush1.xpose.msra.mxu0 0.0
      %2439 = vmatprep.subr.mxu0 0.0
      %2440 = vmatpush1.xpose.msra.mxu0 0.0
      %2441 = vmatprep.subr.mxu0 0.0
      %2442 = vmatpush1.xpose.msra.mxu0 0.0
      %2443 = vmatprep.mubr.f32.mxu0 0.0
      %2444 = vmatmul.mubr.f32.gmra.mrb[0].mxu0 %v2375
      %v2445 = vpop.f32.mrb[0].mxu0
      %v2446 = vadd.f32 0.0, %v2445
      %v2447 = vpop.f32.mrb[0].mxu0
      %2448 = vdwg.mxu0
      %2450 = vrot.lane.b32.xlu0 %v1139, 96
      %v2451 = vpop.permute.xlu0 %2450
      %v2452 = vsel %vm395, %v1139, 0
      %v2454 = vsel %vm395, %v2451, 0
      %2456 = vmatprep.subr.mxu0 0.0
      %2457 = vmatpush1.xpose.msra.mxu0 %v2454
      %2458 = vmatprep.subr.mxu0 0.0
      %2459 = vmatpush1.xpose.msra.mxu0 0.0
      %2460 = vmatprep.subr.mxu0 0.0
      %2461 = vmatpush1.xpose.msra.mxu0 0.0
      %2462 = vmatprep.subr.mxu0 0.0
      %2463 = vmatpush1.xpose.msra.mxu0 0.0
      %2464 = vmatprep.subr.mxu0 0.0
      %2465 = vmatpush1.xpose.msra.mxu0 0.0
      %2466 = vmatprep.subr.mxu0 0.0
      %2467 = vmatpush1.xpose.msra.mxu0 0.0
      %2468 = vmatprep.subr.mxu0 0.0
      %2469 = vmatpush1.xpose.msra.mxu0 0.0
      %2470 = vmatprep.subr.mxu0 0.0
      %2471 = vmatpush1.xpose.msra.mxu0 0.0
      %2472 = vmatprep.subr.mxu0 0.0
      %2473 = vmatpush1.xpose.msra.mxu0 0.0
      %2474 = vmatprep.subr.mxu0 0.0
      %2475 = vmatpush1.xpose.msra.mxu0 0.0
      %2476 = vmatprep.subr.mxu0 0.0
      %2477 = vmatpush1.xpose.msra.mxu0 0.0
      %2478 = vmatprep.subr.mxu0 0.0
      %2479 = vmatpush1.xpose.msra.mxu0 0.0
      %2480 = vmatprep.subr.mxu0 0.0
      %2481 = vmatpush1.xpose.msra.mxu0 0.0
      %2482 = vmatprep.subr.mxu0 0.0
      %2483 = vmatpush1.xpose.msra.mxu0 0.0
      %2484 = vmatprep.subr.mxu0 0.0
      %2485 = vmatpush1.xpose.msra.mxu0 0.0
      %2486 = vmatprep.subr.mxu0 0.0
      %2487 = vmatpush1.xpose.msra.mxu0 0.0
      %2488 = vmatprep.subr.mxu0 0.0
      %2489 = vmatpush1.xpose.msra.mxu0 0.0
      %2490 = vmatprep.subr.mxu0 0.0
      %2491 = vmatpush1.xpose.msra.mxu0 0.0
      %2492 = vmatprep.subr.mxu0 0.0
      %2493 = vmatpush1.xpose.msra.mxu0 0.0
      %2494 = vmatprep.subr.mxu0 0.0
      %2495 = vmatpush1.xpose.msra.mxu0 0.0
      %2496 = vmatprep.subr.mxu0 0.0
      %2497 = vmatpush1.xpose.msra.mxu0 0.0
      %2498 = vmatprep.subr.mxu0 0.0
      %2499 = vmatpush1.xpose.msra.mxu0 0.0
      %2500 = vmatprep.subr.mxu0 0.0
      %2501 = vmatpush1.xpose.msra.mxu0 0.0
      %2502 = vmatprep.subr.mxu0 0.0
      %2503 = vmatpush1.xpose.msra.mxu0 0.0
      %2504 = vmatprep.subr.mxu0 0.0
      %2505 = vmatpush1.xpose.msra.mxu0 0.0
      %2506 = vmatprep.subr.mxu0 0.0
      %2507 = vmatpush1.xpose.msra.mxu0 0.0
      %2508 = vmatprep.subr.mxu0 0.0
      %2509 = vmatpush1.xpose.msra.mxu0 0.0
      %2510 = vmatprep.subr.mxu0 0.0
      %2511 = vmatpush1.xpose.msra.mxu0 0.0
      %2512 = vmatprep.subr.mxu0 0.0
      %2513 = vmatpush1.xpose.msra.mxu0 0.0
      %2514 = vmatprep.subr.mxu0 0.0
      %2515 = vmatpush1.xpose.msra.mxu0 0.0
      %2516 = vmatprep.subr.mxu0 0.0
      %2517 = vmatpush1.xpose.msra.mxu0 0.0
      %2518 = vmatprep.subr.mxu0 0.0
      %2519 = vmatpush1.xpose.msra.mxu0 0.0
      %2520 = vmatprep.mubr.f32.mxu0 0.0
      %2521 = vmatmul.mubr.f32.gmra.mrb[0].mxu0 %v2452
      %v2522 = vpop.f32.mrb[0].mxu0
      %v2523 = vadd.f32 0.0, %v2522
      %v2524 = vpop.f32.mrb[0].mxu0
      %2525 = vdwg.mxu0
      %2527 = vrot.lane.b32.xlu0 %v1144, 96
      %v2528 = vpop.permute.xlu0 %2527
      %v2529 = vsel %vm395, %v1144, 0
      %v2531 = vsel %vm395, %v2528, 0
      %2533 = vmatprep.subr.mxu0 0.0
      %2534 = vmatpush1.xpose.msra.mxu0 %v2531
      %2535 = vmatprep.subr.mxu0 0.0
      %2536 = vmatpush1.xpose.msra.mxu0 0.0
      %2537 = vmatprep.subr.mxu0 0.0
      %2538 = vmatpush1.xpose.msra.mxu0 0.0
      %2539 = vmatprep.subr.mxu0 0.0
      %2540 = vmatpush1.xpose.msra.mxu0 0.0
      %2541 = vmatprep.subr.mxu0 0.0
      %2542 = vmatpush1.xpose.msra.mxu0 0.0
      %2543 = vmatprep.subr.mxu0 0.0
      %2544 = vmatpush1.xpose.msra.mxu0 0.0
      %2545 = vmatprep.subr.mxu0 0.0
      %2546 = vmatpush1.xpose.msra.mxu0 0.0
      %2547 = vmatprep.subr.mxu0 0.0
      %2548 = vmatpush1.xpose.msra.mxu0 0.0
      %2549 = vmatprep.subr.mxu0 0.0
      %2550 = vmatpush1.xpose.msra.mxu0 0.0
      %2551 = vmatprep.subr.mxu0 0.0
      %2552 = vmatpush1.xpose.msra.mxu0 0.0
      %2553 = vmatprep.subr.mxu0 0.0
      %2554 = vmatpush1.xpose.msra.mxu0 0.0
      %2555 = vmatprep.subr.mxu0 0.0
      %2556 = vmatpush1.xpose.msra.mxu0 0.0
      %2557 = vmatprep.subr.mxu0 0.0
      %2558 = vmatpush1.xpose.msra.mxu0 0.0
      %2559 = vmatprep.subr.mxu0 0.0
      %2560 = vmatpush1.xpose.msra.mxu0 0.0
      %2561 = vmatprep.subr.mxu0 0.0
      %2562 = vmatpush1.xpose.msra.mxu0 0.0
      %2563 = vmatprep.subr.mxu0 0.0
      %2564 = vmatpush1.xpose.msra.mxu0 0.0
      %2565 = vmatprep.subr.mxu0 0.0
      %2566 = vmatpush1.xpose.msra.mxu0 0.0
      %2567 = vmatprep.subr.mxu0 0.0
      %2568 = vmatpush1.xpose.msra.mxu0 0.0
      %2569 = vmatprep.subr.mxu0 0.0
      %2570 = vmatpush1.xpose.msra.mxu0 0.0
      %2571 = vmatprep.subr.mxu0 0.0
      %2572 = vmatpush1.xpose.msra.mxu0 0.0
      %2573 = vmatprep.subr.mxu0 0.0
      %2574 = vmatpush1.xpose.msra.mxu0 0.0
      %2575 = vmatprep.subr.mxu0 0.0
      %2576 = vmatpush1.xpose.msra.mxu0 0.0
      %2577 = vmatprep.subr.mxu0 0.0
      %2578 = vmatpush1.xpose.msra.mxu0 0.0
      %2579 = vmatprep.subr.mxu0 0.0
      %2580 = vmatpush1.xpose.msra.mxu0 0.0
      %2581 = vmatprep.subr.mxu0 0.0
      %2582 = vmatpush1.xpose.msra.mxu0 0.0
      %2583 = vmatprep.subr.mxu0 0.0
      %2584 = vmatpush1.xpose.msra.mxu0 0.0
      %2585 = vmatprep.subr.mxu0 0.0
      %2586 = vmatpush1.xpose.msra.mxu0 0.0
      %2587 = vmatprep.subr.mxu0 0.0
      %2588 = vmatpush1.xpose.msra.mxu0 0.0
      %2589 = vmatprep.subr.mxu0 0.0
      %2590 = vmatpush1.xpose.msra.mxu0 0.0
      %2591 = vmatprep.subr.mxu0 0.0
      %2592 = vmatpush1.xpose.msra.mxu0 0.0
      %2593 = vmatprep.subr.mxu0 0.0
      %2594 = vmatpush1.xpose.msra.mxu0 0.0
      %2595 = vmatprep.subr.mxu0 0.0
      %2596 = vmatpush1.xpose.msra.mxu0 0.0
      %2597 = vmatprep.mubr.f32.mxu0 0.0
      %2598 = vmatmul.mubr.f32.gmra.mrb[0].mxu0 %v2529
      %v2599 = vpop.f32.mrb[0].mxu0
      %v2600 = vadd.f32 0.0, %v2599
      %v2601 = vpop.f32.mrb[0].mxu0
      %2602 = vdwg.mxu0
      %2604 = vrot.lane.b32.xlu0 %v1149, 96
      %v2605 = vpop.permute.xlu0 %2604
      %v2606 = vsel %vm395, %v1149, 0
      %v2608 = vsel %vm395, %v2605, 0
      %2610 = vmatprep.subr.mxu0 0.0
      %2611 = vmatpush1.xpose.msra.mxu0 %v2608
      %2612 = vmatprep.subr.mxu0 0.0
      %2613 = vmatpush1.xpose.msra.mxu0 0.0
      %2614 = vmatprep.subr.mxu0 0.0
      %2615 = vmatpush1.xpose.msra.mxu0 0.0
      %2616 = vmatprep.subr.mxu0 0.0
      %2617 = vmatpush1.xpose.msra.mxu0 0.0
      %2618 = vmatprep.subr.mxu0 0.0
      %2619 = vmatpush1.xpose.msra.mxu0 0.0
      %2620 = vmatprep.subr.mxu0 0.0
      %2621 = vmatpush1.xpose.msra.mxu0 0.0
      %2622 = vmatprep.subr.mxu0 0.0
      %2623 = vmatpush1.xpose.msra.mxu0 0.0
      %2624 = vmatprep.subr.mxu0 0.0
      %2625 = vmatpush1.xpose.msra.mxu0 0.0
      %2626 = vmatprep.subr.mxu0 0.0
      %2627 = vmatpush1.xpose.msra.mxu0 0.0
      %2628 = vmatprep.subr.mxu0 0.0
      %2629 = vmatpush1.xpose.msra.mxu0 0.0
      %2630 = vmatprep.subr.mxu0 0.0
      %2631 = vmatpush1.xpose.msra.mxu0 0.0
      %2632 = vmatprep.subr.mxu0 0.0
      %2633 = vmatpush1.xpose.msra.mxu0 0.0
      %2634 = vmatprep.subr.mxu0 0.0
      %2635 = vmatpush1.xpose.msra.mxu0 0.0
      %2636 = vmatprep.subr.mxu0 0.0
      %2637 = vmatpush1.xpose.msra.mxu0 0.0
      %2638 = vmatprep.subr.mxu0 0.0
      %2639 = vmatpush1.xpose.msra.mxu0 0.0
      %2640 = vmatprep.subr.mxu0 0.0
      %2641 = vmatpush1.xpose.msra.mxu0 0.0
      %2642 = vmatprep.subr.mxu0 0.0
      %2643 = vmatpush1.xpose.msra.mxu0 0.0
      %2644 = vmatprep.subr.mxu0 0.0
      %2645 = vmatpush1.xpose.msra.mxu0 0.0
      %2646 = vmatprep.subr.mxu0 0.0
      %2647 = vmatpush1.xpose.msra.mxu0 0.0
      %2648 = vmatprep.subr.mxu0 0.0
      %2649 = vmatpush1.xpose.msra.mxu0 0.0
      %2650 = vmatprep.subr.mxu0 0.0
      %2651 = vmatpush1.xpose.msra.mxu0 0.0
      %2652 = vmatprep.subr.mxu0 0.0
      %2653 = vmatpush1.xpose.msra.mxu0 0.0
      %2654 = vmatprep.subr.mxu0 0.0
      %2655 = vmatpush1.xpose.msra.mxu0 0.0
      %2656 = vmatprep.subr.mxu0 0.0
      %2657 = vmatpush1.xpose.msra.mxu0 0.0
      %2658 = vmatprep.subr.mxu0 0.0
      %2659 = vmatpush1.xpose.msra.mxu0 0.0
      %2660 = vmatprep.subr.mxu0 0.0
      %2661 = vmatpush1.xpose.msra.mxu0 0.0
      %2662 = vmatprep.subr.mxu0 0.0
      %2663 = vmatpush1.xpose.msra.mxu0 0.0
      %2664 = vmatprep.subr.mxu0 0.0
      %2665 = vmatpush1.xpose.msra.mxu0 0.0
      %2666 = vmatprep.subr.mxu0 0.0
      %2667 = vmatpush1.xpose.msra.mxu0 0.0
      %2668 = vmatprep.subr.mxu0 0.0
      %2669 = vmatpush1.xpose.msra.mxu0 0.0
      %2670 = vmatprep.subr.mxu0 0.0
      %2671 = vmatpush1.xpose.msra.mxu0 0.0
      %2672 = vmatprep.subr.mxu0 0.0
      %2673 = vmatpush1.xpose.msra.mxu0 0.0
      %2674 = vmatprep.mubr.f32.mxu0 0.0
      %2675 = vmatmul.mubr.f32.gmra.mrb[0].mxu0 %v2606
      %v2676 = vpop.f32.mrb[0].mxu0
      %v2677 = vadd.f32 0.0, %v2676
      %v2678 = vpop.f32.mrb[0].mxu0
      %2679 = vdwg.mxu0
      %2681 = vrot.lane.b32.xlu0 %v1154, 96
      %v2682 = vpop.permute.xlu0 %2681
      %v2683 = vsel %vm395, %v1154, 0
      %v2685 = vsel %vm395, %v2682, 0
      %2687 = vmatprep.subr.mxu0 0.0
      %2688 = vmatpush1.xpose.msra.mxu0 %v2685
      %2689 = vmatprep.subr.mxu0 0.0
      %2690 = vmatpush1.xpose.msra.mxu0 0.0
      %2691 = vmatprep.subr.mxu0 0.0
      %2692 = vmatpush1.xpose.msra.mxu0 0.0
      %2693 = vmatprep.subr.mxu0 0.0
      %2694 = vmatpush1.xpose.msra.mxu0 0.0
      %2695 = vmatprep.subr.mxu0 0.0
      %2696 = vmatpush1.xpose.msra.mxu0 0.0
      %2697 = vmatprep.subr.mxu0 0.0
      %2698 = vmatpush1.xpose.msra.mxu0 0.0
      %2699 = vmatprep.subr.mxu0 0.0
      %2700 = vmatpush1.xpose.msra.mxu0 0.0
      %2701 = vmatprep.subr.mxu0 0.0
      %2702 = vmatpush1.xpose.msra.mxu0 0.0
      %2703 = vmatprep.subr.mxu0 0.0
      %2704 = vmatpush1.xpose.msra.mxu0 0.0
      %2705 = vmatprep.subr.mxu0 0.0
      %2706 = vmatpush1.xpose.msra.mxu0 0.0
      %2707 = vmatprep.subr.mxu0 0.0
      %2708 = vmatpush1.xpose.msra.mxu0 0.0
      %2709 = vmatprep.subr.mxu0 0.0
      %2710 = vmatpush1.xpose.msra.mxu0 0.0
      %2711 = vmatprep.subr.mxu0 0.0
      %2712 = vmatpush1.xpose.msra.mxu0 0.0
      %2713 = vmatprep.subr.mxu0 0.0
      %2714 = vmatpush1.xpose.msra.mxu0 0.0
      %2715 = vmatprep.subr.mxu0 0.0
      %2716 = vmatpush1.xpose.msra.mxu0 0.0
      %2717 = vmatprep.subr.mxu0 0.0
      %2718 = vmatpush1.xpose.msra.mxu0 0.0
      %2719 = vmatprep.subr.mxu0 0.0
      %2720 = vmatpush1.xpose.msra.mxu0 0.0
      %2721 = vmatprep.subr.mxu0 0.0
      %2722 = vmatpush1.xpose.msra.mxu0 0.0
      %2723 = vmatprep.subr.mxu0 0.0
      %2724 = vmatpush1.xpose.msra.mxu0 0.0
      %2725 = vmatprep.subr.mxu0 0.0
      %2726 = vmatpush1.xpose.msra.mxu0 0.0
      %2727 = vmatprep.subr.mxu0 0.0
      %2728 = vmatpush1.xpose.msra.mxu0 0.0
      %2729 = vmatprep.subr.mxu0 0.0
      %2730 = vmatpush1.xpose.msra.mxu0 0.0
      %2731 = vmatprep.subr.mxu0 0.0
      %2732 = vmatpush1.xpose.msra.mxu0 0.0
      %2733 = vmatprep.subr.mxu0 0.0
      %2734 = vmatpush1.xpose.msra.mxu0 0.0
      %2735 = vmatprep.subr.mxu0 0.0
      %2736 = vmatpush1.xpose.msra.mxu0 0.0
      %2737 = vmatprep.subr.mxu0 0.0
      %2738 = vmatpush1.xpose.msra.mxu0 0.0
      %2739 = vmatprep.subr.mxu0 0.0
      %2740 = vmatpush1.xpose.msra.mxu0 0.0
      %2741 = vmatprep.subr.mxu0 0.0
      %2742 = vmatpush1.xpose.msra.mxu0 0.0
      %2743 = vmatprep.subr.mxu0 0.0
      %2744 = vmatpush1.xpose.msra.mxu0 0.0
      %2745 = vmatprep.subr.mxu0 0.0
      %2746 = vmatpush1.xpose.msra.mxu0 0.0
      %2747 = vmatprep.subr.mxu0 0.0
      %2748 = vmatpush1.xpose.msra.mxu0 0.0
      %2749 = vmatprep.subr.mxu0 0.0
      %2750 = vmatpush1.xpose.msra.mxu0 0.0
      %2751 = vmatprep.mubr.f32.mxu0 0.0
      %2752 = vmatmul.mubr.f32.gmra.mrb[0].mxu0 %v2683
      %v2753 = vpop.f32.mrb[0].mxu0
      %v2754 = vadd.f32 0.0, %v2753
      %v2755 = vpop.f32.mrb[0].mxu0
      %2756 = vdwg.mxu0
      %2758 = vrot.lane.b32.xlu0 %v1159, 96
      %v2759 = vpop.permute.xlu0 %2758
      %v2760 = vsel %vm395, %v1159, 0
      %v2762 = vsel %vm395, %v2759, 0
      %2764 = vmatprep.subr.mxu0 0.0
      %2765 = vmatpush1.xpose.msra.mxu0 %v2762
      %2766 = vmatprep.subr.mxu0 0.0
      %2767 = vmatpush1.xpose.msra.mxu0 0.0
      %2768 = vmatprep.subr.mxu0 0.0
      %2769 = vmatpush1.xpose.msra.mxu0 0.0
      %2770 = vmatprep.subr.mxu0 0.0
      %2771 = vmatpush1.xpose.msra.mxu0 0.0
      %2772 = vmatprep.subr.mxu0 0.0
      %2773 = vmatpush1.xpose.msra.mxu0 0.0
      %2774 = vmatprep.subr.mxu0 0.0
      %2775 = vmatpush1.xpose.msra.mxu0 0.0
      %2776 = vmatprep.subr.mxu0 0.0
      %2777 = vmatpush1.xpose.msra.mxu0 0.0
      %2778 = vmatprep.subr.mxu0 0.0
      %2779 = vmatpush1.xpose.msra.mxu0 0.0
      %2780 = vmatprep.subr.mxu0 0.0
      %2781 = vmatpush1.xpose.msra.mxu0 0.0
      %2782 = vmatprep.subr.mxu0 0.0
      %2783 = vmatpush1.xpose.msra.mxu0 0.0
      %2784 = vmatprep.subr.mxu0 0.0
      %2785 = vmatpush1.xpose.msra.mxu0 0.0
      %2786 = vmatprep.subr.mxu0 0.0
      %2787 = vmatpush1.xpose.msra.mxu0 0.0
      %2788 = vmatprep.subr.mxu0 0.0
      %2789 = vmatpush1.xpose.msra.mxu0 0.0
      %2790 = vmatprep.subr.mxu0 0.0
      %2791 = vmatpush1.xpose.msra.mxu0 0.0
      %2792 = vmatprep.subr.mxu0 0.0
      %2793 = vmatpush1.xpose.msra.mxu0 0.0
      %2794 = vmatprep.subr.mxu0 0.0
      %2795 = vmatpush1.xpose.msra.mxu0 0.0
      %2796 = vmatprep.subr.mxu0 0.0
      %2797 = vmatpush1.xpose.msra.mxu0 0.0
      %2798 = vmatprep.subr.mxu0 0.0
      %2799 = vmatpush1.xpose.msra.mxu0 0.0
      %2800 = vmatprep.subr.mxu0 0.0
      %2801 = vmatpush1.xpose.msra.mxu0 0.0
      %2802 = vmatprep.subr.mxu0 0.0
      %2803 = vmatpush1.xpose.msra.mxu0 0.0
      %2804 = vmatprep.subr.mxu0 0.0
      %2805 = vmatpush1.xpose.msra.mxu0 0.0
      %2806 = vmatprep.subr.mxu0 0.0
      %2807 = vmatpush1.xpose.msra.mxu0 0.0
      %2808 = vmatprep.subr.mxu0 0.0
      %2809 = vmatpush1.xpose.msra.mxu0 0.0
      %2810 = vmatprep.subr.mxu0 0.0
      %2811 = vmatpush1.xpose.msra.mxu0 0.0
      %2812 = vmatprep.subr.mxu0 0.0
      %2813 = vmatpush1.xpose.msra.mxu0 0.0
      %2814 = vmatprep.subr.mxu0 0.0
      %2815 = vmatpush1.xpose.msra.mxu0 0.0
      %2816 = vmatprep.subr.mxu0 0.0
      %2817 = vmatpush1.xpose.msra.mxu0 0.0
      %2818 = vmatprep.subr.mxu0 0.0
      %2819 = vmatpush1.xpose.msra.mxu0 0.0
      %2820 = vmatprep.subr.mxu0 0.0
      %2821 = vmatpush1.xpose.msra.mxu0 0.0
      %2822 = vmatprep.subr.mxu0 0.0
      %2823 = vmatpush1.xpose.msra.mxu0 0.0
      %2824 = vmatprep.subr.mxu0 0.0
      %2825 = vmatpush1.xpose.msra.mxu0 0.0
      %2826 = vmatprep.subr.mxu0 0.0
      %2827 = vmatpush1.xpose.msra.mxu0 0.0
      %2828 = vmatprep.mubr.f32.mxu0 0.0
      %2829 = vmatmul.mubr.f32.gmra.mrb[0].mxu0 %v2760
      %v2830 = vpop.f32.mrb[0].mxu0
      %v2831 = vadd.f32 0.0, %v2830
      %v2832 = vpop.f32.mrb[0].mxu0
      %2833 = vdwg.mxu0
      %2835 = vrot.lane.b32.xlu0 %v1164, 96
      %v2836 = vpop.permute.xlu0 %2835
      %v2837 = vsel %vm395, %v1164, 0
      %v2839 = vsel %vm395, %v2836, 0
      %2841 = vmatprep.subr.mxu0 0.0
      %2842 = vmatpush1.xpose.msra.mxu0 %v2839
      %2843 = vmatprep.subr.mxu0 0.0
      %2844 = vmatpush1.xpose.msra.mxu0 0.0
      %2845 = vmatprep.subr.mxu0 0.0
      %2846 = vmatpush1.xpose.msra.mxu0 0.0
      %2847 = vmatprep.subr.mxu0 0.0
      %2848 = vmatpush1.xpose.msra.mxu0 0.0
      %2849 = vmatprep.subr.mxu0 0.0
      %2850 = vmatpush1.xpose.msra.mxu0 0.0
      %2851 = vmatprep.subr.mxu0 0.0
      %2852 = vmatpush1.xpose.msra.mxu0 0.0
      %2853 = vmatprep.subr.mxu0 0.0
      %2854 = vmatpush1.xpose.msra.mxu0 0.0
      %2855 = vmatprep.subr.mxu0 0.0
      %2856 = vmatpush1.xpose.msra.mxu0 0.0
      %2857 = vmatprep.subr.mxu0 0.0
      %2858 = vmatpush1.xpose.msra.mxu0 0.0
      %2859 = vmatprep.subr.mxu0 0.0
      %2860 = vmatpush1.xpose.msra.mxu0 0.0
      %2861 = vmatprep.subr.mxu0 0.0
      %2862 = vmatpush1.xpose.msra.mxu0 0.0
      %2863 = vmatprep.subr.mxu0 0.0
      %2864 = vmatpush1.xpose.msra.mxu0 0.0
      %2865 = vmatprep.subr.mxu0 0.0
      %2866 = vmatpush1.xpose.msra.mxu0 0.0
      %2867 = vmatprep.subr.mxu0 0.0
      %2868 = vmatpush1.xpose.msra.mxu0 0.0
      %2869 = vmatprep.subr.mxu0 0.0
      %2870 = vmatpush1.xpose.msra.mxu0 0.0
      %2871 = vmatprep.subr.mxu0 0.0
      %2872 = vmatpush1.xpose.msra.mxu0 0.0
      %2873 = vmatprep.subr.mxu0 0.0
      %2874 = vmatpush1.xpose.msra.mxu0 0.0
      %2875 = vmatprep.subr.mxu0 0.0
      %2876 = vmatpush1.xpose.msra.mxu0 0.0
      %2877 = vmatprep.subr.mxu0 0.0
      %2878 = vmatpush1.xpose.msra.mxu0 0.0
      %2879 = vmatprep.subr.mxu0 0.0
      %2880 = vmatpush1.xpose.msra.mxu0 0.0
      %2881 = vmatprep.subr.mxu0 0.0
      %2882 = vmatpush1.xpose.msra.mxu0 0.0
      %2883 = vmatprep.subr.mxu0 0.0
      %2884 = vmatpush1.xpose.msra.mxu0 0.0
      %2885 = vmatprep.subr.mxu0 0.0
      %2886 = vmatpush1.xpose.msra.mxu0 0.0
      %2887 = vmatprep.subr.mxu0 0.0
      %2888 = vmatpush1.xpose.msra.mxu0 0.0
      %2889 = vmatprep.subr.mxu0 0.0
      %2890 = vmatpush1.xpose.msra.mxu0 0.0
      %2891 = vmatprep.subr.mxu0 0.0
      %2892 = vmatpush1.xpose.msra.mxu0 0.0
      %2893 = vmatprep.subr.mxu0 0.0
      %2894 = vmatpush1.xpose.msra.mxu0 0.0
      %2895 = vmatprep.subr.mxu0 0.0
      %2896 = vmatpush1.xpose.msra.mxu0 0.0
      %2897 = vmatprep.subr.mxu0 0.0
      %2898 = vmatpush1.xpose.msra.mxu0 0.0
      %2899 = vmatprep.subr.mxu0 0.0
      %2900 = vmatpush1.xpose.msra.mxu0 0.0
      %2901 = vmatprep.subr.mxu0 0.0
      %2902 = vmatpush1.xpose.msra.mxu0 0.0
      %2903 = vmatprep.subr.mxu0 0.0
      %2904 = vmatpush1.xpose.msra.mxu0 0.0
      %2905 = vmatprep.mubr.f32.mxu0 0.0
      %2906 = vmatmul.mubr.f32.gmra.mrb[0].mxu0 %v2837
      %v2907 = vpop.f32.mrb[0].mxu0
      %v2908 = vadd.f32 0.0, %v2907
      %v2909 = vpop.f32.mrb[0].mxu0
      %2910 = vdwg.mxu0
      %2912 = vrot.lane.b32.xlu0 %v1169, 96
      %v2913 = vpop.permute.xlu0 %2912
      %v2914 = vsel %vm395, %v1169, 0
      %v2916 = vsel %vm395, %v2913, 0
      %2918 = vmatprep.subr.mxu0 0.0
      %2919 = vmatpush1.xpose.msra.mxu0 %v2916
      %2920 = vmatprep.subr.mxu0 0.0
      %2921 = vmatpush1.xpose.msra.mxu0 0.0
      %2922 = vmatprep.subr.mxu0 0.0
      %2923 = vmatpush1.xpose.msra.mxu0 0.0
      %2924 = vmatprep.subr.mxu0 0.0
      %2925 = vmatpush1.xpose.msra.mxu0 0.0
      %2926 = vmatprep.subr.mxu0 0.0
      %2927 = vmatpush1.xpose.msra.mxu0 0.0
      %2928 = vmatprep.subr.mxu0 0.0
      %2929 = vmatpush1.xpose.msra.mxu0 0.0
      %2930 = vmatprep.subr.mxu0 0.0
      %2931 = vmatpush1.xpose.msra.mxu0 0.0
      %2932 = vmatprep.subr.mxu0 0.0
      %2933 = vmatpush1.xpose.msra.mxu0 0.0
      %2934 = vmatprep.subr.mxu0 0.0
      %2935 = vmatpush1.xpose.msra.mxu0 0.0
      %2936 = vmatprep.subr.mxu0 0.0
      %2937 = vmatpush1.xpose.msra.mxu0 0.0
      %2938 = vmatprep.subr.mxu0 0.0
      %2939 = vmatpush1.xpose.msra.mxu0 0.0
      %2940 = vmatprep.subr.mxu0 0.0
      %2941 = vmatpush1.xpose.msra.mxu0 0.0
      %2942 = vmatprep.subr.mxu0 0.0
      %2943 = vmatpush1.xpose.msra.mxu0 0.0
      %2944 = vmatprep.subr.mxu0 0.0
      %2945 = vmatpush1.xpose.msra.mxu0 0.0
      %2946 = vmatprep.subr.mxu0 0.0
      %2947 = vmatpush1.xpose.msra.mxu0 0.0
      %2948 = vmatprep.subr.mxu0 0.0
      %2949 = vmatpush1.xpose.msra.mxu0 0.0
      %2950 = vmatprep.subr.mxu0 0.0
      %2951 = vmatpush1.xpose.msra.mxu0 0.0
      %2952 = vmatprep.subr.mxu0 0.0
      %2953 = vmatpush1.xpose.msra.mxu0 0.0
      %2954 = vmatprep.subr.mxu0 0.0
      %2955 = vmatpush1.xpose.msra.mxu0 0.0
      %2956 = vmatprep.subr.mxu0 0.0
      %2957 = vmatpush1.xpose.msra.mxu0 0.0
      %2958 = vmatprep.subr.mxu0 0.0
      %2959 = vmatpush1.xpose.msra.mxu0 0.0
      %2960 = vmatprep.subr.mxu0 0.0
      %2961 = vmatpush1.xpose.msra.mxu0 0.0
      %2962 = vmatprep.subr.mxu0 0.0
      %2963 = vmatpush1.xpose.msra.mxu0 0.0
      %2964 = vmatprep.subr.mxu0 0.0
      %2965 = vmatpush1.xpose.msra.mxu0 0.0
      %2966 = vmatprep.subr.mxu0 0.0
      %2967 = vmatpush1.xpose.msra.mxu0 0.0
      %2968 = vmatprep.subr.mxu0 0.0
      %2969 = vmatpush1.xpose.msra.mxu0 0.0
      %2970 = vmatprep.subr.mxu0 0.0
      %2971 = vmatpush1.xpose.msra.mxu0 0.0
      %2972 = vmatprep.subr.mxu0 0.0
      %2973 = vmatpush1.xpose.msra.mxu0 0.0
      %2974 = vmatprep.subr.mxu0 0.0
      %2975 = vmatpush1.xpose.msra.mxu0 0.0
      %2976 = vmatprep.subr.mxu0 0.0
      %2977 = vmatpush1.xpose.msra.mxu0 0.0
      %2978 = vmatprep.subr.mxu0 0.0
      %2979 = vmatpush1.xpose.msra.mxu0 0.0
      %2980 = vmatprep.subr.mxu0 0.0
      %2981 = vmatpush1.xpose.msra.mxu0 0.0
      %2982 = vmatprep.mubr.f32.mxu0 0.0
      %2983 = vmatmul.mubr.f32.gmra.mrb[0].mxu0 %v2914
      %v2984 = vpop.f32.mrb[0].mxu0
      %v2985 = vadd.f32 0.0, %v2984
      %v2986 = vpop.f32.mrb[0].mxu0
      %2987 = vdwg.mxu0
      %2989 = vrot.lane.b32.xlu0 %v1174, 96
      %v2990 = vpop.permute.xlu0 %2989
      %v2991 = vsel %vm395, %v1174, 0
      %v2993 = vsel %vm395, %v2990, 0
      %2995 = vmatprep.subr.mxu0 0.0
      %2996 = vmatpush1.xpose.msra.mxu0 %v2993
      %2997 = vmatprep.subr.mxu0 0.0
      %2998 = vmatpush1.xpose.msra.mxu0 0.0
      %2999 = vmatprep.subr.mxu0 0.0
      %3000 = vmatpush1.xpose.msra.mxu0 0.0
      %3001 = vmatprep.subr.mxu0 0.0
      %3002 = vmatpush1.xpose.msra.mxu0 0.0
      %3003 = vmatprep.subr.mxu0 0.0
      %3004 = vmatpush1.xpose.msra.mxu0 0.0
      %3005 = vmatprep.subr.mxu0 0.0
      %3006 = vmatpush1.xpose.msra.mxu0 0.0
      %3007 = vmatprep.subr.mxu0 0.0
      %3008 = vmatpush1.xpose.msra.mxu0 0.0
      %3009 = vmatprep.subr.mxu0 0.0
      %3010 = vmatpush1.xpose.msra.mxu0 0.0
      %3011 = vmatprep.subr.mxu0 0.0
      %3012 = vmatpush1.xpose.msra.mxu0 0.0
      %3013 = vmatprep.subr.mxu0 0.0
      %3014 = vmatpush1.xpose.msra.mxu0 0.0
      %3015 = vmatprep.subr.mxu0 0.0
      %3016 = vmatpush1.xpose.msra.mxu0 0.0
      %3017 = vmatprep.subr.mxu0 0.0
      %3018 = vmatpush1.xpose.msra.mxu0 0.0
      %3019 = vmatprep.subr.mxu0 0.0
      %3020 = vmatpush1.xpose.msra.mxu0 0.0
      %3021 = vmatprep.subr.mxu0 0.0
      %3022 = vmatpush1.xpose.msra.mxu0 0.0
      %3023 = vmatprep.subr.mxu0 0.0
      %3024 = vmatpush1.xpose.msra.mxu0 0.0
      %3025 = vmatprep.subr.mxu0 0.0
      %3026 = vmatpush1.xpose.msra.mxu0 0.0
      %3027 = vmatprep.subr.mxu0 0.0
      %3028 = vmatpush1.xpose.msra.mxu0 0.0
      %3029 = vmatprep.subr.mxu0 0.0
      %3030 = vmatpush1.xpose.msra.mxu0 0.0
      %3031 = vmatprep.subr.mxu0 0.0
      %3032 = vmatpush1.xpose.msra.mxu0 0.0
      %3033 = vmatprep.subr.mxu0 0.0
      %3034 = vmatpush1.xpose.msra.mxu0 0.0
      %3035 = vmatprep.subr.mxu0 0.0
      %3036 = vmatpush1.xpose.msra.mxu0 0.0
      %3037 = vmatprep.subr.mxu0 0.0
      %3038 = vmatpush1.xpose.msra.mxu0 0.0
      %3039 = vmatprep.subr.mxu0 0.0
      %3040 = vmatpush1.xpose.msra.mxu0 0.0
      %3041 = vmatprep.subr.mxu0 0.0
      %3042 = vmatpush1.xpose.msra.mxu0 0.0
      %3043 = vmatprep.subr.mxu0 0.0
      %3044 = vmatpush1.xpose.msra.mxu0 0.0
      %3045 = vmatprep.subr.mxu0 0.0
      %3046 = vmatpush1.xpose.msra.mxu0 0.0
      %3047 = vmatprep.subr.mxu0 0.0
      %3048 = vmatpush1.xpose.msra.mxu0 0.0
      %3049 = vmatprep.subr.mxu0 0.0
      %3050 = vmatpush1.xpose.msra.mxu0 0.0
      %3051 = vmatprep.subr.mxu0 0.0
      %3052 = vmatpush1.xpose.msra.mxu0 0.0
      %3053 = vmatprep.subr.mxu0 0.0
      %3054 = vmatpush1.xpose.msra.mxu0 0.0
      %3055 = vmatprep.subr.mxu0 0.0
      %3056 = vmatpush1.xpose.msra.mxu0 0.0
      %3057 = vmatprep.subr.mxu0 0.0
      %3058 = vmatpush1.xpose.msra.mxu0 0.0
      %3059 = vmatprep.mubr.f32.mxu0 0.0
      %3060 = vmatmul.mubr.f32.gmra.mrb[0].mxu0 %v2991
      %v3061 = vpop.f32.mrb[0].mxu0
      %v3062 = vadd.f32 0.0, %v3061
      %v3063 = vpop.f32.mrb[0].mxu0
      %3064 = vdwg.mxu0
      %3066 = vrot.lane.b32.xlu0 %v1179, 96
      %v3067 = vpop.permute.xlu0 %3066
      %v3068 = vsel %vm395, %v1179, 0
      %v3070 = vsel %vm395, %v3067, 0
      %3072 = vmatprep.subr.mxu0 0.0
      %3073 = vmatpush1.xpose.msra.mxu0 %v3070
      %3074 = vmatprep.subr.mxu0 0.0
      %3075 = vmatpush1.xpose.msra.mxu0 0.0
      %3076 = vmatprep.subr.mxu0 0.0
      %3077 = vmatpush1.xpose.msra.mxu0 0.0
      %3078 = vmatprep.subr.mxu0 0.0
      %3079 = vmatpush1.xpose.msra.mxu0 0.0
      %3080 = vmatprep.subr.mxu0 0.0
      %3081 = vmatpush1.xpose.msra.mxu0 0.0
      %3082 = vmatprep.subr.mxu0 0.0
      %3083 = vmatpush1.xpose.msra.mxu0 0.0
      %3084 = vmatprep.subr.mxu0 0.0
      %3085 = vmatpush1.xpose.msra.mxu0 0.0
      %3086 = vmatprep.subr.mxu0 0.0
      %3087 = vmatpush1.xpose.msra.mxu0 0.0
      %3088 = vmatprep.subr.mxu0 0.0
      %3089 = vmatpush1.xpose.msra.mxu0 0.0
      %3090 = vmatprep.subr.mxu0 0.0
      %3091 = vmatpush1.xpose.msra.mxu0 0.0
      %3092 = vmatprep.subr.mxu0 0.0
      %3093 = vmatpush1.xpose.msra.mxu0 0.0
      %3094 = vmatprep.subr.mxu0 0.0
      %3095 = vmatpush1.xpose.msra.mxu0 0.0
      %3096 = vmatprep.subr.mxu0 0.0
      %3097 = vmatpush1.xpose.msra.mxu0 0.0
      %3098 = vmatprep.subr.mxu0 0.0
      %3099 = vmatpush1.xpose.msra.mxu0 0.0
      %3100 = vmatprep.subr.mxu0 0.0
      %3101 = vmatpush1.xpose.msra.mxu0 0.0
      %3102 = vmatprep.subr.mxu0 0.0
      %3103 = vmatpush1.xpose.msra.mxu0 0.0
      %3104 = vmatprep.subr.mxu0 0.0
      %3105 = vmatpush1.xpose.msra.mxu0 0.0
      %3106 = vmatprep.subr.mxu0 0.0
      %3107 = vmatpush1.xpose.msra.mxu0 0.0
      %3108 = vmatprep.subr.mxu0 0.0
      %3109 = vmatpush1.xpose.msra.mxu0 0.0
      %3110 = vmatprep.subr.mxu0 0.0
      %3111 = vmatpush1.xpose.msra.mxu0 0.0
      %3112 = vmatprep.subr.mxu0 0.0
      %3113 = vmatpush1.xpose.msra.mxu0 0.0
      %3114 = vmatprep.subr.mxu0 0.0
      %3115 = vmatpush1.xpose.msra.mxu0 0.0
      %3116 = vmatprep.subr.mxu0 0.0
      %3117 = vmatpush1.xpose.msra.mxu0 0.0
      %3118 = vmatprep.subr.mxu0 0.0
      %3119 = vmatpush1.xpose.msra.mxu0 0.0
      %3120 = vmatprep.subr.mxu0 0.0
      %3121 = vmatpush1.xpose.msra.mxu0 0.0
      %3122 = vmatprep.subr.mxu0 0.0
      %3123 = vmatpush1.xpose.msra.mxu0 0.0
      %3124 = vmatprep.subr.mxu0 0.0
      %3125 = vmatpush1.xpose.msra.mxu0 0.0
      %3126 = vmatprep.subr.mxu0 0.0
      %3127 = vmatpush1.xpose.msra.mxu0 0.0
      %3128 = vmatprep.subr.mxu0 0.0
      %3129 = vmatpush1.xpose.msra.mxu0 0.0
      %3130 = vmatprep.subr.mxu0 0.0
      %3131 = vmatpush1.xpose.msra.mxu0 0.0
      %3132 = vmatprep.subr.mxu0 0.0
      %3133 = vmatpush1.xpose.msra.mxu0 0.0
      %3134 = vmatprep.subr.mxu0 0.0
      %3135 = vmatpush1.xpose.msra.mxu0 0.0
      %3136 = vmatprep.mubr.f32.mxu0 0.0
      %3137 = vmatmul.mubr.f32.gmra.mrb[0].mxu0 %v3068
      %v3138 = vpop.f32.mrb[0].mxu0
      %v3139 = vadd.f32 0.0, %v3138
      %v3140 = vpop.f32.mrb[0].mxu0
      %3141 = vdwg.mxu0
      %3143 = vrot.lane.b32.xlu0 %v1184, 96
      %v3144 = vpop.permute.xlu0 %3143
      %v3145 = vsel %vm395, %v1184, 0
      %v3147 = vsel %vm395, %v3144, 0
      %3149 = vmatprep.subr.mxu0 0.0
      %3150 = vmatpush1.xpose.msra.mxu0 %v3147
      %3151 = vmatprep.subr.mxu0 0.0
      %3152 = vmatpush1.xpose.msra.mxu0 0.0
      %3153 = vmatprep.subr.mxu0 0.0
      %3154 = vmatpush1.xpose.msra.mxu0 0.0
      %3155 = vmatprep.subr.mxu0 0.0
      %3156 = vmatpush1.xpose.msra.mxu0 0.0
      %3157 = vmatprep.subr.mxu0 0.0
      %3158 = vmatpush1.xpose.msra.mxu0 0.0
      %3159 = vmatprep.subr.mxu0 0.0
      %3160 = vmatpush1.xpose.msra.mxu0 0.0
      %3161 = vmatprep.subr.mxu0 0.0
      %3162 = vmatpush1.xpose.msra.mxu0 0.0
      %3163 = vmatprep.subr.mxu0 0.0
      %3164 = vmatpush1.xpose.msra.mxu0 0.0
      %3165 = vmatprep.subr.mxu0 0.0
      %3166 = vmatpush1.xpose.msra.mxu0 0.0
      %3167 = vmatprep.subr.mxu0 0.0
      %3168 = vmatpush1.xpose.msra.mxu0 0.0
      %3169 = vmatprep.subr.mxu0 0.0
      %3170 = vmatpush1.xpose.msra.mxu0 0.0
      %3171 = vmatprep.subr.mxu0 0.0
      %3172 = vmatpush1.xpose.msra.mxu0 0.0
      %3173 = vmatprep.subr.mxu0 0.0
      %3174 = vmatpush1.xpose.msra.mxu0 0.0
      %3175 = vmatprep.subr.mxu0 0.0
      %3176 = vmatpush1.xpose.msra.mxu0 0.0
      %3177 = vmatprep.subr.mxu0 0.0
      %3178 = vmatpush1.xpose.msra.mxu0 0.0
      %3179 = vmatprep.subr.mxu0 0.0
      %3180 = vmatpush1.xpose.msra.mxu0 0.0
      %3181 = vmatprep.subr.mxu0 0.0
      %3182 = vmatpush1.xpose.msra.mxu0 0.0
      %3183 = vmatprep.subr.mxu0 0.0
      %3184 = vmatpush1.xpose.msra.mxu0 0.0
      %3185 = vmatprep.subr.mxu0 0.0
      %3186 = vmatpush1.xpose.msra.mxu0 0.0
      %3187 = vmatprep.subr.mxu0 0.0
      %3188 = vmatpush1.xpose.msra.mxu0 0.0
      %3189 = vmatprep.subr.mxu0 0.0
      %3190 = vmatpush1.xpose.msra.mxu0 0.0
      %3191 = vmatprep.subr.mxu0 0.0
      %3192 = vmatpush1.xpose.msra.mxu0 0.0
      %3193 = vmatprep.subr.mxu0 0.0
      %3194 = vmatpush1.xpose.msra.mxu0 0.0
      %3195 = vmatprep.subr.mxu0 0.0
      %3196 = vmatpush1.xpose.msra.mxu0 0.0
      %3197 = vmatprep.subr.mxu0 0.0
      %3198 = vmatpush1.xpose.msra.mxu0 0.0
      %3199 = vmatprep.subr.mxu0 0.0
      %3200 = vmatpush1.xpose.msra.mxu0 0.0
      %3201 = vmatprep.subr.mxu0 0.0
      %3202 = vmatpush1.xpose.msra.mxu0 0.0
      %3203 = vmatprep.subr.mxu0 0.0
      %3204 = vmatpush1.xpose.msra.mxu0 0.0
      %3205 = vmatprep.subr.mxu0 0.0
      %3206 = vmatpush1.xpose.msra.mxu0 0.0
      %3207 = vmatprep.subr.mxu0 0.0
      %3208 = vmatpush1.xpose.msra.mxu0 0.0
      %3209 = vmatprep.subr.mxu0 0.0
      %3210 = vmatpush1.xpose.msra.mxu0 0.0
      %3211 = vmatprep.subr.mxu0 0.0
      %3212 = vmatpush1.xpose.msra.mxu0 0.0
      %3213 = vmatprep.mubr.f32.mxu0 0.0
      %3214 = vmatmul.mubr.f32.gmra.mrb[0].mxu0 %v3145
      %v3215 = vpop.f32.mrb[0].mxu0
      %v3216 = vadd.f32 0.0, %v3215
      %v3217 = vpop.f32.mrb[0].mxu0
      %3218 = vdwg.mxu0
      %3220 = vrot.lane.b32.xlu0 %v1189, 96
      %v3221 = vpop.permute.xlu0 %3220
      %v3222 = vsel %vm395, %v1189, 0
      %v3224 = vsel %vm395, %v3221, 0
      %3226 = vmatprep.subr.mxu0 0.0
      %3227 = vmatpush1.xpose.msra.mxu0 %v3224
      %3228 = vmatprep.subr.mxu0 0.0
      %3229 = vmatpush1.xpose.msra.mxu0 0.0
      %3230 = vmatprep.subr.mxu0 0.0
      %3231 = vmatpush1.xpose.msra.mxu0 0.0
      %3232 = vmatprep.subr.mxu0 0.0
      %3233 = vmatpush1.xpose.msra.mxu0 0.0
      %3234 = vmatprep.subr.mxu0 0.0
      %3235 = vmatpush1.xpose.msra.mxu0 0.0
      %3236 = vmatprep.subr.mxu0 0.0
      %3237 = vmatpush1.xpose.msra.mxu0 0.0
      %3238 = vmatprep.subr.mxu0 0.0
      %3239 = vmatpush1.xpose.msra.mxu0 0.0
      %3240 = vmatprep.subr.mxu0 0.0
      %3241 = vmatpush1.xpose.msra.mxu0 0.0
      %3242 = vmatprep.subr.mxu0 0.0
      %3243 = vmatpush1.xpose.msra.mxu0 0.0
      %3244 = vmatprep.subr.mxu0 0.0
      %3245 = vmatpush1.xpose.msra.mxu0 0.0
      %3246 = vmatprep.subr.mxu0 0.0
      %3247 = vmatpush1.xpose.msra.mxu0 0.0
      %3248 = vmatprep.subr.mxu0 0.0
      %3249 = vmatpush1.xpose.msra.mxu0 0.0
      %3250 = vmatprep.subr.mxu0 0.0
      %3251 = vmatpush1.xpose.msra.mxu0 0.0
      %3252 = vmatprep.subr.mxu0 0.0
      %3253 = vmatpush1.xpose.msra.mxu0 0.0
      %3254 = vmatprep.subr.mxu0 0.0
      %3255 = vmatpush1.xpose.msra.mxu0 0.0
      %3256 = vmatprep.subr.mxu0 0.0
      %3257 = vmatpush1.xpose.msra.mxu0 0.0
      %3258 = vmatprep.subr.mxu0 0.0
      %3259 = vmatpush1.xpose.msra.mxu0 0.0
      %3260 = vmatprep.subr.mxu0 0.0
      %3261 = vmatpush1.xpose.msra.mxu0 0.0
      %3262 = vmatprep.subr.mxu0 0.0
      %3263 = vmatpush1.xpose.msra.mxu0 0.0
      %3264 = vmatprep.subr.mxu0 0.0
      %3265 = vmatpush1.xpose.msra.mxu0 0.0
      %3266 = vmatprep.subr.mxu0 0.0
      %3267 = vmatpush1.xpose.msra.mxu0 0.0
      %3268 = vmatprep.subr.mxu0 0.0
      %3269 = vmatpush1.xpose.msra.mxu0 0.0
      %3270 = vmatprep.subr.mxu0 0.0
      %3271 = vmatpush1.xpose.msra.mxu0 0.0
      %3272 = vmatprep.subr.mxu0 0.0
      %3273 = vmatpush1.xpose.msra.mxu0 0.0
      %3274 = vmatprep.subr.mxu0 0.0
      %3275 = vmatpush1.xpose.msra.mxu0 0.0
      %3276 = vmatprep.subr.mxu0 0.0
      %3277 = vmatpush1.xpose.msra.mxu0 0.0
      %3278 = vmatprep.subr.mxu0 0.0
      %3279 = vmatpush1.xpose.msra.mxu0 0.0
      %3280 = vmatprep.subr.mxu0 0.0
      %3281 = vmatpush1.xpose.msra.mxu0 0.0
      %3282 = vmatprep.subr.mxu0 0.0
      %3283 = vmatpush1.xpose.msra.mxu0 0.0
      %3284 = vmatprep.subr.mxu0 0.0
      %3285 = vmatpush1.xpose.msra.mxu0 0.0
      %3286 = vmatprep.subr.mxu0 0.0
      %3287 = vmatpush1.xpose.msra.mxu0 0.0
      %3288 = vmatprep.subr.mxu0 0.0
      %3289 = vmatpush1.xpose.msra.mxu0 0.0
      %3290 = vmatprep.mubr.f32.mxu0 0.0
      %3291 = vmatmul.mubr.f32.gmra.mrb[0].mxu0 %v3222
      %v3292 = vpop.f32.mrb[0].mxu0
      %v3293 = vadd.f32 0.0, %v3292
      %v3294 = vpop.f32.mrb[0].mxu0
      %3295 = vdwg.mxu0
      %3297 = vrot.lane.b32.xlu0 %v1194, 96
      %v3298 = vpop.permute.xlu0 %3297
      %v3299 = vsel %vm395, %v1194, 0
      %v3301 = vsel %vm395, %v3298, 0
      %3303 = vmatprep.subr.mxu0 0.0
      %3304 = vmatpush1.xpose.msra.mxu0 %v3301
      %3305 = vmatprep.subr.mxu0 0.0
      %3306 = vmatpush1.xpose.msra.mxu0 0.0
      %3307 = vmatprep.subr.mxu0 0.0
      %3308 = vmatpush1.xpose.msra.mxu0 0.0
      %3309 = vmatprep.subr.mxu0 0.0
      %3310 = vmatpush1.xpose.msra.mxu0 0.0
      %3311 = vmatprep.subr.mxu0 0.0
      %3312 = vmatpush1.xpose.msra.mxu0 0.0
      %3313 = vmatprep.subr.mxu0 0.0
      %3314 = vmatpush1.xpose.msra.mxu0 0.0
      %3315 = vmatprep.subr.mxu0 0.0
      %3316 = vmatpush1.xpose.msra.mxu0 0.0
      %3317 = vmatprep.subr.mxu0 0.0
      %3318 = vmatpush1.xpose.msra.mxu0 0.0
      %3319 = vmatprep.subr.mxu0 0.0
      %3320 = vmatpush1.xpose.msra.mxu0 0.0
      %3321 = vmatprep.subr.mxu0 0.0
      %3322 = vmatpush1.xpose.msra.mxu0 0.0
      %3323 = vmatprep.subr.mxu0 0.0
      %3324 = vmatpush1.xpose.msra.mxu0 0.0
      %3325 = vmatprep.subr.mxu0 0.0
      %3326 = vmatpush1.xpose.msra.mxu0 0.0
      %3327 = vmatprep.subr.mxu0 0.0
      %3328 = vmatpush1.xpose.msra.mxu0 0.0
      %3329 = vmatprep.subr.mxu0 0.0
      %3330 = vmatpush1.xpose.msra.mxu0 0.0
      %3331 = vmatprep.subr.mxu0 0.0
      %3332 = vmatpush1.xpose.msra.mxu0 0.0
      %3333 = vmatprep.subr.mxu0 0.0
      %3334 = vmatpush1.xpose.msra.mxu0 0.0
      %3335 = vmatprep.subr.mxu0 0.0
      %3336 = vmatpush1.xpose.msra.mxu0 0.0
      %3337 = vmatprep.subr.mxu0 0.0
      %3338 = vmatpush1.xpose.msra.mxu0 0.0
      %3339 = vmatprep.subr.mxu0 0.0
      %3340 = vmatpush1.xpose.msra.mxu0 0.0
      %3341 = vmatprep.subr.mxu0 0.0
      %3342 = vmatpush1.xpose.msra.mxu0 0.0
      %3343 = vmatprep.subr.mxu0 0.0
      %3344 = vmatpush1.xpose.msra.mxu0 0.0
      %3345 = vmatprep.subr.mxu0 0.0
      %3346 = vmatpush1.xpose.msra.mxu0 0.0
      %3347 = vmatprep.subr.mxu0 0.0
      %3348 = vmatpush1.xpose.msra.mxu0 0.0
      %3349 = vmatprep.subr.mxu0 0.0
      %3350 = vmatpush1.xpose.msra.mxu0 0.0
      %3351 = vmatprep.subr.mxu0 0.0
      %3352 = vmatpush1.xpose.msra.mxu0 0.0
      %3353 = vmatprep.subr.mxu0 0.0
      %3354 = vmatpush1.xpose.msra.mxu0 0.0
      %3355 = vmatprep.subr.mxu0 0.0
      %3356 = vmatpush1.xpose.msra.mxu0 0.0
      %3357 = vmatprep.subr.mxu0 0.0
      %3358 = vmatpush1.xpose.msra.mxu0 0.0
      %3359 = vmatprep.subr.mxu0 0.0
      %3360 = vmatpush1.xpose.msra.mxu0 0.0
      %3361 = vmatprep.subr.mxu0 0.0
      %3362 = vmatpush1.xpose.msra.mxu0 0.0
      %3363 = vmatprep.subr.mxu0 0.0
      %3364 = vmatpush1.xpose.msra.mxu0 0.0
      %3365 = vmatprep.subr.mxu0 0.0
      %3366 = vmatpush1.xpose.msra.mxu0 0.0
      %3367 = vmatprep.mubr.f32.mxu0 0.0
      %3368 = vmatmul.mubr.f32.gmra.mrb[0].mxu0 %v3299
      %v3369 = vpop.f32.mrb[0].mxu0
      %v3370 = vadd.f32 0.0, %v3369
      %v3371 = vpop.f32.mrb[0].mxu0
      %3372 = vdwg.mxu0
      %3374 = vrot.lane.b32.xlu0 %v1199, 96
      %v3375 = vpop.permute.xlu0 %3374
      %v3376 = vsel %vm395, %v1199, 0
      %v3378 = vsel %vm395, %v3375, 0
      %3380 = vmatprep.subr.mxu0 0.0
      %3381 = vmatpush1.xpose.msra.mxu0 %v3378
      %3382 = vmatprep.subr.mxu0 0.0
      %3383 = vmatpush1.xpose.msra.mxu0 0.0
      %3384 = vmatprep.subr.mxu0 0.0
      %3385 = vmatpush1.xpose.msra.mxu0 0.0
      %3386 = vmatprep.subr.mxu0 0.0
      %3387 = vmatpush1.xpose.msra.mxu0 0.0
      %3388 = vmatprep.subr.mxu0 0.0
      %3389 = vmatpush1.xpose.msra.mxu0 0.0
      %3390 = vmatprep.subr.mxu0 0.0
      %3391 = vmatpush1.xpose.msra.mxu0 0.0
      %3392 = vmatprep.subr.mxu0 0.0
      %3393 = vmatpush1.xpose.msra.mxu0 0.0
      %3394 = vmatprep.subr.mxu0 0.0
      %3395 = vmatpush1.xpose.msra.mxu0 0.0
      %3396 = vmatprep.subr.mxu0 0.0
      %3397 = vmatpush1.xpose.msra.mxu0 0.0
      %3398 = vmatprep.subr.mxu0 0.0
      %3399 = vmatpush1.xpose.msra.mxu0 0.0
      %3400 = vmatprep.subr.mxu0 0.0
      %3401 = vmatpush1.xpose.msra.mxu0 0.0
      %3402 = vmatprep.subr.mxu0 0.0
      %3403 = vmatpush1.xpose.msra.mxu0 0.0
      %3404 = vmatprep.subr.mxu0 0.0
      %3405 = vmatpush1.xpose.msra.mxu0 0.0
      %3406 = vmatprep.subr.mxu0 0.0
      %3407 = vmatpush1.xpose.msra.mxu0 0.0
      %3408 = vmatprep.subr.mxu0 0.0
      %3409 = vmatpush1.xpose.msra.mxu0 0.0
      %3410 = vmatprep.subr.mxu0 0.0
      %3411 = vmatpush1.xpose.msra.mxu0 0.0
      %3412 = vmatprep.subr.mxu0 0.0
      %3413 = vmatpush1.xpose.msra.mxu0 0.0
      %3414 = vmatprep.subr.mxu0 0.0
      %3415 = vmatpush1.xpose.msra.mxu0 0.0
      %3416 = vmatprep.subr.mxu0 0.0
      %3417 = vmatpush1.xpose.msra.mxu0 0.0
      %3418 = vmatprep.subr.mxu0 0.0
      %3419 = vmatpush1.xpose.msra.mxu0 0.0
      %3420 = vmatprep.subr.mxu0 0.0
      %3421 = vmatpush1.xpose.msra.mxu0 0.0
      %3422 = vmatprep.subr.mxu0 0.0
      %3423 = vmatpush1.xpose.msra.mxu0 0.0
      %3424 = vmatprep.subr.mxu0 0.0
      %3425 = vmatpush1.xpose.msra.mxu0 0.0
      %3426 = vmatprep.subr.mxu0 0.0
      %3427 = vmatpush1.xpose.msra.mxu0 0.0
      %3428 = vmatprep.subr.mxu0 0.0
      %3429 = vmatpush1.xpose.msra.mxu0 0.0
      %3430 = vmatprep.subr.mxu0 0.0
      %3431 = vmatpush1.xpose.msra.mxu0 0.0
      %3432 = vmatprep.subr.mxu0 0.0
      %3433 = vmatpush1.xpose.msra.mxu0 0.0
      %3434 = vmatprep.subr.mxu0 0.0
      %3435 = vmatpush1.xpose.msra.mxu0 0.0
      %3436 = vmatprep.subr.mxu0 0.0
      %3437 = vmatpush1.xpose.msra.mxu0 0.0
      %3438 = vmatprep.subr.mxu0 0.0
      %3439 = vmatpush1.xpose.msra.mxu0 0.0
      %3440 = vmatprep.subr.mxu0 0.0
      %3441 = vmatpush1.xpose.msra.mxu0 0.0
      %3442 = vmatprep.subr.mxu0 0.0
      %3443 = vmatpush1.xpose.msra.mxu0 0.0
      %3444 = vmatprep.mubr.f32.mxu0 0.0
      %3445 = vmatmul.mubr.f32.gmra.mrb[0].mxu0 %v3376
      %v3446 = vpop.f32.mrb[0].mxu0
      %v3447 = vadd.f32 0.0, %v3446
      %v3448 = vpop.f32.mrb[0].mxu0
      %3449 = vdwg.mxu0
      %3451 = vrot.lane.b32.xlu0 %v1204, 96
      %v3452 = vpop.permute.xlu0 %3451
      %v3453 = vsel %vm395, %v1204, 0
      %v3455 = vsel %vm395, %v3452, 0
      %3457 = vmatprep.subr.mxu0 0.0
      %3458 = vmatpush1.xpose.msra.mxu0 %v3455
      %3459 = vmatprep.subr.mxu0 0.0
      %3460 = vmatpush1.xpose.msra.mxu0 0.0
      %3461 = vmatprep.subr.mxu0 0.0
      %3462 = vmatpush1.xpose.msra.mxu0 0.0
      %3463 = vmatprep.subr.mxu0 0.0
      %3464 = vmatpush1.xpose.msra.mxu0 0.0
      %3465 = vmatprep.subr.mxu0 0.0
      %3466 = vmatpush1.xpose.msra.mxu0 0.0
      %3467 = vmatprep.subr.mxu0 0.0
      %3468 = vmatpush1.xpose.msra.mxu0 0.0
      %3469 = vmatprep.subr.mxu0 0.0
      %3470 = vmatpush1.xpose.msra.mxu0 0.0
      %3471 = vmatprep.subr.mxu0 0.0
      %3472 = vmatpush1.xpose.msra.mxu0 0.0
      %3473 = vmatprep.subr.mxu0 0.0
      %3474 = vmatpush1.xpose.msra.mxu0 0.0
      %3475 = vmatprep.subr.mxu0 0.0
      %3476 = vmatpush1.xpose.msra.mxu0 0.0
      %3477 = vmatprep.subr.mxu0 0.0
      %3478 = vmatpush1.xpose.msra.mxu0 0.0
      %3479 = vmatprep.subr.mxu0 0.0
      %3480 = vmatpush1.xpose.msra.mxu0 0.0
      %3481 = vmatprep.subr.mxu0 0.0
      %3482 = vmatpush1.xpose.msra.mxu0 0.0
      %3483 = vmatprep.subr.mxu0 0.0
      %3484 = vmatpush1.xpose.msra.mxu0 0.0
      %3485 = vmatprep.subr.mxu0 0.0
      %3486 = vmatpush1.xpose.msra.mxu0 0.0
      %3487 = vmatprep.subr.mxu0 0.0
      %3488 = vmatpush1.xpose.msra.mxu0 0.0
      %3489 = vmatprep.subr.mxu0 0.0
      %3490 = vmatpush1.xpose.msra.mxu0 0.0
      %3491 = vmatprep.subr.mxu0 0.0
      %3492 = vmatpush1.xpose.msra.mxu0 0.0
      %3493 = vmatprep.subr.mxu0 0.0
      %3494 = vmatpush1.xpose.msra.mxu0 0.0
      %3495 = vmatprep.subr.mxu0 0.0
      %3496 = vmatpush1.xpose.msra.mxu0 0.0
      %3497 = vmatprep.subr.mxu0 0.0
      %3498 = vmatpush1.xpose.msra.mxu0 0.0
      %3499 = vmatprep.subr.mxu0 0.0
      %3500 = vmatpush1.xpose.msra.mxu0 0.0
      %3501 = vmatprep.subr.mxu0 0.0
      %3502 = vmatpush1.xpose.msra.mxu0 0.0
      %3503 = vmatprep.subr.mxu0 0.0
      %3504 = vmatpush1.xpose.msra.mxu0 0.0
      %3505 = vmatprep.subr.mxu0 0.0
      %3506 = vmatpush1.xpose.msra.mxu0 0.0
      %3507 = vmatprep.subr.mxu0 0.0
      %3508 = vmatpush1.xpose.msra.mxu0 0.0
      %3509 = vmatprep.subr.mxu0 0.0
      %3510 = vmatpush1.xpose.msra.mxu0 0.0
      %3511 = vmatprep.subr.mxu0 0.0
      %3512 = vmatpush1.xpose.msra.mxu0 0.0
      %3513 = vmatprep.subr.mxu0 0.0
      %3514 = vmatpush1.xpose.msra.mxu0 0.0
      %3515 = vmatprep.subr.mxu0 0.0
      %3516 = vmatpush1.xpose.msra.mxu0 0.0
      %3517 = vmatprep.subr.mxu0 0.0
      %3518 = vmatpush1.xpose.msra.mxu0 0.0
      %3519 = vmatprep.subr.mxu0 0.0
      %3520 = vmatpush1.xpose.msra.mxu0 0.0
      %3521 = vmatprep.mubr.f32.mxu0 0.0
      %3522 = vmatmul.mubr.f32.gmra.mrb[0].mxu0 %v3453
      %v3523 = vpop.f32.mrb[0].mxu0
      %v3524 = vadd.f32 0.0, %v3523
      %v3525 = vpop.f32.mrb[0].mxu0
      %3526 = vdwg.mxu0
      %3528 = vrot.lane.b32.xlu0 %v1209, 96
      %v3529 = vpop.permute.xlu0 %3528
      %v3530 = vsel %vm395, %v1209, 0
      %v3532 = vsel %vm395, %v3529, 0
      %3534 = vmatprep.subr.mxu0 0.0
      %3535 = vmatpush1.xpose.msra.mxu0 %v3532
      %3536 = vmatprep.subr.mxu0 0.0
      %3537 = vmatpush1.xpose.msra.mxu0 0.0
      %3538 = vmatprep.subr.mxu0 0.0
      %3539 = vmatpush1.xpose.msra.mxu0 0.0
      %3540 = vmatprep.subr.mxu0 0.0
      %3541 = vmatpush1.xpose.msra.mxu0 0.0
      %3542 = vmatprep.subr.mxu0 0.0
      %3543 = vmatpush1.xpose.msra.mxu0 0.0
      %3544 = vmatprep.subr.mxu0 0.0
      %3545 = vmatpush1.xpose.msra.mxu0 0.0
      %3546 = vmatprep.subr.mxu0 0.0
      %3547 = vmatpush1.xpose.msra.mxu0 0.0
      %3548 = vmatprep.subr.mxu0 0.0
      %3549 = vmatpush1.xpose.msra.mxu0 0.0
      %3550 = vmatprep.subr.mxu0 0.0
      %3551 = vmatpush1.xpose.msra.mxu0 0.0
      %3552 = vmatprep.subr.mxu0 0.0
      %3553 = vmatpush1.xpose.msra.mxu0 0.0
      %3554 = vmatprep.subr.mxu0 0.0
      %3555 = vmatpush1.xpose.msra.mxu0 0.0
      %3556 = vmatprep.subr.mxu0 0.0
      %3557 = vmatpush1.xpose.msra.mxu0 0.0
      %3558 = vmatprep.subr.mxu0 0.0
      %3559 = vmatpush1.xpose.msra.mxu0 0.0
      %3560 = vmatprep.subr.mxu0 0.0
      %3561 = vmatpush1.xpose.msra.mxu0 0.0
      %3562 = vmatprep.subr.mxu0 0.0
      %3563 = vmatpush1.xpose.msra.mxu0 0.0
      %3564 = vmatprep.subr.mxu0 0.0
      %3565 = vmatpush1.xpose.msra.mxu0 0.0
      %3566 = vmatprep.subr.mxu0 0.0
      %3567 = vmatpush1.xpose.msra.mxu0 0.0
      %3568 = vmatprep.subr.mxu0 0.0
      %3569 = vmatpush1.xpose.msra.mxu0 0.0
      %3570 = vmatprep.subr.mxu0 0.0
      %3571 = vmatpush1.xpose.msra.mxu0 0.0
      %3572 = vmatprep.subr.mxu0 0.0
      %3573 = vmatpush1.xpose.msra.mxu0 0.0
      %3574 = vmatprep.subr.mxu0 0.0
      %3575 = vmatpush1.xpose.msra.mxu0 0.0
      %3576 = vmatprep.subr.mxu0 0.0
      %3577 = vmatpush1.xpose.msra.mxu0 0.0
      %3578 = vmatprep.subr.mxu0 0.0
      %3579 = vmatpush1.xpose.msra.mxu0 0.0
      %3580 = vmatprep.subr.mxu0 0.0
      %3581 = vmatpush1.xpose.msra.mxu0 0.0
      %3582 = vmatprep.subr.mxu0 0.0
      %3583 = vmatpush1.xpose.msra.mxu0 0.0
      %3584 = vmatprep.subr.mxu0 0.0
      %3585 = vmatpush1.xpose.msra.mxu0 0.0
      %3586 = vmatprep.subr.mxu0 0.0
      %3587 = vmatpush1.xpose.msra.mxu0 0.0
      %3588 = vmatprep.subr.mxu0 0.0
      %3589 = vmatpush1.xpose.msra.mxu0 0.0
      %3590 = vmatprep.subr.mxu0 0.0
      %3591 = vmatpush1.xpose.msra.mxu0 0.0
      %3592 = vmatprep.subr.mxu0 0.0
      %3593 = vmatpush1.xpose.msra.mxu0 0.0
      %3594 = vmatprep.subr.mxu0 0.0
      %3595 = vmatpush1.xpose.msra.mxu0 0.0
      %3596 = vmatprep.subr.mxu0 0.0
      %3597 = vmatpush1.xpose.msra.mxu0 0.0
      %3598 = vmatprep.mubr.f32.mxu0 0.0
      %3599 = vmatmul.mubr.f32.gmra.mrb[0].mxu0 %v3530
      %v3600 = vpop.f32.mrb[0].mxu0
      %v3601 = vadd.f32 0.0, %v3600
      %v3602 = vpop.f32.mrb[0].mxu0
      %3603 = vdwg.mxu0
      %3605 = vrot.lane.b32.xlu0 %v1214, 96
      %v3606 = vpop.permute.xlu0 %3605
      %v3607 = vsel %vm395, %v1214, 0
      %v3609 = vsel %vm395, %v3606, 0
      %3611 = vmatprep.subr.mxu0 0.0
      %3612 = vmatpush1.xpose.msra.mxu0 %v3609
      %3613 = vmatprep.subr.mxu0 0.0
      %3614 = vmatpush1.xpose.msra.mxu0 0.0
      %3615 = vmatprep.subr.mxu0 0.0
      %3616 = vmatpush1.xpose.msra.mxu0 0.0
      %3617 = vmatprep.subr.mxu0 0.0
      %3618 = vmatpush1.xpose.msra.mxu0 0.0
      %3619 = vmatprep.subr.mxu0 0.0
      %3620 = vmatpush1.xpose.msra.mxu0 0.0
      %3621 = vmatprep.subr.mxu0 0.0
      %3622 = vmatpush1.xpose.msra.mxu0 0.0
      %3623 = vmatprep.subr.mxu0 0.0
      %3624 = vmatpush1.xpose.msra.mxu0 0.0
      %3625 = vmatprep.subr.mxu0 0.0
      %3626 = vmatpush1.xpose.msra.mxu0 0.0
      %3627 = vmatprep.subr.mxu0 0.0
      %3628 = vmatpush1.xpose.msra.mxu0 0.0
      %3629 = vmatprep.subr.mxu0 0.0
      %3630 = vmatpush1.xpose.msra.mxu0 0.0
      %3631 = vmatprep.subr.mxu0 0.0
      %3632 = vmatpush1.xpose.msra.mxu0 0.0
      %3633 = vmatprep.subr.mxu0 0.0
      %3634 = vmatpush1.xpose.msra.mxu0 0.0
      %3635 = vmatprep.subr.mxu0 0.0
      %3636 = vmatpush1.xpose.msra.mxu0 0.0
      %3637 = vmatprep.subr.mxu0 0.0
      %3638 = vmatpush1.xpose.msra.mxu0 0.0
      %3639 = vmatprep.subr.mxu0 0.0
      %3640 = vmatpush1.xpose.msra.mxu0 0.0
      %3641 = vmatprep.subr.mxu0 0.0
      %3642 = vmatpush1.xpose.msra.mxu0 0.0
      %3643 = vmatprep.subr.mxu0 0.0
      %3644 = vmatpush1.xpose.msra.mxu0 0.0
      %3645 = vmatprep.subr.mxu0 0.0
      %3646 = vmatpush1.xpose.msra.mxu0 0.0
      %3647 = vmatprep.subr.mxu0 0.0
      %3648 = vmatpush1.xpose.msra.mxu0 0.0
      %3649 = vmatprep.subr.mxu0 0.0
      %3650 = vmatpush1.xpose.msra.mxu0 0.0
      %3651 = vmatprep.subr.mxu0 0.0
      %3652 = vmatpush1.xpose.msra.mxu0 0.0
      %3653 = vmatprep.subr.mxu0 0.0
      %3654 = vmatpush1.xpose.msra.mxu0 0.0
      %3655 = vmatprep.subr.mxu0 0.0
      %3656 = vmatpush1.xpose.msra.mxu0 0.0
      %3657 = vmatprep.subr.mxu0 0.0
      %3658 = vmatpush1.xpose.msra.mxu0 0.0
      %3659 = vmatprep.subr.mxu0 0.0
      %3660 = vmatpush1.xpose.msra.mxu0 0.0
      %3661 = vmatprep.subr.mxu0 0.0
      %3662 = vmatpush1.xpose.msra.mxu0 0.0
      %3663 = vmatprep.subr.mxu0 0.0
      %3664 = vmatpush1.xpose.msra.mxu0 0.0
      %3665 = vmatprep.subr.mxu0 0.0
      %3666 = vmatpush1.xpose.msra.mxu0 0.0
      %3667 = vmatprep.subr.mxu0 0.0
      %3668 = vmatpush1.xpose.msra.mxu0 0.0
      %3669 = vmatprep.subr.mxu0 0.0
      %3670 = vmatpush1.xpose.msra.mxu0 0.0
      %3671 = vmatprep.subr.mxu0 0.0
      %3672 = vmatpush1.xpose.msra.mxu0 0.0
      %3673 = vmatprep.subr.mxu0 0.0
      %3674 = vmatpush1.xpose.msra.mxu0 0.0
      %3675 = vmatprep.mubr.f32.mxu0 0.0
      %3676 = vmatmul.mubr.f32.gmra.mrb[0].mxu0 %v3607
      %v3677 = vpop.f32.mrb[0].mxu0
      %v3678 = vadd.f32 0.0, %v3677
      %v3679 = vpop.f32.mrb[0].mxu0
      %3680 = vdwg.mxu0
      %v3681 = vmul.f32 %v1291, 0.17677669
      %v3682 = vmul.f32 %v1368, 0.17677669
      %v3683 = vmul.f32 %v1445, 0.17677669
      %v3684 = vmul.f32 %v1522, 0.17677669
      %v3685 = vmul.f32 %v1599, 0.17677669
      %v3686 = vmul.f32 %v1676, 0.17677669
      %v3687 = vmul.f32 %v1753, 0.17677669
      %v3688 = vmul.f32 %v1830, 0.17677669
      %v3689 = vmul.f32 %v1907, 0.17677669
      %v3690 = vmul.f32 %v1984, 0.17677669
      %v3691 = vmul.f32 %v2061, 0.17677669
      %v3692 = vmul.f32 %v2138, 0.17677669
      %v3693 = vmul.f32 %v2215, 0.17677669
      %v3694 = vmul.f32 %v2292, 0.17677669
      %v3695 = vmul.f32 %v2369, 0.17677669
      %v3696 = vmul.f32 %v2446, 0.17677669
      %v3697 = vmul.f32 %v2523, 0.17677669
      %v3698 = vmul.f32 %v2600, 0.17677669
      %v3699 = vmul.f32 %v2677, 0.17677669
      %v3700 = vmul.f32 %v2754, 0.17677669
      %v3701 = vmul.f32 %v2831, 0.17677669
      %v3702 = vmul.f32 %v2908, 0.17677669
      %v3703 = vmul.f32 %v2985, 0.17677669
      %v3704 = vmul.f32 %v3062, 0.17677669
      %v3705 = vmul.f32 %v3139, 0.17677669
      %v3706 = vmul.f32 %v3216, 0.17677669
      %v3707 = vmul.f32 %v3293, 0.17677669
      %v3708 = vmul.f32 %v3370, 0.17677669
      %v3709 = vmul.f32 %v3447, 0.17677669
      %v3710 = vmul.f32 %v3524, 0.17677669
      %v3711 = vmul.f32 %v3601, 0.17677669
      %v3712 = vmul.f32 %v3678, 0.17677669
      %v3717 = vcombine.high %v390, %v390
      %v3719 = vunpack.c.l.s4 1966171168
      %v3720 = vunpack.c.0.s8 %v3719
      %v3721 = vlaneseq
      %v3722 = vshrl.u32 %v3721, 7
      %v3723 = vsub.s32 %v3720, %v3722
      %v3724 = vrot.slane %v390, %v3723
      %v3726 = vunpack.c.l.s4 1966171168
      %v3727 = vunpack.c.0.s8 %v3726
      %v3728 = vlaneseq
      %v3729 = vshrl.u32 %v3728, 7
      %v3730 = vsub.s32 %v3727, %v3729
      %v3731 = vrot.slane %v3717, %v3730
      %v3732 = vcombine.high %v3724, %v3724
      %v3733 = vcombine.high %v3731, %v3731
      %v3735 = vunpack.c.l.s4 1966171168
      %v3736 = vunpack.c.0.s8 %v3735
      %v3737 = vlaneseq
      %v3738 = vshrl.u32 %v3737, 7
      %v3739 = vsub.s32 %v3736, %v3738
      %v3740 = vrot.slane %v3724, %v3739
      %v3742 = vunpack.c.l.s4 1966171168
      %v3743 = vunpack.c.0.s8 %v3742
      %v3744 = vlaneseq
      %v3745 = vshrl.u32 %v3744, 7
      %v3746 = vsub.s32 %v3743, %v3745
      %v3747 = vrot.slane %v3731, %v3746
      %v3749 = vunpack.c.l.s4 1966171168
      %v3750 = vunpack.c.0.s8 %v3749
      %v3751 = vlaneseq
      %v3752 = vshrl.u32 %v3751, 7
      %v3753 = vsub.s32 %v3750, %v3752
      %v3754 = vrot.slane %v3732, %v3753
      %v3756 = vunpack.c.l.s4 1966171168
      %v3757 = vunpack.c.0.s8 %v3756
      %v3758 = vlaneseq
      %v3759 = vshrl.u32 %v3758, 7
      %v3760 = vsub.s32 %v3757, %v3759
      %v3761 = vrot.slane %v3733, %v3760
      %v3762 = vcombine.high %v3740, %v3740
      %v3763 = vcombine.high %v3747, %v3747
      %v3764 = vcombine.high %v3754, %v3754
      %v3765 = vcombine.high %v3761, %v3761
      %v3766 = vcombine.high %v391, %v391
      %v3768 = vunpack.c.l.s4 1966171168
      %v3769 = vunpack.c.0.s8 %v3768
      %v3770 = vlaneseq
      %v3771 = vshrl.u32 %v3770, 7
      %v3772 = vsub.s32 %v3769, %v3771
      %v3773 = vrot.slane %v391, %v3772
      %v3775 = vunpack.c.l.s4 1966171168
      %v3776 = vunpack.c.0.s8 %v3775
      %v3777 = vlaneseq
      %v3778 = vshrl.u32 %v3777, 7
      %v3779 = vsub.s32 %v3776, %v3778
      %v3780 = vrot.slane %v3766, %v3779
      %v3781 = vcombine.high %v3773, %v3773
      %v3782 = vcombine.high %v3780, %v3780
      %v3784 = vunpack.c.l.s4 1966171168
      %v3785 = vunpack.c.0.s8 %v3784
      %v3786 = vlaneseq
      %v3787 = vshrl.u32 %v3786, 7
      %v3788 = vsub.s32 %v3785, %v3787
      %v3789 = vrot.slane %v3773, %v3788
      %v3791 = vunpack.c.l.s4 1966171168
      %v3792 = vunpack.c.0.s8 %v3791
      %v3793 = vlaneseq
      %v3794 = vshrl.u32 %v3793, 7
      %v3795 = vsub.s32 %v3792, %v3794
      %v3796 = vrot.slane %v3780, %v3795
      %v3798 = vunpack.c.l.s4 1966171168
      %v3799 = vunpack.c.0.s8 %v3798
      %v3800 = vlaneseq
      %v3801 = vshrl.u32 %v3800, 7
      %v3802 = vsub.s32 %v3799, %v3801
      %v3803 = vrot.slane %v3781, %v3802
      %v3805 = vunpack.c.l.s4 1966171168
      %v3806 = vunpack.c.0.s8 %v3805
      %v3807 = vlaneseq
      %v3808 = vshrl.u32 %v3807, 7
      %v3809 = vsub.s32 %v3806, %v3808
      %v3810 = vrot.slane %v3782, %v3809
      %v3811 = vcombine.high %v3789, %v3789
      %v3812 = vcombine.high %v3796, %v3796
      %v3813 = vcombine.high %v3803, %v3803
      %v3814 = vcombine.high %v3810, %v3810
      %v3815 = vcombine.high %v392, %v392
      %v3817 = vunpack.c.l.s4 1966171168
      %v3818 = vunpack.c.0.s8 %v3817
      %v3819 = vlaneseq
      %v3820 = vshrl.u32 %v3819, 7
      %v3821 = vsub.s32 %v3818, %v3820
      %v3822 = vrot.slane %v392, %v3821
      %v3824 = vunpack.c.l.s4 1966171168
      %v3825 = vunpack.c.0.s8 %v3824
      %v3826 = vlaneseq
      %v3827 = vshrl.u32 %v3826, 7
      %v3828 = vsub.s32 %v3825, %v3827
      %v3829 = vrot.slane %v3815, %v3828
      %v3830 = vcombine.high %v3822, %v3822
      %v3831 = vcombine.high %v3829, %v3829
      %v3833 = vunpack.c.l.s4 1966171168
      %v3834 = vunpack.c.0.s8 %v3833
      %v3835 = vlaneseq
      %v3836 = vshrl.u32 %v3835, 7
      %v3837 = vsub.s32 %v3834, %v3836
      %v3838 = vrot.slane %v3822, %v3837
      %v3840 = vunpack.c.l.s4 1966171168
      %v3841 = vunpack.c.0.s8 %v3840
      %v3842 = vlaneseq
      %v3843 = vshrl.u32 %v3842, 7
      %v3844 = vsub.s32 %v3841, %v3843
      %v3845 = vrot.slane %v3829, %v3844
      %v3847 = vunpack.c.l.s4 1966171168
      %v3848 = vunpack.c.0.s8 %v3847
      %v3849 = vlaneseq
      %v3850 = vshrl.u32 %v3849, 7
      %v3851 = vsub.s32 %v3848, %v3850
      %v3852 = vrot.slane %v3830, %v3851
      %v3854 = vunpack.c.l.s4 1966171168
      %v3855 = vunpack.c.0.s8 %v3854
      %v3856 = vlaneseq
      %v3857 = vshrl.u32 %v3856, 7
      %v3858 = vsub.s32 %v3855, %v3857
      %v3859 = vrot.slane %v3831, %v3858
      %v3860 = vcombine.high %v3838, %v3838
      %v3861 = vcombine.high %v3845, %v3845
      %v3862 = vcombine.high %v3852, %v3852
      %v3863 = vcombine.high %v3859, %v3859
      %v3864 = vcombine.high %v393, %v393
      %v3866 = vunpack.c.l.s4 1966171168
      %v3867 = vunpack.c.0.s8 %v3866
      %v3868 = vlaneseq
      %v3869 = vshrl.u32 %v3868, 7
      %v3870 = vsub.s32 %v3867, %v3869
      %v3871 = vrot.slane %v393, %v3870
      %v3873 = vunpack.c.l.s4 1966171168
      %v3874 = vunpack.c.0.s8 %v3873
      %v3875 = vlaneseq
      %v3876 = vshrl.u32 %v3875, 7
      %v3877 = vsub.s32 %v3874, %v3876
      %v3878 = vrot.slane %v3864, %v3877
      %v3879 = vcombine.high %v3871, %v3871
      %v3880 = vcombine.high %v3878, %v3878
      %v3882 = vunpack.c.l.s4 1966171168
      %v3883 = vunpack.c.0.s8 %v3882
      %v3884 = vlaneseq
      %v3885 = vshrl.u32 %v3884, 7
      %v3886 = vsub.s32 %v3883, %v3885
      %v3887 = vrot.slane %v3871, %v3886
      %v3889 = vunpack.c.l.s4 1966171168
      %v3890 = vunpack.c.0.s8 %v3889
      %v3891 = vlaneseq
      %v3892 = vshrl.u32 %v3891, 7
      %v3893 = vsub.s32 %v3890, %v3892
      %v3894 = vrot.slane %v3878, %v3893
      %v3896 = vunpack.c.l.s4 1966171168
      %v3897 = vunpack.c.0.s8 %v3896
      %v3898 = vlaneseq
      %v3899 = vshrl.u32 %v3898, 7
      %v3900 = vsub.s32 %v3897, %v3899
      %v3901 = vrot.slane %v3879, %v3900
      %v3903 = vunpack.c.l.s4 1966171168
      %v3904 = vunpack.c.0.s8 %v3903
      %v3905 = vlaneseq
      %v3906 = vshrl.u32 %v3905, 7
      %v3907 = vsub.s32 %v3904, %v3906
      %v3908 = vrot.slane %v3880, %v3907
      %v3909 = vcombine.high %v3887, %v3887
      %v3910 = vcombine.high %v3894, %v3894
      %v3911 = vcombine.high %v3901, %v3901
      %v3912 = vcombine.high %v3908, %v3908
      %v3945 = vsub.f32 %v3740, 1.0
      %v3946 = vsub.f32 %v3754, 1.0
      %v3947 = vsub.f32 %v3762, 1.0
      %v3948 = vsub.f32 %v3764, 1.0
      %v3949 = vsub.f32 %v3747, 1.0
      %v3950 = vsub.f32 %v3761, 1.0
      %v3951 = vsub.f32 %v3763, 1.0
      %v3952 = vsub.f32 %v3765, 1.0
      %v3953 = vsub.f32 %v3789, 1.0
      %v3954 = vsub.f32 %v3803, 1.0
      %v3955 = vsub.f32 %v3811, 1.0
      %v3956 = vsub.f32 %v3813, 1.0
      %v3957 = vsub.f32 %v3796, 1.0
      %v3958 = vsub.f32 %v3810, 1.0
      %v3959 = vsub.f32 %v3812, 1.0
      %v3960 = vsub.f32 %v3814, 1.0
      %v3961 = vsub.f32 %v3838, 1.0
      %v3962 = vsub.f32 %v3852, 1.0
      %v3963 = vsub.f32 %v3860, 1.0
      %v3964 = vsub.f32 %v3862, 1.0
      %v3965 = vsub.f32 %v3845, 1.0
      %v3966 = vsub.f32 %v3859, 1.0
      %v3967 = vsub.f32 %v3861, 1.0
      %v3968 = vsub.f32 %v3863, 1.0
      %v3969 = vsub.f32 %v3887, 1.0
      %v3970 = vsub.f32 %v3901, 1.0
      %v3971 = vsub.f32 %v3909, 1.0
      %v3972 = vsub.f32 %v3911, 1.0
      %v3973 = vsub.f32 %v3894, 1.0
      %v3974 = vsub.f32 %v3908, 1.0
      %v3975 = vsub.f32 %v3910, 1.0
      %v3976 = vsub.f32 %v3912, 1.0
      %v3977 = vmul.f32 %v3945, 1e+09
      %v3978 = vmul.f32 %v3946, 1e+09
      %v3979 = vmul.f32 %v3947, 1e+09
      %v3980 = vmul.f32 %v3948, 1e+09
      %v3981 = vmul.f32 %v3949, 1e+09
      %v3982 = vmul.f32 %v3950, 1e+09
      %v3983 = vmul.f32 %v3951, 1e+09
      %v3984 = vmul.f32 %v3952, 1e+09
      %v3985 = vmul.f32 %v3953, 1e+09
      %v3986 = vmul.f32 %v3954, 1e+09
      %v3987 = vmul.f32 %v3955, 1e+09
      %v3988 = vmul.f32 %v3956, 1e+09
      %v3989 = vmul.f32 %v3957, 1e+09
      %v3990 = vmul.f32 %v3958, 1e+09
      %v3991 = vmul.f32 %v3959, 1e+09
      %v3992 = vmul.f32 %v3960, 1e+09
      %v3993 = vmul.f32 %v3961, 1e+09
      %v3994 = vmul.f32 %v3962, 1e+09
      %v3995 = vmul.f32 %v3963, 1e+09
      %v3996 = vmul.f32 %v3964, 1e+09
      %v3997 = vmul.f32 %v3965, 1e+09
      %v3998 = vmul.f32 %v3966, 1e+09
      %v3999 = vmul.f32 %v3967, 1e+09
      %v4000 = vmul.f32 %v3968, 1e+09
      %v4001 = vmul.f32 %v3969, 1e+09
      %v4002 = vmul.f32 %v3970, 1e+09
      %v4003 = vmul.f32 %v3971, 1e+09
      %v4004 = vmul.f32 %v3972, 1e+09
      %v4005 = vmul.f32 %v3973, 1e+09
      %v4006 = vmul.f32 %v3974, 1e+09
      %v4007 = vmul.f32 %v3975, 1e+09
      %v4008 = vmul.f32 %v3976, 1e+09
      %v4041 = vlaneseq
      %v4042 = vshrl.u32 %v4041, 7
      %v4043 = vsub.s32 0, %v4042
      %v4044 = vrot.slane %v3977, %v4043
      %v4045 = vlaneseq
      %v4046 = vshrl.u32 %v4045, 7
      %v4047 = vsub.s32 0, %v4046
      %v4048 = vrot.slane %v3978, %v4047
      %v4049 = vlaneseq
      %v4050 = vshrl.u32 %v4049, 7
      %v4051 = vsub.s32 0, %v4050
      %v4052 = vrot.slane %v3979, %v4051
      %v4053 = vlaneseq
      %v4054 = vshrl.u32 %v4053, 7
      %v4055 = vsub.s32 0, %v4054
      %v4056 = vrot.slane %v3980, %v4055
      %v4057 = vlaneseq
      %v4058 = vshrl.u32 %v4057, 7
      %v4059 = vsub.s32 0, %v4058
      %v4060 = vrot.slane %v3981, %v4059
      %v4061 = vlaneseq
      %v4062 = vshrl.u32 %v4061, 7
      %v4063 = vsub.s32 0, %v4062
      %v4064 = vrot.slane %v3982, %v4063
      %v4065 = vlaneseq
      %v4066 = vshrl.u32 %v4065, 7
      %v4067 = vsub.s32 0, %v4066
      %v4068 = vrot.slane %v3983, %v4067
      %v4069 = vlaneseq
      %v4070 = vshrl.u32 %v4069, 7
      %v4071 = vsub.s32 0, %v4070
      %v4072 = vrot.slane %v3984, %v4071
      %v4073 = vlaneseq
      %v4074 = vshrl.u32 %v4073, 7
      %v4075 = vsub.s32 0, %v4074
      %v4076 = vrot.slane %v3985, %v4075
      %v4077 = vlaneseq
      %v4078 = vshrl.u32 %v4077, 7
      %v4079 = vsub.s32 0, %v4078
      %v4080 = vrot.slane %v3986, %v4079
      %v4081 = vlaneseq
      %v4082 = vshrl.u32 %v4081, 7
      %v4083 = vsub.s32 0, %v4082
      %v4084 = vrot.slane %v3987, %v4083
      %v4085 = vlaneseq
      %v4086 = vshrl.u32 %v4085, 7
      %v4087 = vsub.s32 0, %v4086
      %v4088 = vrot.slane %v3988, %v4087
      %v4089 = vlaneseq
      %v4090 = vshrl.u32 %v4089, 7
      %v4091 = vsub.s32 0, %v4090
      %v4092 = vrot.slane %v3989, %v4091
      %v4093 = vlaneseq
      %v4094 = vshrl.u32 %v4093, 7
      %v4095 = vsub.s32 0, %v4094
      %v4096 = vrot.slane %v3990, %v4095
      %v4097 = vlaneseq
      %v4098 = vshrl.u32 %v4097, 7
      %v4099 = vsub.s32 0, %v4098
      %v4100 = vrot.slane %v3991, %v4099
      %v4101 = vlaneseq
      %v4102 = vshrl.u32 %v4101, 7
      %v4103 = vsub.s32 0, %v4102
      %v4104 = vrot.slane %v3992, %v4103
      %v4105 = vlaneseq
      %v4106 = vshrl.u32 %v4105, 7
      %v4107 = vsub.s32 0, %v4106
      %v4108 = vrot.slane %v3993, %v4107
      %v4109 = vlaneseq
      %v4110 = vshrl.u32 %v4109, 7
      %v4111 = vsub.s32 0, %v4110
      %v4112 = vrot.slane %v3994, %v4111
      %v4113 = vlaneseq
      %v4114 = vshrl.u32 %v4113, 7
      %v4115 = vsub.s32 0, %v4114
      %v4116 = vrot.slane %v3995, %v4115
      %v4117 = vlaneseq
      %v4118 = vshrl.u32 %v4117, 7
      %v4119 = vsub.s32 0, %v4118
      %v4120 = vrot.slane %v3996, %v4119
      %v4121 = vlaneseq
      %v4122 = vshrl.u32 %v4121, 7
      %v4123 = vsub.s32 0, %v4122
      %v4124 = vrot.slane %v3997, %v4123
      %v4125 = vlaneseq
      %v4126 = vshrl.u32 %v4125, 7
      %v4127 = vsub.s32 0, %v4126
      %v4128 = vrot.slane %v3998, %v4127
      %v4129 = vlaneseq
      %v4130 = vshrl.u32 %v4129, 7
      %v4131 = vsub.s32 0, %v4130
      %v4132 = vrot.slane %v3999, %v4131
      %v4133 = vlaneseq
      %v4134 = vshrl.u32 %v4133, 7
      %v4135 = vsub.s32 0, %v4134
      %v4136 = vrot.slane %v4000, %v4135
      %v4137 = vlaneseq
      %v4138 = vshrl.u32 %v4137, 7
      %v4139 = vsub.s32 0, %v4138
      %v4140 = vrot.slane %v4001, %v4139
      %v4141 = vlaneseq
      %v4142 = vshrl.u32 %v4141, 7
      %v4143 = vsub.s32 0, %v4142
      %v4144 = vrot.slane %v4002, %v4143
      %v4145 = vlaneseq
      %v4146 = vshrl.u32 %v4145, 7
      %v4147 = vsub.s32 0, %v4146
      %v4148 = vrot.slane %v4003, %v4147
      %v4149 = vlaneseq
      %v4150 = vshrl.u32 %v4149, 7
      %v4151 = vsub.s32 0, %v4150
      %v4152 = vrot.slane %v4004, %v4151
      %v4153 = vlaneseq
      %v4154 = vshrl.u32 %v4153, 7
      %v4155 = vsub.s32 0, %v4154
      %v4156 = vrot.slane %v4005, %v4155
      %v4157 = vlaneseq
      %v4158 = vshrl.u32 %v4157, 7
      %v4159 = vsub.s32 0, %v4158
      %v4160 = vrot.slane %v4006, %v4159
      %v4161 = vlaneseq
      %v4162 = vshrl.u32 %v4161, 7
      %v4163 = vsub.s32 0, %v4162
      %v4164 = vrot.slane %v4007, %v4163
      %v4165 = vlaneseq
      %v4166 = vshrl.u32 %v4165, 7
      %v4167 = vsub.s32 0, %v4166
      %v4168 = vrot.slane %v4008, %v4167
      %v4201 = vadd.f32 %v3681, %v4044
      %v4202 = vadd.f32 %v3682, %v4048
      %v4203 = vadd.f32 %v3683, %v4052
      %v4204 = vadd.f32 %v3684, %v4056
      %v4205 = vadd.f32 %v3685, %v4060
      %v4206 = vadd.f32 %v3686, %v4064
      %v4207 = vadd.f32 %v3687, %v4068
      %v4208 = vadd.f32 %v3688, %v4072
      %v4209 = vadd.f32 %v3689, %v4076
      %v4210 = vadd.f32 %v3690, %v4080
      %v4211 = vadd.f32 %v3691, %v4084
      %v4212 = vadd.f32 %v3692, %v4088
      %v4213 = vadd.f32 %v3693, %v4092
      %v4214 = vadd.f32 %v3694, %v4096
      %v4215 = vadd.f32 %v3695, %v4100
      %v4216 = vadd.f32 %v3696, %v4104
      %v4217 = vadd.f32 %v3697, %v4108
      %v4218 = vadd.f32 %v3698, %v4112
      %v4219 = vadd.f32 %v3699, %v4116
      %v4220 = vadd.f32 %v3700, %v4120
      %v4221 = vadd.f32 %v3701, %v4124
      %v4222 = vadd.f32 %v3702, %v4128
      %v4223 = vadd.f32 %v3703, %v4132
      %v4224 = vadd.f32 %v3704, %v4136
      %v4225 = vadd.f32 %v3705, %v4140
      %v4226 = vadd.f32 %v3706, %v4144
      %v4227 = vadd.f32 %v3707, %v4148
      %v4228 = vadd.f32 %v3708, %v4152
      %v4229 = vadd.f32 %v3709, %v4156
      %v4230 = vadd.f32 %v3710, %v4160
      %v4231 = vadd.f32 %v3711, %v4164
      %v4232 = vadd.f32 %v3712, %v4168
      %vm4233 = vcmask 64512
      %v4234 = vsel %vm4233, %v4201, -inf
      %4235 = vmax.xlane.f32.xlu0 %v4234
      %v4236 = vpop.xlane.xlu0 %4235
      %v4237 = vsel %vm4233, %v4202, -inf
      %4238 = vmax.xlane.f32.xlu0 %v4237
      %v4239 = vpop.xlane.xlu0 %4238
      %v4240 = vsel %vm4233, %v4203, -inf
      %4241 = vmax.xlane.f32.xlu0 %v4240
      %v4242 = vpop.xlane.xlu0 %4241
      %v4243 = vsel %vm4233, %v4204, -inf
      %4244 = vmax.xlane.f32.xlu0 %v4243
      %v4245 = vpop.xlane.xlu0 %4244
      %v4246 = vsel %vm4233, %v4205, -inf
      %4247 = vmax.xlane.f32.xlu0 %v4246
      %v4248 = vpop.xlane.xlu0 %4247
      %v4249 = vsel %vm4233, %v4206, -inf
      %4250 = vmax.xlane.f32.xlu0 %v4249
      %v4251 = vpop.xlane.xlu0 %4250
      %v4252 = vsel %vm4233, %v4207, -inf
      %4253 = vmax.xlane.f32.xlu0 %v4252
      %v4254 = vpop.xlane.xlu0 %4253
      %v4255 = vsel %vm4233, %v4208, -inf
      %4256 = vmax.xlane.f32.xlu0 %v4255
      %v4257 = vpop.xlane.xlu0 %4256
      %v4258 = vsel %vm4233, %v4209, -inf
      %4259 = vmax.xlane.f32.xlu0 %v4258
      %v4260 = vpop.xlane.xlu0 %4259
      %v4261 = vsel %vm4233, %v4210, -inf
      %4262 = vmax.xlane.f32.xlu0 %v4261
      %v4263 = vpop.xlane.xlu0 %4262
      %v4264 = vsel %vm4233, %v4211, -inf
      %4265 = vmax.xlane.f32.xlu0 %v4264
      %v4266 = vpop.xlane.xlu0 %4265
      %v4267 = vsel %vm4233, %v4212, -inf
      %4268 = vmax.xlane.f32.xlu0 %v4267
      %v4269 = vpop.xlane.xlu0 %4268
      %v4270 = vsel %vm4233, %v4213, -inf
      %4271 = vmax.xlane.f32.xlu0 %v4270
      %v4272 = vpop.xlane.xlu0 %4271
      %v4273 = vsel %vm4233, %v4214, -inf
      %4274 = vmax.xlane.f32.xlu0 %v4273
      %v4275 = vpop.xlane.xlu0 %4274
      %v4276 = vsel %vm4233, %v4215, -inf
      %4277 = vmax.xlane.f32.xlu0 %v4276
      %v4278 = vpop.xlane.xlu0 %4277
      %v4279 = vsel %vm4233, %v4216, -inf
      %4280 = vmax.xlane.f32.xlu0 %v4279
      %v4281 = vpop.xlane.xlu0 %4280
      %v4282 = vsel %vm4233, %v4217, -inf
      %4283 = vmax.xlane.f32.xlu0 %v4282
      %v4284 = vpop.xlane.xlu0 %4283
      %v4285 = vsel %vm4233, %v4218, -inf
      %4286 = vmax.xlane.f32.xlu0 %v4285
      %v4287 = vpop.xlane.xlu0 %4286
      %v4288 = vsel %vm4233, %v4219, -inf
      %4289 = vmax.xlane.f32.xlu0 %v4288
      %v4290 = vpop.xlane.xlu0 %4289
      %v4291 = vsel %vm4233, %v4220, -inf
      %4292 = vmax.xlane.f32.xlu0 %v4291
      %v4293 = vpop.xlane.xlu0 %4292
      %v4294 = vsel %vm4233, %v4221, -inf
      %4295 = vmax.xlane.f32.xlu0 %v4294
      %v4296 = vpop.xlane.xlu0 %4295
      %v4297 = vsel %vm4233, %v4222, -inf
      %4298 = vmax.xlane.f32.xlu0 %v4297
      %v4299 = vpop.xlane.xlu0 %4298
      %v4300 = vsel %vm4233, %v4223, -inf
      %4301 = vmax.xlane.f32.xlu0 %v4300
      %v4302 = vpop.xlane.xlu0 %4301
      %v4303 = vsel %vm4233, %v4224, -inf
      %4304 = vmax.xlane.f32.xlu0 %v4303
      %v4305 = vpop.xlane.xlu0 %4304
      %v4306 = vsel %vm4233, %v4225, -inf
      %4307 = vmax.xlane.f32.xlu0 %v4306
      %v4308 = vpop.xlane.xlu0 %4307
      %v4309 = vsel %vm4233, %v4226, -inf
      %4310 = vmax.xlane.f32.xlu0 %v4309
      %v4311 = vpop.xlane.xlu0 %4310
      %v4312 = vsel %vm4233, %v4227, -inf
      %4313 = vmax.xlane.f32.xlu0 %v4312
      %v4314 = vpop.xlane.xlu0 %4313
      %v4315 = vsel %vm4233, %v4228, -inf
      %4316 = vmax.xlane.f32.xlu0 %v4315
      %v4317 = vpop.xlane.xlu0 %4316
      %v4318 = vsel %vm4233, %v4229, -inf
      %4319 = vmax.xlane.f32.xlu0 %v4318
      %v4320 = vpop.xlane.xlu0 %4319
      %v4321 = vsel %vm4233, %v4230, -inf
      %4322 = vmax.xlane.f32.xlu0 %v4321
      %v4323 = vpop.xlane.xlu0 %4322
      %v4324 = vsel %vm4233, %v4231, -inf
      %4325 = vmax.xlane.f32.xlu0 %v4324
      %v4326 = vpop.xlane.xlu0 %4325
      %v4327 = vsel %vm4233, %v4232, -inf
      %4328 = vmax.xlane.f32.xlu0 %v4327
      %v4329 = vpop.xlane.xlu0 %4328
      %v4330 = vsub.f32 %v4201, %v4236
      %v4331 = vsub.f32 %v4202, %v4239
      %v4332 = vsub.f32 %v4203, %v4242
      %v4333 = vsub.f32 %v4204, %v4245
      %v4334 = vsub.f32 %v4205, %v4248
      %v4335 = vsub.f32 %v4206, %v4251
      %v4336 = vsub.f32 %v4207, %v4254
      %v4337 = vsub.f32 %v4208, %v4257
      %v4338 = vsub.f32 %v4209, %v4260
      %v4339 = vsub.f32 %v4210, %v4263
      %v4340 = vsub.f32 %v4211, %v4266
      %v4341 = vsub.f32 %v4212, %v4269
      %v4342 = vsub.f32 %v4213, %v4272
      %v4343 = vsub.f32 %v4214, %v4275
      %v4344 = vsub.f32 %v4215, %v4278
      %v4345 = vsub.f32 %v4216, %v4281
      %v4346 = vsub.f32 %v4217, %v4284
      %v4347 = vsub.f32 %v4218, %v4287
      %v4348 = vsub.f32 %v4219, %v4290
      %v4349 = vsub.f32 %v4220, %v4293
      %v4350 = vsub.f32 %v4221, %v4296
      %v4351 = vsub.f32 %v4222, %v4299
      %v4352 = vsub.f32 %v4223, %v4302
      %v4353 = vsub.f32 %v4224, %v4305
      %v4354 = vsub.f32 %v4225, %v4308
      %v4355 = vsub.f32 %v4226, %v4311
      %v4356 = vsub.f32 %v4227, %v4314
      %v4357 = vsub.f32 %v4228, %v4317
      %v4358 = vsub.f32 %v4229, %v4320
      %v4359 = vsub.f32 %v4230, %v4323
      %v4360 = vsub.f32 %v4231, %v4326
      %v4361 = vsub.f32 %v4232, %v4329
      %v4362 = vmul.f32 %v4330, 1.442695
      %v4363 = vpow.pop %v4362
      %v4364 = vmul.f32 %v4331, 1.442695
      %v4365 = vpow.pop %v4364
      %v4366 = vmul.f32 %v4332, 1.442695
      %v4367 = vpow.pop %v4366
      %v4368 = vmul.f32 %v4333, 1.442695
      %v4369 = vpow.pop %v4368
      %v4370 = vmul.f32 %v4334, 1.442695
      %v4371 = vpow.pop %v4370
      %v4372 = vmul.f32 %v4335, 1.442695
      %v4373 = vpow.pop %v4372
      %v4374 = vmul.f32 %v4336, 1.442695
      %v4375 = vpow.pop %v4374
      %v4376 = vmul.f32 %v4337, 1.442695
      %v4377 = vpow.pop %v4376
      %v4378 = vmul.f32 %v4338, 1.442695
      %v4379 = vpow.pop %v4378
      %v4380 = vmul.f32 %v4339, 1.442695
      %v4381 = vpow.pop %v4380
      %v4382 = vmul.f32 %v4340, 1.442695
      %v4383 = vpow.pop %v4382
      %v4384 = vmul.f32 %v4341, 1.442695
      %v4385 = vpow.pop %v4384
      %v4386 = vmul.f32 %v4342, 1.442695
      %v4387 = vpow.pop %v4386
      %v4388 = vmul.f32 %v4343, 1.442695
      %v4389 = vpow.pop %v4388
      %v4390 = vmul.f32 %v4344, 1.442695
      %v4391 = vpow.pop %v4390
      %v4392 = vmul.f32 %v4345, 1.442695
      %v4393 = vpow.pop %v4392
      %v4394 = vmul.f32 %v4346, 1.442695
      %v4395 = vpow.pop %v4394
      %v4396 = vmul.f32 %v4347, 1.442695
      %v4397 = vpow.pop %v4396
      %v4398 = vmul.f32 %v4348, 1.442695
      %v4399 = vpow.pop %v4398
      %v4400 = vmul.f32 %v4349, 1.442695
      %v4401 = vpow.pop %v4400
      %v4402 = vmul.f32 %v4350, 1.442695
      %v4403 = vpow.pop %v4402
      %v4404 = vmul.f32 %v4351, 1.442695
      %v4405 = vpow.pop %v4404
      %v4406 = vmul.f32 %v4352, 1.442695
      %v4407 = vpow.pop %v4406
      %v4408 = vmul.f32 %v4353, 1.442695
      %v4409 = vpow.pop %v4408
      %v4410 = vmul.f32 %v4354, 1.442695
      %v4411 = vpow.pop %v4410
      %v4412 = vmul.f32 %v4355, 1.442695
      %v4413 = vpow.pop %v4412
      %v4414 = vmul.f32 %v4356, 1.442695
      %v4415 = vpow.pop %v4414
      %v4416 = vmul.f32 %v4357, 1.442695
      %v4417 = vpow.pop %v4416
      %v4418 = vmul.f32 %v4358, 1.442695
      %v4419 = vpow.pop %v4418
      %v4420 = vmul.f32 %v4359, 1.442695
      %v4421 = vpow.pop %v4420
      %v4422 = vmul.f32 %v4360, 1.442695
      %v4423 = vpow.pop %v4422
      %v4424 = vmul.f32 %v4361, 1.442695
      %v4425 = vpow.pop %v4424
      %v4426 = vsel %vm4233, %v4363, 0.0
      %4427 = vadd.xlane.f32.xlu0 %v4426
      %v4428 = vpop.xlane.xlu0 %4427
      %v4429 = vsel %vm4233, %v4365, 0.0
      %4430 = vadd.xlane.f32.xlu0 %v4429
      %v4431 = vpop.xlane.xlu0 %4430
      %v4432 = vsel %vm4233, %v4367, 0.0
      %4433 = vadd.xlane.f32.xlu0 %v4432
      %v4434 = vpop.xlane.xlu0 %4433
      %v4435 = vsel %vm4233, %v4369, 0.0
      %4436 = vadd.xlane.f32.xlu0 %v4435
      %v4437 = vpop.xlane.xlu0 %4436
      %v4438 = vsel %vm4233, %v4371, 0.0
      %4439 = vadd.xlane.f32.xlu0 %v4438
      %v4440 = vpop.xlane.xlu0 %4439
      %v4441 = vsel %vm4233, %v4373, 0.0
      %4442 = vadd.xlane.f32.xlu0 %v4441
      %v4443 = vpop.xlane.xlu0 %4442
      %v4444 = vsel %vm4233, %v4375, 0.0
      %4445 = vadd.xlane.f32.xlu0 %v4444
      %v4446 = vpop.xlane.xlu0 %4445
      %v4447 = vsel %vm4233, %v4377, 0.0
      %4448 = vadd.xlane.f32.xlu0 %v4447
      %v4449 = vpop.xlane.xlu0 %4448
      %v4450 = vsel %vm4233, %v4379, 0.0
      %4451 = vadd.xlane.f32.xlu0 %v4450
      %v4452 = vpop.xlane.xlu0 %4451
      %v4453 = vsel %vm4233, %v4381, 0.0
      %4454 = vadd.xlane.f32.xlu0 %v4453
      %v4455 = vpop.xlane.xlu0 %4454
      %v4456 = vsel %vm4233, %v4383, 0.0
      %4457 = vadd.xlane.f32.xlu0 %v4456
      %v4458 = vpop.xlane.xlu0 %4457
      %v4459 = vsel %vm4233, %v4385, 0.0
      %4460 = vadd.xlane.f32.xlu0 %v4459
      %v4461 = vpop.xlane.xlu0 %4460
      %v4462 = vsel %vm4233, %v4387, 0.0
      %4463 = vadd.xlane.f32.xlu0 %v4462
      %v4464 = vpop.xlane.xlu0 %4463
      %v4465 = vsel %vm4233, %v4389, 0.0
      %4466 = vadd.xlane.f32.xlu0 %v4465
      %v4467 = vpop.xlane.xlu0 %4466
      %v4468 = vsel %vm4233, %v4391, 0.0
      %4469 = vadd.xlane.f32.xlu0 %v4468
      %v4470 = vpop.xlane.xlu0 %4469
      %v4471 = vsel %vm4233, %v4393, 0.0
      %4472 = vadd.xlane.f32.xlu0 %v4471
      %v4473 = vpop.xlane.xlu0 %4472
      %v4474 = vsel %vm4233, %v4395, 0.0
      %4475 = vadd.xlane.f32.xlu0 %v4474
      %v4476 = vpop.xlane.xlu0 %4475
      %v4477 = vsel %vm4233, %v4397, 0.0
      %4478 = vadd.xlane.f32.xlu0 %v4477
      %v4479 = vpop.xlane.xlu0 %4478
      %v4480 = vsel %vm4233, %v4399, 0.0
      %4481 = vadd.xlane.f32.xlu0 %v4480
      %v4482 = vpop.xlane.xlu0 %4481
      %v4483 = vsel %vm4233, %v4401, 0.0
      %4484 = vadd.xlane.f32.xlu0 %v4483
      %v4485 = vpop.xlane.xlu0 %4484
      %v4486 = vsel %vm4233, %v4403, 0.0
      %4487 = vadd.xlane.f32.xlu0 %v4486
      %v4488 = vpop.xlane.xlu0 %4487
      %v4489 = vsel %vm4233, %v4405, 0.0
      %4490 = vadd.xlane.f32.xlu0 %v4489
      %v4491 = vpop.xlane.xlu0 %4490
      %v4492 = vsel %vm4233, %v4407, 0.0
      %4493 = vadd.xlane.f32.xlu0 %v4492
      %v4494 = vpop.xlane.xlu0 %4493
      %v4495 = vsel %vm4233, %v4409, 0.0
      %4496 = vadd.xlane.f32.xlu0 %v4495
      %v4497 = vpop.xlane.xlu0 %4496
      %v4498 = vsel %vm4233, %v4411, 0.0
      %4499 = vadd.xlane.f32.xlu0 %v4498
      %v4500 = vpop.xlane.xlu0 %4499
      %v4501 = vsel %vm4233, %v4413, 0.0
      %4502 = vadd.xlane.f32.xlu0 %v4501
      %v4503 = vpop.xlane.xlu0 %4502
      %v4504 = vsel %vm4233, %v4415, 0.0
      %4505 = vadd.xlane.f32.xlu0 %v4504
      %v4506 = vpop.xlane.xlu0 %4505
      %v4507 = vsel %vm4233, %v4417, 0.0
      %4508 = vadd.xlane.f32.xlu0 %v4507
      %v4509 = vpop.xlane.xlu0 %4508
      %v4510 = vsel %vm4233, %v4419, 0.0
      %4511 = vadd.xlane.f32.xlu0 %v4510
      %v4512 = vpop.xlane.xlu0 %4511
      %v4513 = vsel %vm4233, %v4421, 0.0
      %4514 = vadd.xlane.f32.xlu0 %v4513
      %v4515 = vpop.xlane.xlu0 %4514
      %v4516 = vsel %vm4233, %v4423, 0.0
      %4517 = vadd.xlane.f32.xlu0 %v4516
      %v4518 = vpop.xlane.xlu0 %4517
      %v4519 = vsel %vm4233, %v4425, 0.0
      %4520 = vadd.xlane.f32.xlu0 %v4519
      %v4521 = vpop.xlane.xlu0 %4520
      %v4522 = vrcp.pop %v4428
      %v4523 = vrcp.pop %v4431
      %v4524 = vrcp.pop %v4434
      %v4525 = vrcp.pop %v4437
      %v4526 = vrcp.pop %v4440
      %v4527 = vrcp.pop %v4443
      %v4528 = vrcp.pop %v4446
      %v4529 = vrcp.pop %v4449
      %v4530 = vrcp.pop %v4452
      %v4531 = vrcp.pop %v4455
      %v4532 = vrcp.pop %v4458
      %v4533 = vrcp.pop %v4461
      %v4534 = vrcp.pop %v4464
      %v4535 = vrcp.pop %v4467
      %v4536 = vrcp.pop %v4470
      %v4537 = vrcp.pop %v4473
      %v4538 = vrcp.pop %v4476
      %v4539 = vrcp.pop %v4479
      %v4540 = vrcp.pop %v4482
      %v4541 = vrcp.pop %v4485
      %v4542 = vrcp.pop %v4488
      %v4543 = vrcp.pop %v4491
      %v4544 = vrcp.pop %v4494
      %v4545 = vrcp.pop %v4497
      %v4546 = vrcp.pop %v4500
      %v4547 = vrcp.pop %v4503
      %v4548 = vrcp.pop %v4506
      %v4549 = vrcp.pop %v4509
      %v4550 = vrcp.pop %v4512
      %v4551 = vrcp.pop %v4515
      %v4552 = vrcp.pop %v4518
      %v4553 = vrcp.pop %v4521
      %v4554 = vmul.f32 %v4363, %v4522
      %v4555 = vmul.f32 %v4365, %v4523
      %v4556 = vmul.f32 %v4367, %v4524
      %v4557 = vmul.f32 %v4369, %v4525
      %v4558 = vmul.f32 %v4371, %v4526
      %v4559 = vmul.f32 %v4373, %v4527
      %v4560 = vmul.f32 %v4375, %v4528
      %v4561 = vmul.f32 %v4377, %v4529
      %v4562 = vmul.f32 %v4379, %v4530
      %v4563 = vmul.f32 %v4381, %v4531
      %v4564 = vmul.f32 %v4383, %v4532
      %v4565 = vmul.f32 %v4385, %v4533
      %v4566 = vmul.f32 %v4387, %v4534
      %v4567 = vmul.f32 %v4389, %v4535
      %v4568 = vmul.f32 %v4391, %v4536
      %v4569 = vmul.f32 %v4393, %v4537
      %v4570 = vmul.f32 %v4395, %v4538
      %v4571 = vmul.f32 %v4397, %v4539
      %v4572 = vmul.f32 %v4399, %v4540
      %v4573 = vmul.f32 %v4401, %v4541
      %v4574 = vmul.f32 %v4403, %v4542
      %v4575 = vmul.f32 %v4405, %v4543
      %v4576 = vmul.f32 %v4407, %v4544
      %v4577 = vmul.f32 %v4409, %v4545
      %v4578 = vmul.f32 %v4411, %v4546
      %v4579 = vmul.f32 %v4413, %v4547
      %v4580 = vmul.f32 %v4415, %v4548
      %v4581 = vmul.f32 %v4417, %v4549
      %v4582 = vmul.f32 %v4419, %v4550
      %v4583 = vmul.f32 %v4421, %v4551
      %v4584 = vmul.f32 %v4423, %v4552
      %v4585 = vmul.f32 %v4425, %v4553
      %4586 = vrot.lane.b32.xlu0 %v1059, 64
      %v4587 = vpop.permute.xlu0 %4586
      %v4590 = vsel %vm4233, %v4554, 0
      %4592 = vmatprep.subr.mxu0 0.0
      %4593 = vmatpush1.msra.mxu0 %v4587
      %4594 = vmatprep.subr.mxu0 0.0
      %4595 = vmatpush1.msra.mxu0 0.0
      %4596 = vmatprep.subr.mxu0 0.0
      %4597 = vmatpush1.msra.mxu0 0.0
      %4598 = vmatprep.subr.mxu0 0.0
      %4599 = vmatpush1.msra.mxu0 0.0
      %4600 = vmatprep.subr.mxu0 0.0
      %4601 = vmatpush1.msra.mxu0 0.0
      %4602 = vmatprep.subr.mxu0 0.0
      %4603 = vmatpush1.msra.mxu0 0.0
      %4604 = vmatprep.subr.mxu0 0.0
      %4605 = vmatpush1.msra.mxu0 0.0
      %4606 = vmatprep.subr.mxu0 0.0
      %4607 = vmatpush1.msra.mxu0 0.0
      %4608 = vmatprep.subr.mxu0 0.0
      %4609 = vmatpush1.msra.mxu0 0.0
      %4610 = vmatprep.subr.mxu0 0.0
      %4611 = vmatpush1.msra.mxu0 0.0
      %4612 = vmatprep.subr.mxu0 0.0
      %4613 = vmatpush1.msra.mxu0 0.0
      %4614 = vmatprep.subr.mxu0 0.0
      %4615 = vmatpush1.msra.mxu0 0.0
      %4616 = vmatprep.subr.mxu0 0.0
      %4617 = vmatpush1.msra.mxu0 0.0
      %4618 = vmatprep.subr.mxu0 0.0
      %4619 = vmatpush1.msra.mxu0 0.0
      %4620 = vmatprep.subr.mxu0 0.0
      %4621 = vmatpush1.msra.mxu0 0.0
      %4622 = vmatprep.subr.mxu0 0.0
      %4623 = vmatpush1.msra.mxu0 0.0
      %4624 = vmatprep.subr.mxu0 0.0
      %4625 = vmatpush1.msra.mxu0 0.0
      %4626 = vmatprep.subr.mxu0 0.0
      %4627 = vmatpush1.msra.mxu0 0.0
      %4628 = vmatprep.subr.mxu0 0.0
      %4629 = vmatpush1.msra.mxu0 0.0
      %4630 = vmatprep.subr.mxu0 0.0
      %4631 = vmatpush1.msra.mxu0 0.0
      %4632 = vmatprep.subr.mxu0 0.0
      %4633 = vmatpush1.msra.mxu0 0.0
      %4634 = vmatprep.subr.mxu0 0.0
      %4635 = vmatpush1.msra.mxu0 0.0
      %4636 = vmatprep.subr.mxu0 0.0
      %4637 = vmatpush1.msra.mxu0 0.0
      %4638 = vmatprep.subr.mxu0 0.0
      %4639 = vmatpush1.msra.mxu0 0.0
      %4640 = vmatprep.subr.mxu0 0.0
      %4641 = vmatpush1.msra.mxu0 0.0
      %4642 = vmatprep.subr.mxu0 0.0
      %4643 = vmatpush1.msra.mxu0 0.0
      %4644 = vmatprep.subr.mxu0 0.0
      %4645 = vmatpush1.msra.mxu0 0.0
      %4646 = vmatprep.subr.mxu0 0.0
      %4647 = vmatpush1.msra.mxu0 0.0
      %4648 = vmatprep.subr.mxu0 0.0
      %4649 = vmatpush1.msra.mxu0 0.0
      %4650 = vmatprep.subr.mxu0 0.0
      %4651 = vmatpush1.msra.mxu0 0.0
      %4652 = vmatprep.subr.mxu0 0.0
      %4653 = vmatpush1.msra.mxu0 0.0
      %4654 = vmatprep.subr.mxu0 0.0
      %4655 = vmatpush1.msra.mxu0 0.0
      %4656 = vmatprep.mubr.f32.mxu0 0.0
      %4657 = vmatmul.mubr.f32.gmra.mrb[0].mxu0 %v4590
      %v4658 = vpop.f32.mrb[0].mxu0
      %v4659 = vadd.f32 0.0, %v4658
      %v4660 = vpop.f32.mrb[0].mxu0
      %4661 = vdwg.mxu0
      %4662 = vrot.lane.b32.xlu0 %v1064, 64
      %v4663 = vpop.permute.xlu0 %4662
      %v4666 = vsel %vm4233, %v4555, 0
      %4668 = vmatprep.subr.mxu0 0.0
      %4669 = vmatpush1.msra.mxu0 %v4663
      %4670 = vmatprep.subr.mxu0 0.0
      %4671 = vmatpush1.msra.mxu0 0.0
      %4672 = vmatprep.subr.mxu0 0.0
      %4673 = vmatpush1.msra.mxu0 0.0
      %4674 = vmatprep.subr.mxu0 0.0
      %4675 = vmatpush1.msra.mxu0 0.0
      %4676 = vmatprep.subr.mxu0 0.0
      %4677 = vmatpush1.msra.mxu0 0.0
      %4678 = vmatprep.subr.mxu0 0.0
      %4679 = vmatpush1.msra.mxu0 0.0
      %4680 = vmatprep.subr.mxu0 0.0
      %4681 = vmatpush1.msra.mxu0 0.0
      %4682 = vmatprep.subr.mxu0 0.0
      %4683 = vmatpush1.msra.mxu0 0.0
      %4684 = vmatprep.subr.mxu0 0.0
      %4685 = vmatpush1.msra.mxu0 0.0
      %4686 = vmatprep.subr.mxu0 0.0
      %4687 = vmatpush1.msra.mxu0 0.0
      %4688 = vmatprep.subr.mxu0 0.0
      %4689 = vmatpush1.msra.mxu0 0.0
      %4690 = vmatprep.subr.mxu0 0.0
      %4691 = vmatpush1.msra.mxu0 0.0
      %4692 = vmatprep.subr.mxu0 0.0
      %4693 = vmatpush1.msra.mxu0 0.0
      %4694 = vmatprep.subr.mxu0 0.0
      %4695 = vmatpush1.msra.mxu0 0.0
      %4696 = vmatprep.subr.mxu0 0.0
      %4697 = vmatpush1.msra.mxu0 0.0
      %4698 = vmatprep.subr.mxu0 0.0
      %4699 = vmatpush1.msra.mxu0 0.0
      %4700 = vmatprep.subr.mxu0 0.0
      %4701 = vmatpush1.msra.mxu0 0.0
      %4702 = vmatprep.subr.mxu0 0.0
      %4703 = vmatpush1.msra.mxu0 0.0
      %4704 = vmatprep.subr.mxu0 0.0
      %4705 = vmatpush1.msra.mxu0 0.0
      %4706 = vmatprep.subr.mxu0 0.0
      %4707 = vmatpush1.msra.mxu0 0.0
      %4708 = vmatprep.subr.mxu0 0.0
      %4709 = vmatpush1.msra.mxu0 0.0
      %4710 = vmatprep.subr.mxu0 0.0
      %4711 = vmatpush1.msra.mxu0 0.0
      %4712 = vmatprep.subr.mxu0 0.0
      %4713 = vmatpush1.msra.mxu0 0.0
      %4714 = vmatprep.subr.mxu0 0.0
      %4715 = vmatpush1.msra.mxu0 0.0
      %4716 = vmatprep.subr.mxu0 0.0
      %4717 = vmatpush1.msra.mxu0 0.0
      %4718 = vmatprep.subr.mxu0 0.0
      %4719 = vmatpush1.msra.mxu0 0.0
      %4720 = vmatprep.subr.mxu0 0.0
      %4721 = vmatpush1.msra.mxu0 0.0
      %4722 = vmatprep.subr.mxu0 0.0
      %4723 = vmatpush1.msra.mxu0 0.0
      %4724 = vmatprep.subr.mxu0 0.0
      %4725 = vmatpush1.msra.mxu0 0.0
      %4726 = vmatprep.subr.mxu0 0.0
      %4727 = vmatpush1.msra.mxu0 0.0
      %4728 = vmatprep.subr.mxu0 0.0
      %4729 = vmatpush1.msra.mxu0 0.0
      %4730 = vmatprep.subr.mxu0 0.0
      %4731 = vmatpush1.msra.mxu0 0.0
      %4732 = vmatprep.mubr.f32.mxu0 0.0
      %4733 = vmatmul.mubr.f32.gmra.mrb[0].mxu0 %v4666
      %v4734 = vpop.f32.mrb[0].mxu0
      %v4735 = vadd.f32 0.0, %v4734
      %v4736 = vpop.f32.mrb[0].mxu0
      %4737 = vdwg.mxu0
      %4738 = vrot.lane.b32.xlu0 %v1069, 64
      %v4739 = vpop.permute.xlu0 %4738
      %v4742 = vsel %vm4233, %v4556, 0
      %4744 = vmatprep.subr.mxu0 0.0
      %4745 = vmatpush1.msra.mxu0 %v4739
      %4746 = vmatprep.subr.mxu0 0.0
      %4747 = vmatpush1.msra.mxu0 0.0
      %4748 = vmatprep.subr.mxu0 0.0
      %4749 = vmatpush1.msra.mxu0 0.0
      %4750 = vmatprep.subr.mxu0 0.0
      %4751 = vmatpush1.msra.mxu0 0.0
      %4752 = vmatprep.subr.mxu0 0.0
      %4753 = vmatpush1.msra.mxu0 0.0
      %4754 = vmatprep.subr.mxu0 0.0
      %4755 = vmatpush1.msra.mxu0 0.0
      %4756 = vmatprep.subr.mxu0 0.0
      %4757 = vmatpush1.msra.mxu0 0.0
      %4758 = vmatprep.subr.mxu0 0.0
      %4759 = vmatpush1.msra.mxu0 0.0
      %4760 = vmatprep.subr.mxu0 0.0
      %4761 = vmatpush1.msra.mxu0 0.0
      %4762 = vmatprep.subr.mxu0 0.0
      %4763 = vmatpush1.msra.mxu0 0.0
      %4764 = vmatprep.subr.mxu0 0.0
      %4765 = vmatpush1.msra.mxu0 0.0
      %4766 = vmatprep.subr.mxu0 0.0
      %4767 = vmatpush1.msra.mxu0 0.0
      %4768 = vmatprep.subr.mxu0 0.0
      %4769 = vmatpush1.msra.mxu0 0.0
      %4770 = vmatprep.subr.mxu0 0.0
      %4771 = vmatpush1.msra.mxu0 0.0
      %4772 = vmatprep.subr.mxu0 0.0
      %4773 = vmatpush1.msra.mxu0 0.0
      %4774 = vmatprep.subr.mxu0 0.0
      %4775 = vmatpush1.msra.mxu0 0.0
      %4776 = vmatprep.subr.mxu0 0.0
      %4777 = vmatpush1.msra.mxu0 0.0
      %4778 = vmatprep.subr.mxu0 0.0
      %4779 = vmatpush1.msra.mxu0 0.0
      %4780 = vmatprep.subr.mxu0 0.0
      %4781 = vmatpush1.msra.mxu0 0.0
      %4782 = vmatprep.subr.mxu0 0.0
      %4783 = vmatpush1.msra.mxu0 0.0
      %4784 = vmatprep.subr.mxu0 0.0
      %4785 = vmatpush1.msra.mxu0 0.0
      %4786 = vmatprep.subr.mxu0 0.0
      %4787 = vmatpush1.msra.mxu0 0.0
      %4788 = vmatprep.subr.mxu0 0.0
      %4789 = vmatpush1.msra.mxu0 0.0
      %4790 = vmatprep.subr.mxu0 0.0
      %4791 = vmatpush1.msra.mxu0 0.0
      %4792 = vmatprep.subr.mxu0 0.0
      %4793 = vmatpush1.msra.mxu0 0.0
      %4794 = vmatprep.subr.mxu0 0.0
      %4795 = vmatpush1.msra.mxu0 0.0
      %4796 = vmatprep.subr.mxu0 0.0
      %4797 = vmatpush1.msra.mxu0 0.0
      %4798 = vmatprep.subr.mxu0 0.0
      %4799 = vmatpush1.msra.mxu0 0.0
      %4800 = vmatprep.subr.mxu0 0.0
      %4801 = vmatpush1.msra.mxu0 0.0
      %4802 = vmatprep.subr.mxu0 0.0
      %4803 = vmatpush1.msra.mxu0 0.0
      %4804 = vmatprep.subr.mxu0 0.0
      %4805 = vmatpush1.msra.mxu0 0.0
      %4806 = vmatprep.subr.mxu0 0.0
      %4807 = vmatpush1.msra.mxu0 0.0
      %4808 = vmatprep.mubr.f32.mxu0 0.0
      %4809 = vmatmul.mubr.f32.gmra.mrb[0].mxu0 %v4742
      %v4810 = vpop.f32.mrb[0].mxu0
      %v4811 = vadd.f32 0.0, %v4810
      %v4812 = vpop.f32.mrb[0].mxu0
      %4813 = vdwg.mxu0
      %4814 = vrot.lane.b32.xlu0 %v1074, 64
      %v4815 = vpop.permute.xlu0 %4814
      %v4818 = vsel %vm4233, %v4557, 0
      %4820 = vmatprep.subr.mxu0 0.0
      %4821 = vmatpush1.msra.mxu0 %v4815
      %4822 = vmatprep.subr.mxu0 0.0
      %4823 = vmatpush1.msra.mxu0 0.0
      %4824 = vmatprep.subr.mxu0 0.0
      %4825 = vmatpush1.msra.mxu0 0.0
      %4826 = vmatprep.subr.mxu0 0.0
      %4827 = vmatpush1.msra.mxu0 0.0
      %4828 = vmatprep.subr.mxu0 0.0
      %4829 = vmatpush1.msra.mxu0 0.0
      %4830 = vmatprep.subr.mxu0 0.0
      %4831 = vmatpush1.msra.mxu0 0.0
      %4832 = vmatprep.subr.mxu0 0.0
      %4833 = vmatpush1.msra.mxu0 0.0
      %4834 = vmatprep.subr.mxu0 0.0
      %4835 = vmatpush1.msra.mxu0 0.0
      %4836 = vmatprep.subr.mxu0 0.0
      %4837 = vmatpush1.msra.mxu0 0.0
      %4838 = vmatprep.subr.mxu0 0.0
      %4839 = vmatpush1.msra.mxu0 0.0
      %4840 = vmatprep.subr.mxu0 0.0
      %4841 = vmatpush1.msra.mxu0 0.0
      %4842 = vmatprep.subr.mxu0 0.0
      %4843 = vmatpush1.msra.mxu0 0.0
      %4844 = vmatprep.subr.mxu0 0.0
      %4845 = vmatpush1.msra.mxu0 0.0
      %4846 = vmatprep.subr.mxu0 0.0
      %4847 = vmatpush1.msra.mxu0 0.0
      %4848 = vmatprep.subr.mxu0 0.0
      %4849 = vmatpush1.msra.mxu0 0.0
      %4850 = vmatprep.subr.mxu0 0.0
      %4851 = vmatpush1.msra.mxu0 0.0
      %4852 = vmatprep.subr.mxu0 0.0
      %4853 = vmatpush1.msra.mxu0 0.0
      %4854 = vmatprep.subr.mxu0 0.0
      %4855 = vmatpush1.msra.mxu0 0.0
      %4856 = vmatprep.subr.mxu0 0.0
      %4857 = vmatpush1.msra.mxu0 0.0
      %4858 = vmatprep.subr.mxu0 0.0
      %4859 = vmatpush1.msra.mxu0 0.0
      %4860 = vmatprep.subr.mxu0 0.0
      %4861 = vmatpush1.msra.mxu0 0.0
      %4862 = vmatprep.subr.mxu0 0.0
      %4863 = vmatpush1.msra.mxu0 0.0
      %4864 = vmatprep.subr.mxu0 0.0
      %4865 = vmatpush1.msra.mxu0 0.0
      %4866 = vmatprep.subr.mxu0 0.0
      %4867 = vmatpush1.msra.mxu0 0.0
      %4868 = vmatprep.subr.mxu0 0.0
      %4869 = vmatpush1.msra.mxu0 0.0
      %4870 = vmatprep.subr.mxu0 0.0
      %4871 = vmatpush1.msra.mxu0 0.0
      %4872 = vmatprep.subr.mxu0 0.0
      %4873 = vmatpush1.msra.mxu0 0.0
      %4874 = vmatprep.subr.mxu0 0.0
      %4875 = vmatpush1.msra.mxu0 0.0
      %4876 = vmatprep.subr.mxu0 0.0
      %4877 = vmatpush1.msra.mxu0 0.0
      %4878 = vmatprep.subr.mxu0 0.0
      %4879 = vmatpush1.msra.mxu0 0.0
      %4880 = vmatprep.subr.mxu0 0.0
      %4881 = vmatpush1.msra.mxu0 0.0
      %4882 = vmatprep.subr.mxu0 0.0
      %4883 = vmatpush1.msra.mxu0 0.0
      %4884 = vmatprep.mubr.f32.mxu0 0.0
      %4885 = vmatmul.mubr.f32.gmra.mrb[0].mxu0 %v4818
      %v4886 = vpop.f32.mrb[0].mxu0
      %v4887 = vadd.f32 0.0, %v4886
      %v4888 = vpop.f32.mrb[0].mxu0
      %4889 = vdwg.mxu0
      %4890 = vrot.lane.b32.xlu0 %v1079, 64
      %v4891 = vpop.permute.xlu0 %4890
      %v4894 = vsel %vm4233, %v4558, 0
      %4896 = vmatprep.subr.mxu0 0.0
      %4897 = vmatpush1.msra.mxu0 %v4891
      %4898 = vmatprep.subr.mxu0 0.0
      %4899 = vmatpush1.msra.mxu0 0.0
      %4900 = vmatprep.subr.mxu0 0.0
      %4901 = vmatpush1.msra.mxu0 0.0
      %4902 = vmatprep.subr.mxu0 0.0
      %4903 = vmatpush1.msra.mxu0 0.0
      %4904 = vmatprep.subr.mxu0 0.0
      %4905 = vmatpush1.msra.mxu0 0.0
      %4906 = vmatprep.subr.mxu0 0.0
      %4907 = vmatpush1.msra.mxu0 0.0
      %4908 = vmatprep.subr.mxu0 0.0
      %4909 = vmatpush1.msra.mxu0 0.0
      %4910 = vmatprep.subr.mxu0 0.0
      %4911 = vmatpush1.msra.mxu0 0.0
      %4912 = vmatprep.subr.mxu0 0.0
      %4913 = vmatpush1.msra.mxu0 0.0
      %4914 = vmatprep.subr.mxu0 0.0
      %4915 = vmatpush1.msra.mxu0 0.0
      %4916 = vmatprep.subr.mxu0 0.0
      %4917 = vmatpush1.msra.mxu0 0.0
      %4918 = vmatprep.subr.mxu0 0.0
      %4919 = vmatpush1.msra.mxu0 0.0
      %4920 = vmatprep.subr.mxu0 0.0
      %4921 = vmatpush1.msra.mxu0 0.0
      %4922 = vmatprep.subr.mxu0 0.0
      %4923 = vmatpush1.msra.mxu0 0.0
      %4924 = vmatprep.subr.mxu0 0.0
      %4925 = vmatpush1.msra.mxu0 0.0
      %4926 = vmatprep.subr.mxu0 0.0
      %4927 = vmatpush1.msra.mxu0 0.0
      %4928 = vmatprep.subr.mxu0 0.0
      %4929 = vmatpush1.msra.mxu0 0.0
      %4930 = vmatprep.subr.mxu0 0.0
      %4931 = vmatpush1.msra.mxu0 0.0
      %4932 = vmatprep.subr.mxu0 0.0
      %4933 = vmatpush1.msra.mxu0 0.0
      %4934 = vmatprep.subr.mxu0 0.0
      %4935 = vmatpush1.msra.mxu0 0.0
      %4936 = vmatprep.subr.mxu0 0.0
      %4937 = vmatpush1.msra.mxu0 0.0
      %4938 = vmatprep.subr.mxu0 0.0
      %4939 = vmatpush1.msra.mxu0 0.0
      %4940 = vmatprep.subr.mxu0 0.0
      %4941 = vmatpush1.msra.mxu0 0.0
      %4942 = vmatprep.subr.mxu0 0.0
      %4943 = vmatpush1.msra.mxu0 0.0
      %4944 = vmatprep.subr.mxu0 0.0
      %4945 = vmatpush1.msra.mxu0 0.0
      %4946 = vmatprep.subr.mxu0 0.0
      %4947 = vmatpush1.msra.mxu0 0.0
      %4948 = vmatprep.subr.mxu0 0.0
      %4949 = vmatpush1.msra.mxu0 0.0
      %4950 = vmatprep.subr.mxu0 0.0
      %4951 = vmatpush1.msra.mxu0 0.0
      %4952 = vmatprep.subr.mxu0 0.0
      %4953 = vmatpush1.msra.mxu0 0.0
      %4954 = vmatprep.subr.mxu0 0.0
      %4955 = vmatpush1.msra.mxu0 0.0
      %4956 = vmatprep.subr.mxu0 0.0
      %4957 = vmatpush1.msra.mxu0 0.0
      %4958 = vmatprep.subr.mxu0 0.0
      %4959 = vmatpush1.msra.mxu0 0.0
      %4960 = vmatprep.mubr.f32.mxu0 0.0
      %4961 = vmatmul.mubr.f32.gmra.mrb[0].mxu0 %v4894
      %v4962 = vpop.f32.mrb[0].mxu0
      %v4963 = vadd.f32 0.0, %v4962
      %v4964 = vpop.f32.mrb[0].mxu0
      %4965 = vdwg.mxu0
      %4966 = vrot.lane.b32.xlu0 %v1084, 64
      %v4967 = vpop.permute.xlu0 %4966
      %v4970 = vsel %vm4233, %v4559, 0
      %4972 = vmatprep.subr.mxu0 0.0
      %4973 = vmatpush1.msra.mxu0 %v4967
      %4974 = vmatprep.subr.mxu0 0.0
      %4975 = vmatpush1.msra.mxu0 0.0
      %4976 = vmatprep.subr.mxu0 0.0
      %4977 = vmatpush1.msra.mxu0 0.0
      %4978 = vmatprep.subr.mxu0 0.0
      %4979 = vmatpush1.msra.mxu0 0.0
      %4980 = vmatprep.subr.mxu0 0.0
      %4981 = vmatpush1.msra.mxu0 0.0
      %4982 = vmatprep.subr.mxu0 0.0
      %4983 = vmatpush1.msra.mxu0 0.0
      %4984 = vmatprep.subr.mxu0 0.0
      %4985 = vmatpush1.msra.mxu0 0.0
      %4986 = vmatprep.subr.mxu0 0.0
      %4987 = vmatpush1.msra.mxu0 0.0
      %4988 = vmatprep.subr.mxu0 0.0
      %4989 = vmatpush1.msra.mxu0 0.0
      %4990 = vmatprep.subr.mxu0 0.0
      %4991 = vmatpush1.msra.mxu0 0.0
      %4992 = vmatprep.subr.mxu0 0.0
      %4993 = vmatpush1.msra.mxu0 0.0
      %4994 = vmatprep.subr.mxu0 0.0
      %4995 = vmatpush1.msra.mxu0 0.0
      %4996 = vmatprep.subr.mxu0 0.0
      %4997 = vmatpush1.msra.mxu0 0.0
      %4998 = vmatprep.subr.mxu0 0.0
      %4999 = vmatpush1.msra.mxu0 0.0
      %5000 = vmatprep.subr.mxu0 0.0
      %5001 = vmatpush1.msra.mxu0 0.0
      %5002 = vmatprep.subr.mxu0 0.0
      %5003 = vmatpush1.msra.mxu0 0.0
      %5004 = vmatprep.subr.mxu0 0.0
      %5005 = vmatpush1.msra.mxu0 0.0
      %5006 = vmatprep.subr.mxu0 0.0
      %5007 = vmatpush1.msra.mxu0 0.0
      %5008 = vmatprep.subr.mxu0 0.0
      %5009 = vmatpush1.msra.mxu0 0.0
      %5010 = vmatprep.subr.mxu0 0.0
      %5011 = vmatpush1.msra.mxu0 0.0
      %5012 = vmatprep.subr.mxu0 0.0
      %5013 = vmatpush1.msra.mxu0 0.0
      %5014 = vmatprep.subr.mxu0 0.0
      %5015 = vmatpush1.msra.mxu0 0.0
      %5016 = vmatprep.subr.mxu0 0.0
      %5017 = vmatpush1.msra.mxu0 0.0
      %5018 = vmatprep.subr.mxu0 0.0
      %5019 = vmatpush1.msra.mxu0 0.0
      %5020 = vmatprep.subr.mxu0 0.0
      %5021 = vmatpush1.msra.mxu0 0.0
      %5022 = vmatprep.subr.mxu0 0.0
      %5023 = vmatpush1.msra.mxu0 0.0
      %5024 = vmatprep.subr.mxu0 0.0
      %5025 = vmatpush1.msra.mxu0 0.0
      %5026 = vmatprep.subr.mxu0 0.0
      %5027 = vmatpush1.msra.mxu0 0.0
      %5028 = vmatprep.subr.mxu0 0.0
      %5029 = vmatpush1.msra.mxu0 0.0
      %5030 = vmatprep.subr.mxu0 0.0
      %5031 = vmatpush1.msra.mxu0 0.0
      %5032 = vmatprep.subr.mxu0 0.0
      %5033 = vmatpush1.msra.mxu0 0.0
      %5034 = vmatprep.subr.mxu0 0.0
      %5035 = vmatpush1.msra.mxu0 0.0
      %5036 = vmatprep.mubr.f32.mxu0 0.0
      %5037 = vmatmul.mubr.f32.gmra.mrb[0].mxu0 %v4970
      %v5038 = vpop.f32.mrb[0].mxu0
      %v5039 = vadd.f32 0.0, %v5038
      %v5040 = vpop.f32.mrb[0].mxu0
      %5041 = vdwg.mxu0
      %5042 = vrot.lane.b32.xlu0 %v1089, 64
      %v5043 = vpop.permute.xlu0 %5042
      %v5046 = vsel %vm4233, %v4560, 0
      %5048 = vmatprep.subr.mxu0 0.0
      %5049 = vmatpush1.msra.mxu0 %v5043
      %5050 = vmatprep.subr.mxu0 0.0
      %5051 = vmatpush1.msra.mxu0 0.0
      %5052 = vmatprep.subr.mxu0 0.0
      %5053 = vmatpush1.msra.mxu0 0.0
      %5054 = vmatprep.subr.mxu0 0.0
      %5055 = vmatpush1.msra.mxu0 0.0
      %5056 = vmatprep.subr.mxu0 0.0
      %5057 = vmatpush1.msra.mxu0 0.0
      %5058 = vmatprep.subr.mxu0 0.0
      %5059 = vmatpush1.msra.mxu0 0.0
      %5060 = vmatprep.subr.mxu0 0.0
      %5061 = vmatpush1.msra.mxu0 0.0
      %5062 = vmatprep.subr.mxu0 0.0
      %5063 = vmatpush1.msra.mxu0 0.0
      %5064 = vmatprep.subr.mxu0 0.0
      %5065 = vmatpush1.msra.mxu0 0.0
      %5066 = vmatprep.subr.mxu0 0.0
      %5067 = vmatpush1.msra.mxu0 0.0
      %5068 = vmatprep.subr.mxu0 0.0
      %5069 = vmatpush1.msra.mxu0 0.0
      %5070 = vmatprep.subr.mxu0 0.0
      %5071 = vmatpush1.msra.mxu0 0.0
      %5072 = vmatprep.subr.mxu0 0.0
      %5073 = vmatpush1.msra.mxu0 0.0
      %5074 = vmatprep.subr.mxu0 0.0
      %5075 = vmatpush1.msra.mxu0 0.0
      %5076 = vmatprep.subr.mxu0 0.0
      %5077 = vmatpush1.msra.mxu0 0.0
      %5078 = vmatprep.subr.mxu0 0.0
      %5079 = vmatpush1.msra.mxu0 0.0
      %5080 = vmatprep.subr.mxu0 0.0
      %5081 = vmatpush1.msra.mxu0 0.0
      %5082 = vmatprep.subr.mxu0 0.0
      %5083 = vmatpush1.msra.mxu0 0.0
      %5084 = vmatprep.subr.mxu0 0.0
      %5085 = vmatpush1.msra.mxu0 0.0
      %5086 = vmatprep.subr.mxu0 0.0
      %5087 = vmatpush1.msra.mxu0 0.0
      %5088 = vmatprep.subr.mxu0 0.0
      %5089 = vmatpush1.msra.mxu0 0.0
      %5090 = vmatprep.subr.mxu0 0.0
      %5091 = vmatpush1.msra.mxu0 0.0
      %5092 = vmatprep.subr.mxu0 0.0
      %5093 = vmatpush1.msra.mxu0 0.0
      %5094 = vmatprep.subr.mxu0 0.0
      %5095 = vmatpush1.msra.mxu0 0.0
      %5096 = vmatprep.subr.mxu0 0.0
      %5097 = vmatpush1.msra.mxu0 0.0
      %5098 = vmatprep.subr.mxu0 0.0
      %5099 = vmatpush1.msra.mxu0 0.0
      %5100 = vmatprep.subr.mxu0 0.0
      %5101 = vmatpush1.msra.mxu0 0.0
      %5102 = vmatprep.subr.mxu0 0.0
      %5103 = vmatpush1.msra.mxu0 0.0
      %5104 = vmatprep.subr.mxu0 0.0
      %5105 = vmatpush1.msra.mxu0 0.0
      %5106 = vmatprep.subr.mxu0 0.0
      %5107 = vmatpush1.msra.mxu0 0.0
      %5108 = vmatprep.subr.mxu0 0.0
      %5109 = vmatpush1.msra.mxu0 0.0
      %5110 = vmatprep.subr.mxu0 0.0
      %5111 = vmatpush1.msra.mxu0 0.0
      %5112 = vmatprep.mubr.f32.mxu0 0.0
      %5113 = vmatmul.mubr.f32.gmra.mrb[0].mxu0 %v5046
      %v5114 = vpop.f32.mrb[0].mxu0
      %v5115 = vadd.f32 0.0, %v5114
      %v5116 = vpop.f32.mrb[0].mxu0
      %5117 = vdwg.mxu0
      %5118 = vrot.lane.b32.xlu0 %v1094, 64
      %v5119 = vpop.permute.xlu0 %5118
      %v5122 = vsel %vm4233, %v4561, 0
      %5124 = vmatprep.subr.mxu0 0.0
      %5125 = vmatpush1.msra.mxu0 %v5119
      %5126 = vmatprep.subr.mxu0 0.0
      %5127 = vmatpush1.msra.mxu0 0.0
      %5128 = vmatprep.subr.mxu0 0.0
      %5129 = vmatpush1.msra.mxu0 0.0
      %5130 = vmatprep.subr.mxu0 0.0
      %5131 = vmatpush1.msra.mxu0 0.0
      %5132 = vmatprep.subr.mxu0 0.0
      %5133 = vmatpush1.msra.mxu0 0.0
      %5134 = vmatprep.subr.mxu0 0.0
      %5135 = vmatpush1.msra.mxu0 0.0
      %5136 = vmatprep.subr.mxu0 0.0
      %5137 = vmatpush1.msra.mxu0 0.0
      %5138 = vmatprep.subr.mxu0 0.0
      %5139 = vmatpush1.msra.mxu0 0.0
      %5140 = vmatprep.subr.mxu0 0.0
      %5141 = vmatpush1.msra.mxu0 0.0
      %5142 = vmatprep.subr.mxu0 0.0
      %5143 = vmatpush1.msra.mxu0 0.0
      %5144 = vmatprep.subr.mxu0 0.0
      %5145 = vmatpush1.msra.mxu0 0.0
      %5146 = vmatprep.subr.mxu0 0.0
      %5147 = vmatpush1.msra.mxu0 0.0
      %5148 = vmatprep.subr.mxu0 0.0
      %5149 = vmatpush1.msra.mxu0 0.0
      %5150 = vmatprep.subr.mxu0 0.0
      %5151 = vmatpush1.msra.mxu0 0.0
      %5152 = vmatprep.subr.mxu0 0.0
      %5153 = vmatpush1.msra.mxu0 0.0
      %5154 = vmatprep.subr.mxu0 0.0
      %5155 = vmatpush1.msra.mxu0 0.0
      %5156 = vmatprep.subr.mxu0 0.0
      %5157 = vmatpush1.msra.mxu0 0.0
      %5158 = vmatprep.subr.mxu0 0.0
      %5159 = vmatpush1.msra.mxu0 0.0
      %5160 = vmatprep.subr.mxu0 0.0
      %5161 = vmatpush1.msra.mxu0 0.0
      %5162 = vmatprep.subr.mxu0 0.0
      %5163 = vmatpush1.msra.mxu0 0.0
      %5164 = vmatprep.subr.mxu0 0.0
      %5165 = vmatpush1.msra.mxu0 0.0
      %5166 = vmatprep.subr.mxu0 0.0
      %5167 = vmatpush1.msra.mxu0 0.0
      %5168 = vmatprep.subr.mxu0 0.0
      %5169 = vmatpush1.msra.mxu0 0.0
      %5170 = vmatprep.subr.mxu0 0.0
      %5171 = vmatpush1.msra.mxu0 0.0
      %5172 = vmatprep.subr.mxu0 0.0
      %5173 = vmatpush1.msra.mxu0 0.0
      %5174 = vmatprep.subr.mxu0 0.0
      %5175 = vmatpush1.msra.mxu0 0.0
      %5176 = vmatprep.subr.mxu0 0.0
      %5177 = vmatpush1.msra.mxu0 0.0
      %5178 = vmatprep.subr.mxu0 0.0
      %5179 = vmatpush1.msra.mxu0 0.0
      %5180 = vmatprep.subr.mxu0 0.0
      %5181 = vmatpush1.msra.mxu0 0.0
      %5182 = vmatprep.subr.mxu0 0.0
      %5183 = vmatpush1.msra.mxu0 0.0
      %5184 = vmatprep.subr.mxu0 0.0
      %5185 = vmatpush1.msra.mxu0 0.0
      %5186 = vmatprep.subr.mxu0 0.0
      %5187 = vmatpush1.msra.mxu0 0.0
      %5188 = vmatprep.mubr.f32.mxu0 0.0
      %5189 = vmatmul.mubr.f32.gmra.mrb[0].mxu0 %v5122
      %v5190 = vpop.f32.mrb[0].mxu0
      %v5191 = vadd.f32 0.0, %v5190
      %v5192 = vpop.f32.mrb[0].mxu0
      %5193 = vdwg.mxu0
      %5194 = vrot.lane.b32.xlu0 %v1099, 64
      %v5195 = vpop.permute.xlu0 %5194
      %v5198 = vsel %vm4233, %v4562, 0
      %5200 = vmatprep.subr.mxu0 0.0
      %5201 = vmatpush1.msra.mxu0 %v5195
      %5202 = vmatprep.subr.mxu0 0.0
      %5203 = vmatpush1.msra.mxu0 0.0
      %5204 = vmatprep.subr.mxu0 0.0
      %5205 = vmatpush1.msra.mxu0 0.0
      %5206 = vmatprep.subr.mxu0 0.0
      %5207 = vmatpush1.msra.mxu0 0.0
      %5208 = vmatprep.subr.mxu0 0.0
      %5209 = vmatpush1.msra.mxu0 0.0
      %5210 = vmatprep.subr.mxu0 0.0
      %5211 = vmatpush1.msra.mxu0 0.0
      %5212 = vmatprep.subr.mxu0 0.0
      %5213 = vmatpush1.msra.mxu0 0.0
      %5214 = vmatprep.subr.mxu0 0.0
      %5215 = vmatpush1.msra.mxu0 0.0
      %5216 = vmatprep.subr.mxu0 0.0
      %5217 = vmatpush1.msra.mxu0 0.0
      %5218 = vmatprep.subr.mxu0 0.0
      %5219 = vmatpush1.msra.mxu0 0.0
      %5220 = vmatprep.subr.mxu0 0.0
      %5221 = vmatpush1.msra.mxu0 0.0
      %5222 = vmatprep.subr.mxu0 0.0
      %5223 = vmatpush1.msra.mxu0 0.0
      %5224 = vmatprep.subr.mxu0 0.0
      %5225 = vmatpush1.msra.mxu0 0.0
      %5226 = vmatprep.subr.mxu0 0.0
      %5227 = vmatpush1.msra.mxu0 0.0
      %5228 = vmatprep.subr.mxu0 0.0
      %5229 = vmatpush1.msra.mxu0 0.0
      %5230 = vmatprep.subr.mxu0 0.0
      %5231 = vmatpush1.msra.mxu0 0.0
      %5232 = vmatprep.subr.mxu0 0.0
      %5233 = vmatpush1.msra.mxu0 0.0
      %5234 = vmatprep.subr.mxu0 0.0
      %5235 = vmatpush1.msra.mxu0 0.0
      %5236 = vmatprep.subr.mxu0 0.0
      %5237 = vmatpush1.msra.mxu0 0.0
      %5238 = vmatprep.subr.mxu0 0.0
      %5239 = vmatpush1.msra.mxu0 0.0
      %5240 = vmatprep.subr.mxu0 0.0
      %5241 = vmatpush1.msra.mxu0 0.0
      %5242 = vmatprep.subr.mxu0 0.0
      %5243 = vmatpush1.msra.mxu0 0.0
      %5244 = vmatprep.subr.mxu0 0.0
      %5245 = vmatpush1.msra.mxu0 0.0
      %5246 = vmatprep.subr.mxu0 0.0
      %5247 = vmatpush1.msra.mxu0 0.0
      %5248 = vmatprep.subr.mxu0 0.0
      %5249 = vmatpush1.msra.mxu0 0.0
      %5250 = vmatprep.subr.mxu0 0.0
      %5251 = vmatpush1.msra.mxu0 0.0
      %5252 = vmatprep.subr.mxu0 0.0
      %5253 = vmatpush1.msra.mxu0 0.0
      %5254 = vmatprep.subr.mxu0 0.0
      %5255 = vmatpush1.msra.mxu0 0.0
      %5256 = vmatprep.subr.mxu0 0.0
      %5257 = vmatpush1.msra.mxu0 0.0
      %5258 = vmatprep.subr.mxu0 0.0
      %5259 = vmatpush1.msra.mxu0 0.0
      %5260 = vmatprep.subr.mxu0 0.0
      %5261 = vmatpush1.msra.mxu0 0.0
      %5262 = vmatprep.subr.mxu0 0.0
      %5263 = vmatpush1.msra.mxu0 0.0
      %5264 = vmatprep.mubr.f32.mxu0 0.0
      %5265 = vmatmul.mubr.f32.gmra.mrb[0].mxu0 %v5198
      %v5266 = vpop.f32.mrb[0].mxu0
      %v5267 = vadd.f32 0.0, %v5266
      %v5268 = vpop.f32.mrb[0].mxu0
      %5269 = vdwg.mxu0
      %5270 = vrot.lane.b32.xlu0 %v1104, 64
      %v5271 = vpop.permute.xlu0 %5270
      %v5274 = vsel %vm4233, %v4563, 0
      %5276 = vmatprep.subr.mxu0 0.0
      %5277 = vmatpush1.msra.mxu0 %v5271
      %5278 = vmatprep.subr.mxu0 0.0
      %5279 = vmatpush1.msra.mxu0 0.0
      %5280 = vmatprep.subr.mxu0 0.0
      %5281 = vmatpush1.msra.mxu0 0.0
      %5282 = vmatprep.subr.mxu0 0.0
      %5283 = vmatpush1.msra.mxu0 0.0
      %5284 = vmatprep.subr.mxu0 0.0
      %5285 = vmatpush1.msra.mxu0 0.0
      %5286 = vmatprep.subr.mxu0 0.0
      %5287 = vmatpush1.msra.mxu0 0.0
      %5288 = vmatprep.subr.mxu0 0.0
      %5289 = vmatpush1.msra.mxu0 0.0
      %5290 = vmatprep.subr.mxu0 0.0
      %5291 = vmatpush1.msra.mxu0 0.0
      %5292 = vmatprep.subr.mxu0 0.0
      %5293 = vmatpush1.msra.mxu0 0.0
      %5294 = vmatprep.subr.mxu0 0.0
      %5295 = vmatpush1.msra.mxu0 0.0
      %5296 = vmatprep.subr.mxu0 0.0
      %5297 = vmatpush1.msra.mxu0 0.0
      %5298 = vmatprep.subr.mxu0 0.0
      %5299 = vmatpush1.msra.mxu0 0.0
      %5300 = vmatprep.subr.mxu0 0.0
      %5301 = vmatpush1.msra.mxu0 0.0
      %5302 = vmatprep.subr.mxu0 0.0
      %5303 = vmatpush1.msra.mxu0 0.0
      %5304 = vmatprep.subr.mxu0 0.0
      %5305 = vmatpush1.msra.mxu0 0.0
      %5306 = vmatprep.subr.mxu0 0.0
      %5307 = vmatpush1.msra.mxu0 0.0
      %5308 = vmatprep.subr.mxu0 0.0
      %5309 = vmatpush1.msra.mxu0 0.0
      %5310 = vmatprep.subr.mxu0 0.0
      %5311 = vmatpush1.msra.mxu0 0.0
      %5312 = vmatprep.subr.mxu0 0.0
      %5313 = vmatpush1.msra.mxu0 0.0
      %5314 = vmatprep.subr.mxu0 0.0
      %5315 = vmatpush1.msra.mxu0 0.0
      %5316 = vmatprep.subr.mxu0 0.0
      %5317 = vmatpush1.msra.mxu0 0.0
      %5318 = vmatprep.subr.mxu0 0.0
      %5319 = vmatpush1.msra.mxu0 0.0
      %5320 = vmatprep.subr.mxu0 0.0
      %5321 = vmatpush1.msra.mxu0 0.0
      %5322 = vmatprep.subr.mxu0 0.0
      %5323 = vmatpush1.msra.mxu0 0.0
      %5324 = vmatprep.subr.mxu0 0.0
      %5325 = vmatpush1.msra.mxu0 0.0
      %5326 = vmatprep.subr.mxu0 0.0
      %5327 = vmatpush1.msra.mxu0 0.0
      %5328 = vmatprep.subr.mxu0 0.0
      %5329 = vmatpush1.msra.mxu0 0.0
      %5330 = vmatprep.subr.mxu0 0.0
      %5331 = vmatpush1.msra.mxu0 0.0
      %5332 = vmatprep.subr.mxu0 0.0
      %5333 = vmatpush1.msra.mxu0 0.0
      %5334 = vmatprep.subr.mxu0 0.0
      %5335 = vmatpush1.msra.mxu0 0.0
      %5336 = vmatprep.subr.mxu0 0.0
      %5337 = vmatpush1.msra.mxu0 0.0
      %5338 = vmatprep.subr.mxu0 0.0
      %5339 = vmatpush1.msra.mxu0 0.0
      %5340 = vmatprep.mubr.f32.mxu0 0.0
      %5341 = vmatmul.mubr.f32.gmra.mrb[0].mxu0 %v5274
      %v5342 = vpop.f32.mrb[0].mxu0
      %v5343 = vadd.f32 0.0, %v5342
      %v5344 = vpop.f32.mrb[0].mxu0
      %5345 = vdwg.mxu0
      %5346 = vrot.lane.b32.xlu0 %v1109, 64
      %v5347 = vpop.permute.xlu0 %5346
      %v5350 = vsel %vm4233, %v4564, 0
      %5352 = vmatprep.subr.mxu0 0.0
      %5353 = vmatpush1.msra.mxu0 %v5347
      %5354 = vmatprep.subr.mxu0 0.0
      %5355 = vmatpush1.msra.mxu0 0.0
      %5356 = vmatprep.subr.mxu0 0.0
      %5357 = vmatpush1.msra.mxu0 0.0
      %5358 = vmatprep.subr.mxu0 0.0
      %5359 = vmatpush1.msra.mxu0 0.0
      %5360 = vmatprep.subr.mxu0 0.0
      %5361 = vmatpush1.msra.mxu0 0.0
      %5362 = vmatprep.subr.mxu0 0.0
      %5363 = vmatpush1.msra.mxu0 0.0
      %5364 = vmatprep.subr.mxu0 0.0
      %5365 = vmatpush1.msra.mxu0 0.0
      %5366 = vmatprep.subr.mxu0 0.0
      %5367 = vmatpush1.msra.mxu0 0.0
      %5368 = vmatprep.subr.mxu0 0.0
      %5369 = vmatpush1.msra.mxu0 0.0
      %5370 = vmatprep.subr.mxu0 0.0
      %5371 = vmatpush1.msra.mxu0 0.0
      %5372 = vmatprep.subr.mxu0 0.0
      %5373 = vmatpush1.msra.mxu0 0.0
      %5374 = vmatprep.subr.mxu0 0.0
      %5375 = vmatpush1.msra.mxu0 0.0
      %5376 = vmatprep.subr.mxu0 0.0
      %5377 = vmatpush1.msra.mxu0 0.0
      %5378 = vmatprep.subr.mxu0 0.0
      %5379 = vmatpush1.msra.mxu0 0.0
      %5380 = vmatprep.subr.mxu0 0.0
      %5381 = vmatpush1.msra.mxu0 0.0
      %5382 = vmatprep.subr.mxu0 0.0
      %5383 = vmatpush1.msra.mxu0 0.0
      %5384 = vmatprep.subr.mxu0 0.0
      %5385 = vmatpush1.msra.mxu0 0.0
      %5386 = vmatprep.subr.mxu0 0.0
      %5387 = vmatpush1.msra.mxu0 0.0
      %5388 = vmatprep.subr.mxu0 0.0
      %5389 = vmatpush1.msra.mxu0 0.0
      %5390 = vmatprep.subr.mxu0 0.0
      %5391 = vmatpush1.msra.mxu0 0.0
      %5392 = vmatprep.subr.mxu0 0.0
      %5393 = vmatpush1.msra.mxu0 0.0
      %5394 = vmatprep.subr.mxu0 0.0
      %5395 = vmatpush1.msra.mxu0 0.0
      %5396 = vmatprep.subr.mxu0 0.0
      %5397 = vmatpush1.msra.mxu0 0.0
      %5398 = vmatprep.subr.mxu0 0.0
      %5399 = vmatpush1.msra.mxu0 0.0
      %5400 = vmatprep.subr.mxu0 0.0
      %5401 = vmatpush1.msra.mxu0 0.0
      %5402 = vmatprep.subr.mxu0 0.0
      %5403 = vmatpush1.msra.mxu0 0.0
      %5404 = vmatprep.subr.mxu0 0.0
      %5405 = vmatpush1.msra.mxu0 0.0
      %5406 = vmatprep.subr.mxu0 0.0
      %5407 = vmatpush1.msra.mxu0 0.0
      %5408 = vmatprep.subr.mxu0 0.0
      %5409 = vmatpush1.msra.mxu0 0.0
      %5410 = vmatprep.subr.mxu0 0.0
      %5411 = vmatpush1.msra.mxu0 0.0
      %5412 = vmatprep.subr.mxu0 0.0
      %5413 = vmatpush1.msra.mxu0 0.0
      %5414 = vmatprep.subr.mxu0 0.0
      %5415 = vmatpush1.msra.mxu0 0.0
      %5416 = vmatprep.mubr.f32.mxu0 0.0
      %5417 = vmatmul.mubr.f32.gmra.mrb[0].mxu0 %v5350
      %v5418 = vpop.f32.mrb[0].mxu0
      %v5419 = vadd.f32 0.0, %v5418
      %v5420 = vpop.f32.mrb[0].mxu0
      %5421 = vdwg.mxu0
      %5422 = vrot.lane.b32.xlu0 %v1114, 64
      %v5423 = vpop.permute.xlu0 %5422
      %v5426 = vsel %vm4233, %v4565, 0
      %5428 = vmatprep.subr.mxu0 0.0
      %5429 = vmatpush1.msra.mxu0 %v5423
      %5430 = vmatprep.subr.mxu0 0.0
      %5431 = vmatpush1.msra.mxu0 0.0
      %5432 = vmatprep.subr.mxu0 0.0
      %5433 = vmatpush1.msra.mxu0 0.0
      %5434 = vmatprep.subr.mxu0 0.0
      %5435 = vmatpush1.msra.mxu0 0.0
      %5436 = vmatprep.subr.mxu0 0.0
      %5437 = vmatpush1.msra.mxu0 0.0
      %5438 = vmatprep.subr.mxu0 0.0
      %5439 = vmatpush1.msra.mxu0 0.0
      %5440 = vmatprep.subr.mxu0 0.0
      %5441 = vmatpush1.msra.mxu0 0.0
      %5442 = vmatprep.subr.mxu0 0.0
      %5443 = vmatpush1.msra.mxu0 0.0
      %5444 = vmatprep.subr.mxu0 0.0
      %5445 = vmatpush1.msra.mxu0 0.0
      %5446 = vmatprep.subr.mxu0 0.0
      %5447 = vmatpush1.msra.mxu0 0.0
      %5448 = vmatprep.subr.mxu0 0.0
      %5449 = vmatpush1.msra.mxu0 0.0
      %5450 = vmatprep.subr.mxu0 0.0
      %5451 = vmatpush1.msra.mxu0 0.0
      %5452 = vmatprep.subr.mxu0 0.0
      %5453 = vmatpush1.msra.mxu0 0.0
      %5454 = vmatprep.subr.mxu0 0.0
      %5455 = vmatpush1.msra.mxu0 0.0
      %5456 = vmatprep.subr.mxu0 0.0
      %5457 = vmatpush1.msra.mxu0 0.0
      %5458 = vmatprep.subr.mxu0 0.0
      %5459 = vmatpush1.msra.mxu0 0.0
      %5460 = vmatprep.subr.mxu0 0.0
      %5461 = vmatpush1.msra.mxu0 0.0
      %5462 = vmatprep.subr.mxu0 0.0
      %5463 = vmatpush1.msra.mxu0 0.0
      %5464 = vmatprep.subr.mxu0 0.0
      %5465 = vmatpush1.msra.mxu0 0.0
      %5466 = vmatprep.subr.mxu0 0.0
      %5467 = vmatpush1.msra.mxu0 0.0
      %5468 = vmatprep.subr.mxu0 0.0
      %5469 = vmatpush1.msra.mxu0 0.0
      %5470 = vmatprep.subr.mxu0 0.0
      %5471 = vmatpush1.msra.mxu0 0.0
      %5472 = vmatprep.subr.mxu0 0.0
      %5473 = vmatpush1.msra.mxu0 0.0
      %5474 = vmatprep.subr.mxu0 0.0
      %5475 = vmatpush1.msra.mxu0 0.0
      %5476 = vmatprep.subr.mxu0 0.0
      %5477 = vmatpush1.msra.mxu0 0.0
      %5478 = vmatprep.subr.mxu0 0.0
      %5479 = vmatpush1.msra.mxu0 0.0
      %5480 = vmatprep.subr.mxu0 0.0
      %5481 = vmatpush1.msra.mxu0 0.0
      %5482 = vmatprep.subr.mxu0 0.0
      %5483 = vmatpush1.msra.mxu0 0.0
      %5484 = vmatprep.subr.mxu0 0.0
      %5485 = vmatpush1.msra.mxu0 0.0
      %5486 = vmatprep.subr.mxu0 0.0
      %5487 = vmatpush1.msra.mxu0 0.0
      %5488 = vmatprep.subr.mxu0 0.0
      %5489 = vmatpush1.msra.mxu0 0.0
      %5490 = vmatprep.subr.mxu0 0.0
      %5491 = vmatpush1.msra.mxu0 0.0
      %5492 = vmatprep.mubr.f32.mxu0 0.0
      %5493 = vmatmul.mubr.f32.gmra.mrb[0].mxu0 %v5426
      %v5494 = vpop.f32.mrb[0].mxu0
      %v5495 = vadd.f32 0.0, %v5494
      %v5496 = vpop.f32.mrb[0].mxu0
      %5497 = vdwg.mxu0
      %5498 = vrot.lane.b32.xlu0 %v1119, 64
      %v5499 = vpop.permute.xlu0 %5498
      %v5502 = vsel %vm4233, %v4566, 0
      %5504 = vmatprep.subr.mxu0 0.0
      %5505 = vmatpush1.msra.mxu0 %v5499
      %5506 = vmatprep.subr.mxu0 0.0
      %5507 = vmatpush1.msra.mxu0 0.0
      %5508 = vmatprep.subr.mxu0 0.0
      %5509 = vmatpush1.msra.mxu0 0.0
      %5510 = vmatprep.subr.mxu0 0.0
      %5511 = vmatpush1.msra.mxu0 0.0
      %5512 = vmatprep.subr.mxu0 0.0
      %5513 = vmatpush1.msra.mxu0 0.0
      %5514 = vmatprep.subr.mxu0 0.0
      %5515 = vmatpush1.msra.mxu0 0.0
      %5516 = vmatprep.subr.mxu0 0.0
      %5517 = vmatpush1.msra.mxu0 0.0
      %5518 = vmatprep.subr.mxu0 0.0
      %5519 = vmatpush1.msra.mxu0 0.0
      %5520 = vmatprep.subr.mxu0 0.0
      %5521 = vmatpush1.msra.mxu0 0.0
      %5522 = vmatprep.subr.mxu0 0.0
      %5523 = vmatpush1.msra.mxu0 0.0
      %5524 = vmatprep.subr.mxu0 0.0
      %5525 = vmatpush1.msra.mxu0 0.0
      %5526 = vmatprep.subr.mxu0 0.0
      %5527 = vmatpush1.msra.mxu0 0.0
      %5528 = vmatprep.subr.mxu0 0.0
      %5529 = vmatpush1.msra.mxu0 0.0
      %5530 = vmatprep.subr.mxu0 0.0
      %5531 = vmatpush1.msra.mxu0 0.0
      %5532 = vmatprep.subr.mxu0 0.0
      %5533 = vmatpush1.msra.mxu0 0.0
      %5534 = vmatprep.subr.mxu0 0.0
      %5535 = vmatpush1.msra.mxu0 0.0
      %5536 = vmatprep.subr.mxu0 0.0
      %5537 = vmatpush1.msra.mxu0 0.0
      %5538 = vmatprep.subr.mxu0 0.0
      %5539 = vmatpush1.msra.mxu0 0.0
      %5540 = vmatprep.subr.mxu0 0.0
      %5541 = vmatpush1.msra.mxu0 0.0
      %5542 = vmatprep.subr.mxu0 0.0
      %5543 = vmatpush1.msra.mxu0 0.0
      %5544 = vmatprep.subr.mxu0 0.0
      %5545 = vmatpush1.msra.mxu0 0.0
      %5546 = vmatprep.subr.mxu0 0.0
      %5547 = vmatpush1.msra.mxu0 0.0
      %5548 = vmatprep.subr.mxu0 0.0
      %5549 = vmatpush1.msra.mxu0 0.0
      %5550 = vmatprep.subr.mxu0 0.0
      %5551 = vmatpush1.msra.mxu0 0.0
      %5552 = vmatprep.subr.mxu0 0.0
      %5553 = vmatpush1.msra.mxu0 0.0
      %5554 = vmatprep.subr.mxu0 0.0
      %5555 = vmatpush1.msra.mxu0 0.0
      %5556 = vmatprep.subr.mxu0 0.0
      %5557 = vmatpush1.msra.mxu0 0.0
      %5558 = vmatprep.subr.mxu0 0.0
      %5559 = vmatpush1.msra.mxu0 0.0
      %5560 = vmatprep.subr.mxu0 0.0
      %5561 = vmatpush1.msra.mxu0 0.0
      %5562 = vmatprep.subr.mxu0 0.0
      %5563 = vmatpush1.msra.mxu0 0.0
      %5564 = vmatprep.subr.mxu0 0.0
      %5565 = vmatpush1.msra.mxu0 0.0
      %5566 = vmatprep.subr.mxu0 0.0
      %5567 = vmatpush1.msra.mxu0 0.0
      %5568 = vmatprep.mubr.f32.mxu0 0.0
      %5569 = vmatmul.mubr.f32.gmra.mrb[0].mxu0 %v5502
      %v5570 = vpop.f32.mrb[0].mxu0
      %v5571 = vadd.f32 0.0, %v5570
      %v5572 = vpop.f32.mrb[0].mxu0
      %5573 = vdwg.mxu0
      %5574 = vrot.lane.b32.xlu0 %v1124, 64
      %v5575 = vpop.permute.xlu0 %5574
      %v5578 = vsel %vm4233, %v4567, 0
      %5580 = vmatprep.subr.mxu0 0.0
      %5581 = vmatpush1.msra.mxu0 %v5575
      %5582 = vmatprep.subr.mxu0 0.0
      %5583 = vmatpush1.msra.mxu0 0.0
      %5584 = vmatprep.subr.mxu0 0.0
      %5585 = vmatpush1.msra.mxu0 0.0
      %5586 = vmatprep.subr.mxu0 0.0
      %5587 = vmatpush1.msra.mxu0 0.0
      %5588 = vmatprep.subr.mxu0 0.0
      %5589 = vmatpush1.msra.mxu0 0.0
      %5590 = vmatprep.subr.mxu0 0.0
      %5591 = vmatpush1.msra.mxu0 0.0
      %5592 = vmatprep.subr.mxu0 0.0
      %5593 = vmatpush1.msra.mxu0 0.0
      %5594 = vmatprep.subr.mxu0 0.0
      %5595 = vmatpush1.msra.mxu0 0.0
      %5596 = vmatprep.subr.mxu0 0.0
      %5597 = vmatpush1.msra.mxu0 0.0
      %5598 = vmatprep.subr.mxu0 0.0
      %5599 = vmatpush1.msra.mxu0 0.0
      %5600 = vmatprep.subr.mxu0 0.0
      %5601 = vmatpush1.msra.mxu0 0.0
      %5602 = vmatprep.subr.mxu0 0.0
      %5603 = vmatpush1.msra.mxu0 0.0
      %5604 = vmatprep.subr.mxu0 0.0
      %5605 = vmatpush1.msra.mxu0 0.0
      %5606 = vmatprep.subr.mxu0 0.0
      %5607 = vmatpush1.msra.mxu0 0.0
      %5608 = vmatprep.subr.mxu0 0.0
      %5609 = vmatpush1.msra.mxu0 0.0
      %5610 = vmatprep.subr.mxu0 0.0
      %5611 = vmatpush1.msra.mxu0 0.0
      %5612 = vmatprep.subr.mxu0 0.0
      %5613 = vmatpush1.msra.mxu0 0.0
      %5614 = vmatprep.subr.mxu0 0.0
      %5615 = vmatpush1.msra.mxu0 0.0
      %5616 = vmatprep.subr.mxu0 0.0
      %5617 = vmatpush1.msra.mxu0 0.0
      %5618 = vmatprep.subr.mxu0 0.0
      %5619 = vmatpush1.msra.mxu0 0.0
      %5620 = vmatprep.subr.mxu0 0.0
      %5621 = vmatpush1.msra.mxu0 0.0
      %5622 = vmatprep.subr.mxu0 0.0
      %5623 = vmatpush1.msra.mxu0 0.0
      %5624 = vmatprep.subr.mxu0 0.0
      %5625 = vmatpush1.msra.mxu0 0.0
      %5626 = vmatprep.subr.mxu0 0.0
      %5627 = vmatpush1.msra.mxu0 0.0
      %5628 = vmatprep.subr.mxu0 0.0
      %5629 = vmatpush1.msra.mxu0 0.0
      %5630 = vmatprep.subr.mxu0 0.0
      %5631 = vmatpush1.msra.mxu0 0.0
      %5632 = vmatprep.subr.mxu0 0.0
      %5633 = vmatpush1.msra.mxu0 0.0
      %5634 = vmatprep.subr.mxu0 0.0
      %5635 = vmatpush1.msra.mxu0 0.0
      %5636 = vmatprep.subr.mxu0 0.0
      %5637 = vmatpush1.msra.mxu0 0.0
      %5638 = vmatprep.subr.mxu0 0.0
      %5639 = vmatpush1.msra.mxu0 0.0
      %5640 = vmatprep.subr.mxu0 0.0
      %5641 = vmatpush1.msra.mxu0 0.0
      %5642 = vmatprep.subr.mxu0 0.0
      %5643 = vmatpush1.msra.mxu0 0.0
      %5644 = vmatprep.mubr.f32.mxu0 0.0
      %5645 = vmatmul.mubr.f32.gmra.mrb[0].mxu0 %v5578
      %v5646 = vpop.f32.mrb[0].mxu0
      %v5647 = vadd.f32 0.0, %v5646
      %v5648 = vpop.f32.mrb[0].mxu0
      %5649 = vdwg.mxu0
      %5650 = vrot.lane.b32.xlu0 %v1129, 64
      %v5651 = vpop.permute.xlu0 %5650
      %v5654 = vsel %vm4233, %v4568, 0
      %5656 = vmatprep.subr.mxu0 0.0
      %5657 = vmatpush1.msra.mxu0 %v5651
      %5658 = vmatprep.subr.mxu0 0.0
      %5659 = vmatpush1.msra.mxu0 0.0
      %5660 = vmatprep.subr.mxu0 0.0
      %5661 = vmatpush1.msra.mxu0 0.0
      %5662 = vmatprep.subr.mxu0 0.0
      %5663 = vmatpush1.msra.mxu0 0.0
      %5664 = vmatprep.subr.mxu0 0.0
      %5665 = vmatpush1.msra.mxu0 0.0
      %5666 = vmatprep.subr.mxu0 0.0
      %5667 = vmatpush1.msra.mxu0 0.0
      %5668 = vmatprep.subr.mxu0 0.0
      %5669 = vmatpush1.msra.mxu0 0.0
      %5670 = vmatprep.subr.mxu0 0.0
      %5671 = vmatpush1.msra.mxu0 0.0
      %5672 = vmatprep.subr.mxu0 0.0
      %5673 = vmatpush1.msra.mxu0 0.0
      %5674 = vmatprep.subr.mxu0 0.0
      %5675 = vmatpush1.msra.mxu0 0.0
      %5676 = vmatprep.subr.mxu0 0.0
      %5677 = vmatpush1.msra.mxu0 0.0
      %5678 = vmatprep.subr.mxu0 0.0
      %5679 = vmatpush1.msra.mxu0 0.0
      %5680 = vmatprep.subr.mxu0 0.0
      %5681 = vmatpush1.msra.mxu0 0.0
      %5682 = vmatprep.subr.mxu0 0.0
      %5683 = vmatpush1.msra.mxu0 0.0
      %5684 = vmatprep.subr.mxu0 0.0
      %5685 = vmatpush1.msra.mxu0 0.0
      %5686 = vmatprep.subr.mxu0 0.0
      %5687 = vmatpush1.msra.mxu0 0.0
      %5688 = vmatprep.subr.mxu0 0.0
      %5689 = vmatpush1.msra.mxu0 0.0
      %5690 = vmatprep.subr.mxu0 0.0
      %5691 = vmatpush1.msra.mxu0 0.0
      %5692 = vmatprep.subr.mxu0 0.0
      %5693 = vmatpush1.msra.mxu0 0.0
      %5694 = vmatprep.subr.mxu0 0.0
      %5695 = vmatpush1.msra.mxu0 0.0
      %5696 = vmatprep.subr.mxu0 0.0
      %5697 = vmatpush1.msra.mxu0 0.0
      %5698 = vmatprep.subr.mxu0 0.0
      %5699 = vmatpush1.msra.mxu0 0.0
      %5700 = vmatprep.subr.mxu0 0.0
      %5701 = vmatpush1.msra.mxu0 0.0
      %5702 = vmatprep.subr.mxu0 0.0
      %5703 = vmatpush1.msra.mxu0 0.0
      %5704 = vmatprep.subr.mxu0 0.0
      %5705 = vmatpush1.msra.mxu0 0.0
      %5706 = vmatprep.subr.mxu0 0.0
      %5707 = vmatpush1.msra.mxu0 0.0
      %5708 = vmatprep.subr.mxu0 0.0
      %5709 = vmatpush1.msra.mxu0 0.0
      %5710 = vmatprep.subr.mxu0 0.0
      %5711 = vmatpush1.msra.mxu0 0.0
      %5712 = vmatprep.subr.mxu0 0.0
      %5713 = vmatpush1.msra.mxu0 0.0
      %5714 = vmatprep.subr.mxu0 0.0
      %5715 = vmatpush1.msra.mxu0 0.0
      %5716 = vmatprep.subr.mxu0 0.0
      %5717 = vmatpush1.msra.mxu0 0.0
      %5718 = vmatprep.subr.mxu0 0.0
      %5719 = vmatpush1.msra.mxu0 0.0
      %5720 = vmatprep.mubr.f32.mxu0 0.0
      %5721 = vmatmul.mubr.f32.gmra.mrb[0].mxu0 %v5654
      %v5722 = vpop.f32.mrb[0].mxu0
      %v5723 = vadd.f32 0.0, %v5722
      %v5724 = vpop.f32.mrb[0].mxu0
      %5725 = vdwg.mxu0
      %5726 = vrot.lane.b32.xlu0 %v1134, 64
      %v5727 = vpop.permute.xlu0 %5726
      %v5730 = vsel %vm4233, %v4569, 0
      %5732 = vmatprep.subr.mxu0 0.0
      %5733 = vmatpush1.msra.mxu0 %v5727
      %5734 = vmatprep.subr.mxu0 0.0
      %5735 = vmatpush1.msra.mxu0 0.0
      %5736 = vmatprep.subr.mxu0 0.0
      %5737 = vmatpush1.msra.mxu0 0.0
      %5738 = vmatprep.subr.mxu0 0.0
      %5739 = vmatpush1.msra.mxu0 0.0
      %5740 = vmatprep.subr.mxu0 0.0
      %5741 = vmatpush1.msra.mxu0 0.0
      %5742 = vmatprep.subr.mxu0 0.0
      %5743 = vmatpush1.msra.mxu0 0.0
      %5744 = vmatprep.subr.mxu0 0.0
      %5745 = vmatpush1.msra.mxu0 0.0
      %5746 = vmatprep.subr.mxu0 0.0
      %5747 = vmatpush1.msra.mxu0 0.0
      %5748 = vmatprep.subr.mxu0 0.0
      %5749 = vmatpush1.msra.mxu0 0.0
      %5750 = vmatprep.subr.mxu0 0.0
      %5751 = vmatpush1.msra.mxu0 0.0
      %5752 = vmatprep.subr.mxu0 0.0
      %5753 = vmatpush1.msra.mxu0 0.0
      %5754 = vmatprep.subr.mxu0 0.0
      %5755 = vmatpush1.msra.mxu0 0.0
      %5756 = vmatprep.subr.mxu0 0.0
      %5757 = vmatpush1.msra.mxu0 0.0
      %5758 = vmatprep.subr.mxu0 0.0
      %5759 = vmatpush1.msra.mxu0 0.0
      %5760 = vmatprep.subr.mxu0 0.0
      %5761 = vmatpush1.msra.mxu0 0.0
      %5762 = vmatprep.subr.mxu0 0.0
      %5763 = vmatpush1.msra.mxu0 0.0
      %5764 = vmatprep.subr.mxu0 0.0
      %5765 = vmatpush1.msra.mxu0 0.0
      %5766 = vmatprep.subr.mxu0 0.0
      %5767 = vmatpush1.msra.mxu0 0.0
      %5768 = vmatprep.subr.mxu0 0.0
      %5769 = vmatpush1.msra.mxu0 0.0
      %5770 = vmatprep.subr.mxu0 0.0
      %5771 = vmatpush1.msra.mxu0 0.0
      %5772 = vmatprep.subr.mxu0 0.0
      %5773 = vmatpush1.msra.mxu0 0.0
      %5774 = vmatprep.subr.mxu0 0.0
      %5775 = vmatpush1.msra.mxu0 0.0
      %5776 = vmatprep.subr.mxu0 0.0
      %5777 = vmatpush1.msra.mxu0 0.0
      %5778 = vmatprep.subr.mxu0 0.0
      %5779 = vmatpush1.msra.mxu0 0.0
      %5780 = vmatprep.subr.mxu0 0.0
      %5781 = vmatpush1.msra.mxu0 0.0
      %5782 = vmatprep.subr.mxu0 0.0
      %5783 = vmatpush1.msra.mxu0 0.0
      %5784 = vmatprep.subr.mxu0 0.0
      %5785 = vmatpush1.msra.mxu0 0.0
      %5786 = vmatprep.subr.mxu0 0.0
      %5787 = vmatpush1.msra.mxu0 0.0
      %5788 = vmatprep.subr.mxu0 0.0
      %5789 = vmatpush1.msra.mxu0 0.0
      %5790 = vmatprep.subr.mxu0 0.0
      %5791 = vmatpush1.msra.mxu0 0.0
      %5792 = vmatprep.subr.mxu0 0.0
      %5793 = vmatpush1.msra.mxu0 0.0
      %5794 = vmatprep.subr.mxu0 0.0
      %5795 = vmatpush1.msra.mxu0 0.0
      %5796 = vmatprep.mubr.f32.mxu0 0.0
      %5797 = vmatmul.mubr.f32.gmra.mrb[0].mxu0 %v5730
      %v5798 = vpop.f32.mrb[0].mxu0
      %v5799 = vadd.f32 0.0, %v5798
      %v5800 = vpop.f32.mrb[0].mxu0
      %5801 = vdwg.mxu0
      %5802 = vrot.lane.b32.xlu0 %v1139, 64
      %v5803 = vpop.permute.xlu0 %5802
      %v5806 = vsel %vm4233, %v4570, 0
      %5808 = vmatprep.subr.mxu0 0.0
      %5809 = vmatpush1.msra.mxu0 %v5803
      %5810 = vmatprep.subr.mxu0 0.0
      %5811 = vmatpush1.msra.mxu0 0.0
      %5812 = vmatprep.subr.mxu0 0.0
      %5813 = vmatpush1.msra.mxu0 0.0
      %5814 = vmatprep.subr.mxu0 0.0
      %5815 = vmatpush1.msra.mxu0 0.0
      %5816 = vmatprep.subr.mxu0 0.0
      %5817 = vmatpush1.msra.mxu0 0.0
      %5818 = vmatprep.subr.mxu0 0.0
      %5819 = vmatpush1.msra.mxu0 0.0
      %5820 = vmatprep.subr.mxu0 0.0
      %5821 = vmatpush1.msra.mxu0 0.0
      %5822 = vmatprep.subr.mxu0 0.0
      %5823 = vmatpush1.msra.mxu0 0.0
      %5824 = vmatprep.subr.mxu0 0.0
      %5825 = vmatpush1.msra.mxu0 0.0
      %5826 = vmatprep.subr.mxu0 0.0
      %5827 = vmatpush1.msra.mxu0 0.0
      %5828 = vmatprep.subr.mxu0 0.0
      %5829 = vmatpush1.msra.mxu0 0.0
      %5830 = vmatprep.subr.mxu0 0.0
      %5831 = vmatpush1.msra.mxu0 0.0
      %5832 = vmatprep.subr.mxu0 0.0
      %5833 = vmatpush1.msra.mxu0 0.0
      %5834 = vmatprep.subr.mxu0 0.0
      %5835 = vmatpush1.msra.mxu0 0.0
      %5836 = vmatprep.subr.mxu0 0.0
      %5837 = vmatpush1.msra.mxu0 0.0
      %5838 = vmatprep.subr.mxu0 0.0
      %5839 = vmatpush1.msra.mxu0 0.0
      %5840 = vmatprep.subr.mxu0 0.0
      %5841 = vmatpush1.msra.mxu0 0.0
      %5842 = vmatprep.subr.mxu0 0.0
      %5843 = vmatpush1.msra.mxu0 0.0
      %5844 = vmatprep.subr.mxu0 0.0
      %5845 = vmatpush1.msra.mxu0 0.0
      %5846 = vmatprep.subr.mxu0 0.0
      %5847 = vmatpush1.msra.mxu0 0.0
      %5848 = vmatprep.subr.mxu0 0.0
      %5849 = vmatpush1.msra.mxu0 0.0
      %5850 = vmatprep.subr.mxu0 0.0
      %5851 = vmatpush1.msra.mxu0 0.0
      %5852 = vmatprep.subr.mxu0 0.0
      %5853 = vmatpush1.msra.mxu0 0.0
      %5854 = vmatprep.subr.mxu0 0.0
      %5855 = vmatpush1.msra.mxu0 0.0
      %5856 = vmatprep.subr.mxu0 0.0
      %5857 = vmatpush1.msra.mxu0 0.0
      %5858 = vmatprep.subr.mxu0 0.0
      %5859 = vmatpush1.msra.mxu0 0.0
      %5860 = vmatprep.subr.mxu0 0.0
      %5861 = vmatpush1.msra.mxu0 0.0
      %5862 = vmatprep.subr.mxu0 0.0
      %5863 = vmatpush1.msra.mxu0 0.0
      %5864 = vmatprep.subr.mxu0 0.0
      %5865 = vmatpush1.msra.mxu0 0.0
      %5866 = vmatprep.subr.mxu0 0.0
      %5867 = vmatpush1.msra.mxu0 0.0
      %5868 = vmatprep.subr.mxu0 0.0
      %5869 = vmatpush1.msra.mxu0 0.0
      %5870 = vmatprep.subr.mxu0 0.0
      %5871 = vmatpush1.msra.mxu0 0.0
      %5872 = vmatprep.mubr.f32.mxu0 0.0
      %5873 = vmatmul.mubr.f32.gmra.mrb[0].mxu0 %v5806
      %v5874 = vpop.f32.mrb[0].mxu0
      %v5875 = vadd.f32 0.0, %v5874
      %v5876 = vpop.f32.mrb[0].mxu0
      %5877 = vdwg.mxu0
      %5878 = vrot.lane.b32.xlu0 %v1144, 64
      %v5879 = vpop.permute.xlu0 %5878
      %v5882 = vsel %vm4233, %v4571, 0
      %5884 = vmatprep.subr.mxu0 0.0
      %5885 = vmatpush1.msra.mxu0 %v5879
      %5886 = vmatprep.subr.mxu0 0.0
      %5887 = vmatpush1.msra.mxu0 0.0
      %5888 = vmatprep.subr.mxu0 0.0
      %5889 = vmatpush1.msra.mxu0 0.0
      %5890 = vmatprep.subr.mxu0 0.0
      %5891 = vmatpush1.msra.mxu0 0.0
      %5892 = vmatprep.subr.mxu0 0.0
      %5893 = vmatpush1.msra.mxu0 0.0
      %5894 = vmatprep.subr.mxu0 0.0
      %5895 = vmatpush1.msra.mxu0 0.0
      %5896 = vmatprep.subr.mxu0 0.0
      %5897 = vmatpush1.msra.mxu0 0.0
      %5898 = vmatprep.subr.mxu0 0.0
      %5899 = vmatpush1.msra.mxu0 0.0
      %5900 = vmatprep.subr.mxu0 0.0
      %5901 = vmatpush1.msra.mxu0 0.0
      %5902 = vmatprep.subr.mxu0 0.0
      %5903 = vmatpush1.msra.mxu0 0.0
      %5904 = vmatprep.subr.mxu0 0.0
      %5905 = vmatpush1.msra.mxu0 0.0
      %5906 = vmatprep.subr.mxu0 0.0
      %5907 = vmatpush1.msra.mxu0 0.0
      %5908 = vmatprep.subr.mxu0 0.0
      %5909 = vmatpush1.msra.mxu0 0.0
      %5910 = vmatprep.subr.mxu0 0.0
      %5911 = vmatpush1.msra.mxu0 0.0
      %5912 = vmatprep.subr.mxu0 0.0
      %5913 = vmatpush1.msra.mxu0 0.0
      %5914 = vmatprep.subr.mxu0 0.0
      %5915 = vmatpush1.msra.mxu0 0.0
      %5916 = vmatprep.subr.mxu0 0.0
      %5917 = vmatpush1.msra.mxu0 0.0
      %5918 = vmatprep.subr.mxu0 0.0
      %5919 = vmatpush1.msra.mxu0 0.0
      %5920 = vmatprep.subr.mxu0 0.0
      %5921 = vmatpush1.msra.mxu0 0.0
      %5922 = vmatprep.subr.mxu0 0.0
      %5923 = vmatpush1.msra.mxu0 0.0
      %5924 = vmatprep.subr.mxu0 0.0
      %5925 = vmatpush1.msra.mxu0 0.0
      %5926 = vmatprep.subr.mxu0 0.0
      %5927 = vmatpush1.msra.mxu0 0.0
      %5928 = vmatprep.subr.mxu0 0.0
      %5929 = vmatpush1.msra.mxu0 0.0
      %5930 = vmatprep.subr.mxu0 0.0
      %5931 = vmatpush1.msra.mxu0 0.0
      %5932 = vmatprep.subr.mxu0 0.0
      %5933 = vmatpush1.msra.mxu0 0.0
      %5934 = vmatprep.subr.mxu0 0.0
      %5935 = vmatpush1.msra.mxu0 0.0
      %5936 = vmatprep.subr.mxu0 0.0
      %5937 = vmatpush1.msra.mxu0 0.0
      %5938 = vmatprep.subr.mxu0 0.0
      %5939 = vmatpush1.msra.mxu0 0.0
      %5940 = vmatprep.subr.mxu0 0.0
      %5941 = vmatpush1.msra.mxu0 0.0
      %5942 = vmatprep.subr.mxu0 0.0
      %5943 = vmatpush1.msra.mxu0 0.0
      %5944 = vmatprep.subr.mxu0 0.0
      %5945 = vmatpush1.msra.mxu0 0.0
      %5946 = vmatprep.subr.mxu0 0.0
      %5947 = vmatpush1.msra.mxu0 0.0
      %5948 = vmatprep.mubr.f32.mxu0 0.0
      %5949 = vmatmul.mubr.f32.gmra.mrb[0].mxu0 %v5882
      %v5950 = vpop.f32.mrb[0].mxu0
      %v5951 = vadd.f32 0.0, %v5950
      %v5952 = vpop.f32.mrb[0].mxu0
      %5953 = vdwg.mxu0
      %5954 = vrot.lane.b32.xlu0 %v1149, 64
      %v5955 = vpop.permute.xlu0 %5954
      %v5958 = vsel %vm4233, %v4572, 0
      %5960 = vmatprep.subr.mxu0 0.0
      %5961 = vmatpush1.msra.mxu0 %v5955
      %5962 = vmatprep.subr.mxu0 0.0
      %5963 = vmatpush1.msra.mxu0 0.0
      %5964 = vmatprep.subr.mxu0 0.0
      %5965 = vmatpush1.msra.mxu0 0.0
      %5966 = vmatprep.subr.mxu0 0.0
      %5967 = vmatpush1.msra.mxu0 0.0
      %5968 = vmatprep.subr.mxu0 0.0
      %5969 = vmatpush1.msra.mxu0 0.0
      %5970 = vmatprep.subr.mxu0 0.0
      %5971 = vmatpush1.msra.mxu0 0.0
      %5972 = vmatprep.subr.mxu0 0.0
      %5973 = vmatpush1.msra.mxu0 0.0
      %5974 = vmatprep.subr.mxu0 0.0
      %5975 = vmatpush1.msra.mxu0 0.0
      %5976 = vmatprep.subr.mxu0 0.0
      %5977 = vmatpush1.msra.mxu0 0.0
      %5978 = vmatprep.subr.mxu0 0.0
      %5979 = vmatpush1.msra.mxu0 0.0
      %5980 = vmatprep.subr.mxu0 0.0
      %5981 = vmatpush1.msra.mxu0 0.0
      %5982 = vmatprep.subr.mxu0 0.0
      %5983 = vmatpush1.msra.mxu0 0.0
      %5984 = vmatprep.subr.mxu0 0.0
      %5985 = vmatpush1.msra.mxu0 0.0
      %5986 = vmatprep.subr.mxu0 0.0
      %5987 = vmatpush1.msra.mxu0 0.0
      %5988 = vmatprep.subr.mxu0 0.0
      %5989 = vmatpush1.msra.mxu0 0.0
      %5990 = vmatprep.subr.mxu0 0.0
      %5991 = vmatpush1.msra.mxu0 0.0
      %5992 = vmatprep.subr.mxu0 0.0
      %5993 = vmatpush1.msra.mxu0 0.0
      %5994 = vmatprep.subr.mxu0 0.0
      %5995 = vmatpush1.msra.mxu0 0.0
      %5996 = vmatprep.subr.mxu0 0.0
      %5997 = vmatpush1.msra.mxu0 0.0
      %5998 = vmatprep.subr.mxu0 0.0
      %5999 = vmatpush1.msra.mxu0 0.0
      %6000 = vmatprep.subr.mxu0 0.0
      %6001 = vmatpush1.msra.mxu0 0.0
      %6002 = vmatprep.subr.mxu0 0.0
      %6003 = vmatpush1.msra.mxu0 0.0
      %6004 = vmatprep.subr.mxu0 0.0
      %6005 = vmatpush1.msra.mxu0 0.0
      %6006 = vmatprep.subr.mxu0 0.0
      %6007 = vmatpush1.msra.mxu0 0.0
      %6008 = vmatprep.subr.mxu0 0.0
      %6009 = vmatpush1.msra.mxu0 0.0
      %6010 = vmatprep.subr.mxu0 0.0
      %6011 = vmatpush1.msra.mxu0 0.0
      %6012 = vmatprep.subr.mxu0 0.0
      %6013 = vmatpush1.msra.mxu0 0.0
      %6014 = vmatprep.subr.mxu0 0.0
      %6015 = vmatpush1.msra.mxu0 0.0
      %6016 = vmatprep.subr.mxu0 0.0
      %6017 = vmatpush1.msra.mxu0 0.0
      %6018 = vmatprep.subr.mxu0 0.0
      %6019 = vmatpush1.msra.mxu0 0.0
      %6020 = vmatprep.subr.mxu0 0.0
      %6021 = vmatpush1.msra.mxu0 0.0
      %6022 = vmatprep.subr.mxu0 0.0
      %6023 = vmatpush1.msra.mxu0 0.0
      %6024 = vmatprep.mubr.f32.mxu0 0.0
      %6025 = vmatmul.mubr.f32.gmra.mrb[0].mxu0 %v5958
      %v6026 = vpop.f32.mrb[0].mxu0
      %v6027 = vadd.f32 0.0, %v6026
      %v6028 = vpop.f32.mrb[0].mxu0
      %6029 = vdwg.mxu0
      %6030 = vrot.lane.b32.xlu0 %v1154, 64
      %v6031 = vpop.permute.xlu0 %6030
      %v6034 = vsel %vm4233, %v4573, 0
      %6036 = vmatprep.subr.mxu0 0.0
      %6037 = vmatpush1.msra.mxu0 %v6031
      %6038 = vmatprep.subr.mxu0 0.0
      %6039 = vmatpush1.msra.mxu0 0.0
      %6040 = vmatprep.subr.mxu0 0.0
      %6041 = vmatpush1.msra.mxu0 0.0
      %6042 = vmatprep.subr.mxu0 0.0
      %6043 = vmatpush1.msra.mxu0 0.0
      %6044 = vmatprep.subr.mxu0 0.0
      %6045 = vmatpush1.msra.mxu0 0.0
      %6046 = vmatprep.subr.mxu0 0.0
      %6047 = vmatpush1.msra.mxu0 0.0
      %6048 = vmatprep.subr.mxu0 0.0
      %6049 = vmatpush1.msra.mxu0 0.0
      %6050 = vmatprep.subr.mxu0 0.0
      %6051 = vmatpush1.msra.mxu0 0.0
      %6052 = vmatprep.subr.mxu0 0.0
      %6053 = vmatpush1.msra.mxu0 0.0
      %6054 = vmatprep.subr.mxu0 0.0
      %6055 = vmatpush1.msra.mxu0 0.0
      %6056 = vmatprep.subr.mxu0 0.0
      %6057 = vmatpush1.msra.mxu0 0.0
      %6058 = vmatprep.subr.mxu0 0.0
      %6059 = vmatpush1.msra.mxu0 0.0
      %6060 = vmatprep.subr.mxu0 0.0
      %6061 = vmatpush1.msra.mxu0 0.0
      %6062 = vmatprep.subr.mxu0 0.0
      %6063 = vmatpush1.msra.mxu0 0.0
      %6064 = vmatprep.subr.mxu0 0.0
      %6065 = vmatpush1.msra.mxu0 0.0
      %6066 = vmatprep.subr.mxu0 0.0
      %6067 = vmatpush1.msra.mxu0 0.0
      %6068 = vmatprep.subr.mxu0 0.0
      %6069 = vmatpush1.msra.mxu0 0.0
      %6070 = vmatprep.subr.mxu0 0.0
      %6071 = vmatpush1.msra.mxu0 0.0
      %6072 = vmatprep.subr.mxu0 0.0
      %6073 = vmatpush1.msra.mxu0 0.0
      %6074 = vmatprep.subr.mxu0 0.0
      %6075 = vmatpush1.msra.mxu0 0.0
      %6076 = vmatprep.subr.mxu0 0.0
      %6077 = vmatpush1.msra.mxu0 0.0
      %6078 = vmatprep.subr.mxu0 0.0
      %6079 = vmatpush1.msra.mxu0 0.0
      %6080 = vmatprep.subr.mxu0 0.0
      %6081 = vmatpush1.msra.mxu0 0.0
      %6082 = vmatprep.subr.mxu0 0.0
      %6083 = vmatpush1.msra.mxu0 0.0
      %6084 = vmatprep.subr.mxu0 0.0
      %6085 = vmatpush1.msra.mxu0 0.0
      %6086 = vmatprep.subr.mxu0 0.0
      %6087 = vmatpush1.msra.mxu0 0.0
      %6088 = vmatprep.subr.mxu0 0.0
      %6089 = vmatpush1.msra.mxu0 0.0
      %6090 = vmatprep.subr.mxu0 0.0
      %6091 = vmatpush1.msra.mxu0 0.0
      %6092 = vmatprep.subr.mxu0 0.0
      %6093 = vmatpush1.msra.mxu0 0.0
      %6094 = vmatprep.subr.mxu0 0.0
      %6095 = vmatpush1.msra.mxu0 0.0
      %6096 = vmatprep.subr.mxu0 0.0
      %6097 = vmatpush1.msra.mxu0 0.0
      %6098 = vmatprep.subr.mxu0 0.0
      %6099 = vmatpush1.msra.mxu0 0.0
      %6100 = vmatprep.mubr.f32.mxu0 0.0
      %6101 = vmatmul.mubr.f32.gmra.mrb[0].mxu0 %v6034
      %v6102 = vpop.f32.mrb[0].mxu0
      %v6103 = vadd.f32 0.0, %v6102
      %v6104 = vpop.f32.mrb[0].mxu0
      %6105 = vdwg.mxu0
      %6106 = vrot.lane.b32.xlu0 %v1159, 64
      %v6107 = vpop.permute.xlu0 %6106
      %v6110 = vsel %vm4233, %v4574, 0
      %6112 = vmatprep.subr.mxu0 0.0
      %6113 = vmatpush1.msra.mxu0 %v6107
      %6114 = vmatprep.subr.mxu0 0.0
      %6115 = vmatpush1.msra.mxu0 0.0
      %6116 = vmatprep.subr.mxu0 0.0
      %6117 = vmatpush1.msra.mxu0 0.0
      %6118 = vmatprep.subr.mxu0 0.0
      %6119 = vmatpush1.msra.mxu0 0.0
      %6120 = vmatprep.subr.mxu0 0.0
      %6121 = vmatpush1.msra.mxu0 0.0
      %6122 = vmatprep.subr.mxu0 0.0
      %6123 = vmatpush1.msra.mxu0 0.0
      %6124 = vmatprep.subr.mxu0 0.0
      %6125 = vmatpush1.msra.mxu0 0.0
      %6126 = vmatprep.subr.mxu0 0.0
      %6127 = vmatpush1.msra.mxu0 0.0
      %6128 = vmatprep.subr.mxu0 0.0
      %6129 = vmatpush1.msra.mxu0 0.0
      %6130 = vmatprep.subr.mxu0 0.0
      %6131 = vmatpush1.msra.mxu0 0.0
      %6132 = vmatprep.subr.mxu0 0.0
      %6133 = vmatpush1.msra.mxu0 0.0
      %6134 = vmatprep.subr.mxu0 0.0
      %6135 = vmatpush1.msra.mxu0 0.0
      %6136 = vmatprep.subr.mxu0 0.0
      %6137 = vmatpush1.msra.mxu0 0.0
      %6138 = vmatprep.subr.mxu0 0.0
      %6139 = vmatpush1.msra.mxu0 0.0
      %6140 = vmatprep.subr.mxu0 0.0
      %6141 = vmatpush1.msra.mxu0 0.0
      %6142 = vmatprep.subr.mxu0 0.0
      %6143 = vmatpush1.msra.mxu0 0.0
      %6144 = vmatprep.subr.mxu0 0.0
      %6145 = vmatpush1.msra.mxu0 0.0
      %6146 = vmatprep.subr.mxu0 0.0
      %6147 = vmatpush1.msra.mxu0 0.0
      %6148 = vmatprep.subr.mxu0 0.0
      %6149 = vmatpush1.msra.mxu0 0.0
      %6150 = vmatprep.subr.mxu0 0.0
      %6151 = vmatpush1.msra.mxu0 0.0
      %6152 = vmatprep.subr.mxu0 0.0
      %6153 = vmatpush1.msra.mxu0 0.0
      %6154 = vmatprep.subr.mxu0 0.0
      %6155 = vmatpush1.msra.mxu0 0.0
      %6156 = vmatprep.subr.mxu0 0.0
      %6157 = vmatpush1.msra.mxu0 0.0
      %6158 = vmatprep.subr.mxu0 0.0
      %6159 = vmatpush1.msra.mxu0 0.0
      %6160 = vmatprep.subr.mxu0 0.0
      %6161 = vmatpush1.msra.mxu0 0.0
      %6162 = vmatprep.subr.mxu0 0.0
      %6163 = vmatpush1.msra.mxu0 0.0
      %6164 = vmatprep.subr.mxu0 0.0
      %6165 = vmatpush1.msra.mxu0 0.0
      %6166 = vmatprep.subr.mxu0 0.0
      %6167 = vmatpush1.msra.mxu0 0.0
      %6168 = vmatprep.subr.mxu0 0.0
      %6169 = vmatpush1.msra.mxu0 0.0
      %6170 = vmatprep.subr.mxu0 0.0
      %6171 = vmatpush1.msra.mxu0 0.0
      %6172 = vmatprep.subr.mxu0 0.0
      %6173 = vmatpush1.msra.mxu0 0.0
      %6174 = vmatprep.subr.mxu0 0.0
      %6175 = vmatpush1.msra.mxu0 0.0
      %6176 = vmatprep.mubr.f32.mxu0 0.0
      %6177 = vmatmul.mubr.f32.gmra.mrb[0].mxu0 %v6110
      %v6178 = vpop.f32.mrb[0].mxu0
      %v6179 = vadd.f32 0.0, %v6178
      %v6180 = vpop.f32.mrb[0].mxu0
      %6181 = vdwg.mxu0
      %6182 = vrot.lane.b32.xlu0 %v1164, 64
      %v6183 = vpop.permute.xlu0 %6182
      %v6186 = vsel %vm4233, %v4575, 0
      %6188 = vmatprep.subr.mxu0 0.0
      %6189 = vmatpush1.msra.mxu0 %v6183
      %6190 = vmatprep.subr.mxu0 0.0
      %6191 = vmatpush1.msra.mxu0 0.0
      %6192 = vmatprep.subr.mxu0 0.0
      %6193 = vmatpush1.msra.mxu0 0.0
      %6194 = vmatprep.subr.mxu0 0.0
      %6195 = vmatpush1.msra.mxu0 0.0
      %6196 = vmatprep.subr.mxu0 0.0
      %6197 = vmatpush1.msra.mxu0 0.0
      %6198 = vmatprep.subr.mxu0 0.0
      %6199 = vmatpush1.msra.mxu0 0.0
      %6200 = vmatprep.subr.mxu0 0.0
      %6201 = vmatpush1.msra.mxu0 0.0
      %6202 = vmatprep.subr.mxu0 0.0
      %6203 = vmatpush1.msra.mxu0 0.0
      %6204 = vmatprep.subr.mxu0 0.0
      %6205 = vmatpush1.msra.mxu0 0.0
      %6206 = vmatprep.subr.mxu0 0.0
      %6207 = vmatpush1.msra.mxu0 0.0
      %6208 = vmatprep.subr.mxu0 0.0
      %6209 = vmatpush1.msra.mxu0 0.0
      %6210 = vmatprep.subr.mxu0 0.0
      %6211 = vmatpush1.msra.mxu0 0.0
      %6212 = vmatprep.subr.mxu0 0.0
      %6213 = vmatpush1.msra.mxu0 0.0
      %6214 = vmatprep.subr.mxu0 0.0
      %6215 = vmatpush1.msra.mxu0 0.0
      %6216 = vmatprep.subr.mxu0 0.0
      %6217 = vmatpush1.msra.mxu0 0.0
      %6218 = vmatprep.subr.mxu0 0.0
      %6219 = vmatpush1.msra.mxu0 0.0
      %6220 = vmatprep.subr.mxu0 0.0
      %6221 = vmatpush1.msra.mxu0 0.0
      %6222 = vmatprep.subr.mxu0 0.0
      %6223 = vmatpush1.msra.mxu0 0.0
      %6224 = vmatprep.subr.mxu0 0.0
      %6225 = vmatpush1.msra.mxu0 0.0
      %6226 = vmatprep.subr.mxu0 0.0
      %6227 = vmatpush1.msra.mxu0 0.0
      %6228 = vmatprep.subr.mxu0 0.0
      %6229 = vmatpush1.msra.mxu0 0.0
      %6230 = vmatprep.subr.mxu0 0.0
      %6231 = vmatpush1.msra.mxu0 0.0
      %6232 = vmatprep.subr.mxu0 0.0
      %6233 = vmatpush1.msra.mxu0 0.0
      %6234 = vmatprep.subr.mxu0 0.0
      %6235 = vmatpush1.msra.mxu0 0.0
      %6236 = vmatprep.subr.mxu0 0.0
      %6237 = vmatpush1.msra.mxu0 0.0
      %6238 = vmatprep.subr.mxu0 0.0
      %6239 = vmatpush1.msra.mxu0 0.0
      %6240 = vmatprep.subr.mxu0 0.0
      %6241 = vmatpush1.msra.mxu0 0.0
      %6242 = vmatprep.subr.mxu0 0.0
      %6243 = vmatpush1.msra.mxu0 0.0
      %6244 = vmatprep.subr.mxu0 0.0
      %6245 = vmatpush1.msra.mxu0 0.0
      %6246 = vmatprep.subr.mxu0 0.0
      %6247 = vmatpush1.msra.mxu0 0.0
      %6248 = vmatprep.subr.mxu0 0.0
      %6249 = vmatpush1.msra.mxu0 0.0
      %6250 = vmatprep.subr.mxu0 0.0
      %6251 = vmatpush1.msra.mxu0 0.0
      %6252 = vmatprep.mubr.f32.mxu0 0.0
      %6253 = vmatmul.mubr.f32.gmra.mrb[0].mxu0 %v6186
      %v6254 = vpop.f32.mrb[0].mxu0
      %v6255 = vadd.f32 0.0, %v6254
      %v6256 = vpop.f32.mrb[0].mxu0
      %6257 = vdwg.mxu0
      %6258 = vrot.lane.b32.xlu0 %v1169, 64
      %v6259 = vpop.permute.xlu0 %6258
      %v6262 = vsel %vm4233, %v4576, 0
      %6264 = vmatprep.subr.mxu0 0.0
      %6265 = vmatpush1.msra.mxu0 %v6259
      %6266 = vmatprep.subr.mxu0 0.0
      %6267 = vmatpush1.msra.mxu0 0.0
      %6268 = vmatprep.subr.mxu0 0.0
      %6269 = vmatpush1.msra.mxu0 0.0
      %6270 = vmatprep.subr.mxu0 0.0
      %6271 = vmatpush1.msra.mxu0 0.0
      %6272 = vmatprep.subr.mxu0 0.0
      %6273 = vmatpush1.msra.mxu0 0.0
      %6274 = vmatprep.subr.mxu0 0.0
      %6275 = vmatpush1.msra.mxu0 0.0
      %6276 = vmatprep.subr.mxu0 0.0
      %6277 = vmatpush1.msra.mxu0 0.0
      %6278 = vmatprep.subr.mxu0 0.0
      %6279 = vmatpush1.msra.mxu0 0.0
      %6280 = vmatprep.subr.mxu0 0.0
      %6281 = vmatpush1.msra.mxu0 0.0
      %6282 = vmatprep.subr.mxu0 0.0
      %6283 = vmatpush1.msra.mxu0 0.0
      %6284 = vmatprep.subr.mxu0 0.0
      %6285 = vmatpush1.msra.mxu0 0.0
      %6286 = vmatprep.subr.mxu0 0.0
      %6287 = vmatpush1.msra.mxu0 0.0
      %6288 = vmatprep.subr.mxu0 0.0
      %6289 = vmatpush1.msra.mxu0 0.0
      %6290 = vmatprep.subr.mxu0 0.0
      %6291 = vmatpush1.msra.mxu0 0.0
      %6292 = vmatprep.subr.mxu0 0.0
      %6293 = vmatpush1.msra.mxu0 0.0
      %6294 = vmatprep.subr.mxu0 0.0
      %6295 = vmatpush1.msra.mxu0 0.0
      %6296 = vmatprep.subr.mxu0 0.0
      %6297 = vmatpush1.msra.mxu0 0.0
      %6298 = vmatprep.subr.mxu0 0.0
      %6299 = vmatpush1.msra.mxu0 0.0
      %6300 = vmatprep.subr.mxu0 0.0
      %6301 = vmatpush1.msra.mxu0 0.0
      %6302 = vmatprep.subr.mxu0 0.0
      %6303 = vmatpush1.msra.mxu0 0.0
      %6304 = vmatprep.subr.mxu0 0.0
      %6305 = vmatpush1.msra.mxu0 0.0
      %6306 = vmatprep.subr.mxu0 0.0
      %6307 = vmatpush1.msra.mxu0 0.0
      %6308 = vmatprep.subr.mxu0 0.0
      %6309 = vmatpush1.msra.mxu0 0.0
      %6310 = vmatprep.subr.mxu0 0.0
      %6311 = vmatpush1.msra.mxu0 0.0
      %6312 = vmatprep.subr.mxu0 0.0
      %6313 = vmatpush1.msra.mxu0 0.0
      %6314 = vmatprep.subr.mxu0 0.0
      %6315 = vmatpush1.msra.mxu0 0.0
      %6316 = vmatprep.subr.mxu0 0.0
      %6317 = vmatpush1.msra.mxu0 0.0
      %6318 = vmatprep.subr.mxu0 0.0
      %6319 = vmatpush1.msra.mxu0 0.0
      %6320 = vmatprep.subr.mxu0 0.0
      %6321 = vmatpush1.msra.mxu0 0.0
      %6322 = vmatprep.subr.mxu0 0.0
      %6323 = vmatpush1.msra.mxu0 0.0
      %6324 = vmatprep.subr.mxu0 0.0
      %6325 = vmatpush1.msra.mxu0 0.0
      %6326 = vmatprep.subr.mxu0 0.0
      %6327 = vmatpush1.msra.mxu0 0.0
      %6328 = vmatprep.mubr.f32.mxu0 0.0
      %6329 = vmatmul.mubr.f32.gmra.mrb[0].mxu0 %v6262
      %v6330 = vpop.f32.mrb[0].mxu0
      %v6331 = vadd.f32 0.0, %v6330
      %v6332 = vpop.f32.mrb[0].mxu0
      %6333 = vdwg.mxu0
      %6334 = vrot.lane.b32.xlu0 %v1174, 64
      %v6335 = vpop.permute.xlu0 %6334
      %v6338 = vsel %vm4233, %v4577, 0
      %6340 = vmatprep.subr.mxu0 0.0
      %6341 = vmatpush1.msra.mxu0 %v6335
      %6342 = vmatprep.subr.mxu0 0.0
      %6343 = vmatpush1.msra.mxu0 0.0
      %6344 = vmatprep.subr.mxu0 0.0
      %6345 = vmatpush1.msra.mxu0 0.0
      %6346 = vmatprep.subr.mxu0 0.0
      %6347 = vmatpush1.msra.mxu0 0.0
      %6348 = vmatprep.subr.mxu0 0.0
      %6349 = vmatpush1.msra.mxu0 0.0
      %6350 = vmatprep.subr.mxu0 0.0
      %6351 = vmatpush1.msra.mxu0 0.0
      %6352 = vmatprep.subr.mxu0 0.0
      %6353 = vmatpush1.msra.mxu0 0.0
      %6354 = vmatprep.subr.mxu0 0.0
      %6355 = vmatpush1.msra.mxu0 0.0
      %6356 = vmatprep.subr.mxu0 0.0
      %6357 = vmatpush1.msra.mxu0 0.0
      %6358 = vmatprep.subr.mxu0 0.0
      %6359 = vmatpush1.msra.mxu0 0.0
      %6360 = vmatprep.subr.mxu0 0.0
      %6361 = vmatpush1.msra.mxu0 0.0
      %6362 = vmatprep.subr.mxu0 0.0
      %6363 = vmatpush1.msra.mxu0 0.0
      %6364 = vmatprep.subr.mxu0 0.0
      %6365 = vmatpush1.msra.mxu0 0.0
      %6366 = vmatprep.subr.mxu0 0.0
      %6367 = vmatpush1.msra.mxu0 0.0
      %6368 = vmatprep.subr.mxu0 0.0
      %6369 = vmatpush1.msra.mxu0 0.0
      %6370 = vmatprep.subr.mxu0 0.0
      %6371 = vmatpush1.msra.mxu0 0.0
      %6372 = vmatprep.subr.mxu0 0.0
      %6373 = vmatpush1.msra.mxu0 0.0
      %6374 = vmatprep.subr.mxu0 0.0
      %6375 = vmatpush1.msra.mxu0 0.0
      %6376 = vmatprep.subr.mxu0 0.0
      %6377 = vmatpush1.msra.mxu0 0.0
      %6378 = vmatprep.subr.mxu0 0.0
      %6379 = vmatpush1.msra.mxu0 0.0
      %6380 = vmatprep.subr.mxu0 0.0
      %6381 = vmatpush1.msra.mxu0 0.0
      %6382 = vmatprep.subr.mxu0 0.0
      %6383 = vmatpush1.msra.mxu0 0.0
      %6384 = vmatprep.subr.mxu0 0.0
      %6385 = vmatpush1.msra.mxu0 0.0
      %6386 = vmatprep.subr.mxu0 0.0
      %6387 = vmatpush1.msra.mxu0 0.0
      %6388 = vmatprep.subr.mxu0 0.0
      %6389 = vmatpush1.msra.mxu0 0.0
      %6390 = vmatprep.subr.mxu0 0.0
      %6391 = vmatpush1.msra.mxu0 0.0
      %6392 = vmatprep.subr.mxu0 0.0
      %6393 = vmatpush1.msra.mxu0 0.0
      %6394 = vmatprep.subr.mxu0 0.0
      %6395 = vmatpush1.msra.mxu0 0.0
      %6396 = vmatprep.subr.mxu0 0.0
      %6397 = vmatpush1.msra.mxu0 0.0
      %6398 = vmatprep.subr.mxu0 0.0
      %6399 = vmatpush1.msra.mxu0 0.0
      %6400 = vmatprep.subr.mxu0 0.0
      %6401 = vmatpush1.msra.mxu0 0.0
      %6402 = vmatprep.subr.mxu0 0.0
      %6403 = vmatpush1.msra.mxu0 0.0
      %6404 = vmatprep.mubr.f32.mxu0 0.0
      %6405 = vmatmul.mubr.f32.gmra.mrb[0].mxu0 %v6338
      %v6406 = vpop.f32.mrb[0].mxu0
      %v6407 = vadd.f32 0.0, %v6406
      %v6408 = vpop.f32.mrb[0].mxu0
      %6409 = vdwg.mxu0
      %6410 = vrot.lane.b32.xlu0 %v1179, 64
      %v6411 = vpop.permute.xlu0 %6410
      %v6414 = vsel %vm4233, %v4578, 0
      %6416 = vmatprep.subr.mxu0 0.0
      %6417 = vmatpush1.msra.mxu0 %v6411
      %6418 = vmatprep.subr.mxu0 0.0
      %6419 = vmatpush1.msra.mxu0 0.0
      %6420 = vmatprep.subr.mxu0 0.0
      %6421 = vmatpush1.msra.mxu0 0.0
      %6422 = vmatprep.subr.mxu0 0.0
      %6423 = vmatpush1.msra.mxu0 0.0
      %6424 = vmatprep.subr.mxu0 0.0
      %6425 = vmatpush1.msra.mxu0 0.0
      %6426 = vmatprep.subr.mxu0 0.0
      %6427 = vmatpush1.msra.mxu0 0.0
      %6428 = vmatprep.subr.mxu0 0.0
      %6429 = vmatpush1.msra.mxu0 0.0
      %6430 = vmatprep.subr.mxu0 0.0
      %6431 = vmatpush1.msra.mxu0 0.0
      %6432 = vmatprep.subr.mxu0 0.0
      %6433 = vmatpush1.msra.mxu0 0.0
      %6434 = vmatprep.subr.mxu0 0.0
      %6435 = vmatpush1.msra.mxu0 0.0
      %6436 = vmatprep.subr.mxu0 0.0
      %6437 = vmatpush1.msra.mxu0 0.0
      %6438 = vmatprep.subr.mxu0 0.0
      %6439 = vmatpush1.msra.mxu0 0.0
      %6440 = vmatprep.subr.mxu0 0.0
      %6441 = vmatpush1.msra.mxu0 0.0
      %6442 = vmatprep.subr.mxu0 0.0
      %6443 = vmatpush1.msra.mxu0 0.0
      %6444 = vmatprep.subr.mxu0 0.0
      %6445 = vmatpush1.msra.mxu0 0.0
      %6446 = vmatprep.subr.mxu0 0.0
      %6447 = vmatpush1.msra.mxu0 0.0
      %6448 = vmatprep.subr.mxu0 0.0
      %6449 = vmatpush1.msra.mxu0 0.0
      %6450 = vmatprep.subr.mxu0 0.0
      %6451 = vmatpush1.msra.mxu0 0.0
      %6452 = vmatprep.subr.mxu0 0.0
      %6453 = vmatpush1.msra.mxu0 0.0
      %6454 = vmatprep.subr.mxu0 0.0
      %6455 = vmatpush1.msra.mxu0 0.0
      %6456 = vmatprep.subr.mxu0 0.0
      %6457 = vmatpush1.msra.mxu0 0.0
      %6458 = vmatprep.subr.mxu0 0.0
      %6459 = vmatpush1.msra.mxu0 0.0
      %6460 = vmatprep.subr.mxu0 0.0
      %6461 = vmatpush1.msra.mxu0 0.0
      %6462 = vmatprep.subr.mxu0 0.0
      %6463 = vmatpush1.msra.mxu0 0.0
      %6464 = vmatprep.subr.mxu0 0.0
      %6465 = vmatpush1.msra.mxu0 0.0
      %6466 = vmatprep.subr.mxu0 0.0
      %6467 = vmatpush1.msra.mxu0 0.0
      %6468 = vmatprep.subr.mxu0 0.0
      %6469 = vmatpush1.msra.mxu0 0.0
      %6470 = vmatprep.subr.mxu0 0.0
      %6471 = vmatpush1.msra.mxu0 0.0
      %6472 = vmatprep.subr.mxu0 0.0
      %6473 = vmatpush1.msra.mxu0 0.0
      %6474 = vmatprep.subr.mxu0 0.0
      %6475 = vmatpush1.msra.mxu0 0.0
      %6476 = vmatprep.subr.mxu0 0.0
      %6477 = vmatpush1.msra.mxu0 0.0
      %6478 = vmatprep.subr.mxu0 0.0
      %6479 = vmatpush1.msra.mxu0 0.0
      %6480 = vmatprep.mubr.f32.mxu0 0.0
      %6481 = vmatmul.mubr.f32.gmra.mrb[0].mxu0 %v6414
      %v6482 = vpop.f32.mrb[0].mxu0
      %v6483 = vadd.f32 0.0, %v6482
      %v6484 = vpop.f32.mrb[0].mxu0
      %6485 = vdwg.mxu0
      %6486 = vrot.lane.b32.xlu0 %v1184, 64
      %v6487 = vpop.permute.xlu0 %6486
      %v6490 = vsel %vm4233, %v4579, 0
      %6492 = vmatprep.subr.mxu0 0.0
      %6493 = vmatpush1.msra.mxu0 %v6487
      %6494 = vmatprep.subr.mxu0 0.0
      %6495 = vmatpush1.msra.mxu0 0.0
      %6496 = vmatprep.subr.mxu0 0.0
      %6497 = vmatpush1.msra.mxu0 0.0
      %6498 = vmatprep.subr.mxu0 0.0
      %6499 = vmatpush1.msra.mxu0 0.0
      %6500 = vmatprep.subr.mxu0 0.0
      %6501 = vmatpush1.msra.mxu0 0.0
      %6502 = vmatprep.subr.mxu0 0.0
      %6503 = vmatpush1.msra.mxu0 0.0
      %6504 = vmatprep.subr.mxu0 0.0
      %6505 = vmatpush1.msra.mxu0 0.0
      %6506 = vmatprep.subr.mxu0 0.0
      %6507 = vmatpush1.msra.mxu0 0.0
      %6508 = vmatprep.subr.mxu0 0.0
      %6509 = vmatpush1.msra.mxu0 0.0
      %6510 = vmatprep.subr.mxu0 0.0
      %6511 = vmatpush1.msra.mxu0 0.0
      %6512 = vmatprep.subr.mxu0 0.0
      %6513 = vmatpush1.msra.mxu0 0.0
      %6514 = vmatprep.subr.mxu0 0.0
      %6515 = vmatpush1.msra.mxu0 0.0
      %6516 = vmatprep.subr.mxu0 0.0
      %6517 = vmatpush1.msra.mxu0 0.0
      %6518 = vmatprep.subr.mxu0 0.0
      %6519 = vmatpush1.msra.mxu0 0.0
      %6520 = vmatprep.subr.mxu0 0.0
      %6521 = vmatpush1.msra.mxu0 0.0
      %6522 = vmatprep.subr.mxu0 0.0
      %6523 = vmatpush1.msra.mxu0 0.0
      %6524 = vmatprep.subr.mxu0 0.0
      %6525 = vmatpush1.msra.mxu0 0.0
      %6526 = vmatprep.subr.mxu0 0.0
      %6527 = vmatpush1.msra.mxu0 0.0
      %6528 = vmatprep.subr.mxu0 0.0
      %6529 = vmatpush1.msra.mxu0 0.0
      %6530 = vmatprep.subr.mxu0 0.0
      %6531 = vmatpush1.msra.mxu0 0.0
      %6532 = vmatprep.subr.mxu0 0.0
      %6533 = vmatpush1.msra.mxu0 0.0
      %6534 = vmatprep.subr.mxu0 0.0
      %6535 = vmatpush1.msra.mxu0 0.0
      %6536 = vmatprep.subr.mxu0 0.0
      %6537 = vmatpush1.msra.mxu0 0.0
      %6538 = vmatprep.subr.mxu0 0.0
      %6539 = vmatpush1.msra.mxu0 0.0
      %6540 = vmatprep.subr.mxu0 0.0
      %6541 = vmatpush1.msra.mxu0 0.0
      %6542 = vmatprep.subr.mxu0 0.0
      %6543 = vmatpush1.msra.mxu0 0.0
      %6544 = vmatprep.subr.mxu0 0.0
      %6545 = vmatpush1.msra.mxu0 0.0
      %6546 = vmatprep.subr.mxu0 0.0
      %6547 = vmatpush1.msra.mxu0 0.0
      %6548 = vmatprep.subr.mxu0 0.0
      %6549 = vmatpush1.msra.mxu0 0.0
      %6550 = vmatprep.subr.mxu0 0.0
      %6551 = vmatpush1.msra.mxu0 0.0
      %6552 = vmatprep.subr.mxu0 0.0
      %6553 = vmatpush1.msra.mxu0 0.0
      %6554 = vmatprep.subr.mxu0 0.0
      %6555 = vmatpush1.msra.mxu0 0.0
      %6556 = vmatprep.mubr.f32.mxu0 0.0
      %6557 = vmatmul.mubr.f32.gmra.mrb[0].mxu0 %v6490
      %v6558 = vpop.f32.mrb[0].mxu0
      %v6559 = vadd.f32 0.0, %v6558
      %v6560 = vpop.f32.mrb[0].mxu0
      %6561 = vdwg.mxu0
      %6562 = vrot.lane.b32.xlu0 %v1189, 64
      %v6563 = vpop.permute.xlu0 %6562
      %v6566 = vsel %vm4233, %v4580, 0
      %6568 = vmatprep.subr.mxu0 0.0
      %6569 = vmatpush1.msra.mxu0 %v6563
      %6570 = vmatprep.subr.mxu0 0.0
      %6571 = vmatpush1.msra.mxu0 0.0
      %6572 = vmatprep.subr.mxu0 0.0
      %6573 = vmatpush1.msra.mxu0 0.0
      %6574 = vmatprep.subr.mxu0 0.0
      %6575 = vmatpush1.msra.mxu0 0.0
      %6576 = vmatprep.subr.mxu0 0.0
      %6577 = vmatpush1.msra.mxu0 0.0
      %6578 = vmatprep.subr.mxu0 0.0
      %6579 = vmatpush1.msra.mxu0 0.0
      %6580 = vmatprep.subr.mxu0 0.0
      %6581 = vmatpush1.msra.mxu0 0.0
      %6582 = vmatprep.subr.mxu0 0.0
      %6583 = vmatpush1.msra.mxu0 0.0
      %6584 = vmatprep.subr.mxu0 0.0
      %6585 = vmatpush1.msra.mxu0 0.0
      %6586 = vmatprep.subr.mxu0 0.0
      %6587 = vmatpush1.msra.mxu0 0.0
      %6588 = vmatprep.subr.mxu0 0.0
      %6589 = vmatpush1.msra.mxu0 0.0
      %6590 = vmatprep.subr.mxu0 0.0
      %6591 = vmatpush1.msra.mxu0 0.0
      %6592 = vmatprep.subr.mxu0 0.0
      %6593 = vmatpush1.msra.mxu0 0.0
      %6594 = vmatprep.subr.mxu0 0.0
      %6595 = vmatpush1.msra.mxu0 0.0
      %6596 = vmatprep.subr.mxu0 0.0
      %6597 = vmatpush1.msra.mxu0 0.0
      %6598 = vmatprep.subr.mxu0 0.0
      %6599 = vmatpush1.msra.mxu0 0.0
      %6600 = vmatprep.subr.mxu0 0.0
      %6601 = vmatpush1.msra.mxu0 0.0
      %6602 = vmatprep.subr.mxu0 0.0
      %6603 = vmatpush1.msra.mxu0 0.0
      %6604 = vmatprep.subr.mxu0 0.0
      %6605 = vmatpush1.msra.mxu0 0.0
      %6606 = vmatprep.subr.mxu0 0.0
      %6607 = vmatpush1.msra.mxu0 0.0
      %6608 = vmatprep.subr.mxu0 0.0
      %6609 = vmatpush1.msra.mxu0 0.0
      %6610 = vmatprep.subr.mxu0 0.0
      %6611 = vmatpush1.msra.mxu0 0.0
      %6612 = vmatprep.subr.mxu0 0.0
      %6613 = vmatpush1.msra.mxu0 0.0
      %6614 = vmatprep.subr.mxu0 0.0
      %6615 = vmatpush1.msra.mxu0 0.0
      %6616 = vmatprep.subr.mxu0 0.0
      %6617 = vmatpush1.msra.mxu0 0.0
      %6618 = vmatprep.subr.mxu0 0.0
      %6619 = vmatpush1.msra.mxu0 0.0
      %6620 = vmatprep.subr.mxu0 0.0
      %6621 = vmatpush1.msra.mxu0 0.0
      %6622 = vmatprep.subr.mxu0 0.0
      %6623 = vmatpush1.msra.mxu0 0.0
      %6624 = vmatprep.subr.mxu0 0.0
      %6625 = vmatpush1.msra.mxu0 0.0
      %6626 = vmatprep.subr.mxu0 0.0
      %6627 = vmatpush1.msra.mxu0 0.0
      %6628 = vmatprep.subr.mxu0 0.0
      %6629 = vmatpush1.msra.mxu0 0.0
      %6630 = vmatprep.subr.mxu0 0.0
      %6631 = vmatpush1.msra.mxu0 0.0
      %6632 = vmatprep.mubr.f32.mxu0 0.0
      %6633 = vmatmul.mubr.f32.gmra.mrb[0].mxu0 %v6566
      %v6634 = vpop.f32.mrb[0].mxu0
      %v6635 = vadd.f32 0.0, %v6634
      %v6636 = vpop.f32.mrb[0].mxu0
      %6637 = vdwg.mxu0
      %6638 = vrot.lane.b32.xlu0 %v1194, 64
      %v6639 = vpop.permute.xlu0 %6638
      %v6642 = vsel %vm4233, %v4581, 0
      %6644 = vmatprep.subr.mxu0 0.0
      %6645 = vmatpush1.msra.mxu0 %v6639
      %6646 = vmatprep.subr.mxu0 0.0
      %6647 = vmatpush1.msra.mxu0 0.0
      %6648 = vmatprep.subr.mxu0 0.0
      %6649 = vmatpush1.msra.mxu0 0.0
      %6650 = vmatprep.subr.mxu0 0.0
      %6651 = vmatpush1.msra.mxu0 0.0
      %6652 = vmatprep.subr.mxu0 0.0
      %6653 = vmatpush1.msra.mxu0 0.0
      %6654 = vmatprep.subr.mxu0 0.0
      %6655 = vmatpush1.msra.mxu0 0.0
      %6656 = vmatprep.subr.mxu0 0.0
      %6657 = vmatpush1.msra.mxu0 0.0
      %6658 = vmatprep.subr.mxu0 0.0
      %6659 = vmatpush1.msra.mxu0 0.0
      %6660 = vmatprep.subr.mxu0 0.0
      %6661 = vmatpush1.msra.mxu0 0.0
      %6662 = vmatprep.subr.mxu0 0.0
      %6663 = vmatpush1.msra.mxu0 0.0
      %6664 = vmatprep.subr.mxu0 0.0
      %6665 = vmatpush1.msra.mxu0 0.0
      %6666 = vmatprep.subr.mxu0 0.0
      %6667 = vmatpush1.msra.mxu0 0.0
      %6668 = vmatprep.subr.mxu0 0.0
      %6669 = vmatpush1.msra.mxu0 0.0
      %6670 = vmatprep.subr.mxu0 0.0
      %6671 = vmatpush1.msra.mxu0 0.0
      %6672 = vmatprep.subr.mxu0 0.0
      %6673 = vmatpush1.msra.mxu0 0.0
      %6674 = vmatprep.subr.mxu0 0.0
      %6675 = vmatpush1.msra.mxu0 0.0
      %6676 = vmatprep.subr.mxu0 0.0
      %6677 = vmatpush1.msra.mxu0 0.0
      %6678 = vmatprep.subr.mxu0 0.0
      %6679 = vmatpush1.msra.mxu0 0.0
      %6680 = vmatprep.subr.mxu0 0.0
      %6681 = vmatpush1.msra.mxu0 0.0
      %6682 = vmatprep.subr.mxu0 0.0
      %6683 = vmatpush1.msra.mxu0 0.0
      %6684 = vmatprep.subr.mxu0 0.0
      %6685 = vmatpush1.msra.mxu0 0.0
      %6686 = vmatprep.subr.mxu0 0.0
      %6687 = vmatpush1.msra.mxu0 0.0
      %6688 = vmatprep.subr.mxu0 0.0
      %6689 = vmatpush1.msra.mxu0 0.0
      %6690 = vmatprep.subr.mxu0 0.0
      %6691 = vmatpush1.msra.mxu0 0.0
      %6692 = vmatprep.subr.mxu0 0.0
      %6693 = vmatpush1.msra.mxu0 0.0
      %6694 = vmatprep.subr.mxu0 0.0
      %6695 = vmatpush1.msra.mxu0 0.0
      %6696 = vmatprep.subr.mxu0 0.0
      %6697 = vmatpush1.msra.mxu0 0.0
      %6698 = vmatprep.subr.mxu0 0.0
      %6699 = vmatpush1.msra.mxu0 0.0
      %6700 = vmatprep.subr.mxu0 0.0
      %6701 = vmatpush1.msra.mxu0 0.0
      %6702 = vmatprep.subr.mxu0 0.0
      %6703 = vmatpush1.msra.mxu0 0.0
      %6704 = vmatprep.subr.mxu0 0.0
      %6705 = vmatpush1.msra.mxu0 0.0
      %6706 = vmatprep.subr.mxu0 0.0
      %6707 = vmatpush1.msra.mxu0 0.0
      %6708 = vmatprep.mubr.f32.mxu0 0.0
      %6709 = vmatmul.mubr.f32.gmra.mrb[0].mxu0 %v6642
      %v6710 = vpop.f32.mrb[0].mxu0
      %v6711 = vadd.f32 0.0, %v6710
      %v6712 = vpop.f32.mrb[0].mxu0
      %6713 = vdwg.mxu0
      %6714 = vrot.lane.b32.xlu0 %v1199, 64
      %v6715 = vpop.permute.xlu0 %6714
      %v6718 = vsel %vm4233, %v4582, 0
      %6720 = vmatprep.subr.mxu0 0.0
      %6721 = vmatpush1.msra.mxu0 %v6715
      %6722 = vmatprep.subr.mxu0 0.0
      %6723 = vmatpush1.msra.mxu0 0.0
      %6724 = vmatprep.subr.mxu0 0.0
      %6725 = vmatpush1.msra.mxu0 0.0
      %6726 = vmatprep.subr.mxu0 0.0
      %6727 = vmatpush1.msra.mxu0 0.0
      %6728 = vmatprep.subr.mxu0 0.0
      %6729 = vmatpush1.msra.mxu0 0.0
      %6730 = vmatprep.subr.mxu0 0.0
      %6731 = vmatpush1.msra.mxu0 0.0
      %6732 = vmatprep.subr.mxu0 0.0
      %6733 = vmatpush1.msra.mxu0 0.0
      %6734 = vmatprep.subr.mxu0 0.0
      %6735 = vmatpush1.msra.mxu0 0.0
      %6736 = vmatprep.subr.mxu0 0.0
      %6737 = vmatpush1.msra.mxu0 0.0
      %6738 = vmatprep.subr.mxu0 0.0
      %6739 = vmatpush1.msra.mxu0 0.0
      %6740 = vmatprep.subr.mxu0 0.0
      %6741 = vmatpush1.msra.mxu0 0.0
      %6742 = vmatprep.subr.mxu0 0.0
      %6743 = vmatpush1.msra.mxu0 0.0
      %6744 = vmatprep.subr.mxu0 0.0
      %6745 = vmatpush1.msra.mxu0 0.0
      %6746 = vmatprep.subr.mxu0 0.0
      %6747 = vmatpush1.msra.mxu0 0.0
      %6748 = vmatprep.subr.mxu0 0.0
      %6749 = vmatpush1.msra.mxu0 0.0
      %6750 = vmatprep.subr.mxu0 0.0
      %6751 = vmatpush1.msra.mxu0 0.0
      %6752 = vmatprep.subr.mxu0 0.0
      %6753 = vmatpush1.msra.mxu0 0.0
      %6754 = vmatprep.subr.mxu0 0.0
      %6755 = vmatpush1.msra.mxu0 0.0
      %6756 = vmatprep.subr.mxu0 0.0
      %6757 = vmatpush1.msra.mxu0 0.0
      %6758 = vmatprep.subr.mxu0 0.0
      %6759 = vmatpush1.msra.mxu0 0.0
      %6760 = vmatprep.subr.mxu0 0.0
      %6761 = vmatpush1.msra.mxu0 0.0
      %6762 = vmatprep.subr.mxu0 0.0
      %6763 = vmatpush1.msra.mxu0 0.0
      %6764 = vmatprep.subr.mxu0 0.0
      %6765 = vmatpush1.msra.mxu0 0.0
      %6766 = vmatprep.subr.mxu0 0.0
      %6767 = vmatpush1.msra.mxu0 0.0
      %6768 = vmatprep.subr.mxu0 0.0
      %6769 = vmatpush1.msra.mxu0 0.0
      %6770 = vmatprep.subr.mxu0 0.0
      %6771 = vmatpush1.msra.mxu0 0.0
      %6772 = vmatprep.subr.mxu0 0.0
      %6773 = vmatpush1.msra.mxu0 0.0
      %6774 = vmatprep.subr.mxu0 0.0
      %6775 = vmatpush1.msra.mxu0 0.0
      %6776 = vmatprep.subr.mxu0 0.0
      %6777 = vmatpush1.msra.mxu0 0.0
      %6778 = vmatprep.subr.mxu0 0.0
      %6779 = vmatpush1.msra.mxu0 0.0
      %6780 = vmatprep.subr.mxu0 0.0
      %6781 = vmatpush1.msra.mxu0 0.0
      %6782 = vmatprep.subr.mxu0 0.0
      %6783 = vmatpush1.msra.mxu0 0.0
      %6784 = vmatprep.mubr.f32.mxu0 0.0
      %6785 = vmatmul.mubr.f32.gmra.mrb[0].mxu0 %v6718
      %v6786 = vpop.f32.mrb[0].mxu0
      %v6787 = vadd.f32 0.0, %v6786
      %v6788 = vpop.f32.mrb[0].mxu0
      %6789 = vdwg.mxu0
      %6790 = vrot.lane.b32.xlu0 %v1204, 64
      %v6791 = vpop.permute.xlu0 %6790
      %v6794 = vsel %vm4233, %v4583, 0
      %6796 = vmatprep.subr.mxu0 0.0
      %6797 = vmatpush1.msra.mxu0 %v6791
      %6798 = vmatprep.subr.mxu0 0.0
      %6799 = vmatpush1.msra.mxu0 0.0
      %6800 = vmatprep.subr.mxu0 0.0
      %6801 = vmatpush1.msra.mxu0 0.0
      %6802 = vmatprep.subr.mxu0 0.0
      %6803 = vmatpush1.msra.mxu0 0.0
      %6804 = vmatprep.subr.mxu0 0.0
      %6805 = vmatpush1.msra.mxu0 0.0
      %6806 = vmatprep.subr.mxu0 0.0
      %6807 = vmatpush1.msra.mxu0 0.0
      %6808 = vmatprep.subr.mxu0 0.0
      %6809 = vmatpush1.msra.mxu0 0.0
      %6810 = vmatprep.subr.mxu0 0.0
      %6811 = vmatpush1.msra.mxu0 0.0
      %6812 = vmatprep.subr.mxu0 0.0
      %6813 = vmatpush1.msra.mxu0 0.0
      %6814 = vmatprep.subr.mxu0 0.0
      %6815 = vmatpush1.msra.mxu0 0.0
      %6816 = vmatprep.subr.mxu0 0.0
      %6817 = vmatpush1.msra.mxu0 0.0
      %6818 = vmatprep.subr.mxu0 0.0
      %6819 = vmatpush1.msra.mxu0 0.0
      %6820 = vmatprep.subr.mxu0 0.0
      %6821 = vmatpush1.msra.mxu0 0.0
      %6822 = vmatprep.subr.mxu0 0.0
      %6823 = vmatpush1.msra.mxu0 0.0
      %6824 = vmatprep.subr.mxu0 0.0
      %6825 = vmatpush1.msra.mxu0 0.0
      %6826 = vmatprep.subr.mxu0 0.0
      %6827 = vmatpush1.msra.mxu0 0.0
      %6828 = vmatprep.subr.mxu0 0.0
      %6829 = vmatpush1.msra.mxu0 0.0
      %6830 = vmatprep.subr.mxu0 0.0
      %6831 = vmatpush1.msra.mxu0 0.0
      %6832 = vmatprep.subr.mxu0 0.0
      %6833 = vmatpush1.msra.mxu0 0.0
      %6834 = vmatprep.subr.mxu0 0.0
      %6835 = vmatpush1.msra.mxu0 0.0
      %6836 = vmatprep.subr.mxu0 0.0
      %6837 = vmatpush1.msra.mxu0 0.0
      %6838 = vmatprep.subr.mxu0 0.0
      %6839 = vmatpush1.msra.mxu0 0.0
      %6840 = vmatprep.subr.mxu0 0.0
      %6841 = vmatpush1.msra.mxu0 0.0
      %6842 = vmatprep.subr.mxu0 0.0
      %6843 = vmatpush1.msra.mxu0 0.0
      %6844 = vmatprep.subr.mxu0 0.0
      %6845 = vmatpush1.msra.mxu0 0.0
      %6846 = vmatprep.subr.mxu0 0.0
      %6847 = vmatpush1.msra.mxu0 0.0
      %6848 = vmatprep.subr.mxu0 0.0
      %6849 = vmatpush1.msra.mxu0 0.0
      %6850 = vmatprep.subr.mxu0 0.0
      %6851 = vmatpush1.msra.mxu0 0.0
      %6852 = vmatprep.subr.mxu0 0.0
      %6853 = vmatpush1.msra.mxu0 0.0
      %6854 = vmatprep.subr.mxu0 0.0
      %6855 = vmatpush1.msra.mxu0 0.0
      %6856 = vmatprep.subr.mxu0 0.0
      %6857 = vmatpush1.msra.mxu0 0.0
      %6858 = vmatprep.subr.mxu0 0.0
      %6859 = vmatpush1.msra.mxu0 0.0
      %6860 = vmatprep.mubr.f32.mxu0 0.0
      %6861 = vmatmul.mubr.f32.gmra.mrb[0].mxu0 %v6794
      %v6862 = vpop.f32.mrb[0].mxu0
      %v6863 = vadd.f32 0.0, %v6862
      %v6864 = vpop.f32.mrb[0].mxu0
      %6865 = vdwg.mxu0
      %6866 = vrot.lane.b32.xlu0 %v1209, 64
      %v6867 = vpop.permute.xlu0 %6866
      %v6870 = vsel %vm4233, %v4584, 0
      %6872 = vmatprep.subr.mxu0 0.0
      %6873 = vmatpush1.msra.mxu0 %v6867
      %6874 = vmatprep.subr.mxu0 0.0
      %6875 = vmatpush1.msra.mxu0 0.0
      %6876 = vmatprep.subr.mxu0 0.0
      %6877 = vmatpush1.msra.mxu0 0.0
      %6878 = vmatprep.subr.mxu0 0.0
      %6879 = vmatpush1.msra.mxu0 0.0
      %6880 = vmatprep.subr.mxu0 0.0
      %6881 = vmatpush1.msra.mxu0 0.0
      %6882 = vmatprep.subr.mxu0 0.0
      %6883 = vmatpush1.msra.mxu0 0.0
      %6884 = vmatprep.subr.mxu0 0.0
      %6885 = vmatpush1.msra.mxu0 0.0
      %6886 = vmatprep.subr.mxu0 0.0
      %6887 = vmatpush1.msra.mxu0 0.0
      %6888 = vmatprep.subr.mxu0 0.0
      %6889 = vmatpush1.msra.mxu0 0.0
      %6890 = vmatprep.subr.mxu0 0.0
      %6891 = vmatpush1.msra.mxu0 0.0
      %6892 = vmatprep.subr.mxu0 0.0
      %6893 = vmatpush1.msra.mxu0 0.0
      %6894 = vmatprep.subr.mxu0 0.0
      %6895 = vmatpush1.msra.mxu0 0.0
      %6896 = vmatprep.subr.mxu0 0.0
      %6897 = vmatpush1.msra.mxu0 0.0
      %6898 = vmatprep.subr.mxu0 0.0
      %6899 = vmatpush1.msra.mxu0 0.0
      %6900 = vmatprep.subr.mxu0 0.0
      %6901 = vmatpush1.msra.mxu0 0.0
      %6902 = vmatprep.subr.mxu0 0.0
      %6903 = vmatpush1.msra.mxu0 0.0
      %6904 = vmatprep.subr.mxu0 0.0
      %6905 = vmatpush1.msra.mxu0 0.0
      %6906 = vmatprep.subr.mxu0 0.0
      %6907 = vmatpush1.msra.mxu0 0.0
      %6908 = vmatprep.subr.mxu0 0.0
      %6909 = vmatpush1.msra.mxu0 0.0
      %6910 = vmatprep.subr.mxu0 0.0
      %6911 = vmatpush1.msra.mxu0 0.0
      %6912 = vmatprep.subr.mxu0 0.0
      %6913 = vmatpush1.msra.mxu0 0.0
      %6914 = vmatprep.subr.mxu0 0.0
      %6915 = vmatpush1.msra.mxu0 0.0
      %6916 = vmatprep.subr.mxu0 0.0
      %6917 = vmatpush1.msra.mxu0 0.0
      %6918 = vmatprep.subr.mxu0 0.0
      %6919 = vmatpush1.msra.mxu0 0.0
      %6920 = vmatprep.subr.mxu0 0.0
      %6921 = vmatpush1.msra.mxu0 0.0
      %6922 = vmatprep.subr.mxu0 0.0
      %6923 = vmatpush1.msra.mxu0 0.0
      %6924 = vmatprep.subr.mxu0 0.0
      %6925 = vmatpush1.msra.mxu0 0.0
      %6926 = vmatprep.subr.mxu0 0.0
      %6927 = vmatpush1.msra.mxu0 0.0
      %6928 = vmatprep.subr.mxu0 0.0
      %6929 = vmatpush1.msra.mxu0 0.0
      %6930 = vmatprep.subr.mxu0 0.0
      %6931 = vmatpush1.msra.mxu0 0.0
      %6932 = vmatprep.subr.mxu0 0.0
      %6933 = vmatpush1.msra.mxu0 0.0
      %6934 = vmatprep.subr.mxu0 0.0
      %6935 = vmatpush1.msra.mxu0 0.0
      %6936 = vmatprep.mubr.f32.mxu0 0.0
      %6937 = vmatmul.mubr.f32.gmra.mrb[0].mxu0 %v6870
      %v6938 = vpop.f32.mrb[0].mxu0
      %v6939 = vadd.f32 0.0, %v6938
      %v6940 = vpop.f32.mrb[0].mxu0
      %6941 = vdwg.mxu0
      %6942 = vrot.lane.b32.xlu0 %v1214, 64
      %v6943 = vpop.permute.xlu0 %6942
      %v6946 = vsel %vm4233, %v4585, 0
      %6948 = vmatprep.subr.mxu0 0.0
      %6949 = vmatpush1.msra.mxu0 %v6943
      %6950 = vmatprep.subr.mxu0 0.0
      %6951 = vmatpush1.msra.mxu0 0.0
      %6952 = vmatprep.subr.mxu0 0.0
      %6953 = vmatpush1.msra.mxu0 0.0
      %6954 = vmatprep.subr.mxu0 0.0
      %6955 = vmatpush1.msra.mxu0 0.0
      %6956 = vmatprep.subr.mxu0 0.0
      %6957 = vmatpush1.msra.mxu0 0.0
      %6958 = vmatprep.subr.mxu0 0.0
      %6959 = vmatpush1.msra.mxu0 0.0
      %6960 = vmatprep.subr.mxu0 0.0
      %6961 = vmatpush1.msra.mxu0 0.0
      %6962 = vmatprep.subr.mxu0 0.0
      %6963 = vmatpush1.msra.mxu0 0.0
      %6964 = vmatprep.subr.mxu0 0.0
      %6965 = vmatpush1.msra.mxu0 0.0
      %6966 = vmatprep.subr.mxu0 0.0
      %6967 = vmatpush1.msra.mxu0 0.0
      %6968 = vmatprep.subr.mxu0 0.0
      %6969 = vmatpush1.msra.mxu0 0.0
      %6970 = vmatprep.subr.mxu0 0.0
      %6971 = vmatpush1.msra.mxu0 0.0
      %6972 = vmatprep.subr.mxu0 0.0
      %6973 = vmatpush1.msra.mxu0 0.0
      %6974 = vmatprep.subr.mxu0 0.0
      %6975 = vmatpush1.msra.mxu0 0.0
      %6976 = vmatprep.subr.mxu0 0.0
      %6977 = vmatpush1.msra.mxu0 0.0
      %6978 = vmatprep.subr.mxu0 0.0
      %6979 = vmatpush1.msra.mxu0 0.0
      %6980 = vmatprep.subr.mxu0 0.0
      %6981 = vmatpush1.msra.mxu0 0.0
      %6982 = vmatprep.subr.mxu0 0.0
      %6983 = vmatpush1.msra.mxu0 0.0
      %6984 = vmatprep.subr.mxu0 0.0
      %6985 = vmatpush1.msra.mxu0 0.0
      %6986 = vmatprep.subr.mxu0 0.0
      %6987 = vmatpush1.msra.mxu0 0.0
      %6988 = vmatprep.subr.mxu0 0.0
      %6989 = vmatpush1.msra.mxu0 0.0
      %6990 = vmatprep.subr.mxu0 0.0
      %6991 = vmatpush1.msra.mxu0 0.0
      %6992 = vmatprep.subr.mxu0 0.0
      %6993 = vmatpush1.msra.mxu0 0.0
      %6994 = vmatprep.subr.mxu0 0.0
      %6995 = vmatpush1.msra.mxu0 0.0
      %6996 = vmatprep.subr.mxu0 0.0
      %6997 = vmatpush1.msra.mxu0 0.0
      %6998 = vmatprep.subr.mxu0 0.0
      %6999 = vmatpush1.msra.mxu0 0.0
      %7000 = vmatprep.subr.mxu0 0.0
      %7001 = vmatpush1.msra.mxu0 0.0
      %7002 = vmatprep.subr.mxu0 0.0
      %7003 = vmatpush1.msra.mxu0 0.0
      %7004 = vmatprep.subr.mxu0 0.0
      %7005 = vmatpush1.msra.mxu0 0.0
      %7006 = vmatprep.subr.mxu0 0.0
      %7007 = vmatpush1.msra.mxu0 0.0
      %7008 = vmatprep.subr.mxu0 0.0
      %7009 = vmatpush1.msra.mxu0 0.0
      %7010 = vmatprep.subr.mxu0 0.0
      %7011 = vmatpush1.msra.mxu0 0.0
      %7012 = vmatprep.mubr.f32.mxu0 0.0
      %7013 = vmatmul.mubr.f32.gmra.mrb[0].mxu0 %v6946
      %v7014 = vpop.f32.mrb[0].mxu0
      %v7015 = vadd.f32 0.0, %v7014
      %v7016 = vpop.f32.mrb[0].mxu0
      %7017 = vdwg.mxu0
      %v7018 = vld [vmem:[%s4] sm:$0xff]
      %v7019 = vld [vmem:[%s4 + $0x8] sm:$0xff]
      %v7020 = vld [vmem:[%s4 + $0x10] sm:$0xff]
      %v7021 = vld [vmem:[%s4 + $0x18] sm:$0xff]
      %v7022 = vlaneseq
      %v7023 = vshrl.u32 %v7022, 7
      %v7024 = vsub.s32 2, %v7023
      %v7025 = vrot.slane %v394, %v7024
      %v7027 = vsel %vm395, %v4659, 0
      %v7030 = vsel %vm395, %v4735, 0
      %v7033 = vsel %vm395, %v4811, 0
      %v7036 = vsel %vm395, %v4887, 0
      %v7039 = vsel %vm395, %v4963, 0
      %v7042 = vsel %vm395, %v5039, 0
      %v7045 = vsel %vm395, %v5115, 0
      %v7048 = vsel %vm395, %v5191, 0
      %v7051 = vsel %vm395, %v5267, 0
      %v7054 = vsel %vm395, %v5343, 0
      %v7057 = vsel %vm395, %v5419, 0
      %v7060 = vsel %vm395, %v5495, 0
      %v7063 = vsel %vm395, %v5571, 0
      %v7066 = vsel %vm395, %v5647, 0
      %v7069 = vsel %vm395, %v5723, 0
      %v7072 = vsel %vm395, %v5799, 0
      %v7075 = vsel %vm395, %v5875, 0
      %v7078 = vsel %vm395, %v5951, 0
      %v7081 = vsel %vm395, %v6027, 0
      %v7084 = vsel %vm395, %v6103, 0
      %v7087 = vsel %vm395, %v6179, 0
      %v7090 = vsel %vm395, %v6255, 0
      %v7093 = vsel %vm395, %v6331, 0
      %v7096 = vsel %vm395, %v6407, 0
      %v7099 = vsel %vm395, %v6483, 0
      %v7102 = vsel %vm395, %v6559, 0
      %v7105 = vsel %vm395, %v6635, 0
      %v7108 = vsel %vm395, %v6711, 0
      %v7111 = vsel %vm395, %v6787, 0
      %v7114 = vsel %vm395, %v6863, 0
      %v7117 = vsel %vm395, %v6939, 0
      %v7120 = vsel %vm395, %v7015, 0
      %7122 = vmatprep.subr.mxu0 0.0
      %7123 = vmatpush1.msra.mxu0 %v7018
      %7124 = vmatprep.subr.mxu0 0.0
      %7125 = vmatpush1.msra.mxu0 %v7019
      %7126 = vmatprep.subr.mxu0 0.0
      %7127 = vmatpush1.msra.mxu0 %v7020
      %7128 = vmatprep.subr.mxu0 0.0
      %7129 = vmatpush1.msra.mxu0 %v7021
      %7130 = vmatprep.subr.mxu0 0.0
      %7131 = vmatpush1.msra.mxu0 0.0
      %7132 = vmatprep.subr.mxu0 0.0
      %7133 = vmatpush1.msra.mxu0 0.0
      %7134 = vmatprep.subr.mxu0 0.0
      %7135 = vmatpush1.msra.mxu0 0.0
      %7136 = vmatprep.subr.mxu0 0.0
      %7137 = vmatpush1.msra.mxu0 0.0
      %7138 = vmatprep.subr.mxu0 0.0
      %7139 = vmatpush1.msra.mxu0 0.0
      %7140 = vmatprep.subr.mxu0 0.0
      %7141 = vmatpush1.msra.mxu0 0.0
      %7142 = vmatprep.subr.mxu0 0.0
      %7143 = vmatpush1.msra.mxu0 0.0
      %7144 = vmatprep.subr.mxu0 0.0
      %7145 = vmatpush1.msra.mxu0 0.0
      %7146 = vmatprep.subr.mxu0 0.0
      %7147 = vmatpush1.msra.mxu0 0.0
      %7148 = vmatprep.subr.mxu0 0.0
      %7149 = vmatpush1.msra.mxu0 0.0
      %7150 = vmatprep.subr.mxu0 0.0
      %7151 = vmatpush1.msra.mxu0 0.0
      %7152 = vmatprep.subr.mxu0 0.0
      %7153 = vmatpush1.msra.mxu0 0.0
      %7154 = vmatprep.subr.mxu0 0.0
      %7155 = vmatpush1.msra.mxu0 0.0
      %7156 = vmatprep.subr.mxu0 0.0
      %7157 = vmatpush1.msra.mxu0 0.0
      %7158 = vmatprep.subr.mxu0 0.0
      %7159 = vmatpush1.msra.mxu0 0.0
      %7160 = vmatprep.subr.mxu0 0.0
      %7161 = vmatpush1.msra.mxu0 0.0
      %7162 = vmatprep.subr.mxu0 0.0
      %7163 = vmatpush1.msra.mxu0 0.0
      %7164 = vmatprep.subr.mxu0 0.0
      %7165 = vmatpush1.msra.mxu0 0.0
      %7166 = vmatprep.subr.mxu0 0.0
      %7167 = vmatpush1.msra.mxu0 0.0
      %7168 = vmatprep.subr.mxu0 0.0
      %7169 = vmatpush1.msra.mxu0 0.0
      %7170 = vmatprep.subr.mxu0 0.0
      %7171 = vmatpush1.msra.mxu0 0.0
      %7172 = vmatprep.subr.mxu0 0.0
      %7173 = vmatpush1.msra.mxu0 0.0
      %7174 = vmatprep.subr.mxu0 0.0
      %7175 = vmatpush1.msra.mxu0 0.0
      %7176 = vmatprep.subr.mxu0 0.0
      %7177 = vmatpush1.msra.mxu0 0.0
      %7178 = vmatprep.subr.mxu0 0.0
      %7179 = vmatpush1.msra.mxu0 0.0
      %7180 = vmatprep.subr.mxu0 0.0
      %7181 = vmatpush1.msra.mxu0 0.0
      %7182 = vmatprep.subr.mxu0 0.0
      %7183 = vmatpush1.msra.mxu0 0.0
      %7184 = vmatprep.subr.mxu0 0.0
      %7185 = vmatpush1.msra.mxu0 0.0
      %7186 = vmatprep.mubr.f32.mxu0 0.0
      %7187 = vmatmul.mubr.f32.gmra.mrb[0].mxu0 %v7027
      %v7188 = vpop.f32.mrb[0].mxu0
      %v7189 = vadd.f32 %v7025, %v7188
      %v7190 = vpop.f32.mrb[0].mxu0
      %7191 = vmatprep.mubr.f32.mxu0 0.0
      %7192 = vmatmul.mubr.f32.gmra.mrb[0].mxu0 %v7030
      %v7193 = vpop.f32.mrb[0].mxu0
      %v7194 = vadd.f32 %v7025, %v7193
      %v7195 = vpop.f32.mrb[0].mxu0
      %7196 = vmatprep.mubr.f32.mxu0 0.0
      %7197 = vmatmul.mubr.f32.gmra.mrb[0].mxu0 %v7033
      %v7198 = vpop.f32.mrb[0].mxu0
      %v7199 = vadd.f32 %v7025, %v7198
      %v7200 = vpop.f32.mrb[0].mxu0
      %7201 = vmatprep.mubr.f32.mxu0 0.0
      %7202 = vmatmul.mubr.f32.gmra.mrb[0].mxu0 %v7036
      %v7203 = vpop.f32.mrb[0].mxu0
      %v7204 = vadd.f32 %v7025, %v7203
      %v7205 = vpop.f32.mrb[0].mxu0
      %7206 = vmatprep.mubr.f32.mxu0 0.0
      %7207 = vmatmul.mubr.f32.gmra.mrb[0].mxu0 %v7039
      %v7208 = vpop.f32.mrb[0].mxu0
      %v7209 = vadd.f32 %v7025, %v7208
      %v7210 = vpop.f32.mrb[0].mxu0
      %7211 = vmatprep.mubr.f32.mxu0 0.0
      %7212 = vmatmul.mubr.f32.gmra.mrb[0].mxu0 %v7042
      %v7213 = vpop.f32.mrb[0].mxu0
      %v7214 = vadd.f32 %v7025, %v7213
      %v7215 = vpop.f32.mrb[0].mxu0
      %7216 = vmatprep.mubr.f32.mxu0 0.0
      %7217 = vmatmul.mubr.f32.gmra.mrb[0].mxu0 %v7045
      %v7218 = vpop.f32.mrb[0].mxu0
      %v7219 = vadd.f32 %v7025, %v7218
      %v7220 = vpop.f32.mrb[0].mxu0
      %7221 = vmatprep.mubr.f32.mxu0 0.0
      %7222 = vmatmul.mubr.f32.gmra.mrb[0].mxu0 %v7048
      %v7223 = vpop.f32.mrb[0].mxu0
      %v7224 = vadd.f32 %v7025, %v7223
      %v7225 = vpop.f32.mrb[0].mxu0
      %7226 = vmatprep.mubr.f32.mxu0 0.0
      %7227 = vmatmul.mubr.f32.gmra.mrb[0].mxu0 %v7051
      %v7228 = vpop.f32.mrb[0].mxu0
      %v7229 = vadd.f32 %v7025, %v7228
      %v7230 = vpop.f32.mrb[0].mxu0
      %7231 = vmatprep.mubr.f32.mxu0 0.0
      %7232 = vmatmul.mubr.f32.gmra.mrb[0].mxu0 %v7054
      %v7233 = vpop.f32.mrb[0].mxu0
      %v7234 = vadd.f32 %v7025, %v7233
      %v7235 = vpop.f32.mrb[0].mxu0
      %7236 = vmatprep.mubr.f32.mxu0 0.0
      %7237 = vmatmul.mubr.f32.gmra.mrb[0].mxu0 %v7057
      %v7238 = vpop.f32.mrb[0].mxu0
      %v7239 = vadd.f32 %v7025, %v7238
      %v7240 = vpop.f32.mrb[0].mxu0
      %7241 = vmatprep.mubr.f32.mxu0 0.0
      %7242 = vmatmul.mubr.f32.gmra.mrb[0].mxu0 %v7060
      %v7243 = vpop.f32.mrb[0].mxu0
      %v7244 = vadd.f32 %v7025, %v7243
      %v7245 = vpop.f32.mrb[0].mxu0
      %7246 = vmatprep.mubr.f32.mxu0 0.0
      %7247 = vmatmul.mubr.f32.gmra.mrb[0].mxu0 %v7063
      %v7248 = vpop.f32.mrb[0].mxu0
      %v7249 = vadd.f32 %v7025, %v7248
      %v7250 = vpop.f32.mrb[0].mxu0
      %7251 = vmatprep.mubr.f32.mxu0 0.0
      %7252 = vmatmul.mubr.f32.gmra.mrb[0].mxu0 %v7066
      %v7253 = vpop.f32.mrb[0].mxu0
      %v7254 = vadd.f32 %v7025, %v7253
      %v7255 = vpop.f32.mrb[0].mxu0
      %7256 = vmatprep.mubr.f32.mxu0 0.0
      %7257 = vmatmul.mubr.f32.gmra.mrb[0].mxu0 %v7069
      %v7258 = vpop.f32.mrb[0].mxu0
      %v7259 = vadd.f32 %v7025, %v7258
      %v7260 = vpop.f32.mrb[0].mxu0
      %7261 = vmatprep.mubr.f32.mxu0 0.0
      %7262 = vmatmul.mubr.f32.gmra.mrb[0].mxu0 %v7072
      %v7263 = vpop.f32.mrb[0].mxu0
      %v7264 = vadd.f32 %v7025, %v7263
      %v7265 = vpop.f32.mrb[0].mxu0
      %7266 = vmatprep.mubr.f32.mxu0 0.0
      %7267 = vmatmul.mubr.f32.gmra.mrb[0].mxu0 %v7075
      %v7268 = vpop.f32.mrb[0].mxu0
      %v7269 = vadd.f32 %v7025, %v7268
      %v7270 = vpop.f32.mrb[0].mxu0
      %7271 = vmatprep.mubr.f32.mxu0 0.0
      %7272 = vmatmul.mubr.f32.gmra.mrb[0].mxu0 %v7078
      %v7273 = vpop.f32.mrb[0].mxu0
      %v7274 = vadd.f32 %v7025, %v7273
      %v7275 = vpop.f32.mrb[0].mxu0
      %7276 = vmatprep.mubr.f32.mxu0 0.0
      %7277 = vmatmul.mubr.f32.gmra.mrb[0].mxu0 %v7081
      %v7278 = vpop.f32.mrb[0].mxu0
      %v7279 = vadd.f32 %v7025, %v7278
      %v7280 = vpop.f32.mrb[0].mxu0
      %7281 = vmatprep.mubr.f32.mxu0 0.0
      %7282 = vmatmul.mubr.f32.gmra.mrb[0].mxu0 %v7084
      %v7283 = vpop.f32.mrb[0].mxu0
      %v7284 = vadd.f32 %v7025, %v7283
      %v7285 = vpop.f32.mrb[0].mxu0
      %7286 = vmatprep.mubr.f32.mxu0 0.0
      %7287 = vmatmul.mubr.f32.gmra.mrb[0].mxu0 %v7087
      %v7288 = vpop.f32.mrb[0].mxu0
      %v7289 = vadd.f32 %v7025, %v7288
      %v7290 = vpop.f32.mrb[0].mxu0
      %7291 = vmatprep.mubr.f32.mxu0 0.0
      %7292 = vmatmul.mubr.f32.gmra.mrb[0].mxu0 %v7090
      %v7293 = vpop.f32.mrb[0].mxu0
      %v7294 = vadd.f32 %v7025, %v7293
      %v7295 = vpop.f32.mrb[0].mxu0
      %7296 = vmatprep.mubr.f32.mxu0 0.0
      %7297 = vmatmul.mubr.f32.gmra.mrb[0].mxu0 %v7093
      %v7298 = vpop.f32.mrb[0].mxu0
      %v7299 = vadd.f32 %v7025, %v7298
      %v7300 = vpop.f32.mrb[0].mxu0
      %7301 = vmatprep.mubr.f32.mxu0 0.0
      %7302 = vmatmul.mubr.f32.gmra.mrb[0].mxu0 %v7096
      %v7303 = vpop.f32.mrb[0].mxu0
      %v7304 = vadd.f32 %v7025, %v7303
      %v7305 = vpop.f32.mrb[0].mxu0
      %7306 = vmatprep.mubr.f32.mxu0 0.0
      %7307 = vmatmul.mubr.f32.gmra.mrb[0].mxu0 %v7099
      %v7308 = vpop.f32.mrb[0].mxu0
      %v7309 = vadd.f32 %v7025, %v7308
      %v7310 = vpop.f32.mrb[0].mxu0
      %7311 = vmatprep.mubr.f32.mxu0 0.0
      %7312 = vmatmul.mubr.f32.gmra.mrb[0].mxu0 %v7102
      %v7313 = vpop.f32.mrb[0].mxu0
      %v7314 = vadd.f32 %v7025, %v7313
      %v7315 = vpop.f32.mrb[0].mxu0
      %7316 = vmatprep.mubr.f32.mxu0 0.0
      %7317 = vmatmul.mubr.f32.gmra.mrb[0].mxu0 %v7105
      %v7318 = vpop.f32.mrb[0].mxu0
      %v7319 = vadd.f32 %v7025, %v7318
      %v7320 = vpop.f32.mrb[0].mxu0
      %7321 = vmatprep.mubr.f32.mxu0 0.0
      %7322 = vmatmul.mubr.f32.gmra.mrb[0].mxu0 %v7108
      %v7323 = vpop.f32.mrb[0].mxu0
      %v7324 = vadd.f32 %v7025, %v7323
      %v7325 = vpop.f32.mrb[0].mxu0
      %7326 = vmatprep.mubr.f32.mxu0 0.0
      %7327 = vmatmul.mubr.f32.gmra.mrb[0].mxu0 %v7111
      %v7328 = vpop.f32.mrb[0].mxu0
      %v7329 = vadd.f32 %v7025, %v7328
      %v7330 = vpop.f32.mrb[0].mxu0
      %7331 = vmatprep.mubr.f32.mxu0 0.0
      %7332 = vmatmul.mubr.f32.gmra.mrb[0].mxu0 %v7114
      %v7333 = vpop.f32.mrb[0].mxu0
      %v7334 = vadd.f32 %v7025, %v7333
      %v7335 = vpop.f32.mrb[0].mxu0
      %7336 = vmatprep.mubr.f32.mxu0 0.0
      %7337 = vmatmul.mubr.f32.gmra.mrb[0].mxu0 %v7117
      %v7338 = vpop.f32.mrb[0].mxu0
      %v7339 = vadd.f32 %v7025, %v7338
      %v7340 = vpop.f32.mrb[0].mxu0
      %7341 = vmatprep.mubr.f32.mxu0 0.0
      %7342 = vmatmul.mubr.f32.gmra.mrb[0].mxu0 %v7120
      %v7343 = vpop.f32.mrb[0].mxu0
      %v7344 = vadd.f32 %v7025, %v7343
      %v7345 = vpop.f32.mrb[0].mxu0
      %7346 = vdwg.mxu0
      %v7347 = vadd.f32 %v853, %v7189
      %v7348 = vadd.f32 %v854, %v7194
      %v7349 = vadd.f32 %v855, %v7199
      %v7350 = vadd.f32 %v856, %v7204
      %v7351 = vadd.f32 %v857, %v7209
      %v7352 = vadd.f32 %v858, %v7214
      %v7353 = vadd.f32 %v859, %v7219
      %v7354 = vadd.f32 %v860, %v7224
      %v7355 = vadd.f32 %v861, %v7229
      %v7356 = vadd.f32 %v862, %v7234
      %v7357 = vadd.f32 %v863, %v7239
      %v7358 = vadd.f32 %v864, %v7244
      %v7359 = vadd.f32 %v865, %v7249
      %v7360 = vadd.f32 %v866, %v7254
      %v7361 = vadd.f32 %v867, %v7259
      %v7362 = vadd.f32 %v868, %v7264
      %v7363 = vadd.f32 %v869, %v7269
      %v7364 = vadd.f32 %v870, %v7274
      %v7365 = vadd.f32 %v871, %v7279
      %v7366 = vadd.f32 %v872, %v7284
      %v7367 = vadd.f32 %v873, %v7289
      %v7368 = vadd.f32 %v874, %v7294
      %v7369 = vadd.f32 %v875, %v7299
      %v7370 = vadd.f32 %v876, %v7304
      %v7371 = vadd.f32 %v877, %v7309
      %v7372 = vadd.f32 %v878, %v7314
      %v7373 = vadd.f32 %v879, %v7319
      %v7374 = vadd.f32 %v880, %v7324
      %v7375 = vadd.f32 %v881, %v7329
      %v7376 = vadd.f32 %v882, %v7334
      %v7377 = vadd.f32 %v883, %v7339
      %v7378 = vadd.f32 %v884, %v7344
      %v7379 = vsel %vm395, %v7347, 0.0
      %7380 = vadd.xlane.f32.xlu0 %v7379
      %v7381 = vpop.xlane.xlu0 %7380
      %v7382 = vsel %vm395, %v7348, 0.0
      %7383 = vadd.xlane.f32.xlu0 %v7382
      %v7384 = vpop.xlane.xlu0 %7383
      %v7385 = vsel %vm395, %v7349, 0.0
      %7386 = vadd.xlane.f32.xlu0 %v7385
      %v7387 = vpop.xlane.xlu0 %7386
      %v7388 = vsel %vm395, %v7350, 0.0
      %7389 = vadd.xlane.f32.xlu0 %v7388
      %v7390 = vpop.xlane.xlu0 %7389
      %v7391 = vsel %vm395, %v7351, 0.0
      %7392 = vadd.xlane.f32.xlu0 %v7391
      %v7393 = vpop.xlane.xlu0 %7392
      %v7394 = vsel %vm395, %v7352, 0.0
      %7395 = vadd.xlane.f32.xlu0 %v7394
      %v7396 = vpop.xlane.xlu0 %7395
      %v7397 = vsel %vm395, %v7353, 0.0
      %7398 = vadd.xlane.f32.xlu0 %v7397
      %v7399 = vpop.xlane.xlu0 %7398
      %v7400 = vsel %vm395, %v7354, 0.0
      %7401 = vadd.xlane.f32.xlu0 %v7400
      %v7402 = vpop.xlane.xlu0 %7401
      %v7403 = vsel %vm395, %v7355, 0.0
      %7404 = vadd.xlane.f32.xlu0 %v7403
      %v7405 = vpop.xlane.xlu0 %7404
      %v7406 = vsel %vm395, %v7356, 0.0
      %7407 = vadd.xlane.f32.xlu0 %v7406
      %v7408 = vpop.xlane.xlu0 %7407
      %v7409 = vsel %vm395, %v7357, 0.0
      %7410 = vadd.xlane.f32.xlu0 %v7409
      %v7411 = vpop.xlane.xlu0 %7410
      %v7412 = vsel %vm395, %v7358, 0.0
      %7413 = vadd.xlane.f32.xlu0 %v7412
      %v7414 = vpop.xlane.xlu0 %7413
      %v7415 = vsel %vm395, %v7359, 0.0
      %7416 = vadd.xlane.f32.xlu0 %v7415
      %v7417 = vpop.xlane.xlu0 %7416
      %v7418 = vsel %vm395, %v7360, 0.0
      %7419 = vadd.xlane.f32.xlu0 %v7418
      %v7420 = vpop.xlane.xlu0 %7419
      %v7421 = vsel %vm395, %v7361, 0.0
      %7422 = vadd.xlane.f32.xlu0 %v7421
      %v7423 = vpop.xlane.xlu0 %7422
      %v7424 = vsel %vm395, %v7362, 0.0
      %7425 = vadd.xlane.f32.xlu0 %v7424
      %v7426 = vpop.xlane.xlu0 %7425
      %v7427 = vsel %vm395, %v7363, 0.0
      %7428 = vadd.xlane.f32.xlu0 %v7427
      %v7429 = vpop.xlane.xlu0 %7428
      %v7430 = vsel %vm395, %v7364, 0.0
      %7431 = vadd.xlane.f32.xlu0 %v7430
      %v7432 = vpop.xlane.xlu0 %7431
      %v7433 = vsel %vm395, %v7365, 0.0
      %7434 = vadd.xlane.f32.xlu0 %v7433
      %v7435 = vpop.xlane.xlu0 %7434
      %v7436 = vsel %vm395, %v7366, 0.0
      %7437 = vadd.xlane.f32.xlu0 %v7436
      %v7438 = vpop.xlane.xlu0 %7437
      %v7439 = vsel %vm395, %v7367, 0.0
      %7440 = vadd.xlane.f32.xlu0 %v7439
      %v7441 = vpop.xlane.xlu0 %7440
      %v7442 = vsel %vm395, %v7368, 0.0
      %7443 = vadd.xlane.f32.xlu0 %v7442
      %v7444 = vpop.xlane.xlu0 %7443
      %v7445 = vsel %vm395, %v7369, 0.0
      %7446 = vadd.xlane.f32.xlu0 %v7445
      %v7447 = vpop.xlane.xlu0 %7446
      %v7448 = vsel %vm395, %v7370, 0.0
      %7449 = vadd.xlane.f32.xlu0 %v7448
      %v7450 = vpop.xlane.xlu0 %7449
      %v7451 = vsel %vm395, %v7371, 0.0
      %7452 = vadd.xlane.f32.xlu0 %v7451
      %v7453 = vpop.xlane.xlu0 %7452
      %v7454 = vsel %vm395, %v7372, 0.0
      %7455 = vadd.xlane.f32.xlu0 %v7454
      %v7456 = vpop.xlane.xlu0 %7455
      %v7457 = vsel %vm395, %v7373, 0.0
      %7458 = vadd.xlane.f32.xlu0 %v7457
      %v7459 = vpop.xlane.xlu0 %7458
      %v7460 = vsel %vm395, %v7374, 0.0
      %7461 = vadd.xlane.f32.xlu0 %v7460
      %v7462 = vpop.xlane.xlu0 %7461
      %v7463 = vsel %vm395, %v7375, 0.0
      %7464 = vadd.xlane.f32.xlu0 %v7463
      %v7465 = vpop.xlane.xlu0 %7464
      %v7466 = vsel %vm395, %v7376, 0.0
      %7467 = vadd.xlane.f32.xlu0 %v7466
      %v7468 = vpop.xlane.xlu0 %7467
      %v7469 = vsel %vm395, %v7377, 0.0
      %7470 = vadd.xlane.f32.xlu0 %v7469
      %v7471 = vpop.xlane.xlu0 %7470
      %v7472 = vsel %vm395, %v7378, 0.0
      %7473 = vadd.xlane.f32.xlu0 %v7472
      %v7474 = vpop.xlane.xlu0 %7473
      %v7475 = vmul.f32 %v7381, %v492
      %v7476 = vmul.f32 %v7384, %v492
      %v7477 = vmul.f32 %v7387, %v492
      %v7478 = vmul.f32 %v7390, %v492
      %v7479 = vmul.f32 %v7393, %v492
      %v7480 = vmul.f32 %v7396, %v492
      %v7481 = vmul.f32 %v7399, %v492
      %v7482 = vmul.f32 %v7402, %v492
      %v7483 = vmul.f32 %v7405, %v492
      %v7484 = vmul.f32 %v7408, %v492
      %v7485 = vmul.f32 %v7411, %v492
      %v7486 = vmul.f32 %v7414, %v492
      %v7487 = vmul.f32 %v7417, %v492
      %v7488 = vmul.f32 %v7420, %v492
      %v7489 = vmul.f32 %v7423, %v492
      %v7490 = vmul.f32 %v7426, %v492
      %v7491 = vmul.f32 %v7429, %v492
      %v7492 = vmul.f32 %v7432, %v492
      %v7493 = vmul.f32 %v7435, %v492
      %v7494 = vmul.f32 %v7438, %v492
      %v7495 = vmul.f32 %v7441, %v492
      %v7496 = vmul.f32 %v7444, %v492
      %v7497 = vmul.f32 %v7447, %v492
      %v7498 = vmul.f32 %v7450, %v492
      %v7499 = vmul.f32 %v7453, %v492
      %v7500 = vmul.f32 %v7456, %v492
      %v7501 = vmul.f32 %v7459, %v492
      %v7502 = vmul.f32 %v7462, %v492
      %v7503 = vmul.f32 %v7465, %v492
      %v7504 = vmul.f32 %v7468, %v492
      %v7505 = vmul.f32 %v7471, %v492
      %v7506 = vmul.f32 %v7474, %v492
      %v7507 = vsub.f32 %v7347, %v7475
      %v7508 = vsub.f32 %v7348, %v7476
      %v7509 = vsub.f32 %v7349, %v7477
      %v7510 = vsub.f32 %v7350, %v7478
      %v7511 = vsub.f32 %v7351, %v7479
      %v7512 = vsub.f32 %v7352, %v7480
      %v7513 = vsub.f32 %v7353, %v7481
      %v7514 = vsub.f32 %v7354, %v7482
      %v7515 = vsub.f32 %v7355, %v7483
      %v7516 = vsub.f32 %v7356, %v7484
      %v7517 = vsub.f32 %v7357, %v7485
      %v7518 = vsub.f32 %v7358, %v7486
      %v7519 = vsub.f32 %v7359, %v7487
      %v7520 = vsub.f32 %v7360, %v7488
      %v7521 = vsub.f32 %v7361, %v7489
      %v7522 = vsub.f32 %v7362, %v7490
      %v7523 = vsub.f32 %v7363, %v7491
      %v7524 = vsub.f32 %v7364, %v7492
      %v7525 = vsub.f32 %v7365, %v7493
      %v7526 = vsub.f32 %v7366, %v7494
      %v7527 = vsub.f32 %v7367, %v7495
      %v7528 = vsub.f32 %v7368, %v7496
      %v7529 = vsub.f32 %v7369, %v7497
      %v7530 = vsub.f32 %v7370, %v7498
      %v7531 = vsub.f32 %v7371, %v7499
      %v7532 = vsub.f32 %v7372, %v7500
      %v7533 = vsub.f32 %v7373, %v7501
      %v7534 = vsub.f32 %v7374, %v7502
      %v7535 = vsub.f32 %v7375, %v7503
      %v7536 = vsub.f32 %v7376, %v7504
      %v7537 = vsub.f32 %v7377, %v7505
      %v7538 = vsub.f32 %v7378, %v7506
      %v7539 = vmul.f32 %v7507, %v7507
      %v7540 = vmul.f32 %v7508, %v7508
      %v7541 = vmul.f32 %v7509, %v7509
      %v7542 = vmul.f32 %v7510, %v7510
      %v7543 = vmul.f32 %v7511, %v7511
      %v7544 = vmul.f32 %v7512, %v7512
      %v7545 = vmul.f32 %v7513, %v7513
      %v7546 = vmul.f32 %v7514, %v7514
      %v7547 = vmul.f32 %v7515, %v7515
      %v7548 = vmul.f32 %v7516, %v7516
      %v7549 = vmul.f32 %v7517, %v7517
      %v7550 = vmul.f32 %v7518, %v7518
      %v7551 = vmul.f32 %v7519, %v7519
      %v7552 = vmul.f32 %v7520, %v7520
      %v7553 = vmul.f32 %v7521, %v7521
      %v7554 = vmul.f32 %v7522, %v7522
      %v7555 = vmul.f32 %v7523, %v7523
      %v7556 = vmul.f32 %v7524, %v7524
      %v7557 = vmul.f32 %v7525, %v7525
      %v7558 = vmul.f32 %v7526, %v7526
      %v7559 = vmul.f32 %v7527, %v7527
      %v7560 = vmul.f32 %v7528, %v7528
      %v7561 = vmul.f32 %v7529, %v7529
      %v7562 = vmul.f32 %v7530, %v7530
      %v7563 = vmul.f32 %v7531, %v7531
      %v7564 = vmul.f32 %v7532, %v7532
      %v7565 = vmul.f32 %v7533, %v7533
      %v7566 = vmul.f32 %v7534, %v7534
      %v7567 = vmul.f32 %v7535, %v7535
      %v7568 = vmul.f32 %v7536, %v7536
      %v7569 = vmul.f32 %v7537, %v7537
      %v7570 = vmul.f32 %v7538, %v7538
      %v7571 = vsel %vm395, %v7539, 0.0
      %7572 = vadd.xlane.f32.xlu0 %v7571
      %v7573 = vpop.xlane.xlu0 %7572
      %v7574 = vsel %vm395, %v7540, 0.0
      %7575 = vadd.xlane.f32.xlu0 %v7574
      %v7576 = vpop.xlane.xlu0 %7575
      %v7577 = vsel %vm395, %v7541, 0.0
      %7578 = vadd.xlane.f32.xlu0 %v7577
      %v7579 = vpop.xlane.xlu0 %7578
      %v7580 = vsel %vm395, %v7542, 0.0
      %7581 = vadd.xlane.f32.xlu0 %v7580
      %v7582 = vpop.xlane.xlu0 %7581
      %v7583 = vsel %vm395, %v7543, 0.0
      %7584 = vadd.xlane.f32.xlu0 %v7583
      %v7585 = vpop.xlane.xlu0 %7584
      %v7586 = vsel %vm395, %v7544, 0.0
      %7587 = vadd.xlane.f32.xlu0 %v7586
      %v7588 = vpop.xlane.xlu0 %7587
      %v7589 = vsel %vm395, %v7545, 0.0
      %7590 = vadd.xlane.f32.xlu0 %v7589
      %v7591 = vpop.xlane.xlu0 %7590
      %v7592 = vsel %vm395, %v7546, 0.0
      %7593 = vadd.xlane.f32.xlu0 %v7592
      %v7594 = vpop.xlane.xlu0 %7593
      %v7595 = vsel %vm395, %v7547, 0.0
      %7596 = vadd.xlane.f32.xlu0 %v7595
      %v7597 = vpop.xlane.xlu0 %7596
      %v7598 = vsel %vm395, %v7548, 0.0
      %7599 = vadd.xlane.f32.xlu0 %v7598
      %v7600 = vpop.xlane.xlu0 %7599
      %v7601 = vsel %vm395, %v7549, 0.0
      %7602 = vadd.xlane.f32.xlu0 %v7601
      %v7603 = vpop.xlane.xlu0 %7602
      %v7604 = vsel %vm395, %v7550, 0.0
      %7605 = vadd.xlane.f32.xlu0 %v7604
      %v7606 = vpop.xlane.xlu0 %7605
      %v7607 = vsel %vm395, %v7551, 0.0
      %7608 = vadd.xlane.f32.xlu0 %v7607
      %v7609 = vpop.xlane.xlu0 %7608
      %v7610 = vsel %vm395, %v7552, 0.0
      %7611 = vadd.xlane.f32.xlu0 %v7610
      %v7612 = vpop.xlane.xlu0 %7611
      %v7613 = vsel %vm395, %v7553, 0.0
      %7614 = vadd.xlane.f32.xlu0 %v7613
      %v7615 = vpop.xlane.xlu0 %7614
      %v7616 = vsel %vm395, %v7554, 0.0
      %7617 = vadd.xlane.f32.xlu0 %v7616
      %v7618 = vpop.xlane.xlu0 %7617
      %v7619 = vsel %vm395, %v7555, 0.0
      %7620 = vadd.xlane.f32.xlu0 %v7619
      %v7621 = vpop.xlane.xlu0 %7620
      %v7622 = vsel %vm395, %v7556, 0.0
      %7623 = vadd.xlane.f32.xlu0 %v7622
      %v7624 = vpop.xlane.xlu0 %7623
      %v7625 = vsel %vm395, %v7557, 0.0
      %7626 = vadd.xlane.f32.xlu0 %v7625
      %v7627 = vpop.xlane.xlu0 %7626
      %v7628 = vsel %vm395, %v7558, 0.0
      %7629 = vadd.xlane.f32.xlu0 %v7628
      %v7630 = vpop.xlane.xlu0 %7629
      %v7631 = vsel %vm395, %v7559, 0.0
      %7632 = vadd.xlane.f32.xlu0 %v7631
      %v7633 = vpop.xlane.xlu0 %7632
      %v7634 = vsel %vm395, %v7560, 0.0
      %7635 = vadd.xlane.f32.xlu0 %v7634
      %v7636 = vpop.xlane.xlu0 %7635
      %v7637 = vsel %vm395, %v7561, 0.0
      %7638 = vadd.xlane.f32.xlu0 %v7637
      %v7639 = vpop.xlane.xlu0 %7638
      %v7640 = vsel %vm395, %v7562, 0.0
      %7641 = vadd.xlane.f32.xlu0 %v7640
      %v7642 = vpop.xlane.xlu0 %7641
      %v7643 = vsel %vm395, %v7563, 0.0
      %7644 = vadd.xlane.f32.xlu0 %v7643
      %v7645 = vpop.xlane.xlu0 %7644
      %v7646 = vsel %vm395, %v7564, 0.0
      %7647 = vadd.xlane.f32.xlu0 %v7646
      %v7648 = vpop.xlane.xlu0 %7647
      %v7649 = vsel %vm395, %v7565, 0.0
      %7650 = vadd.xlane.f32.xlu0 %v7649
      %v7651 = vpop.xlane.xlu0 %7650
      %v7652 = vsel %vm395, %v7566, 0.0
      %7653 = vadd.xlane.f32.xlu0 %v7652
      %v7654 = vpop.xlane.xlu0 %7653
      %v7655 = vsel %vm395, %v7567, 0.0
      %7656 = vadd.xlane.f32.xlu0 %v7655
      %v7657 = vpop.xlane.xlu0 %7656
      %v7658 = vsel %vm395, %v7568, 0.0
      %7659 = vadd.xlane.f32.xlu0 %v7658
      %v7660 = vpop.xlane.xlu0 %7659
      %v7661 = vsel %vm395, %v7569, 0.0
      %7662 = vadd.xlane.f32.xlu0 %v7661
      %v7663 = vpop.xlane.xlu0 %7662
      %v7664 = vsel %vm395, %v7570, 0.0
      %7665 = vadd.xlane.f32.xlu0 %v7664
      %v7666 = vpop.xlane.xlu0 %7665
      %v7667 = vmul.f32 %v7573, %v492
      %v7668 = vmul.f32 %v7576, %v492
      %v7669 = vmul.f32 %v7579, %v492
      %v7670 = vmul.f32 %v7582, %v492
      %v7671 = vmul.f32 %v7585, %v492
      %v7672 = vmul.f32 %v7588, %v492
      %v7673 = vmul.f32 %v7591, %v492
      %v7674 = vmul.f32 %v7594, %v492
      %v7675 = vmul.f32 %v7597, %v492
      %v7676 = vmul.f32 %v7600, %v492
      %v7677 = vmul.f32 %v7603, %v492
      %v7678 = vmul.f32 %v7606, %v492
      %v7679 = vmul.f32 %v7609, %v492
      %v7680 = vmul.f32 %v7612, %v492
      %v7681 = vmul.f32 %v7615, %v492
      %v7682 = vmul.f32 %v7618, %v492
      %v7683 = vmul.f32 %v7621, %v492
      %v7684 = vmul.f32 %v7624, %v492
      %v7685 = vmul.f32 %v7627, %v492
      %v7686 = vmul.f32 %v7630, %v492
      %v7687 = vmul.f32 %v7633, %v492
      %v7688 = vmul.f32 %v7636, %v492
      %v7689 = vmul.f32 %v7639, %v492
      %v7690 = vmul.f32 %v7642, %v492
      %v7691 = vmul.f32 %v7645, %v492
      %v7692 = vmul.f32 %v7648, %v492
      %v7693 = vmul.f32 %v7651, %v492
      %v7694 = vmul.f32 %v7654, %v492
      %v7695 = vmul.f32 %v7657, %v492
      %v7696 = vmul.f32 %v7660, %v492
      %v7697 = vmul.f32 %v7663, %v492
      %v7698 = vmul.f32 %v7666, %v492
      %v7699 = vadd.f32 %v7667, 1e-12
      %v7700 = vadd.f32 %v7668, 1e-12
      %v7701 = vadd.f32 %v7669, 1e-12
      %v7702 = vadd.f32 %v7670, 1e-12
      %v7703 = vadd.f32 %v7671, 1e-12
      %v7704 = vadd.f32 %v7672, 1e-12
      %v7705 = vadd.f32 %v7673, 1e-12
      %v7706 = vadd.f32 %v7674, 1e-12
      %v7707 = vadd.f32 %v7675, 1e-12
      %v7708 = vadd.f32 %v7676, 1e-12
      %v7709 = vadd.f32 %v7677, 1e-12
      %v7710 = vadd.f32 %v7678, 1e-12
      %v7711 = vadd.f32 %v7679, 1e-12
      %v7712 = vadd.f32 %v7680, 1e-12
      %v7713 = vadd.f32 %v7681, 1e-12
      %v7714 = vadd.f32 %v7682, 1e-12
      %v7715 = vadd.f32 %v7683, 1e-12
      %v7716 = vadd.f32 %v7684, 1e-12
      %v7717 = vadd.f32 %v7685, 1e-12
      %v7718 = vadd.f32 %v7686, 1e-12
      %v7719 = vadd.f32 %v7687, 1e-12
      %v7720 = vadd.f32 %v7688, 1e-12
      %v7721 = vadd.f32 %v7689, 1e-12
      %v7722 = vadd.f32 %v7690, 1e-12
      %v7723 = vadd.f32 %v7691, 1e-12
      %v7724 = vadd.f32 %v7692, 1e-12
      %v7725 = vadd.f32 %v7693, 1e-12
      %v7726 = vadd.f32 %v7694, 1e-12
      %v7727 = vadd.f32 %v7695, 1e-12
      %v7728 = vadd.f32 %v7696, 1e-12
      %v7729 = vadd.f32 %v7697, 1e-12
      %v7730 = vadd.f32 %v7698, 1e-12
      %v7731 = vrsqrt.pop %v7699
      %v7732 = vrsqrt.pop %v7700
      %v7733 = vrsqrt.pop %v7701
      %v7734 = vrsqrt.pop %v7702
      %v7735 = vrsqrt.pop %v7703
      %v7736 = vrsqrt.pop %v7704
      %v7737 = vrsqrt.pop %v7705
      %v7738 = vrsqrt.pop %v7706
      %v7739 = vrsqrt.pop %v7707
      %v7740 = vrsqrt.pop %v7708
      %v7741 = vrsqrt.pop %v7709
      %v7742 = vrsqrt.pop %v7710
      %v7743 = vrsqrt.pop %v7711
      %v7744 = vrsqrt.pop %v7712
      %v7745 = vrsqrt.pop %v7713
      %v7746 = vrsqrt.pop %v7714
      %v7747 = vrsqrt.pop %v7715
      %v7748 = vrsqrt.pop %v7716
      %v7749 = vrsqrt.pop %v7717
      %v7750 = vrsqrt.pop %v7718
      %v7751 = vrsqrt.pop %v7719
      %v7752 = vrsqrt.pop %v7720
      %v7753 = vrsqrt.pop %v7721
      %v7754 = vrsqrt.pop %v7722
      %v7755 = vrsqrt.pop %v7723
      %v7756 = vrsqrt.pop %v7724
      %v7757 = vrsqrt.pop %v7725
      %v7758 = vrsqrt.pop %v7726
      %v7759 = vrsqrt.pop %v7727
      %v7760 = vrsqrt.pop %v7728
      %v7761 = vrsqrt.pop %v7729
      %v7762 = vrsqrt.pop %v7730
      %v7763 = vmul.f32 %v7507, %v7731
      %v7764 = vmul.f32 %v7508, %v7732
      %v7765 = vmul.f32 %v7509, %v7733
      %v7766 = vmul.f32 %v7510, %v7734
      %v7767 = vmul.f32 %v7511, %v7735
      %v7768 = vmul.f32 %v7512, %v7736
      %v7769 = vmul.f32 %v7513, %v7737
      %v7770 = vmul.f32 %v7514, %v7738
      %v7771 = vmul.f32 %v7515, %v7739
      %v7772 = vmul.f32 %v7516, %v7740
      %v7773 = vmul.f32 %v7517, %v7741
      %v7774 = vmul.f32 %v7518, %v7742
      %v7775 = vmul.f32 %v7519, %v7743
      %v7776 = vmul.f32 %v7520, %v7744
      %v7777 = vmul.f32 %v7521, %v7745
      %v7778 = vmul.f32 %v7522, %v7746
      %v7779 = vmul.f32 %v7523, %v7747
      %v7780 = vmul.f32 %v7524, %v7748
      %v7781 = vmul.f32 %v7525, %v7749
      %v7782 = vmul.f32 %v7526, %v7750
      %v7783 = vmul.f32 %v7527, %v7751
      %v7784 = vmul.f32 %v7528, %v7752
      %v7785 = vmul.f32 %v7529, %v7753
      %v7786 = vmul.f32 %v7530, %v7754
      %v7787 = vmul.f32 %v7531, %v7755
      %v7788 = vmul.f32 %v7532, %v7756
      %v7789 = vmul.f32 %v7533, %v7757
      %v7790 = vmul.f32 %v7534, %v7758
      %v7791 = vmul.f32 %v7535, %v7759
      %v7792 = vmul.f32 %v7536, %v7760
      %v7793 = vmul.f32 %v7537, %v7761
      %v7794 = vmul.f32 %v7538, %v7762
      %v7795 = vlaneseq
      %v7796 = vshrl.u32 %v7795, 7
      %v7797 = vsub.s32 3, %v7796
      %v7798 = vrot.slane %v394, %v7797
      %v7799 = vmul.f32 %v7763, %v7798
      %v7800 = vmul.f32 %v7764, %v7798
      %v7801 = vmul.f32 %v7765, %v7798
      %v7802 = vmul.f32 %v7766, %v7798
      %v7803 = vmul.f32 %v7767, %v7798
      %v7804 = vmul.f32 %v7768, %v7798
      %v7805 = vmul.f32 %v7769, %v7798
      %v7806 = vmul.f32 %v7770, %v7798
      %v7807 = vmul.f32 %v7771, %v7798
      %v7808 = vmul.f32 %v7772, %v7798
      %v7809 = vmul.f32 %v7773, %v7798
      %v7810 = vmul.f32 %v7774, %v7798
      %v7811 = vmul.f32 %v7775, %v7798
      %v7812 = vmul.f32 %v7776, %v7798
      %v7813 = vmul.f32 %v7777, %v7798
      %v7814 = vmul.f32 %v7778, %v7798
      %v7815 = vmul.f32 %v7779, %v7798
      %v7816 = vmul.f32 %v7780, %v7798
      %v7817 = vmul.f32 %v7781, %v7798
      %v7818 = vmul.f32 %v7782, %v7798
      %v7819 = vmul.f32 %v7783, %v7798
      %v7820 = vmul.f32 %v7784, %v7798
      %v7821 = vmul.f32 %v7785, %v7798
      %v7822 = vmul.f32 %v7786, %v7798
      %v7823 = vmul.f32 %v7787, %v7798
      %v7824 = vmul.f32 %v7788, %v7798
      %v7825 = vmul.f32 %v7789, %v7798
      %v7826 = vmul.f32 %v7790, %v7798
      %v7827 = vmul.f32 %v7791, %v7798
      %v7828 = vmul.f32 %v7792, %v7798
      %v7829 = vmul.f32 %v7793, %v7798
      %v7830 = vmul.f32 %v7794, %v7798
      %v7831 = vlaneseq
      %v7832 = vshrl.u32 %v7831, 7
      %v7833 = vsub.s32 4, %v7832
      %v7834 = vrot.slane %v394, %v7833
      %v7835 = vadd.f32 %v7799, %v7834
      %v7836 = vadd.f32 %v7800, %v7834
      %v7837 = vadd.f32 %v7801, %v7834
      %v7838 = vadd.f32 %v7802, %v7834
      %v7839 = vadd.f32 %v7803, %v7834
      %v7840 = vadd.f32 %v7804, %v7834
      %v7841 = vadd.f32 %v7805, %v7834
      %v7842 = vadd.f32 %v7806, %v7834
      %v7843 = vadd.f32 %v7807, %v7834
      %v7844 = vadd.f32 %v7808, %v7834
      %v7845 = vadd.f32 %v7809, %v7834
      %v7846 = vadd.f32 %v7810, %v7834
      %v7847 = vadd.f32 %v7811, %v7834
      %v7848 = vadd.f32 %v7812, %v7834
      %v7849 = vadd.f32 %v7813, %v7834
      %v7850 = vadd.f32 %v7814, %v7834
      %v7851 = vadd.f32 %v7815, %v7834
      %v7852 = vadd.f32 %v7816, %v7834
      %v7853 = vadd.f32 %v7817, %v7834
      %v7854 = vadd.f32 %v7818, %v7834
      %v7855 = vadd.f32 %v7819, %v7834
      %v7856 = vadd.f32 %v7820, %v7834
      %v7857 = vadd.f32 %v7821, %v7834
      %v7858 = vadd.f32 %v7822, %v7834
      %v7859 = vadd.f32 %v7823, %v7834
      %v7860 = vadd.f32 %v7824, %v7834
      %v7861 = vadd.f32 %v7825, %v7834
      %v7862 = vadd.f32 %v7826, %v7834
      %v7863 = vadd.f32 %v7827, %v7834
      %v7864 = vadd.f32 %v7828, %v7834
      %v7865 = vadd.f32 %v7829, %v7834
      %v7866 = vadd.f32 %v7830, %v7834
      %v7867 = vld [vmem:[%s5] sm:$0xff]
      %v7868 = vld [vmem:[%s5 + $0x8] sm:$0xff]
      %v7869 = vld [vmem:[%s5 + $0x10] sm:$0xff]
      %v7870 = vld [vmem:[%s5 + $0x18] sm:$0xff]
      %v7871 = vld [vmem:[%s6] sm:$0x1]
      %v7873 = vlaneseq
      %v7874 = vshrl.u32 %v7873, 7
      %v7875 = vsub.s32 0, %v7874
      %v7876 = vrot.slane %v7871, %v7875
      %v7879 = vsel %vm395, %v7835, 0
      %v7882 = vsel %vm395, %v7836, 0
      %v7885 = vsel %vm395, %v7837, 0
      %v7888 = vsel %vm395, %v7838, 0
      %v7891 = vsel %vm395, %v7839, 0
      %v7894 = vsel %vm395, %v7840, 0
      %v7897 = vsel %vm395, %v7841, 0
      %v7900 = vsel %vm395, %v7842, 0
      %v7903 = vsel %vm395, %v7843, 0
      %v7906 = vsel %vm395, %v7844, 0
      %v7909 = vsel %vm395, %v7845, 0
      %v7912 = vsel %vm395, %v7846, 0
      %v7915 = vsel %vm395, %v7847, 0
      %v7918 = vsel %vm395, %v7848, 0
      %v7921 = vsel %vm395, %v7849, 0
      %v7924 = vsel %vm395, %v7850, 0
      %v7927 = vsel %vm395, %v7851, 0
      %v7930 = vsel %vm395, %v7852, 0
      %v7933 = vsel %vm395, %v7853, 0
      %v7936 = vsel %vm395, %v7854, 0
      %v7939 = vsel %vm395, %v7855, 0
      %v7942 = vsel %vm395, %v7856, 0
      %v7945 = vsel %vm395, %v7857, 0
      %v7948 = vsel %vm395, %v7858, 0
      %v7951 = vsel %vm395, %v7859, 0
      %v7954 = vsel %vm395, %v7860, 0
      %v7957 = vsel %vm395, %v7861, 0
      %v7960 = vsel %vm395, %v7862, 0
      %v7963 = vsel %vm395, %v7863, 0
      %v7966 = vsel %vm395, %v7864, 0
      %v7969 = vsel %vm395, %v7865, 0
      %v7972 = vsel %vm395, %v7866, 0
      %7974 = vmatprep.subr.mxu0 0.0
      %7975 = vmatpush1.msra.mxu0 %v7867
      %7976 = vmatprep.subr.mxu0 0.0
      %7977 = vmatpush1.msra.mxu0 %v7868
      %7978 = vmatprep.subr.mxu0 0.0
      %7979 = vmatpush1.msra.mxu0 %v7869
      %7980 = vmatprep.subr.mxu0 0.0
      %7981 = vmatpush1.msra.mxu0 %v7870
      %7982 = vmatprep.subr.mxu0 0.0
      %7983 = vmatpush1.msra.mxu0 0.0
      %7984 = vmatprep.subr.mxu0 0.0
      %7985 = vmatpush1.msra.mxu0 0.0
      %7986 = vmatprep.subr.mxu0 0.0
      %7987 = vmatpush1.msra.mxu0 0.0
      %7988 = vmatprep.subr.mxu0 0.0
      %7989 = vmatpush1.msra.mxu0 0.0
      %7990 = vmatprep.subr.mxu0 0.0
      %7991 = vmatpush1.msra.mxu0 0.0
      %7992 = vmatprep.subr.mxu0 0.0
      %7993 = vmatpush1.msra.mxu0 0.0
      %7994 = vmatprep.subr.mxu0 0.0
      %7995 = vmatpush1.msra.mxu0 0.0
      %7996 = vmatprep.subr.mxu0 0.0
      %7997 = vmatpush1.msra.mxu0 0.0
      %7998 = vmatprep.subr.mxu0 0.0
      %7999 = vmatpush1.msra.mxu0 0.0
      %8000 = vmatprep.subr.mxu0 0.0
      %8001 = vmatpush1.msra.mxu0 0.0
      %8002 = vmatprep.subr.mxu0 0.0
      %8003 = vmatpush1.msra.mxu0 0.0
      %8004 = vmatprep.subr.mxu0 0.0
      %8005 = vmatpush1.msra.mxu0 0.0
      %8006 = vmatprep.subr.mxu0 0.0
      %8007 = vmatpush1.msra.mxu0 0.0
      %8008 = vmatprep.subr.mxu0 0.0
      %8009 = vmatpush1.msra.mxu0 0.0
      %8010 = vmatprep.subr.mxu0 0.0
      %8011 = vmatpush1.msra.mxu0 0.0
      %8012 = vmatprep.subr.mxu0 0.0
      %8013 = vmatpush1.msra.mxu0 0.0
      %8014 = vmatprep.subr.mxu0 0.0
      %8015 = vmatpush1.msra.mxu0 0.0
      %8016 = vmatprep.subr.mxu0 0.0
      %8017 = vmatpush1.msra.mxu0 0.0
      %8018 = vmatprep.subr.mxu0 0.0
      %8019 = vmatpush1.msra.mxu0 0.0
      %8020 = vmatprep.subr.mxu0 0.0
      %8021 = vmatpush1.msra.mxu0 0.0
      %8022 = vmatprep.subr.mxu0 0.0
      %8023 = vmatpush1.msra.mxu0 0.0
      %8024 = vmatprep.subr.mxu0 0.0
      %8025 = vmatpush1.msra.mxu0 0.0
      %8026 = vmatprep.subr.mxu0 0.0
      %8027 = vmatpush1.msra.mxu0 0.0
      %8028 = vmatprep.subr.mxu0 0.0
      %8029 = vmatpush1.msra.mxu0 0.0
      %8030 = vmatprep.subr.mxu0 0.0
      %8031 = vmatpush1.msra.mxu0 0.0
      %8032 = vmatprep.subr.mxu0 0.0
      %8033 = vmatpush1.msra.mxu0 0.0
      %8034 = vmatprep.subr.mxu0 0.0
      %8035 = vmatpush1.msra.mxu0 0.0
      %8036 = vmatprep.subr.mxu0 0.0
      %8037 = vmatpush1.msra.mxu0 0.0
      %8038 = vmatprep.mubr.f32.mxu0 0.0
      %8039 = vmatmul.mubr.f32.gmra.mrb[0].mxu0 %v7879
      %v8040 = vpop.f32.mrb[0].mxu0
      %v8041 = vadd.f32 %v7876, %v8040
      %v8042 = vpop.f32.mrb[0].mxu0
      %8043 = vmatprep.mubr.f32.mxu0 0.0
      %8044 = vmatmul.mubr.f32.gmra.mrb[0].mxu0 %v7882
      %v8045 = vpop.f32.mrb[0].mxu0
      %v8046 = vadd.f32 %v7876, %v8045
      %v8047 = vpop.f32.mrb[0].mxu0
      %8048 = vmatprep.mubr.f32.mxu0 0.0
      %8049 = vmatmul.mubr.f32.gmra.mrb[0].mxu0 %v7885
      %v8050 = vpop.f32.mrb[0].mxu0
      %v8051 = vadd.f32 %v7876, %v8050
      %v8052 = vpop.f32.mrb[0].mxu0
      %8053 = vmatprep.mubr.f32.mxu0 0.0
      %8054 = vmatmul.mubr.f32.gmra.mrb[0].mxu0 %v7888
      %v8055 = vpop.f32.mrb[0].mxu0
      %v8056 = vadd.f32 %v7876, %v8055
      %v8057 = vpop.f32.mrb[0].mxu0
      %8058 = vmatprep.mubr.f32.mxu0 0.0
      %8059 = vmatmul.mubr.f32.gmra.mrb[0].mxu0 %v7891
      %v8060 = vpop.f32.mrb[0].mxu0
      %v8061 = vadd.f32 %v7876, %v8060
      %v8062 = vpop.f32.mrb[0].mxu0
      %8063 = vmatprep.mubr.f32.mxu0 0.0
      %8064 = vmatmul.mubr.f32.gmra.mrb[0].mxu0 %v7894
      %v8065 = vpop.f32.mrb[0].mxu0
      %v8066 = vadd.f32 %v7876, %v8065
      %v8067 = vpop.f32.mrb[0].mxu0
      %8068 = vmatprep.mubr.f32.mxu0 0.0
      %8069 = vmatmul.mubr.f32.gmra.mrb[0].mxu0 %v7897
      %v8070 = vpop.f32.mrb[0].mxu0
      %v8071 = vadd.f32 %v7876, %v8070
      %v8072 = vpop.f32.mrb[0].mxu0
      %8073 = vmatprep.mubr.f32.mxu0 0.0
      %8074 = vmatmul.mubr.f32.gmra.mrb[0].mxu0 %v7900
      %v8075 = vpop.f32.mrb[0].mxu0
      %v8076 = vadd.f32 %v7876, %v8075
      %v8077 = vpop.f32.mrb[0].mxu0
      %8078 = vmatprep.mubr.f32.mxu0 0.0
      %8079 = vmatmul.mubr.f32.gmra.mrb[0].mxu0 %v7903
      %v8080 = vpop.f32.mrb[0].mxu0
      %v8081 = vadd.f32 %v7876, %v8080
      %v8082 = vpop.f32.mrb[0].mxu0
      %8083 = vmatprep.mubr.f32.mxu0 0.0
      %8084 = vmatmul.mubr.f32.gmra.mrb[0].mxu0 %v7906
      %v8085 = vpop.f32.mrb[0].mxu0
      %v8086 = vadd.f32 %v7876, %v8085
      %v8087 = vpop.f32.mrb[0].mxu0
      %8088 = vmatprep.mubr.f32.mxu0 0.0
      %8089 = vmatmul.mubr.f32.gmra.mrb[0].mxu0 %v7909
      %v8090 = vpop.f32.mrb[0].mxu0
      %v8091 = vadd.f32 %v7876, %v8090
      %v8092 = vpop.f32.mrb[0].mxu0
      %8093 = vmatprep.mubr.f32.mxu0 0.0
      %8094 = vmatmul.mubr.f32.gmra.mrb[0].mxu0 %v7912
      %v8095 = vpop.f32.mrb[0].mxu0
      %v8096 = vadd.f32 %v7876, %v8095
      %v8097 = vpop.f32.mrb[0].mxu0
      %8098 = vmatprep.mubr.f32.mxu0 0.0
      %8099 = vmatmul.mubr.f32.gmra.mrb[0].mxu0 %v7915
      %v8100 = vpop.f32.mrb[0].mxu0
      %v8101 = vadd.f32 %v7876, %v8100
      %v8102 = vpop.f32.mrb[0].mxu0
      %8103 = vmatprep.mubr.f32.mxu0 0.0
      %8104 = vmatmul.mubr.f32.gmra.mrb[0].mxu0 %v7918
      %v8105 = vpop.f32.mrb[0].mxu0
      %v8106 = vadd.f32 %v7876, %v8105
      %v8107 = vpop.f32.mrb[0].mxu0
      %8108 = vmatprep.mubr.f32.mxu0 0.0
      %8109 = vmatmul.mubr.f32.gmra.mrb[0].mxu0 %v7921
      %v8110 = vpop.f32.mrb[0].mxu0
      %v8111 = vadd.f32 %v7876, %v8110
      %v8112 = vpop.f32.mrb[0].mxu0
      %8113 = vmatprep.mubr.f32.mxu0 0.0
      %8114 = vmatmul.mubr.f32.gmra.mrb[0].mxu0 %v7924
      %v8115 = vpop.f32.mrb[0].mxu0
      %v8116 = vadd.f32 %v7876, %v8115
      %v8117 = vpop.f32.mrb[0].mxu0
      %8118 = vmatprep.mubr.f32.mxu0 0.0
      %8119 = vmatmul.mubr.f32.gmra.mrb[0].mxu0 %v7927
      %v8120 = vpop.f32.mrb[0].mxu0
      %v8121 = vadd.f32 %v7876, %v8120
      %v8122 = vpop.f32.mrb[0].mxu0
      %8123 = vmatprep.mubr.f32.mxu0 0.0
      %8124 = vmatmul.mubr.f32.gmra.mrb[0].mxu0 %v7930
      %v8125 = vpop.f32.mrb[0].mxu0
      %v8126 = vadd.f32 %v7876, %v8125
      %v8127 = vpop.f32.mrb[0].mxu0
      %8128 = vmatprep.mubr.f32.mxu0 0.0
      %8129 = vmatmul.mubr.f32.gmra.mrb[0].mxu0 %v7933
      %v8130 = vpop.f32.mrb[0].mxu0
      %v8131 = vadd.f32 %v7876, %v8130
      %v8132 = vpop.f32.mrb[0].mxu0
      %8133 = vmatprep.mubr.f32.mxu0 0.0
      %8134 = vmatmul.mubr.f32.gmra.mrb[0].mxu0 %v7936
      %v8135 = vpop.f32.mrb[0].mxu0
      %v8136 = vadd.f32 %v7876, %v8135
      %v8137 = vpop.f32.mrb[0].mxu0
      %8138 = vmatprep.mubr.f32.mxu0 0.0
      %8139 = vmatmul.mubr.f32.gmra.mrb[0].mxu0 %v7939
      %v8140 = vpop.f32.mrb[0].mxu0
      %v8141 = vadd.f32 %v7876, %v8140
      %v8142 = vpop.f32.mrb[0].mxu0
      %8143 = vmatprep.mubr.f32.mxu0 0.0
      %8144 = vmatmul.mubr.f32.gmra.mrb[0].mxu0 %v7942
      %v8145 = vpop.f32.mrb[0].mxu0
      %v8146 = vadd.f32 %v7876, %v8145
      %v8147 = vpop.f32.mrb[0].mxu0
      %8148 = vmatprep.mubr.f32.mxu0 0.0
      %8149 = vmatmul.mubr.f32.gmra.mrb[0].mxu0 %v7945
      %v8150 = vpop.f32.mrb[0].mxu0
      %v8151 = vadd.f32 %v7876, %v8150
      %v8152 = vpop.f32.mrb[0].mxu0
      %8153 = vmatprep.mubr.f32.mxu0 0.0
      %8154 = vmatmul.mubr.f32.gmra.mrb[0].mxu0 %v7948
      %v8155 = vpop.f32.mrb[0].mxu0
      %v8156 = vadd.f32 %v7876, %v8155
      %v8157 = vpop.f32.mrb[0].mxu0
      %8158 = vmatprep.mubr.f32.mxu0 0.0
      %8159 = vmatmul.mubr.f32.gmra.mrb[0].mxu0 %v7951
      %v8160 = vpop.f32.mrb[0].mxu0
      %v8161 = vadd.f32 %v7876, %v8160
      %v8162 = vpop.f32.mrb[0].mxu0
      %8163 = vmatprep.mubr.f32.mxu0 0.0
      %8164 = vmatmul.mubr.f32.gmra.mrb[0].mxu0 %v7954
      %v8165 = vpop.f32.mrb[0].mxu0
      %v8166 = vadd.f32 %v7876, %v8165
      %v8167 = vpop.f32.mrb[0].mxu0
      %8168 = vmatprep.mubr.f32.mxu0 0.0
      %8169 = vmatmul.mubr.f32.gmra.mrb[0].mxu0 %v7957
      %v8170 = vpop.f32.mrb[0].mxu0
      %v8171 = vadd.f32 %v7876, %v8170
      %v8172 = vpop.f32.mrb[0].mxu0
      %8173 = vmatprep.mubr.f32.mxu0 0.0
      %8174 = vmatmul.mubr.f32.gmra.mrb[0].mxu0 %v7960
      %v8175 = vpop.f32.mrb[0].mxu0
      %v8176 = vadd.f32 %v7876, %v8175
      %v8177 = vpop.f32.mrb[0].mxu0
      %8178 = vmatprep.mubr.f32.mxu0 0.0
      %8179 = vmatmul.mubr.f32.gmra.mrb[0].mxu0 %v7963
      %v8180 = vpop.f32.mrb[0].mxu0
      %v8181 = vadd.f32 %v7876, %v8180
      %v8182 = vpop.f32.mrb[0].mxu0
      %8183 = vmatprep.mubr.f32.mxu0 0.0
      %8184 = vmatmul.mubr.f32.gmra.mrb[0].mxu0 %v7966
      %v8185 = vpop.f32.mrb[0].mxu0
      %v8186 = vadd.f32 %v7876, %v8185
      %v8187 = vpop.f32.mrb[0].mxu0
      %8188 = vmatprep.mubr.f32.mxu0 0.0
      %8189 = vmatmul.mubr.f32.gmra.mrb[0].mxu0 %v7969
      %v8190 = vpop.f32.mrb[0].mxu0
      %v8191 = vadd.f32 %v7876, %v8190
      %v8192 = vpop.f32.mrb[0].mxu0
      %8193 = vmatprep.mubr.f32.mxu0 0.0
      %8194 = vmatmul.mubr.f32.gmra.mrb[0].mxu0 %v7972
      %v8195 = vpop.f32.mrb[0].mxu0
      %v8196 = vadd.f32 %v7876, %v8195
      %v8197 = vpop.f32.mrb[0].mxu0
      %8198 = vdwg.mxu0
      %v8199 = vmul.f32 %v8041, %v8041
      %v8200 = vmul.f32 %v8046, %v8046
      %v8201 = vmul.f32 %v8051, %v8051
      %v8202 = vmul.f32 %v8056, %v8056
      %v8203 = vmul.f32 %v8061, %v8061
      %v8204 = vmul.f32 %v8066, %v8066
      %v8205 = vmul.f32 %v8071, %v8071
      %v8206 = vmul.f32 %v8076, %v8076
      %v8207 = vmul.f32 %v8081, %v8081
      %v8208 = vmul.f32 %v8086, %v8086
      %v8209 = vmul.f32 %v8091, %v8091
      %v8210 = vmul.f32 %v8096, %v8096
      %v8211 = vmul.f32 %v8101, %v8101
      %v8212 = vmul.f32 %v8106, %v8106
      %v8213 = vmul.f32 %v8111, %v8111
      %v8214 = vmul.f32 %v8116, %v8116
      %v8215 = vmul.f32 %v8121, %v8121
      %v8216 = vmul.f32 %v8126, %v8126
      %v8217 = vmul.f32 %v8131, %v8131
      %v8218 = vmul.f32 %v8136, %v8136
      %v8219 = vmul.f32 %v8141, %v8141
      %v8220 = vmul.f32 %v8146, %v8146
      %v8221 = vmul.f32 %v8151, %v8151
      %v8222 = vmul.f32 %v8156, %v8156
      %v8223 = vmul.f32 %v8161, %v8161
      %v8224 = vmul.f32 %v8166, %v8166
      %v8225 = vmul.f32 %v8171, %v8171
      %v8226 = vmul.f32 %v8176, %v8176
      %v8227 = vmul.f32 %v8181, %v8181
      %v8228 = vmul.f32 %v8186, %v8186
      %v8229 = vmul.f32 %v8191, %v8191
      %v8230 = vmul.f32 %v8196, %v8196
      %v8231 = vmul.f32 %v8041, %v8199
      %v8232 = vmul.f32 %v8046, %v8200
      %v8233 = vmul.f32 %v8051, %v8201
      %v8234 = vmul.f32 %v8056, %v8202
      %v8235 = vmul.f32 %v8061, %v8203
      %v8236 = vmul.f32 %v8066, %v8204
      %v8237 = vmul.f32 %v8071, %v8205
      %v8238 = vmul.f32 %v8076, %v8206
      %v8239 = vmul.f32 %v8081, %v8207
      %v8240 = vmul.f32 %v8086, %v8208
      %v8241 = vmul.f32 %v8091, %v8209
      %v8242 = vmul.f32 %v8096, %v8210
      %v8243 = vmul.f32 %v8101, %v8211
      %v8244 = vmul.f32 %v8106, %v8212
      %v8245 = vmul.f32 %v8111, %v8213
      %v8246 = vmul.f32 %v8116, %v8214
      %v8247 = vmul.f32 %v8121, %v8215
      %v8248 = vmul.f32 %v8126, %v8216
      %v8249 = vmul.f32 %v8131, %v8217
      %v8250 = vmul.f32 %v8136, %v8218
      %v8251 = vmul.f32 %v8141, %v8219
      %v8252 = vmul.f32 %v8146, %v8220
      %v8253 = vmul.f32 %v8151, %v8221
      %v8254 = vmul.f32 %v8156, %v8222
      %v8255 = vmul.f32 %v8161, %v8223
      %v8256 = vmul.f32 %v8166, %v8224
      %v8257 = vmul.f32 %v8171, %v8225
      %v8258 = vmul.f32 %v8176, %v8226
      %v8259 = vmul.f32 %v8181, %v8227
      %v8260 = vmul.f32 %v8186, %v8228
      %v8261 = vmul.f32 %v8191, %v8229
      %v8262 = vmul.f32 %v8196, %v8230
      %v8263 = vmul.f32 %v8231, 0.044715
      %v8264 = vmul.f32 %v8232, 0.044715
      %v8265 = vmul.f32 %v8233, 0.044715
      %v8266 = vmul.f32 %v8234, 0.044715
      %v8267 = vmul.f32 %v8235, 0.044715
      %v8268 = vmul.f32 %v8236, 0.044715
      %v8269 = vmul.f32 %v8237, 0.044715
      %v8270 = vmul.f32 %v8238, 0.044715
      %v8271 = vmul.f32 %v8239, 0.044715
      %v8272 = vmul.f32 %v8240, 0.044715
      %v8273 = vmul.f32 %v8241, 0.044715
      %v8274 = vmul.f32 %v8242, 0.044715
      %v8275 = vmul.f32 %v8243, 0.044715
      %v8276 = vmul.f32 %v8244, 0.044715
      %v8277 = vmul.f32 %v8245, 0.044715
      %v8278 = vmul.f32 %v8246, 0.044715
      %v8279 = vmul.f32 %v8247, 0.044715
      %v8280 = vmul.f32 %v8248, 0.044715
      %v8281 = vmul.f32 %v8249, 0.044715
      %v8282 = vmul.f32 %v8250, 0.044715
      %v8283 = vmul.f32 %v8251, 0.044715
      %v8284 = vmul.f32 %v8252, 0.044715
      %v8285 = vmul.f32 %v8253, 0.044715
      %v8286 = vmul.f32 %v8254, 0.044715
      %v8287 = vmul.f32 %v8255, 0.044715
      %v8288 = vmul.f32 %v8256, 0.044715
      %v8289 = vmul.f32 %v8257, 0.044715
      %v8290 = vmul.f32 %v8258, 0.044715
      %v8291 = vmul.f32 %v8259, 0.044715
      %v8292 = vmul.f32 %v8260, 0.044715
      %v8293 = vmul.f32 %v8261, 0.044715
      %v8294 = vmul.f32 %v8262, 0.044715
      %v8295 = vadd.f32 %v8041, %v8263
      %v8296 = vadd.f32 %v8046, %v8264
      %v8297 = vadd.f32 %v8051, %v8265
      %v8298 = vadd.f32 %v8056, %v8266
      %v8299 = vadd.f32 %v8061, %v8267
      %v8300 = vadd.f32 %v8066, %v8268
      %v8301 = vadd.f32 %v8071, %v8269
      %v8302 = vadd.f32 %v8076, %v8270
      %v8303 = vadd.f32 %v8081, %v8271
      %v8304 = vadd.f32 %v8086, %v8272
      %v8305 = vadd.f32 %v8091, %v8273
      %v8306 = vadd.f32 %v8096, %v8274
      %v8307 = vadd.f32 %v8101, %v8275
      %v8308 = vadd.f32 %v8106, %v8276
      %v8309 = vadd.f32 %v8111, %v8277
      %v8310 = vadd.f32 %v8116, %v8278
      %v8311 = vadd.f32 %v8121, %v8279
      %v8312 = vadd.f32 %v8126, %v8280
      %v8313 = vadd.f32 %v8131, %v8281
      %v8314 = vadd.f32 %v8136, %v8282
      %v8315 = vadd.f32 %v8141, %v8283
      %v8316 = vadd.f32 %v8146, %v8284
      %v8317 = vadd.f32 %v8151, %v8285
      %v8318 = vadd.f32 %v8156, %v8286
      %v8319 = vadd.f32 %v8161, %v8287
      %v8320 = vadd.f32 %v8166, %v8288
      %v8321 = vadd.f32 %v8171, %v8289
      %v8322 = vadd.f32 %v8176, %v8290
      %v8323 = vadd.f32 %v8181, %v8291
      %v8324 = vadd.f32 %v8186, %v8292
      %v8325 = vadd.f32 %v8191, %v8293
      %v8326 = vadd.f32 %v8196, %v8294
      %v8327 = vmul.f32 %v8295, 0.7978846
      %v8328 = vmul.f32 %v8296, 0.7978846
      %v8329 = vmul.f32 %v8297, 0.7978846
      %v8330 = vmul.f32 %v8298, 0.7978846
      %v8331 = vmul.f32 %v8299, 0.7978846
      %v8332 = vmul.f32 %v8300, 0.7978846
      %v8333 = vmul.f32 %v8301, 0.7978846
      %v8334 = vmul.f32 %v8302, 0.7978846
      %v8335 = vmul.f32 %v8303, 0.7978846
      %v8336 = vmul.f32 %v8304, 0.7978846
      %v8337 = vmul.f32 %v8305, 0.7978846
      %v8338 = vmul.f32 %v8306, 0.7978846
      %v8339 = vmul.f32 %v8307, 0.7978846
      %v8340 = vmul.f32 %v8308, 0.7978846
      %v8341 = vmul.f32 %v8309, 0.7978846
      %v8342 = vmul.f32 %v8310, 0.7978846
      %v8343 = vmul.f32 %v8311, 0.7978846
      %v8344 = vmul.f32 %v8312, 0.7978846
      %v8345 = vmul.f32 %v8313, 0.7978846
      %v8346 = vmul.f32 %v8314, 0.7978846
      %v8347 = vmul.f32 %v8315, 0.7978846
      %v8348 = vmul.f32 %v8316, 0.7978846
      %v8349 = vmul.f32 %v8317, 0.7978846
      %v8350 = vmul.f32 %v8318, 0.7978846
      %v8351 = vmul.f32 %v8319, 0.7978846
      %v8352 = vmul.f32 %v8320, 0.7978846
      %v8353 = vmul.f32 %v8321, 0.7978846
      %v8354 = vmul.f32 %v8322, 0.7978846
      %v8355 = vmul.f32 %v8323, 0.7978846
      %v8356 = vmul.f32 %v8324, 0.7978846
      %v8357 = vmul.f32 %v8325, 0.7978846
      %v8358 = vmul.f32 %v8326, 0.7978846
      %v8359 = vtanh.pop %v8327
      %v8360 = vtanh.pop %v8328
      %v8361 = vtanh.pop %v8329
      %v8362 = vtanh.pop %v8330
      %v8363 = vtanh.pop %v8331
      %v8364 = vtanh.pop %v8332
      %v8365 = vtanh.pop %v8333
      %v8366 = vtanh.pop %v8334
      %v8367 = vtanh.pop %v8335
      %v8368 = vtanh.pop %v8336
      %v8369 = vtanh.pop %v8337
      %v8370 = vtanh.pop %v8338
      %v8371 = vtanh.pop %v8339
      %v8372 = vtanh.pop %v8340
      %v8373 = vtanh.pop %v8341
      %v8374 = vtanh.pop %v8342
      %v8375 = vtanh.pop %v8343
      %v8376 = vtanh.pop %v8344
      %v8377 = vtanh.pop %v8345
      %v8378 = vtanh.pop %v8346
      %v8379 = vtanh.pop %v8347
      %v8380 = vtanh.pop %v8348
      %v8381 = vtanh.pop %v8349
      %v8382 = vtanh.pop %v8350
      %v8383 = vtanh.pop %v8351
      %v8384 = vtanh.pop %v8352
      %v8385 = vtanh.pop %v8353
      %v8386 = vtanh.pop %v8354
      %v8387 = vtanh.pop %v8355
      %v8388 = vtanh.pop %v8356
      %v8389 = vtanh.pop %v8357
      %v8390 = vtanh.pop %v8358
      %v8391 = vadd.f32 %v8359, 1.0
      %v8392 = vadd.f32 %v8360, 1.0
      %v8393 = vadd.f32 %v8361, 1.0
      %v8394 = vadd.f32 %v8362, 1.0
      %v8395 = vadd.f32 %v8363, 1.0
      %v8396 = vadd.f32 %v8364, 1.0
      %v8397 = vadd.f32 %v8365, 1.0
      %v8398 = vadd.f32 %v8366, 1.0
      %v8399 = vadd.f32 %v8367, 1.0
      %v8400 = vadd.f32 %v8368, 1.0
      %v8401 = vadd.f32 %v8369, 1.0
      %v8402 = vadd.f32 %v8370, 1.0
      %v8403 = vadd.f32 %v8371, 1.0
      %v8404 = vadd.f32 %v8372, 1.0
      %v8405 = vadd.f32 %v8373, 1.0
      %v8406 = vadd.f32 %v8374, 1.0
      %v8407 = vadd.f32 %v8375, 1.0
      %v8408 = vadd.f32 %v8376, 1.0
      %v8409 = vadd.f32 %v8377, 1.0
      %v8410 = vadd.f32 %v8378, 1.0
      %v8411 = vadd.f32 %v8379, 1.0
      %v8412 = vadd.f32 %v8380, 1.0
      %v8413 = vadd.f32 %v8381, 1.0
      %v8414 = vadd.f32 %v8382, 1.0
      %v8415 = vadd.f32 %v8383, 1.0
      %v8416 = vadd.f32 %v8384, 1.0
      %v8417 = vadd.f32 %v8385, 1.0
      %v8418 = vadd.f32 %v8386, 1.0
      %v8419 = vadd.f32 %v8387, 1.0
      %v8420 = vadd.f32 %v8388, 1.0
      %v8421 = vadd.f32 %v8389, 1.0
      %v8422 = vadd.f32 %v8390, 1.0
      %v8423 = vmul.f32 %v8391, 0.5
      %v8424 = vmul.f32 %v8392, 0.5
      %v8425 = vmul.f32 %v8393, 0.5
      %v8426 = vmul.f32 %v8394, 0.5
      %v8427 = vmul.f32 %v8395, 0.5
      %v8428 = vmul.f32 %v8396, 0.5
      %v8429 = vmul.f32 %v8397, 0.5
      %v8430 = vmul.f32 %v8398, 0.5
      %v8431 = vmul.f32 %v8399, 0.5
      %v8432 = vmul.f32 %v8400, 0.5
      %v8433 = vmul.f32 %v8401, 0.5
      %v8434 = vmul.f32 %v8402, 0.5
      %v8435 = vmul.f32 %v8403, 0.5
      %v8436 = vmul.f32 %v8404, 0.5
      %v8437 = vmul.f32 %v8405, 0.5
      %v8438 = vmul.f32 %v8406, 0.5
      %v8439 = vmul.f32 %v8407, 0.5
      %v8440 = vmul.f32 %v8408, 0.5
      %v8441 = vmul.f32 %v8409, 0.5
      %v8442 = vmul.f32 %v8410, 0.5
      %v8443 = vmul.f32 %v8411, 0.5
      %v8444 = vmul.f32 %v8412, 0.5
      %v8445 = vmul.f32 %v8413, 0.5
      %v8446 = vmul.f32 %v8414, 0.5
      %v8447 = vmul.f32 %v8415, 0.5
      %v8448 = vmul.f32 %v8416, 0.5
      %v8449 = vmul.f32 %v8417, 0.5
      %v8450 = vmul.f32 %v8418, 0.5
      %v8451 = vmul.f32 %v8419, 0.5
      %v8452 = vmul.f32 %v8420, 0.5
      %v8453 = vmul.f32 %v8421, 0.5
      %v8454 = vmul.f32 %v8422, 0.5
      %v8455 = vmul.f32 %v8041, %v8423
      %v8456 = vmul.f32 %v8046, %v8424
      %v8457 = vmul.f32 %v8051, %v8425
      %v8458 = vmul.f32 %v8056, %v8426
      %v8459 = vmul.f32 %v8061, %v8427
      %v8460 = vmul.f32 %v8066, %v8428
      %v8461 = vmul.f32 %v8071, %v8429
      %v8462 = vmul.f32 %v8076, %v8430
      %v8463 = vmul.f32 %v8081, %v8431
      %v8464 = vmul.f32 %v8086, %v8432
      %v8465 = vmul.f32 %v8091, %v8433
      %v8466 = vmul.f32 %v8096, %v8434
      %v8467 = vmul.f32 %v8101, %v8435
      %v8468 = vmul.f32 %v8106, %v8436
      %v8469 = vmul.f32 %v8111, %v8437
      %v8470 = vmul.f32 %v8116, %v8438
      %v8471 = vmul.f32 %v8121, %v8439
      %v8472 = vmul.f32 %v8126, %v8440
      %v8473 = vmul.f32 %v8131, %v8441
      %v8474 = vmul.f32 %v8136, %v8442
      %v8475 = vmul.f32 %v8141, %v8443
      %v8476 = vmul.f32 %v8146, %v8444
      %v8477 = vmul.f32 %v8151, %v8445
      %v8478 = vmul.f32 %v8156, %v8446
      %v8479 = vmul.f32 %v8161, %v8447
      %v8480 = vmul.f32 %v8166, %v8448
      %v8481 = vmul.f32 %v8171, %v8449
      %v8482 = vmul.f32 %v8176, %v8450
      %v8483 = vmul.f32 %v8181, %v8451
      %v8484 = vmul.f32 %v8186, %v8452
      %v8485 = vmul.f32 %v8191, %v8453
      %v8486 = vmul.f32 %v8196, %v8454
      %v8487 = vld [vmem:[%s7] sm:$0xff]
      %v8488 = vld [vmem:[%s7 + $0x8] sm:$0xff]
      %v8489 = vld [vmem:[%s7 + $0x10] sm:$0xff]
      %v8490 = vld [vmem:[%s7 + $0x18] sm:$0xff]
      %v8491 = vld [vmem:[%s7 + $0x20] sm:$0xff]
      %v8492 = vld [vmem:[%s7 + $0x28] sm:$0xff]
      %v8493 = vld [vmem:[%s7 + $0x30] sm:$0xff]
      %v8494 = vld [vmem:[%s7 + $0x38] sm:$0xff]
      %v8495 = vld [vmem:[%s7 + $0x40] sm:$0xff]
      %v8496 = vld [vmem:[%s7 + $0x48] sm:$0xff]
      %v8497 = vld [vmem:[%s7 + $0x50] sm:$0xff]
      %v8498 = vld [vmem:[%s7 + $0x58] sm:$0xff]
      %v8499 = vld [vmem:[%s7 + $0x60] sm:$0xff]
      %v8500 = vld [vmem:[%s7 + $0x68] sm:$0xff]
      %v8501 = vld [vmem:[%s7 + $0x70] sm:$0xff]
      %v8502 = vld [vmem:[%s7 + $0x78] sm:$0xff]
      %v8503 = vlaneseq
      %v8504 = vshrl.u32 %v8503, 7
      %v8505 = vsub.s32 5, %v8504
      %v8506 = vrot.slane %v394, %v8505
      %8507 = vmatprep.subr.mxu0 0.0
      %8508 = vmatpush1.msra.mxu0 %v8487
      %8509 = vmatprep.subr.mxu0 0.0
      %8510 = vmatpush1.msra.mxu0 %v8488
      %8511 = vmatprep.subr.mxu0 0.0
      %8512 = vmatpush1.msra.mxu0 %v8489
      %8513 = vmatprep.subr.mxu0 0.0
      %8514 = vmatpush1.msra.mxu0 %v8490
      %8515 = vmatprep.subr.mxu0 0.0
      %8516 = vmatpush1.msra.mxu0 %v8491
      %8517 = vmatprep.subr.mxu0 0.0
      %8518 = vmatpush1.msra.mxu0 %v8492
      %8519 = vmatprep.subr.mxu0 0.0
      %8520 = vmatpush1.msra.mxu0 %v8493
      %8521 = vmatprep.subr.mxu0 0.0
      %8522 = vmatpush1.msra.mxu0 %v8494
      %8523 = vmatprep.subr.mxu0 0.0
      %8524 = vmatpush1.msra.mxu0 %v8495
      %8525 = vmatprep.subr.mxu0 0.0
      %8526 = vmatpush1.msra.mxu0 %v8496
      %8527 = vmatprep.subr.mxu0 0.0
      %8528 = vmatpush1.msra.mxu0 %v8497
      %8529 = vmatprep.subr.mxu0 0.0
      %8530 = vmatpush1.msra.mxu0 %v8498
      %8531 = vmatprep.subr.mxu0 0.0
      %8532 = vmatpush1.msra.mxu0 %v8499
      %8533 = vmatprep.subr.mxu0 0.0
      %8534 = vmatpush1.msra.mxu0 %v8500
      %8535 = vmatprep.subr.mxu0 0.0
      %8536 = vmatpush1.msra.mxu0 %v8501
      %8537 = vmatprep.subr.mxu0 0.0
      %8538 = vmatpush1.msra.mxu0 %v8502
      %8539 = vmatprep.subr.mxu0 0.0
      %8540 = vmatpush1.msra.mxu0 0.0
      %8541 = vmatprep.subr.mxu0 0.0
      %8542 = vmatpush1.msra.mxu0 0.0
      %8543 = vmatprep.subr.mxu0 0.0
      %8544 = vmatpush1.msra.mxu0 0.0
      %8545 = vmatprep.subr.mxu0 0.0
      %8546 = vmatpush1.msra.mxu0 0.0
      %8547 = vmatprep.subr.mxu0 0.0
      %8548 = vmatpush1.msra.mxu0 0.0
      %8549 = vmatprep.subr.mxu0 0.0
      %8550 = vmatpush1.msra.mxu0 0.0
      %8551 = vmatprep.subr.mxu0 0.0
      %8552 = vmatpush1.msra.mxu0 0.0
      %8553 = vmatprep.subr.mxu0 0.0
      %8554 = vmatpush1.msra.mxu0 0.0
      %8555 = vmatprep.subr.mxu0 0.0
      %8556 = vmatpush1.msra.mxu0 0.0
      %8557 = vmatprep.subr.mxu0 0.0
      %8558 = vmatpush1.msra.mxu0 0.0
      %8559 = vmatprep.subr.mxu0 0.0
      %8560 = vmatpush1.msra.mxu0 0.0
      %8561 = vmatprep.subr.mxu0 0.0
      %8562 = vmatpush1.msra.mxu0 0.0
      %8563 = vmatprep.subr.mxu0 0.0
      %8564 = vmatpush1.msra.mxu0 0.0
      %8565 = vmatprep.subr.mxu0 0.0
      %8566 = vmatpush1.msra.mxu0 0.0
      %8567 = vmatprep.subr.mxu0 0.0
      %8568 = vmatpush1.msra.mxu0 0.0
      %8569 = vmatprep.subr.mxu0 0.0
      %8570 = vmatpush1.msra.mxu0 0.0
      %8571 = vmatprep.mubr.f32.mxu0 0.0
      %8572 = vmatmul.mubr.f32.gmra.mrb[0].mxu0 %v8455
      %v8573 = vpop.f32.mrb[0].mxu0
      %v8574 = vadd.f32 %v8506, %v8573
      %v8575 = vpop.f32.mrb[0].mxu0
      %8576 = vmatprep.mubr.f32.mxu0 0.0
      %8577 = vmatmul.mubr.f32.gmra.mrb[0].mxu0 %v8456
      %v8578 = vpop.f32.mrb[0].mxu0
      %v8579 = vadd.f32 %v8506, %v8578
      %v8580 = vpop.f32.mrb[0].mxu0
      %8581 = vmatprep.mubr.f32.mxu0 0.0
      %8582 = vmatmul.mubr.f32.gmra.mrb[0].mxu0 %v8457
      %v8583 = vpop.f32.mrb[0].mxu0
      %v8584 = vadd.f32 %v8506, %v8583
      %v8585 = vpop.f32.mrb[0].mxu0
      %8586 = vmatprep.mubr.f32.mxu0 0.0
      %8587 = vmatmul.mubr.f32.gmra.mrb[0].mxu0 %v8458
      %v8588 = vpop.f32.mrb[0].mxu0
      %v8589 = vadd.f32 %v8506, %v8588
      %v8590 = vpop.f32.mrb[0].mxu0
      %8591 = vmatprep.mubr.f32.mxu0 0.0
      %8592 = vmatmul.mubr.f32.gmra.mrb[0].mxu0 %v8459
      %v8593 = vpop.f32.mrb[0].mxu0
      %v8594 = vadd.f32 %v8506, %v8593
      %v8595 = vpop.f32.mrb[0].mxu0
      %8596 = vmatprep.mubr.f32.mxu0 0.0
      %8597 = vmatmul.mubr.f32.gmra.mrb[0].mxu0 %v8460
      %v8598 = vpop.f32.mrb[0].mxu0
      %v8599 = vadd.f32 %v8506, %v8598
      %v8600 = vpop.f32.mrb[0].mxu0
      %8601 = vmatprep.mubr.f32.mxu0 0.0
      %8602 = vmatmul.mubr.f32.gmra.mrb[0].mxu0 %v8461
      %v8603 = vpop.f32.mrb[0].mxu0
      %v8604 = vadd.f32 %v8506, %v8603
      %v8605 = vpop.f32.mrb[0].mxu0
      %8606 = vmatprep.mubr.f32.mxu0 0.0
      %8607 = vmatmul.mubr.f32.gmra.mrb[0].mxu0 %v8462
      %v8608 = vpop.f32.mrb[0].mxu0
      %v8609 = vadd.f32 %v8506, %v8608
      %v8610 = vpop.f32.mrb[0].mxu0
      %8611 = vmatprep.mubr.f32.mxu0 0.0
      %8612 = vmatmul.mubr.f32.gmra.mrb[0].mxu0 %v8463
      %v8613 = vpop.f32.mrb[0].mxu0
      %v8614 = vadd.f32 %v8506, %v8613
      %v8615 = vpop.f32.mrb[0].mxu0
      %8616 = vmatprep.mubr.f32.mxu0 0.0
      %8617 = vmatmul.mubr.f32.gmra.mrb[0].mxu0 %v8464
      %v8618 = vpop.f32.mrb[0].mxu0
      %v8619 = vadd.f32 %v8506, %v8618
      %v8620 = vpop.f32.mrb[0].mxu0
      %8621 = vmatprep.mubr.f32.mxu0 0.0
      %8622 = vmatmul.mubr.f32.gmra.mrb[0].mxu0 %v8465
      %v8623 = vpop.f32.mrb[0].mxu0
      %v8624 = vadd.f32 %v8506, %v8623
      %v8625 = vpop.f32.mrb[0].mxu0
      %8626 = vmatprep.mubr.f32.mxu0 0.0
      %8627 = vmatmul.mubr.f32.gmra.mrb[0].mxu0 %v8466
      %v8628 = vpop.f32.mrb[0].mxu0
      %v8629 = vadd.f32 %v8506, %v8628
      %v8630 = vpop.f32.mrb[0].mxu0
      %8631 = vmatprep.mubr.f32.mxu0 0.0
      %8632 = vmatmul.mubr.f32.gmra.mrb[0].mxu0 %v8467
      %v8633 = vpop.f32.mrb[0].mxu0
      %v8634 = vadd.f32 %v8506, %v8633
      %v8635 = vpop.f32.mrb[0].mxu0
      %8636 = vmatprep.mubr.f32.mxu0 0.0
      %8637 = vmatmul.mubr.f32.gmra.mrb[0].mxu0 %v8468
      %v8638 = vpop.f32.mrb[0].mxu0
      %v8639 = vadd.f32 %v8506, %v8638
      %v8640 = vpop.f32.mrb[0].mxu0
      %8641 = vmatprep.mubr.f32.mxu0 0.0
      %8642 = vmatmul.mubr.f32.gmra.mrb[0].mxu0 %v8469
      %v8643 = vpop.f32.mrb[0].mxu0
      %v8644 = vadd.f32 %v8506, %v8643
      %v8645 = vpop.f32.mrb[0].mxu0
      %8646 = vmatprep.mubr.f32.mxu0 0.0
      %8647 = vmatmul.mubr.f32.gmra.mrb[0].mxu0 %v8470
      %v8648 = vpop.f32.mrb[0].mxu0
      %v8649 = vadd.f32 %v8506, %v8648
      %v8650 = vpop.f32.mrb[0].mxu0
      %8651 = vmatprep.mubr.f32.mxu0 0.0
      %8652 = vmatmul.mubr.f32.gmra.mrb[0].mxu0 %v8471
      %v8653 = vpop.f32.mrb[0].mxu0
      %v8654 = vadd.f32 %v8506, %v8653
      %v8655 = vpop.f32.mrb[0].mxu0
      %8656 = vmatprep.mubr.f32.mxu0 0.0
      %8657 = vmatmul.mubr.f32.gmra.mrb[0].mxu0 %v8472
      %v8658 = vpop.f32.mrb[0].mxu0
      %v8659 = vadd.f32 %v8506, %v8658
      %v8660 = vpop.f32.mrb[0].mxu0
      %8661 = vmatprep.mubr.f32.mxu0 0.0
      %8662 = vmatmul.mubr.f32.gmra.mrb[0].mxu0 %v8473
      %v8663 = vpop.f32.mrb[0].mxu0
      %v8664 = vadd.f32 %v8506, %v8663
      %v8665 = vpop.f32.mrb[0].mxu0
      %8666 = vmatprep.mubr.f32.mxu0 0.0
      %8667 = vmatmul.mubr.f32.gmra.mrb[0].mxu0 %v8474
      %v8668 = vpop.f32.mrb[0].mxu0
      %v8669 = vadd.f32 %v8506, %v8668
      %v8670 = vpop.f32.mrb[0].mxu0
      %8671 = vmatprep.mubr.f32.mxu0 0.0
      %8672 = vmatmul.mubr.f32.gmra.mrb[0].mxu0 %v8475
      %v8673 = vpop.f32.mrb[0].mxu0
      %v8674 = vadd.f32 %v8506, %v8673
      %v8675 = vpop.f32.mrb[0].mxu0
      %8676 = vmatprep.mubr.f32.mxu0 0.0
      %8677 = vmatmul.mubr.f32.gmra.mrb[0].mxu0 %v8476
      %v8678 = vpop.f32.mrb[0].mxu0
      %v8679 = vadd.f32 %v8506, %v8678
      %v8680 = vpop.f32.mrb[0].mxu0
      %8681 = vmatprep.mubr.f32.mxu0 0.0
      %8682 = vmatmul.mubr.f32.gmra.mrb[0].mxu0 %v8477
      %v8683 = vpop.f32.mrb[0].mxu0
      %v8684 = vadd.f32 %v8506, %v8683
      %v8685 = vpop.f32.mrb[0].mxu0
      %8686 = vmatprep.mubr.f32.mxu0 0.0
      %8687 = vmatmul.mubr.f32.gmra.mrb[0].mxu0 %v8478
      %v8688 = vpop.f32.mrb[0].mxu0
      %v8689 = vadd.f32 %v8506, %v8688
      %v8690 = vpop.f32.mrb[0].mxu0
      %8691 = vmatprep.mubr.f32.mxu0 0.0
      %8692 = vmatmul.mubr.f32.gmra.mrb[0].mxu0 %v8479
      %v8693 = vpop.f32.mrb[0].mxu0
      %v8694 = vadd.f32 %v8506, %v8693
      %v8695 = vpop.f32.mrb[0].mxu0
      %8696 = vmatprep.mubr.f32.mxu0 0.0
      %8697 = vmatmul.mubr.f32.gmra.mrb[0].mxu0 %v8480
      %v8698 = vpop.f32.mrb[0].mxu0
      %v8699 = vadd.f32 %v8506, %v8698
      %v8700 = vpop.f32.mrb[0].mxu0
      %8701 = vmatprep.mubr.f32.mxu0 0.0
      %8702 = vmatmul.mubr.f32.gmra.mrb[0].mxu0 %v8481
      %v8703 = vpop.f32.mrb[0].mxu0
      %v8704 = vadd.f32 %v8506, %v8703
      %v8705 = vpop.f32.mrb[0].mxu0
      %8706 = vmatprep.mubr.f32.mxu0 0.0
      %8707 = vmatmul.mubr.f32.gmra.mrb[0].mxu0 %v8482
      %v8708 = vpop.f32.mrb[0].mxu0
      %v8709 = vadd.f32 %v8506, %v8708
      %v8710 = vpop.f32.mrb[0].mxu0
      %8711 = vmatprep.mubr.f32.mxu0 0.0
      %8712 = vmatmul.mubr.f32.gmra.mrb[0].mxu0 %v8483
      %v8713 = vpop.f32.mrb[0].mxu0
      %v8714 = vadd.f32 %v8506, %v8713
      %v8715 = vpop.f32.mrb[0].mxu0
      %8716 = vmatprep.mubr.f32.mxu0 0.0
      %8717 = vmatmul.mubr.f32.gmra.mrb[0].mxu0 %v8484
      %v8718 = vpop.f32.mrb[0].mxu0
      %v8719 = vadd.f32 %v8506, %v8718
      %v8720 = vpop.f32.mrb[0].mxu0
      %8721 = vmatprep.mubr.f32.mxu0 0.0
      %8722 = vmatmul.mubr.f32.gmra.mrb[0].mxu0 %v8485
      %v8723 = vpop.f32.mrb[0].mxu0
      %v8724 = vadd.f32 %v8506, %v8723
      %v8725 = vpop.f32.mrb[0].mxu0
      %8726 = vmatprep.mubr.f32.mxu0 0.0
      %8727 = vmatmul.mubr.f32.gmra.mrb[0].mxu0 %v8486
      %v8728 = vpop.f32.mrb[0].mxu0
      %v8729 = vadd.f32 %v8506, %v8728
      %v8730 = vpop.f32.mrb[0].mxu0
      %8731 = vdwg.mxu0
      %v8732 = vadd.f32 %v7835, %v8574
      %v8733 = vadd.f32 %v7836, %v8579
      %v8734 = vadd.f32 %v7837, %v8584
      %v8735 = vadd.f32 %v7838, %v8589
      %v8736 = vadd.f32 %v7839, %v8594
      %v8737 = vadd.f32 %v7840, %v8599
      %v8738 = vadd.f32 %v7841, %v8604
      %v8739 = vadd.f32 %v7842, %v8609
      %v8740 = vadd.f32 %v7843, %v8614
      %v8741 = vadd.f32 %v7844, %v8619
      %v8742 = vadd.f32 %v7845, %v8624
      %v8743 = vadd.f32 %v7846, %v8629
      %v8744 = vadd.f32 %v7847, %v8634
      %v8745 = vadd.f32 %v7848, %v8639
      %v8746 = vadd.f32 %v7849, %v8644
      %v8747 = vadd.f32 %v7850, %v8649
      %v8748 = vadd.f32 %v7851, %v8654
      %v8749 = vadd.f32 %v7852, %v8659
      %v8750 = vadd.f32 %v7853, %v8664
      %v8751 = vadd.f32 %v7854, %v8669
      %v8752 = vadd.f32 %v7855, %v8674
      %v8753 = vadd.f32 %v7856, %v8679
      %v8754 = vadd.f32 %v7857, %v8684
      %v8755 = vadd.f32 %v7858, %v8689
      %v8756 = vadd.f32 %v7859, %v8694
      %v8757 = vadd.f32 %v7860, %v8699
      %v8758 = vadd.f32 %v7861, %v8704
      %v8759 = vadd.f32 %v7862, %v8709
      %v8760 = vadd.f32 %v7863, %v8714
      %v8761 = vadd.f32 %v7864, %v8719
      %v8762 = vadd.f32 %v7865, %v8724
      %v8763 = vadd.f32 %v7866, %v8729
      %v8764 = vsel %vm395, %v8732, 0.0
      %8765 = vadd.xlane.f32.xlu0 %v8764
      %v8766 = vpop.xlane.xlu0 %8765
      %v8767 = vsel %vm395, %v8733, 0.0
      %8768 = vadd.xlane.f32.xlu0 %v8767
      %v8769 = vpop.xlane.xlu0 %8768
      %v8770 = vsel %vm395, %v8734, 0.0
      %8771 = vadd.xlane.f32.xlu0 %v8770
      %v8772 = vpop.xlane.xlu0 %8771
      %v8773 = vsel %vm395, %v8735, 0.0
      %8774 = vadd.xlane.f32.xlu0 %v8773
      %v8775 = vpop.xlane.xlu0 %8774
      %v8776 = vsel %vm395, %v8736, 0.0
      %8777 = vadd.xlane.f32.xlu0 %v8776
      %v8778 = vpop.xlane.xlu0 %8777
      %v8779 = vsel %vm395, %v8737, 0.0
      %8780 = vadd.xlane.f32.xlu0 %v8779
      %v8781 = vpop.xlane.xlu0 %8780
      %v8782 = vsel %vm395, %v8738, 0.0
      %8783 = vadd.xlane.f32.xlu0 %v8782
      %v8784 = vpop.xlane.xlu0 %8783
      %v8785 = vsel %vm395, %v8739, 0.0
      %8786 = vadd.xlane.f32.xlu0 %v8785
      %v8787 = vpop.xlane.xlu0 %8786
      %v8788 = vsel %vm395, %v8740, 0.0
      %8789 = vadd.xlane.f32.xlu0 %v8788
      %v8790 = vpop.xlane.xlu0 %8789
      %v8791 = vsel %vm395, %v8741, 0.0
      %8792 = vadd.xlane.f32.xlu0 %v8791
      %v8793 = vpop.xlane.xlu0 %8792
      %v8794 = vsel %vm395, %v8742, 0.0
      %8795 = vadd.xlane.f32.xlu0 %v8794
      %v8796 = vpop.xlane.xlu0 %8795
      %v8797 = vsel %vm395, %v8743, 0.0
      %8798 = vadd.xlane.f32.xlu0 %v8797
      %v8799 = vpop.xlane.xlu0 %8798
      %v8800 = vsel %vm395, %v8744, 0.0
      %8801 = vadd.xlane.f32.xlu0 %v8800
      %v8802 = vpop.xlane.xlu0 %8801
      %v8803 = vsel %vm395, %v8745, 0.0
      %8804 = vadd.xlane.f32.xlu0 %v8803
      %v8805 = vpop.xlane.xlu0 %8804
      %v8806 = vsel %vm395, %v8746, 0.0
      %8807 = vadd.xlane.f32.xlu0 %v8806
      %v8808 = vpop.xlane.xlu0 %8807
      %v8809 = vsel %vm395, %v8747, 0.0
      %8810 = vadd.xlane.f32.xlu0 %v8809
      %v8811 = vpop.xlane.xlu0 %8810
      %v8812 = vsel %vm395, %v8748, 0.0
      %8813 = vadd.xlane.f32.xlu0 %v8812
      %v8814 = vpop.xlane.xlu0 %8813
      %v8815 = vsel %vm395, %v8749, 0.0
      %8816 = vadd.xlane.f32.xlu0 %v8815
      %v8817 = vpop.xlane.xlu0 %8816
      %v8818 = vsel %vm395, %v8750, 0.0
      %8819 = vadd.xlane.f32.xlu0 %v8818
      %v8820 = vpop.xlane.xlu0 %8819
      %v8821 = vsel %vm395, %v8751, 0.0
      %8822 = vadd.xlane.f32.xlu0 %v8821
      %v8823 = vpop.xlane.xlu0 %8822
      %v8824 = vsel %vm395, %v8752, 0.0
      %8825 = vadd.xlane.f32.xlu0 %v8824
      %v8826 = vpop.xlane.xlu0 %8825
      %v8827 = vsel %vm395, %v8753, 0.0
      %8828 = vadd.xlane.f32.xlu0 %v8827
      %v8829 = vpop.xlane.xlu0 %8828
      %v8830 = vsel %vm395, %v8754, 0.0
      %8831 = vadd.xlane.f32.xlu0 %v8830
      %v8832 = vpop.xlane.xlu0 %8831
      %v8833 = vsel %vm395, %v8755, 0.0
      %8834 = vadd.xlane.f32.xlu0 %v8833
      %v8835 = vpop.xlane.xlu0 %8834
      %v8836 = vsel %vm395, %v8756, 0.0
      %8837 = vadd.xlane.f32.xlu0 %v8836
      %v8838 = vpop.xlane.xlu0 %8837
      %v8839 = vsel %vm395, %v8757, 0.0
      %8840 = vadd.xlane.f32.xlu0 %v8839
      %v8841 = vpop.xlane.xlu0 %8840
      %v8842 = vsel %vm395, %v8758, 0.0
      %8843 = vadd.xlane.f32.xlu0 %v8842
      %v8844 = vpop.xlane.xlu0 %8843
      %v8845 = vsel %vm395, %v8759, 0.0
      %8846 = vadd.xlane.f32.xlu0 %v8845
      %v8847 = vpop.xlane.xlu0 %8846
      %v8848 = vsel %vm395, %v8760, 0.0
      %8849 = vadd.xlane.f32.xlu0 %v8848
      %v8850 = vpop.xlane.xlu0 %8849
      %v8851 = vsel %vm395, %v8761, 0.0
      %8852 = vadd.xlane.f32.xlu0 %v8851
      %v8853 = vpop.xlane.xlu0 %8852
      %v8854 = vsel %vm395, %v8762, 0.0
      %8855 = vadd.xlane.f32.xlu0 %v8854
      %v8856 = vpop.xlane.xlu0 %8855
      %v8857 = vsel %vm395, %v8763, 0.0
      %8858 = vadd.xlane.f32.xlu0 %v8857
      %v8859 = vpop.xlane.xlu0 %8858
      %v8860 = vmul.f32 %v8766, %v492
      %v8861 = vmul.f32 %v8769, %v492
      %v8862 = vmul.f32 %v8772, %v492
      %v8863 = vmul.f32 %v8775, %v492
      %v8864 = vmul.f32 %v8778, %v492
      %v8865 = vmul.f32 %v8781, %v492
      %v8866 = vmul.f32 %v8784, %v492
      %v8867 = vmul.f32 %v8787, %v492
      %v8868 = vmul.f32 %v8790, %v492
      %v8869 = vmul.f32 %v8793, %v492
      %v8870 = vmul.f32 %v8796, %v492
      %v8871 = vmul.f32 %v8799, %v492
      %v8872 = vmul.f32 %v8802, %v492
      %v8873 = vmul.f32 %v8805, %v492
      %v8874 = vmul.f32 %v8808, %v492
      %v8875 = vmul.f32 %v8811, %v492
      %v8876 = vmul.f32 %v8814, %v492
      %v8877 = vmul.f32 %v8817, %v492
      %v8878 = vmul.f32 %v8820, %v492
      %v8879 = vmul.f32 %v8823, %v492
      %v8880 = vmul.f32 %v8826, %v492
      %v8881 = vmul.f32 %v8829, %v492
      %v8882 = vmul.f32 %v8832, %v492
      %v8883 = vmul.f32 %v8835, %v492
      %v8884 = vmul.f32 %v8838, %v492
      %v8885 = vmul.f32 %v8841, %v492
      %v8886 = vmul.f32 %v8844, %v492
      %v8887 = vmul.f32 %v8847, %v492
      %v8888 = vmul.f32 %v8850, %v492
      %v8889 = vmul.f32 %v8853, %v492
      %v8890 = vmul.f32 %v8856, %v492
      %v8891 = vmul.f32 %v8859, %v492
      %v8892 = vsub.f32 %v8732, %v8860
      %v8893 = vsub.f32 %v8733, %v8861
      %v8894 = vsub.f32 %v8734, %v8862
      %v8895 = vsub.f32 %v8735, %v8863
      %v8896 = vsub.f32 %v8736, %v8864
      %v8897 = vsub.f32 %v8737, %v8865
      %v8898 = vsub.f32 %v8738, %v8866
      %v8899 = vsub.f32 %v8739, %v8867
      %v8900 = vsub.f32 %v8740, %v8868
      %v8901 = vsub.f32 %v8741, %v8869
      %v8902 = vsub.f32 %v8742, %v8870
      %v8903 = vsub.f32 %v8743, %v8871
      %v8904 = vsub.f32 %v8744, %v8872
      %v8905 = vsub.f32 %v8745, %v8873
      %v8906 = vsub.f32 %v8746, %v8874
      %v8907 = vsub.f32 %v8747, %v8875
      %v8908 = vsub.f32 %v8748, %v8876
      %v8909 = vsub.f32 %v8749, %v8877
      %v8910 = vsub.f32 %v8750, %v8878
      %v8911 = vsub.f32 %v8751, %v8879
      %v8912 = vsub.f32 %v8752, %v8880
      %v8913 = vsub.f32 %v8753, %v8881
      %v8914 = vsub.f32 %v8754, %v8882
      %v8915 = vsub.f32 %v8755, %v8883
      %v8916 = vsub.f32 %v8756, %v8884
      %v8917 = vsub.f32 %v8757, %v8885
      %v8918 = vsub.f32 %v8758, %v8886
      %v8919 = vsub.f32 %v8759, %v8887
      %v8920 = vsub.f32 %v8760, %v8888
      %v8921 = vsub.f32 %v8761, %v8889
      %v8922 = vsub.f32 %v8762, %v8890
      %v8923 = vsub.f32 %v8763, %v8891
      %v8924 = vmul.f32 %v8892, %v8892
      %v8925 = vmul.f32 %v8893, %v8893
      %v8926 = vmul.f32 %v8894, %v8894
      %v8927 = vmul.f32 %v8895, %v8895
      %v8928 = vmul.f32 %v8896, %v8896
      %v8929 = vmul.f32 %v8897, %v8897
      %v8930 = vmul.f32 %v8898, %v8898
      %v8931 = vmul.f32 %v8899, %v8899
      %v8932 = vmul.f32 %v8900, %v8900
      %v8933 = vmul.f32 %v8901, %v8901
      %v8934 = vmul.f32 %v8902, %v8902
      %v8935 = vmul.f32 %v8903, %v8903
      %v8936 = vmul.f32 %v8904, %v8904
      %v8937 = vmul.f32 %v8905, %v8905
      %v8938 = vmul.f32 %v8906, %v8906
      %v8939 = vmul.f32 %v8907, %v8907
      %v8940 = vmul.f32 %v8908, %v8908
      %v8941 = vmul.f32 %v8909, %v8909
      %v8942 = vmul.f32 %v8910, %v8910
      %v8943 = vmul.f32 %v8911, %v8911
      %v8944 = vmul.f32 %v8912, %v8912
      %v8945 = vmul.f32 %v8913, %v8913
      %v8946 = vmul.f32 %v8914, %v8914
      %v8947 = vmul.f32 %v8915, %v8915
      %v8948 = vmul.f32 %v8916, %v8916
      %v8949 = vmul.f32 %v8917, %v8917
      %v8950 = vmul.f32 %v8918, %v8918
      %v8951 = vmul.f32 %v8919, %v8919
      %v8952 = vmul.f32 %v8920, %v8920
      %v8953 = vmul.f32 %v8921, %v8921
      %v8954 = vmul.f32 %v8922, %v8922
      %v8955 = vmul.f32 %v8923, %v8923
      %v8956 = vsel %vm395, %v8924, 0.0
      %8957 = vadd.xlane.f32.xlu0 %v8956
      %v8958 = vpop.xlane.xlu0 %8957
      %v8959 = vsel %vm395, %v8925, 0.0
      %8960 = vadd.xlane.f32.xlu0 %v8959
      %v8961 = vpop.xlane.xlu0 %8960
      %v8962 = vsel %vm395, %v8926, 0.0
      %8963 = vadd.xlane.f32.xlu0 %v8962
      %v8964 = vpop.xlane.xlu0 %8963
      %v8965 = vsel %vm395, %v8927, 0.0
      %8966 = vadd.xlane.f32.xlu0 %v8965
      %v8967 = vpop.xlane.xlu0 %8966
      %v8968 = vsel %vm395, %v8928, 0.0
      %8969 = vadd.xlane.f32.xlu0 %v8968
      %v8970 = vpop.xlane.xlu0 %8969
      %v8971 = vsel %vm395, %v8929, 0.0
      %8972 = vadd.xlane.f32.xlu0 %v8971
      %v8973 = vpop.xlane.xlu0 %8972
      %v8974 = vsel %vm395, %v8930, 0.0
      %8975 = vadd.xlane.f32.xlu0 %v8974
      %v8976 = vpop.xlane.xlu0 %8975
      %v8977 = vsel %vm395, %v8931, 0.0
      %8978 = vadd.xlane.f32.xlu0 %v8977
      %v8979 = vpop.xlane.xlu0 %8978
      %v8980 = vsel %vm395, %v8932, 0.0
      %8981 = vadd.xlane.f32.xlu0 %v8980
      %v8982 = vpop.xlane.xlu0 %8981
      %v8983 = vsel %vm395, %v8933, 0.0
      %8984 = vadd.xlane.f32.xlu0 %v8983
      %v8985 = vpop.xlane.xlu0 %8984
      %v8986 = vsel %vm395, %v8934, 0.0
      %8987 = vadd.xlane.f32.xlu0 %v8986
      %v8988 = vpop.xlane.xlu0 %8987
      %v8989 = vsel %vm395, %v8935, 0.0
      %8990 = vadd.xlane.f32.xlu0 %v8989
      %v8991 = vpop.xlane.xlu0 %8990
      %v8992 = vsel %vm395, %v8936, 0.0
      %8993 = vadd.xlane.f32.xlu0 %v8992
      %v8994 = vpop.xlane.xlu0 %8993
      %v8995 = vsel %vm395, %v8937, 0.0
      %8996 = vadd.xlane.f32.xlu0 %v8995
      %v8997 = vpop.xlane.xlu0 %8996
      %v8998 = vsel %vm395, %v8938, 0.0
      %8999 = vadd.xlane.f32.xlu0 %v8998
      %v9000 = vpop.xlane.xlu0 %8999
      %v9001 = vsel %vm395, %v8939, 0.0
      %9002 = vadd.xlane.f32.xlu0 %v9001
      %v9003 = vpop.xlane.xlu0 %9002
      %v9004 = vsel %vm395, %v8940, 0.0
      %9005 = vadd.xlane.f32.xlu0 %v9004
      %v9006 = vpop.xlane.xlu0 %9005
      %v9007 = vsel %vm395, %v8941, 0.0
      %9008 = vadd.xlane.f32.xlu0 %v9007
      %v9009 = vpop.xlane.xlu0 %9008
      %v9010 = vsel %vm395, %v8942, 0.0
      %9011 = vadd.xlane.f32.xlu0 %v9010
      %v9012 = vpop.xlane.xlu0 %9011
      %v9013 = vsel %vm395, %v8943, 0.0
      %9014 = vadd.xlane.f32.xlu0 %v9013
      %v9015 = vpop.xlane.xlu0 %9014
      %v9016 = vsel %vm395, %v8944, 0.0
      %9017 = vadd.xlane.f32.xlu0 %v9016
      %v9018 = vpop.xlane.xlu0 %9017
      %v9019 = vsel %vm395, %v8945, 0.0
      %9020 = vadd.xlane.f32.xlu0 %v9019
      %v9021 = vpop.xlane.xlu0 %9020
      %v9022 = vsel %vm395, %v8946, 0.0
      %9023 = vadd.xlane.f32.xlu0 %v9022
      %v9024 = vpop.xlane.xlu0 %9023
      %v9025 = vsel %vm395, %v8947, 0.0
      %9026 = vadd.xlane.f32.xlu0 %v9025
      %v9027 = vpop.xlane.xlu0 %9026
      %v9028 = vsel %vm395, %v8948, 0.0
      %9029 = vadd.xlane.f32.xlu0 %v9028
      %v9030 = vpop.xlane.xlu0 %9029
      %v9031 = vsel %vm395, %v8949, 0.0
      %9032 = vadd.xlane.f32.xlu0 %v9031
      %v9033 = vpop.xlane.xlu0 %9032
      %v9034 = vsel %vm395, %v8950, 0.0
      %9035 = vadd.xlane.f32.xlu0 %v9034
      %v9036 = vpop.xlane.xlu0 %9035
      %v9037 = vsel %vm395, %v8951, 0.0
      %9038 = vadd.xlane.f32.xlu0 %v9037
      %v9039 = vpop.xlane.xlu0 %9038
      %v9040 = vsel %vm395, %v8952, 0.0
      %9041 = vadd.xlane.f32.xlu0 %v9040
      %v9042 = vpop.xlane.xlu0 %9041
      %v9043 = vsel %vm395, %v8953, 0.0
      %9044 = vadd.xlane.f32.xlu0 %v9043
      %v9045 = vpop.xlane.xlu0 %9044
      %v9046 = vsel %vm395, %v8954, 0.0
      %9047 = vadd.xlane.f32.xlu0 %v9046
      %v9048 = vpop.xlane.xlu0 %9047
      %v9049 = vsel %vm395, %v8955, 0.0
      %9050 = vadd.xlane.f32.xlu0 %v9049
      %v9051 = vpop.xlane.xlu0 %9050
      %v9052 = vmul.f32 %v8958, %v492
      %v9053 = vmul.f32 %v8961, %v492
      %v9054 = vmul.f32 %v8964, %v492
      %v9055 = vmul.f32 %v8967, %v492
      %v9056 = vmul.f32 %v8970, %v492
      %v9057 = vmul.f32 %v8973, %v492
      %v9058 = vmul.f32 %v8976, %v492
      %v9059 = vmul.f32 %v8979, %v492
      %v9060 = vmul.f32 %v8982, %v492
      %v9061 = vmul.f32 %v8985, %v492
      %v9062 = vmul.f32 %v8988, %v492
      %v9063 = vmul.f32 %v8991, %v492
      %v9064 = vmul.f32 %v8994, %v492
      %v9065 = vmul.f32 %v8997, %v492
      %v9066 = vmul.f32 %v9000, %v492
      %v9067 = vmul.f32 %v9003, %v492
      %v9068 = vmul.f32 %v9006, %v492
      %v9069 = vmul.f32 %v9009, %v492
      %v9070 = vmul.f32 %v9012, %v492
      %v9071 = vmul.f32 %v9015, %v492
      %v9072 = vmul.f32 %v9018, %v492
      %v9073 = vmul.f32 %v9021, %v492
      %v9074 = vmul.f32 %v9024, %v492
      %v9075 = vmul.f32 %v9027, %v492
      %v9076 = vmul.f32 %v9030, %v492
      %v9077 = vmul.f32 %v9033, %v492
      %v9078 = vmul.f32 %v9036, %v492
      %v9079 = vmul.f32 %v9039, %v492
      %v9080 = vmul.f32 %v9042, %v492
      %v9081 = vmul.f32 %v9045, %v492
      %v9082 = vmul.f32 %v9048, %v492
      %v9083 = vmul.f32 %v9051, %v492
      %v9084 = vadd.f32 %v9052, 1e-12
      %v9085 = vadd.f32 %v9053, 1e-12
      %v9086 = vadd.f32 %v9054, 1e-12
      %v9087 = vadd.f32 %v9055, 1e-12
      %v9088 = vadd.f32 %v9056, 1e-12
      %v9089 = vadd.f32 %v9057, 1e-12
      %v9090 = vadd.f32 %v9058, 1e-12
      %v9091 = vadd.f32 %v9059, 1e-12
      %v9092 = vadd.f32 %v9060, 1e-12
      %v9093 = vadd.f32 %v9061, 1e-12
      %v9094 = vadd.f32 %v9062, 1e-12
      %v9095 = vadd.f32 %v9063, 1e-12
      %v9096 = vadd.f32 %v9064, 1e-12
      %v9097 = vadd.f32 %v9065, 1e-12
      %v9098 = vadd.f32 %v9066, 1e-12
      %v9099 = vadd.f32 %v9067, 1e-12
      %v9100 = vadd.f32 %v9068, 1e-12
      %v9101 = vadd.f32 %v9069, 1e-12
      %v9102 = vadd.f32 %v9070, 1e-12
      %v9103 = vadd.f32 %v9071, 1e-12
      %v9104 = vadd.f32 %v9072, 1e-12
      %v9105 = vadd.f32 %v9073, 1e-12
      %v9106 = vadd.f32 %v9074, 1e-12
      %v9107 = vadd.f32 %v9075, 1e-12
      %v9108 = vadd.f32 %v9076, 1e-12
      %v9109 = vadd.f32 %v9077, 1e-12
      %v9110 = vadd.f32 %v9078, 1e-12
      %v9111 = vadd.f32 %v9079, 1e-12
      %v9112 = vadd.f32 %v9080, 1e-12
      %v9113 = vadd.f32 %v9081, 1e-12
      %v9114 = vadd.f32 %v9082, 1e-12
      %v9115 = vadd.f32 %v9083, 1e-12
      %v9116 = vrsqrt.pop %v9084
      %v9117 = vrsqrt.pop %v9085
      %v9118 = vrsqrt.pop %v9086
      %v9119 = vrsqrt.pop %v9087
      %v9120 = vrsqrt.pop %v9088
      %v9121 = vrsqrt.pop %v9089
      %v9122 = vrsqrt.pop %v9090
      %v9123 = vrsqrt.pop %v9091
      %v9124 = vrsqrt.pop %v9092
      %v9125 = vrsqrt.pop %v9093
      %v9126 = vrsqrt.pop %v9094
      %v9127 = vrsqrt.pop %v9095
      %v9128 = vrsqrt.pop %v9096
      %v9129 = vrsqrt.pop %v9097
      %v9130 = vrsqrt.pop %v9098
      %v9131 = vrsqrt.pop %v9099
      %v9132 = vrsqrt.pop %v9100
      %v9133 = vrsqrt.pop %v9101
      %v9134 = vrsqrt.pop %v9102
      %v9135 = vrsqrt.pop %v9103
      %v9136 = vrsqrt.pop %v9104
      %v9137 = vrsqrt.pop %v9105
      %v9138 = vrsqrt.pop %v9106
      %v9139 = vrsqrt.pop %v9107
      %v9140 = vrsqrt.pop %v9108
      %v9141 = vrsqrt.pop %v9109
      %v9142 = vrsqrt.pop %v9110
      %v9143 = vrsqrt.pop %v9111
      %v9144 = vrsqrt.pop %v9112
      %v9145 = vrsqrt.pop %v9113
      %v9146 = vrsqrt.pop %v9114
      %v9147 = vrsqrt.pop %v9115
      %v9148 = vmul.f32 %v8892, %v9116
      %v9149 = vmul.f32 %v8893, %v9117
      %v9150 = vmul.f32 %v8894, %v9118
      %v9151 = vmul.f32 %v8895, %v9119
      %v9152 = vmul.f32 %v8896, %v9120
      %v9153 = vmul.f32 %v8897, %v9121
      %v9154 = vmul.f32 %v8898, %v9122
      %v9155 = vmul.f32 %v8899, %v9123
      %v9156 = vmul.f32 %v8900, %v9124
      %v9157 = vmul.f32 %v8901, %v9125
      %v9158 = vmul.f32 %v8902, %v9126
      %v9159 = vmul.f32 %v8903, %v9127
      %v9160 = vmul.f32 %v8904, %v9128
      %v9161 = vmul.f32 %v8905, %v9129
      %v9162 = vmul.f32 %v8906, %v9130
      %v9163 = vmul.f32 %v8907, %v9131
      %v9164 = vmul.f32 %v8908, %v9132
      %v9165 = vmul.f32 %v8909, %v9133
      %v9166 = vmul.f32 %v8910, %v9134
      %v9167 = vmul.f32 %v8911, %v9135
      %v9168 = vmul.f32 %v8912, %v9136
      %v9169 = vmul.f32 %v8913, %v9137
      %v9170 = vmul.f32 %v8914, %v9138
      %v9171 = vmul.f32 %v8915, %v9139
      %v9172 = vmul.f32 %v8916, %v9140
      %v9173 = vmul.f32 %v8917, %v9141
      %v9174 = vmul.f32 %v8918, %v9142
      %v9175 = vmul.f32 %v8919, %v9143
      %v9176 = vmul.f32 %v8920, %v9144
      %v9177 = vmul.f32 %v8921, %v9145
      %v9178 = vmul.f32 %v8922, %v9146
      %v9179 = vmul.f32 %v8923, %v9147
      %v9180 = vlaneseq
      %v9181 = vshrl.u32 %v9180, 7
      %v9182 = vsub.s32 6, %v9181
      %v9183 = vrot.slane %v394, %v9182
      %v9184 = vmul.f32 %v9148, %v9183
      %v9185 = vmul.f32 %v9149, %v9183
      %v9186 = vmul.f32 %v9150, %v9183
      %v9187 = vmul.f32 %v9151, %v9183
      %v9188 = vmul.f32 %v9152, %v9183
      %v9189 = vmul.f32 %v9153, %v9183
      %v9190 = vmul.f32 %v9154, %v9183
      %v9191 = vmul.f32 %v9155, %v9183
      %v9192 = vmul.f32 %v9156, %v9183
      %v9193 = vmul.f32 %v9157, %v9183
      %v9194 = vmul.f32 %v9158, %v9183
      %v9195 = vmul.f32 %v9159, %v9183
      %v9196 = vmul.f32 %v9160, %v9183
      %v9197 = vmul.f32 %v9161, %v9183
      %v9198 = vmul.f32 %v9162, %v9183
      %v9199 = vmul.f32 %v9163, %v9183
      %v9200 = vmul.f32 %v9164, %v9183
      %v9201 = vmul.f32 %v9165, %v9183
      %v9202 = vmul.f32 %v9166, %v9183
      %v9203 = vmul.f32 %v9167, %v9183
      %v9204 = vmul.f32 %v9168, %v9183
      %v9205 = vmul.f32 %v9169, %v9183
      %v9206 = vmul.f32 %v9170, %v9183
      %v9207 = vmul.f32 %v9171, %v9183
      %v9208 = vmul.f32 %v9172, %v9183
      %v9209 = vmul.f32 %v9173, %v9183
      %v9210 = vmul.f32 %v9174, %v9183
      %v9211 = vmul.f32 %v9175, %v9183
      %v9212 = vmul.f32 %v9176, %v9183
      %v9213 = vmul.f32 %v9177, %v9183
      %v9214 = vmul.f32 %v9178, %v9183
      %v9215 = vmul.f32 %v9179, %v9183
      %v9216 = vlaneseq
      %v9217 = vshrl.u32 %v9216, 7
      %v9218 = vsub.s32 7, %v9217
      %v9219 = vrot.slane %v394, %v9218
      %v9220 = vadd.f32 %v9184, %v9219
      %v9221 = vadd.f32 %v9185, %v9219
      %v9222 = vadd.f32 %v9186, %v9219
      %v9223 = vadd.f32 %v9187, %v9219
      %v9224 = vadd.f32 %v9188, %v9219
      %v9225 = vadd.f32 %v9189, %v9219
      %v9226 = vadd.f32 %v9190, %v9219
      %v9227 = vadd.f32 %v9191, %v9219
      %v9228 = vadd.f32 %v9192, %v9219
      %v9229 = vadd.f32 %v9193, %v9219
      %v9230 = vadd.f32 %v9194, %v9219
      %v9231 = vadd.f32 %v9195, %v9219
      %v9232 = vadd.f32 %v9196, %v9219
      %v9233 = vadd.f32 %v9197, %v9219
      %v9234 = vadd.f32 %v9198, %v9219
      %v9235 = vadd.f32 %v9199, %v9219
      %v9236 = vadd.f32 %v9200, %v9219
      %v9237 = vadd.f32 %v9201, %v9219
      %v9238 = vadd.f32 %v9202, %v9219
      %v9239 = vadd.f32 %v9203, %v9219
      %v9240 = vadd.f32 %v9204, %v9219
      %v9241 = vadd.f32 %v9205, %v9219
      %v9242 = vadd.f32 %v9206, %v9219
      %v9243 = vadd.f32 %v9207, %v9219
      %v9244 = vadd.f32 %v9208, %v9219
      %v9245 = vadd.f32 %v9209, %v9219
      %v9246 = vadd.f32 %v9210, %v9219
      %v9247 = vadd.f32 %v9211, %v9219
      %v9248 = vadd.f32 %v9212, %v9219
      %v9249 = vadd.f32 %v9213, %v9219
      %v9250 = vadd.f32 %v9214, %v9219
      %v9251 = vadd.f32 %v9215, %v9219
      %v9252 = vlaneseq
      %v9253 = vshrl.u32 %v9252, 7
      %v9254 = vsub.s32 0, %v9253
      %v9255 = vrot.slane %v390, %v9254
      %9257 = vbcast.lane.b32.xlu0 %v9255, 256
      %v9258 = vpop.permute.xlu0 %9257
      %v9259 = vlaneseq
      %v9260 = vshrl.u32 %v9259, 7
      %v9261 = vsub.s32 1, %v9260
      %v9262 = vrot.slane %v390, %v9261
      %9264 = vbcast.lane.b32.xlu0 %v9262, 256
      %v9265 = vpop.permute.xlu0 %9264
      %v9266 = vlaneseq
      %v9267 = vshrl.u32 %v9266, 7
      %v9268 = vsub.s32 2, %v9267
      %v9269 = vrot.slane %v390, %v9268
      %9271 = vbcast.lane.b32.xlu0 %v9269, 256
      %v9272 = vpop.permute.xlu0 %9271
      %v9273 = vlaneseq
      %v9274 = vshrl.u32 %v9273, 7
      %v9275 = vsub.s32 3, %v9274
      %v9276 = vrot.slane %v390, %v9275
      %9278 = vbcast.lane.b32.xlu0 %v9276, 256
      %v9279 = vpop.permute.xlu0 %9278
      %v9280 = vlaneseq
      %v9281 = vshrl.u32 %v9280, 7
      %v9282 = vsub.s32 4, %v9281
      %v9283 = vrot.slane %v390, %v9282
      %9285 = vbcast.lane.b32.xlu0 %v9283, 256
      %v9286 = vpop.permute.xlu0 %9285
      %v9287 = vlaneseq
      %v9288 = vshrl.u32 %v9287, 7
      %v9289 = vsub.s32 5, %v9288
      %v9290 = vrot.slane %v390, %v9289
      %9292 = vbcast.lane.b32.xlu0 %v9290, 256
      %v9293 = vpop.permute.xlu0 %9292
      %v9294 = vlaneseq
      %v9295 = vshrl.u32 %v9294, 7
      %v9296 = vsub.s32 6, %v9295
      %v9297 = vrot.slane %v390, %v9296
      %9299 = vbcast.lane.b32.xlu0 %v9297, 256
      %v9300 = vpop.permute.xlu0 %9299
      %v9301 = vlaneseq
      %v9302 = vshrl.u32 %v9301, 7
      %v9303 = vsub.s32 7, %v9302
      %v9304 = vrot.slane %v390, %v9303
      %9306 = vbcast.lane.b32.xlu0 %v9304, 256
      %v9307 = vpop.permute.xlu0 %9306
      %v9308 = vlaneseq
      %v9309 = vshrl.u32 %v9308, 7
      %v9310 = vsub.s32 0, %v9309
      %v9311 = vrot.slane %v391, %v9310
      %9313 = vbcast.lane.b32.xlu0 %v9311, 256
      %v9314 = vpop.permute.xlu0 %9313
      %v9315 = vlaneseq
      %v9316 = vshrl.u32 %v9315, 7
      %v9317 = vsub.s32 1, %v9316
      %v9318 = vrot.slane %v391, %v9317
      %9320 = vbcast.lane.b32.xlu0 %v9318, 256
      %v9321 = vpop.permute.xlu0 %9320
      %v9322 = vlaneseq
      %v9323 = vshrl.u32 %v9322, 7
      %v9324 = vsub.s32 2, %v9323
      %v9325 = vrot.slane %v391, %v9324
      %9327 = vbcast.lane.b32.xlu0 %v9325, 256
      %v9328 = vpop.permute.xlu0 %9327
      %v9329 = vlaneseq
      %v9330 = vshrl.u32 %v9329, 7
      %v9331 = vsub.s32 3, %v9330
      %v9332 = vrot.slane %v391, %v9331
      %9334 = vbcast.lane.b32.xlu0 %v9332, 256
      %v9335 = vpop.permute.xlu0 %9334
      %v9336 = vlaneseq
      %v9337 = vshrl.u32 %v9336, 7
      %v9338 = vsub.s32 4, %v9337
      %v9339 = vrot.slane %v391, %v9338
      %9341 = vbcast.lane.b32.xlu0 %v9339, 256
      %v9342 = vpop.permute.xlu0 %9341
      %v9343 = vlaneseq
      %v9344 = vshrl.u32 %v9343, 7
      %v9345 = vsub.s32 5, %v9344
      %v9346 = vrot.slane %v391, %v9345
      %9348 = vbcast.lane.b32.xlu0 %v9346, 256
      %v9349 = vpop.permute.xlu0 %9348
      %v9350 = vlaneseq
      %v9351 = vshrl.u32 %v9350, 7
      %v9352 = vsub.s32 6, %v9351
      %v9353 = vrot.slane %v391, %v9352
      %9355 = vbcast.lane.b32.xlu0 %v9353, 256
      %v9356 = vpop.permute.xlu0 %9355
      %v9357 = vlaneseq
      %v9358 = vshrl.u32 %v9357, 7
      %v9359 = vsub.s32 7, %v9358
      %v9360 = vrot.slane %v391, %v9359
      %9362 = vbcast.lane.b32.xlu0 %v9360, 256
      %v9363 = vpop.permute.xlu0 %9362
      %v9364 = vlaneseq
      %v9365 = vshrl.u32 %v9364, 7
      %v9366 = vsub.s32 0, %v9365
      %v9367 = vrot.slane %v392, %v9366
      %9369 = vbcast.lane.b32.xlu0 %v9367, 256
      %v9370 = vpop.permute.xlu0 %9369
      %v9371 = vlaneseq
      %v9372 = vshrl.u32 %v9371, 7
      %v9373 = vsub.s32 1, %v9372
      %v9374 = vrot.slane %v392, %v9373
      %9376 = vbcast.lane.b32.xlu0 %v9374, 256
      %v9377 = vpop.permute.xlu0 %9376
      %v9378 = vlaneseq
      %v9379 = vshrl.u32 %v9378, 7
      %v9380 = vsub.s32 2, %v9379
      %v9381 = vrot.slane %v392, %v9380
      %9383 = vbcast.lane.b32.xlu0 %v9381, 256
      %v9384 = vpop.permute.xlu0 %9383
      %v9385 = vlaneseq
      %v9386 = vshrl.u32 %v9385, 7
      %v9387 = vsub.s32 3, %v9386
      %v9388 = vrot.slane %v392, %v9387
      %9390 = vbcast.lane.b32.xlu0 %v9388, 256
      %v9391 = vpop.permute.xlu0 %9390
      %v9392 = vlaneseq
      %v9393 = vshrl.u32 %v9392, 7
      %v9394 = vsub.s32 4, %v9393
      %v9395 = vrot.slane %v392, %v9394
      %9397 = vbcast.lane.b32.xlu0 %v9395, 256
      %v9398 = vpop.permute.xlu0 %9397
      %v9399 = vlaneseq
      %v9400 = vshrl.u32 %v9399, 7
      %v9401 = vsub.s32 5, %v9400
      %v9402 = vrot.slane %v392, %v9401
      %9404 = vbcast.lane.b32.xlu0 %v9402, 256
      %v9405 = vpop.permute.xlu0 %9404
      %v9406 = vlaneseq
      %v9407 = vshrl.u32 %v9406, 7
      %v9408 = vsub.s32 6, %v9407
      %v9409 = vrot.slane %v392, %v9408
      %9411 = vbcast.lane.b32.xlu0 %v9409, 256
      %v9412 = vpop.permute.xlu0 %9411
      %v9413 = vlaneseq
      %v9414 = vshrl.u32 %v9413, 7
      %v9415 = vsub.s32 7, %v9414
      %v9416 = vrot.slane %v392, %v9415
      %9418 = vbcast.lane.b32.xlu0 %v9416, 256
      %v9419 = vpop.permute.xlu0 %9418
      %v9420 = vlaneseq
      %v9421 = vshrl.u32 %v9420, 7
      %v9422 = vsub.s32 0, %v9421
      %v9423 = vrot.slane %v393, %v9422
      %9425 = vbcast.lane.b32.xlu0 %v9423, 256
      %v9426 = vpop.permute.xlu0 %9425
      %v9427 = vlaneseq
      %v9428 = vshrl.u32 %v9427, 7
      %v9429 = vsub.s32 1, %v9428
      %v9430 = vrot.slane %v393, %v9429
      %9432 = vbcast.lane.b32.xlu0 %v9430, 256
      %v9433 = vpop.permute.xlu0 %9432
      %v9434 = vlaneseq
      %v9435 = vshrl.u32 %v9434, 7
      %v9436 = vsub.s32 2, %v9435
      %v9437 = vrot.slane %v393, %v9436
      %9439 = vbcast.lane.b32.xlu0 %v9437, 256
      %v9440 = vpop.permute.xlu0 %9439
      %v9441 = vlaneseq
      %v9442 = vshrl.u32 %v9441, 7
      %v9443 = vsub.s32 3, %v9442
      %v9444 = vrot.slane %v393, %v9443
      %9446 = vbcast.lane.b32.xlu0 %v9444, 256
      %v9447 = vpop.permute.xlu0 %9446
      %v9448 = vlaneseq
      %v9449 = vshrl.u32 %v9448, 7
      %v9450 = vsub.s32 4, %v9449
      %v9451 = vrot.slane %v393, %v9450
      %9453 = vbcast.lane.b32.xlu0 %v9451, 256
      %v9454 = vpop.permute.xlu0 %9453
      %v9455 = vlaneseq
      %v9456 = vshrl.u32 %v9455, 7
      %v9457 = vsub.s32 5, %v9456
      %v9458 = vrot.slane %v393, %v9457
      %9460 = vbcast.lane.b32.xlu0 %v9458, 256
      %v9461 = vpop.permute.xlu0 %9460
      %v9462 = vlaneseq
      %v9463 = vshrl.u32 %v9462, 7
      %v9464 = vsub.s32 6, %v9463
      %v9465 = vrot.slane %v393, %v9464
      %9467 = vbcast.lane.b32.xlu0 %v9465, 256
      %v9468 = vpop.permute.xlu0 %9467
      %v9469 = vlaneseq
      %v9470 = vshrl.u32 %v9469, 7
      %v9471 = vsub.s32 7, %v9470
      %v9472 = vrot.slane %v393, %v9471
      %9474 = vbcast.lane.b32.xlu0 %v9472, 256
      %v9475 = vpop.permute.xlu0 %9474
      %v9476 = vmul.f32 %v9220, %v9258
      %v9477 = vmul.f32 %v9221, %v9265
      %v9478 = vmul.f32 %v9222, %v9272
      %v9479 = vmul.f32 %v9223, %v9279
      %v9480 = vmul.f32 %v9224, %v9286
      %v9481 = vmul.f32 %v9225, %v9293
      %v9482 = vmul.f32 %v9226, %v9300
      %v9483 = vmul.f32 %v9227, %v9307
      %v9484 = vmul.f32 %v9228, %v9314
      %v9485 = vmul.f32 %v9229, %v9321
      %v9486 = vmul.f32 %v9230, %v9328
      %v9487 = vmul.f32 %v9231, %v9335
      %v9488 = vmul.f32 %v9232, %v9342
      %v9489 = vmul.f32 %v9233, %v9349
      %v9490 = vmul.f32 %v9234, %v9356
      %v9491 = vmul.f32 %v9235, %v9363
      %v9492 = vmul.f32 %v9236, %v9370
      %v9493 = vmul.f32 %v9237, %v9377
      %v9494 = vmul.f32 %v9238, %v9384
      %v9495 = vmul.f32 %v9239, %v9391
      %v9496 = vmul.f32 %v9240, %v9398
      %v9497 = vmul.f32 %v9241, %v9405
      %v9498 = vmul.f32 %v9242, %v9412
      %v9499 = vmul.f32 %v9243, %v9419
      %v9500 = vmul.f32 %v9244, %v9426
      %v9501 = vmul.f32 %v9245, %v9433
      %v9502 = vmul.f32 %v9246, %v9440
      %v9503 = vmul.f32 %v9247, %v9447
      %v9504 = vmul.f32 %v9248, %v9454
      %v9505 = vmul.f32 %v9249, %v9461
      %v9506 = vmul.f32 %v9250, %v9468
      %v9507 = vmul.f32 %v9251, %v9475
      %v9508 = vsel %vm395, %v9476, 0.0
      %v9509 = vrot.slane %v9508, 4
      %v9510 = vadd.f32 %v9508, %v9509
      %v9511 = vrot.slane %v9510, 2
      %v9512 = vadd.f32 %v9510, %v9511
      %v9513 = vrot.slane %v9512, 1
      %v9514 = vadd.f32 %v9512, %v9513
      %v9515 = vsel %vm395, %v9477, 0.0
      %v9516 = vrot.slane %v9515, 4
      %v9517 = vadd.f32 %v9515, %v9516
      %v9518 = vrot.slane %v9517, 2
      %v9519 = vadd.f32 %v9517, %v9518
      %v9520 = vrot.slane %v9519, 1
      %v9521 = vadd.f32 %v9519, %v9520
      %v9522 = vsel %vm395, %v9478, 0.0
      %v9523 = vrot.slane %v9522, 4
      %v9524 = vadd.f32 %v9522, %v9523
      %v9525 = vrot.slane %v9524, 2
      %v9526 = vadd.f32 %v9524, %v9525
      %v9527 = vrot.slane %v9526, 1
      %v9528 = vadd.f32 %v9526, %v9527
      %v9529 = vsel %vm395, %v9479, 0.0
      %v9530 = vrot.slane %v9529, 4
      %v9531 = vadd.f32 %v9529, %v9530
      %v9532 = vrot.slane %v9531, 2
      %v9533 = vadd.f32 %v9531, %v9532
      %v9534 = vrot.slane %v9533, 1
      %v9535 = vadd.f32 %v9533, %v9534
      %v9536 = vsel %vm395, %v9480, 0.0
      %v9537 = vrot.slane %v9536, 4
      %v9538 = vadd.f32 %v9536, %v9537
      %v9539 = vrot.slane %v9538, 2
      %v9540 = vadd.f32 %v9538, %v9539
      %v9541 = vrot.slane %v9540, 1
      %v9542 = vadd.f32 %v9540, %v9541
      %v9543 = vsel %vm395, %v9481, 0.0
      %v9544 = vrot.slane %v9543, 4
      %v9545 = vadd.f32 %v9543, %v9544
      %v9546 = vrot.slane %v9545, 2
      %v9547 = vadd.f32 %v9545, %v9546
      %v9548 = vrot.slane %v9547, 1
      %v9549 = vadd.f32 %v9547, %v9548
      %v9550 = vsel %vm395, %v9482, 0.0
      %v9551 = vrot.slane %v9550, 4
      %v9552 = vadd.f32 %v9550, %v9551
      %v9553 = vrot.slane %v9552, 2
      %v9554 = vadd.f32 %v9552, %v9553
      %v9555 = vrot.slane %v9554, 1
      %v9556 = vadd.f32 %v9554, %v9555
      %v9557 = vsel %vm395, %v9483, 0.0
      %v9558 = vrot.slane %v9557, 4
      %v9559 = vadd.f32 %v9557, %v9558
      %v9560 = vrot.slane %v9559, 2
      %v9561 = vadd.f32 %v9559, %v9560
      %v9562 = vrot.slane %v9561, 1
      %v9563 = vadd.f32 %v9561, %v9562
      %v9564 = vsel %vm395, %v9484, 0.0
      %v9565 = vrot.slane %v9564, 4
      %v9566 = vadd.f32 %v9564, %v9565
      %v9567 = vrot.slane %v9566, 2
      %v9568 = vadd.f32 %v9566, %v9567
      %v9569 = vrot.slane %v9568, 1
      %v9570 = vadd.f32 %v9568, %v9569
      %v9571 = vsel %vm395, %v9485, 0.0
      %v9572 = vrot.slane %v9571, 4
      %v9573 = vadd.f32 %v9571, %v9572
      %v9574 = vrot.slane %v9573, 2
      %v9575 = vadd.f32 %v9573, %v9574
      %v9576 = vrot.slane %v9575, 1
      %v9577 = vadd.f32 %v9575, %v9576
      %v9578 = vsel %vm395, %v9486, 0.0
      %v9579 = vrot.slane %v9578, 4
      %v9580 = vadd.f32 %v9578, %v9579
      %v9581 = vrot.slane %v9580, 2
      %v9582 = vadd.f32 %v9580, %v9581
      %v9583 = vrot.slane %v9582, 1
      %v9584 = vadd.f32 %v9582, %v9583
      %v9585 = vsel %vm395, %v9487, 0.0
      %v9586 = vrot.slane %v9585, 4
      %v9587 = vadd.f32 %v9585, %v9586
      %v9588 = vrot.slane %v9587, 2
      %v9589 = vadd.f32 %v9587, %v9588
      %v9590 = vrot.slane %v9589, 1
      %v9591 = vadd.f32 %v9589, %v9590
      %v9592 = vsel %vm395, %v9488, 0.0
      %v9593 = vrot.slane %v9592, 4
      %v9594 = vadd.f32 %v9592, %v9593
      %v9595 = vrot.slane %v9594, 2
      %v9596 = vadd.f32 %v9594, %v9595
      %v9597 = vrot.slane %v9596, 1
      %v9598 = vadd.f32 %v9596, %v9597
      %v9599 = vsel %vm395, %v9489, 0.0
      %v9600 = vrot.slane %v9599, 4
      %v9601 = vadd.f32 %v9599, %v9600
      %v9602 = vrot.slane %v9601, 2
      %v9603 = vadd.f32 %v9601, %v9602
      %v9604 = vrot.slane %v9603, 1
      %v9605 = vadd.f32 %v9603, %v9604
      %v9606 = vsel %vm395, %v9490, 0.0
      %v9607 = vrot.slane %v9606, 4
      %v9608 = vadd.f32 %v9606, %v9607
      %v9609 = vrot.slane %v9608, 2
      %v9610 = vadd.f32 %v9608, %v9609
      %v9611 = vrot.slane %v9610, 1
      %v9612 = vadd.f32 %v9610, %v9611
      %v9613 = vsel %vm395, %v9491, 0.0
      %v9614 = vrot.slane %v9613, 4
      %v9615 = vadd.f32 %v9613, %v9614
      %v9616 = vrot.slane %v9615, 2
      %v9617 = vadd.f32 %v9615, %v9616
      %v9618 = vrot.slane %v9617, 1
      %v9619 = vadd.f32 %v9617, %v9618
      %v9620 = vsel %vm395, %v9492, 0.0
      %v9621 = vrot.slane %v9620, 4
      %v9622 = vadd.f32 %v9620, %v9621
      %v9623 = vrot.slane %v9622, 2
      %v9624 = vadd.f32 %v9622, %v9623
      %v9625 = vrot.slane %v9624, 1
      %v9626 = vadd.f32 %v9624, %v9625
      %v9627 = vsel %vm395, %v9493, 0.0
      %v9628 = vrot.slane %v9627, 4
      %v9629 = vadd.f32 %v9627, %v9628
      %v9630 = vrot.slane %v9629, 2
      %v9631 = vadd.f32 %v9629, %v9630
      %v9632 = vrot.slane %v9631, 1
      %v9633 = vadd.f32 %v9631, %v9632
      %v9634 = vsel %vm395, %v9494, 0.0
      %v9635 = vrot.slane %v9634, 4
      %v9636 = vadd.f32 %v9634, %v9635
      %v9637 = vrot.slane %v9636, 2
      %v9638 = vadd.f32 %v9636, %v9637
      %v9639 = vrot.slane %v9638, 1
      %v9640 = vadd.f32 %v9638, %v9639
      %v9641 = vsel %vm395, %v9495, 0.0
      %v9642 = vrot.slane %v9641, 4
      %v9643 = vadd.f32 %v9641, %v9642
      %v9644 = vrot.slane %v9643, 2
      %v9645 = vadd.f32 %v9643, %v9644
      %v9646 = vrot.slane %v9645, 1
      %v9647 = vadd.f32 %v9645, %v9646
      %v9648 = vsel %vm395, %v9496, 0.0
      %v9649 = vrot.slane %v9648, 4
      %v9650 = vadd.f32 %v9648, %v9649
      %v9651 = vrot.slane %v9650, 2
      %v9652 = vadd.f32 %v9650, %v9651
      %v9653 = vrot.slane %v9652, 1
      %v9654 = vadd.f32 %v9652, %v9653
      %v9655 = vsel %vm395, %v9497, 0.0
      %v9656 = vrot.slane %v9655, 4
      %v9657 = vadd.f32 %v9655, %v9656
      %v9658 = vrot.slane %v9657, 2
      %v9659 = vadd.f32 %v9657, %v9658
      %v9660 = vrot.slane %v9659, 1
      %v9661 = vadd.f32 %v9659, %v9660
      %v9662 = vsel %vm395, %v9498, 0.0
      %v9663 = vrot.slane %v9662, 4
      %v9664 = vadd.f32 %v9662, %v9663
      %v9665 = vrot.slane %v9664, 2
      %v9666 = vadd.f32 %v9664, %v9665
      %v9667 = vrot.slane %v9666, 1
      %v9668 = vadd.f32 %v9666, %v9667
      %v9669 = vsel %vm395, %v9499, 0.0
      %v9670 = vrot.slane %v9669, 4
      %v9671 = vadd.f32 %v9669, %v9670
      %v9672 = vrot.slane %v9671, 2
      %v9673 = vadd.f32 %v9671, %v9672
      %v9674 = vrot.slane %v9673, 1
      %v9675 = vadd.f32 %v9673, %v9674
      %v9676 = vsel %vm395, %v9500, 0.0
      %v9677 = vrot.slane %v9676, 4
      %v9678 = vadd.f32 %v9676, %v9677
      %v9679 = vrot.slane %v9678, 2
      %v9680 = vadd.f32 %v9678, %v9679
      %v9681 = vrot.slane %v9680, 1
      %v9682 = vadd.f32 %v9680, %v9681
      %v9683 = vsel %vm395, %v9501, 0.0
      %v9684 = vrot.slane %v9683, 4
      %v9685 = vadd.f32 %v9683, %v9684
      %v9686 = vrot.slane %v9685, 2
      %v9687 = vadd.f32 %v9685, %v9686
      %v9688 = vrot.slane %v9687, 1
      %v9689 = vadd.f32 %v9687, %v9688
      %v9690 = vsel %vm395, %v9502, 0.0
      %v9691 = vrot.slane %v9690, 4
      %v9692 = vadd.f32 %v9690, %v9691
      %v9693 = vrot.slane %v9692, 2
      %v9694 = vadd.f32 %v9692, %v9693
      %v9695 = vrot.slane %v9694, 1
      %v9696 = vadd.f32 %v9694, %v9695
      %v9697 = vsel %vm395, %v9503, 0.0
      %v9698 = vrot.slane %v9697, 4
      %v9699 = vadd.f32 %v9697, %v9698
      %v9700 = vrot.slane %v9699, 2
      %v9701 = vadd.f32 %v9699, %v9700
      %v9702 = vrot.slane %v9701, 1
      %v9703 = vadd.f32 %v9701, %v9702
      %v9704 = vsel %vm395, %v9504, 0.0
      %v9705 = vrot.slane %v9704, 4
      %v9706 = vadd.f32 %v9704, %v9705
      %v9707 = vrot.slane %v9706, 2
      %v9708 = vadd.f32 %v9706, %v9707
      %v9709 = vrot.slane %v9708, 1
      %v9710 = vadd.f32 %v9708, %v9709
      %v9711 = vsel %vm395, %v9505, 0.0
      %v9712 = vrot.slane %v9711, 4
      %v9713 = vadd.f32 %v9711, %v9712
      %v9714 = vrot.slane %v9713, 2
      %v9715 = vadd.f32 %v9713, %v9714
      %v9716 = vrot.slane %v9715, 1
      %v9717 = vadd.f32 %v9715, %v9716
      %v9718 = vsel %vm395, %v9506, 0.0
      %v9719 = vrot.slane %v9718, 4
      %v9720 = vadd.f32 %v9718, %v9719
      %v9721 = vrot.slane %v9720, 2
      %v9722 = vadd.f32 %v9720, %v9721
      %v9723 = vrot.slane %v9722, 1
      %v9724 = vadd.f32 %v9722, %v9723
      %v9725 = vsel %vm395, %v9507, 0.0
      %v9726 = vrot.slane %v9725, 4
      %v9727 = vadd.f32 %v9725, %v9726
      %v9728 = vrot.slane %v9727, 2
      %v9729 = vadd.f32 %v9727, %v9728
      %v9730 = vrot.slane %v9729, 1
      %v9731 = vadd.f32 %v9729, %v9730
      %v9732 = vsel %vm4233, %v390, 0.0
      %9733 = vadd.xlane.f32.xlu0 %v9732
      %v9734 = vpop.xlane.xlu0 %9733
      %v9735 = vsel %vm4233, %v391, 0.0
      %9736 = vadd.xlane.f32.xlu0 %v9735
      %v9737 = vpop.xlane.xlu0 %9736
      %v9738 = vsel %vm4233, %v392, 0.0
      %9739 = vadd.xlane.f32.xlu0 %v9738
      %v9740 = vpop.xlane.xlu0 %9739
      %v9741 = vsel %vm4233, %v393, 0.0
      %9742 = vadd.xlane.f32.xlu0 %v9741
      %v9743 = vpop.xlane.xlu0 %9742
      %v9744 = vmax.f32 %v9734, 1e-09
      %v9745 = vmax.f32 %v9737, 1e-09
      %v9746 = vmax.f32 %v9740, 1e-09
      %v9747 = vmax.f32 %v9743, 1e-09
      %v9748 = vrcp.pop %v9744
      %v9749 = vrcp.pop %v9745
      %v9750 = vrcp.pop %v9746
      %v9751 = vrcp.pop %v9747
      %v9756 = vrot.slane %v9748, 1
      %v9757 = vrot.slane %v9748, 2
      %v9758 = vrot.slane %v9748, 3
      %v9759 = vrot.slane %v9748, 4
      %v9760 = vrot.slane %v9748, 5
      %v9761 = vrot.slane %v9748, 6
      %v9762 = vrot.slane %v9748, 7
      %v9763 = vrot.slane %v9749, 1
      %v9764 = vrot.slane %v9749, 2
      %v9765 = vrot.slane %v9749, 3
      %v9766 = vrot.slane %v9749, 4
      %v9767 = vrot.slane %v9749, 5
      %v9768 = vrot.slane %v9749, 6
      %v9769 = vrot.slane %v9749, 7
      %v9770 = vrot.slane %v9750, 1
      %v9771 = vrot.slane %v9750, 2
      %v9772 = vrot.slane %v9750, 3
      %v9773 = vrot.slane %v9750, 4
      %v9774 = vrot.slane %v9750, 5
      %v9775 = vrot.slane %v9750, 6
      %v9776 = vrot.slane %v9750, 7
      %v9777 = vrot.slane %v9751, 1
      %v9778 = vrot.slane %v9751, 2
      %v9779 = vrot.slane %v9751, 3
      %v9780 = vrot.slane %v9751, 4
      %v9781 = vrot.slane %v9751, 5
      %v9782 = vrot.slane %v9751, 6
      %v9783 = vrot.slane %v9751, 7
      %v9816 = vmul.f32 %v9514, %v9748
      %v9817 = vmul.f32 %v9521, %v9756
      %v9818 = vmul.f32 %v9528, %v9757
      %v9819 = vmul.f32 %v9535, %v9758
      %v9820 = vmul.f32 %v9542, %v9759
      %v9821 = vmul.f32 %v9549, %v9760
      %v9822 = vmul.f32 %v9556, %v9761
      %v9823 = vmul.f32 %v9563, %v9762
      %v9824 = vmul.f32 %v9570, %v9749
      %v9825 = vmul.f32 %v9577, %v9763
      %v9826 = vmul.f32 %v9584, %v9764
      %v9827 = vmul.f32 %v9591, %v9765
      %v9828 = vmul.f32 %v9598, %v9766
      %v9829 = vmul.f32 %v9605, %v9767
      %v9830 = vmul.f32 %v9612, %v9768
      %v9831 = vmul.f32 %v9619, %v9769
      %v9832 = vmul.f32 %v9626, %v9750
      %v9833 = vmul.f32 %v9633, %v9770
      %v9834 = vmul.f32 %v9640, %v9771
      %v9835 = vmul.f32 %v9647, %v9772
      %v9836 = vmul.f32 %v9654, %v9773
      %v9837 = vmul.f32 %v9661, %v9774
      %v9838 = vmul.f32 %v9668, %v9775
      %v9839 = vmul.f32 %v9675, %v9776
      %v9840 = vmul.f32 %v9682, %v9751
      %v9841 = vmul.f32 %v9689, %v9777
      %v9842 = vmul.f32 %v9696, %v9778
      %v9843 = vmul.f32 %v9703, %v9779
      %v9844 = vmul.f32 %v9710, %v9780
      %v9845 = vmul.f32 %v9717, %v9781
      %v9846 = vmul.f32 %v9724, %v9782
      %v9847 = vmul.f32 %v9731, %v9783
      %v9848 = vmul.f32 %v9816, %v9816
      %v9849 = vmul.f32 %v9817, %v9817
      %v9850 = vmul.f32 %v9818, %v9818
      %v9851 = vmul.f32 %v9819, %v9819
      %v9852 = vmul.f32 %v9820, %v9820
      %v9853 = vmul.f32 %v9821, %v9821
      %v9854 = vmul.f32 %v9822, %v9822
      %v9855 = vmul.f32 %v9823, %v9823
      %v9856 = vmul.f32 %v9824, %v9824
      %v9857 = vmul.f32 %v9825, %v9825
      %v9858 = vmul.f32 %v9826, %v9826
      %v9859 = vmul.f32 %v9827, %v9827
      %v9860 = vmul.f32 %v9828, %v9828
      %v9861 = vmul.f32 %v9829, %v9829
      %v9862 = vmul.f32 %v9830, %v9830
      %v9863 = vmul.f32 %v9831, %v9831
      %v9864 = vmul.f32 %v9832, %v9832
      %v9865 = vmul.f32 %v9833, %v9833
      %v9866 = vmul.f32 %v9834, %v9834
      %v9867 = vmul.f32 %v9835, %v9835
      %v9868 = vmul.f32 %v9836, %v9836
      %v9869 = vmul.f32 %v9837, %v9837
      %v9870 = vmul.f32 %v9838, %v9838
      %v9871 = vmul.f32 %v9839, %v9839
      %v9872 = vmul.f32 %v9840, %v9840
      %v9873 = vmul.f32 %v9841, %v9841
      %v9874 = vmul.f32 %v9842, %v9842
      %v9875 = vmul.f32 %v9843, %v9843
      %v9876 = vmul.f32 %v9844, %v9844
      %v9877 = vmul.f32 %v9845, %v9845
      %v9878 = vmul.f32 %v9846, %v9846
      %v9879 = vmul.f32 %v9847, %v9847
      %v9912 = vrot.slane %v9849, 7
      %vm9913 = vcmask 1041409
      %v9914 = vsel %vm9913, %v9912, %v9848
      %v9915 = vrot.slane %v9850, 6
      %vm9916 = vcmask 1042434
      %v9917 = vsel %vm9916, %v9915, %v9914
      %v9918 = vrot.slane %v9851, 5
      %vm9919 = vcmask 1043459
      %v9920 = vsel %vm9919, %v9918, %v9917
      %v9921 = vrot.slane %v9852, 4
      %vm9922 = vcmask 1044484
      %v9923 = vsel %vm9922, %v9921, %v9920
      %v9924 = vrot.slane %v9853, 3
      %vm9925 = vcmask 1045509
      %v9926 = vsel %vm9925, %v9924, %v9923
      %v9927 = vrot.slane %v9854, 2
      %vm9928 = vcmask 1046534
      %v9929 = vsel %vm9928, %v9927, %v9926
      %v9930 = vrot.slane %v9855, 1
      %vm9931 = vcmask 1047559
      %v9932 = vsel %vm9931, %v9930, %v9929
      %v9933 = vrot.slane %v9857, 7
      %v9934 = vsel %vm9913, %v9933, %v9856
      %v9935 = vrot.slane %v9858, 6
      %v9936 = vsel %vm9916, %v9935, %v9934
      %v9937 = vrot.slane %v9859, 5
      %v9938 = vsel %vm9919, %v9937, %v9936
      %v9939 = vrot.slane %v9860, 4
      %v9940 = vsel %vm9922, %v9939, %v9938
      %v9941 = vrot.slane %v9861, 3
      %v9942 = vsel %vm9925, %v9941, %v9940
      %v9943 = vrot.slane %v9862, 2
      %v9944 = vsel %vm9928, %v9943, %v9942
      %v9945 = vrot.slane %v9863, 1
      %v9946 = vsel %vm9931, %v9945, %v9944
      %v9947 = vrot.slane %v9865, 7
      %v9948 = vsel %vm9913, %v9947, %v9864
      %v9949 = vrot.slane %v9866, 6
      %v9950 = vsel %vm9916, %v9949, %v9948
      %v9951 = vrot.slane %v9867, 5
      %v9952 = vsel %vm9919, %v9951, %v9950
      %v9953 = vrot.slane %v9868, 4
      %v9954 = vsel %vm9922, %v9953, %v9952
      %v9955 = vrot.slane %v9869, 3
      %v9956 = vsel %vm9925, %v9955, %v9954
      %v9957 = vrot.slane %v9870, 2
      %v9958 = vsel %vm9928, %v9957, %v9956
      %v9959 = vrot.slane %v9871, 1
      %v9960 = vsel %vm9931, %v9959, %v9958
      %v9961 = vrot.slane %v9873, 7
      %v9962 = vsel %vm9913, %v9961, %v9872
      %v9963 = vrot.slane %v9874, 6
      %v9964 = vsel %vm9916, %v9963, %v9962
      %v9965 = vrot.slane %v9875, 5
      %v9966 = vsel %vm9919, %v9965, %v9964
      %v9967 = vrot.slane %v9876, 4
      %v9968 = vsel %vm9922, %v9967, %v9966
      %v9969 = vrot.slane %v9877, 3
      %v9970 = vsel %vm9925, %v9969, %v9968
      %v9971 = vrot.slane %v9878, 2
      %v9972 = vsel %vm9928, %v9971, %v9970
      %v9973 = vrot.slane %v9879, 1
      %v9974 = vsel %vm9931, %v9973, %v9972
      %v9979 = vsel %vm395, %v9932, 0.0
      %9980 = vadd.xlane.f32.xlu0 %v9979
      %v9981 = vpop.xlane.xlu0 %9980
      %v9982 = vsel %vm395, %v9946, 0.0
      %9983 = vadd.xlane.f32.xlu0 %v9982
      %v9984 = vpop.xlane.xlu0 %9983
      %v9985 = vsel %vm395, %v9960, 0.0
      %9986 = vadd.xlane.f32.xlu0 %v9985
      %v9987 = vpop.xlane.xlu0 %9986
      %v9988 = vsel %vm395, %v9974, 0.0
      %9989 = vadd.xlane.f32.xlu0 %v9988
      %v9990 = vpop.xlane.xlu0 %9989
      %v9991 = vmax.f32 %v9981, 1e-24
      %v9992 = vmax.f32 %v9984, 1e-24
      %v9993 = vmax.f32 %v9987, 1e-24
      %v9994 = vmax.f32 %v9990, 1e-24
      %v9995 = vrsqrt.pop %v9991
      %v9996 = vrsqrt.pop %v9992
      %v9997 = vrsqrt.pop %v9993
      %v9998 = vrsqrt.pop %v9994
      %v10003 = vrot.slane %v9995, 1
      %v10004 = vrot.slane %v9995, 2
      %v10005 = vrot.slane %v9995, 3
      %v10006 = vrot.slane %v9995, 4
      %v10007 = vrot.slane %v9995, 5
      %v10008 = vrot.slane %v9995, 6
      %v10009 = vrot.slane %v9995, 7
      %v10010 = vrot.slane %v9996, 1
      %v10011 = vrot.slane %v9996, 2
      %v10012 = vrot.slane %v9996, 3
      %v10013 = vrot.slane %v9996, 4
      %v10014 = vrot.slane %v9996, 5
      %v10015 = vrot.slane %v9996, 6
      %v10016 = vrot.slane %v9996, 7
      %v10017 = vrot.slane %v9997, 1
      %v10018 = vrot.slane %v9997, 2
      %v10019 = vrot.slane %v9997, 3
      %v10020 = vrot.slane %v9997, 4
      %v10021 = vrot.slane %v9997, 5
      %v10022 = vrot.slane %v9997, 6
      %v10023 = vrot.slane %v9997, 7
      %v10024 = vrot.slane %v9998, 1
      %v10025 = vrot.slane %v9998, 2
      %v10026 = vrot.slane %v9998, 3
      %v10027 = vrot.slane %v9998, 4
      %v10028 = vrot.slane %v9998, 5
      %v10029 = vrot.slane %v9998, 6
      %v10030 = vrot.slane %v9998, 7
      %v10063 = vmul.f32 %v9816, %v9995
      %v10064 = vmul.f32 %v9817, %v10003
      %v10065 = vmul.f32 %v9818, %v10004
      %v10066 = vmul.f32 %v9819, %v10005
      %v10067 = vmul.f32 %v9820, %v10006
      %v10068 = vmul.f32 %v9821, %v10007
      %v10069 = vmul.f32 %v9822, %v10008
      %v10070 = vmul.f32 %v9823, %v10009
      %v10071 = vmul.f32 %v9824, %v9996
      %v10072 = vmul.f32 %v9825, %v10010
      %v10073 = vmul.f32 %v9826, %v10011
      %v10074 = vmul.f32 %v9827, %v10012
      %v10075 = vmul.f32 %v9828, %v10013
      %v10076 = vmul.f32 %v9829, %v10014
      %v10077 = vmul.f32 %v9830, %v10015
      %v10078 = vmul.f32 %v9831, %v10016
      %v10079 = vmul.f32 %v9832, %v9997
      %v10080 = vmul.f32 %v9833, %v10017
      %v10081 = vmul.f32 %v9834, %v10018
      %v10082 = vmul.f32 %v9835, %v10019
      %v10083 = vmul.f32 %v9836, %v10020
      %v10084 = vmul.f32 %v9837, %v10021
      %v10085 = vmul.f32 %v9838, %v10022
      %v10086 = vmul.f32 %v9839, %v10023
      %v10087 = vmul.f32 %v9840, %v9998
      %v10088 = vmul.f32 %v9841, %v10024
      %v10089 = vmul.f32 %v9842, %v10025
      %v10090 = vmul.f32 %v9843, %v10026
      %v10091 = vmul.f32 %v9844, %v10027
      %v10092 = vmul.f32 %v9845, %v10028
      %v10093 = vmul.f32 %v9846, %v10029
      %v10094 = vmul.f32 %v9847, %v10030
      %v10095 = vmul.f32 %v10063, %v10063
      %v10096 = vmul.f32 %v10064, %v10064
      %v10097 = vmul.f32 %v10065, %v10065
      %v10098 = vmul.f32 %v10066, %v10066
      %v10099 = vmul.f32 %v10067, %v10067
      %v10100 = vmul.f32 %v10068, %v10068
      %v10101 = vmul.f32 %v10069, %v10069
      %v10102 = vmul.f32 %v10070, %v10070
      %v10103 = vmul.f32 %v10071, %v10071
      %v10104 = vmul.f32 %v10072, %v10072
      %v10105 = vmul.f32 %v10073, %v10073
      %v10106 = vmul.f32 %v10074, %v10074
      %v10107 = vmul.f32 %v10075, %v10075
      %v10108 = vmul.f32 %v10076, %v10076
      %v10109 = vmul.f32 %v10077, %v10077
      %v10110 = vmul.f32 %v10078, %v10078
      %v10111 = vmul.f32 %v10079, %v10079
      %v10112 = vmul.f32 %v10080, %v10080
      %v10113 = vmul.f32 %v10081, %v10081
      %v10114 = vmul.f32 %v10082, %v10082
      %v10115 = vmul.f32 %v10083, %v10083
      %v10116 = vmul.f32 %v10084, %v10084
      %v10117 = vmul.f32 %v10085, %v10085
      %v10118 = vmul.f32 %v10086, %v10086
      %v10119 = vmul.f32 %v10087, %v10087
      %v10120 = vmul.f32 %v10088, %v10088
      %v10121 = vmul.f32 %v10089, %v10089
      %v10122 = vmul.f32 %v10090, %v10090
      %v10123 = vmul.f32 %v10091, %v10091
      %v10124 = vmul.f32 %v10092, %v10092
      %v10125 = vmul.f32 %v10093, %v10093
      %v10126 = vmul.f32 %v10094, %v10094
      %v10159 = vrot.slane %v10096, 7
      %v10160 = vsel %vm9913, %v10159, %v10095
      %v10161 = vrot.slane %v10097, 6
      %v10162 = vsel %vm9916, %v10161, %v10160
      %v10163 = vrot.slane %v10098, 5
      %v10164 = vsel %vm9919, %v10163, %v10162
      %v10165 = vrot.slane %v10099, 4
      %v10166 = vsel %vm9922, %v10165, %v10164
      %v10167 = vrot.slane %v10100, 3
      %v10168 = vsel %vm9925, %v10167, %v10166
      %v10169 = vrot.slane %v10101, 2
      %v10170 = vsel %vm9928, %v10169, %v10168
      %v10171 = vrot.slane %v10102, 1
      %v10172 = vsel %vm9931, %v10171, %v10170
      %v10173 = vrot.slane %v10104, 7
      %v10174 = vsel %vm9913, %v10173, %v10103
      %v10175 = vrot.slane %v10105, 6
      %v10176 = vsel %vm9916, %v10175, %v10174
      %v10177 = vrot.slane %v10106, 5
      %v10178 = vsel %vm9919, %v10177, %v10176
      %v10179 = vrot.slane %v10107, 4
      %v10180 = vsel %vm9922, %v10179, %v10178
      %v10181 = vrot.slane %v10108, 3
      %v10182 = vsel %vm9925, %v10181, %v10180
      %v10183 = vrot.slane %v10109, 2
      %v10184 = vsel %vm9928, %v10183, %v10182
      %v10185 = vrot.slane %v10110, 1
      %v10186 = vsel %vm9931, %v10185, %v10184
      %v10187 = vrot.slane %v10112, 7
      %v10188 = vsel %vm9913, %v10187, %v10111
      %v10189 = vrot.slane %v10113, 6
      %v10190 = vsel %vm9916, %v10189, %v10188
      %v10191 = vrot.slane %v10114, 5
      %v10192 = vsel %vm9919, %v10191, %v10190
      %v10193 = vrot.slane %v10115, 4
      %v10194 = vsel %vm9922, %v10193, %v10192
      %v10195 = vrot.slane %v10116, 3
      %v10196 = vsel %vm9925, %v10195, %v10194
      %v10197 = vrot.slane %v10117, 2
      %v10198 = vsel %vm9928, %v10197, %v10196
      %v10199 = vrot.slane %v10118, 1
      %v10200 = vsel %vm9931, %v10199, %v10198
      %v10201 = vrot.slane %v10120, 7
      %v10202 = vsel %vm9913, %v10201, %v10119
      %v10203 = vrot.slane %v10121, 6
      %v10204 = vsel %vm9916, %v10203, %v10202
      %v10205 = vrot.slane %v10122, 5
      %v10206 = vsel %vm9919, %v10205, %v10204
      %v10207 = vrot.slane %v10123, 4
      %v10208 = vsel %vm9922, %v10207, %v10206
      %v10209 = vrot.slane %v10124, 3
      %v10210 = vsel %vm9925, %v10209, %v10208
      %v10211 = vrot.slane %v10125, 2
      %v10212 = vsel %vm9928, %v10211, %v10210
      %v10213 = vrot.slane %v10126, 1
      %v10214 = vsel %vm9931, %v10213, %v10212
      %v10219 = vsel %vm395, %v10172, 0.0
      %10220 = vadd.xlane.f32.xlu0 %v10219
      %v10221 = vpop.xlane.xlu0 %10220
      %v10222 = vsel %vm395, %v10186, 0.0
      %10223 = vadd.xlane.f32.xlu0 %v10222
      %v10224 = vpop.xlane.xlu0 %10223
      %v10225 = vsel %vm395, %v10200, 0.0
      %10226 = vadd.xlane.f32.xlu0 %v10225
      %v10227 = vpop.xlane.xlu0 %10226
      %v10228 = vsel %vm395, %v10214, 0.0
      %10229 = vadd.xlane.f32.xlu0 %v10228
      %v10230 = vpop.xlane.xlu0 %10229
      %v10231 = vmax.f32 %v10221, 1e-24
      %v10232 = vmax.f32 %v10224, 1e-24
      %v10233 = vmax.f32 %v10227, 1e-24
      %v10234 = vmax.f32 %v10230, 1e-24
      %v10235 = vrsqrt.pop %v10231
      %v10236 = vrsqrt.pop %v10232
      %v10237 = vrsqrt.pop %v10233
      %v10238 = vrsqrt.pop %v10234
      %v10243 = vrot.slane %v10235, 1
      %v10244 = vrot.slane %v10235, 2
      %v10245 = vrot.slane %v10235, 3
      %v10246 = vrot.slane %v10235, 4
      %v10247 = vrot.slane %v10235, 5
      %v10248 = vrot.slane %v10235, 6
      %v10249 = vrot.slane %v10235, 7
      %v10250 = vrot.slane %v10236, 1
      %v10251 = vrot.slane %v10236, 2
      %v10252 = vrot.slane %v10236, 3
      %v10253 = vrot.slane %v10236, 4
      %v10254 = vrot.slane %v10236, 5
      %v10255 = vrot.slane %v10236, 6
      %v10256 = vrot.slane %v10236, 7
      %v10257 = vrot.slane %v10237, 1
      %v10258 = vrot.slane %v10237, 2
      %v10259 = vrot.slane %v10237, 3
      %v10260 = vrot.slane %v10237, 4
      %v10261 = vrot.slane %v10237, 5
      %v10262 = vrot.slane %v10237, 6
      %v10263 = vrot.slane %v10237, 7
      %v10264 = vrot.slane %v10238, 1
      %v10265 = vrot.slane %v10238, 2
      %v10266 = vrot.slane %v10238, 3
      %v10267 = vrot.slane %v10238, 4
      %v10268 = vrot.slane %v10238, 5
      %v10269 = vrot.slane %v10238, 6
      %v10270 = vrot.slane %v10238, 7
      %v10303 = vmul.f32 %v10063, %v10235
      %v10304 = vmul.f32 %v10064, %v10243
      %v10305 = vmul.f32 %v10065, %v10244
      %v10306 = vmul.f32 %v10066, %v10245
      %v10307 = vmul.f32 %v10067, %v10246
      %v10308 = vmul.f32 %v10068, %v10247
      %v10309 = vmul.f32 %v10069, %v10248
      %v10310 = vmul.f32 %v10070, %v10249
      %v10311 = vmul.f32 %v10071, %v10236
      %v10312 = vmul.f32 %v10072, %v10250
      %v10313 = vmul.f32 %v10073, %v10251
      %v10314 = vmul.f32 %v10074, %v10252
      %v10315 = vmul.f32 %v10075, %v10253
      %v10316 = vmul.f32 %v10076, %v10254
      %v10317 = vmul.f32 %v10077, %v10255
      %v10318 = vmul.f32 %v10078, %v10256
      %v10319 = vmul.f32 %v10079, %v10237
      %v10320 = vmul.f32 %v10080, %v10257
      %v10321 = vmul.f32 %v10081, %v10258
      %v10322 = vmul.f32 %v10082, %v10259
      %v10323 = vmul.f32 %v10083, %v10260
      %v10324 = vmul.f32 %v10084, %v10261
      %v10325 = vmul.f32 %v10085, %v10262
      %v10326 = vmul.f32 %v10086, %v10263
      %v10327 = vmul.f32 %v10087, %v10238
      %v10328 = vmul.f32 %v10088, %v10264
      %v10329 = vmul.f32 %v10089, %v10265
      %v10330 = vmul.f32 %v10090, %v10266
      %v10331 = vmul.f32 %v10091, %v10267
      %v10332 = vmul.f32 %v10092, %v10268
      %v10333 = vmul.f32 %v10093, %v10269
      %v10334 = vmul.f32 %v10094, %v10270
      %v10367 = vrot.slane %v10304, 7
      %v10368 = vsel %vm9913, %v10367, %v10303
      %v10369 = vrot.slane %v10305, 6
      %v10370 = vsel %vm9916, %v10369, %v10368
      %v10371 = vrot.slane %v10306, 5
      %v10372 = vsel %vm9919, %v10371, %v10370
      %v10373 = vrot.slane %v10307, 4
      %v10374 = vsel %vm9922, %v10373, %v10372
      %v10375 = vrot.slane %v10308, 3
      %v10376 = vsel %vm9925, %v10375, %v10374
      %v10377 = vrot.slane %v10309, 2
      %v10378 = vsel %vm9928, %v10377, %v10376
      %v10379 = vrot.slane %v10310, 1
      %v10380 = vsel %vm9931, %v10379, %v10378
      %v10381 = vrot.slane %v10312, 7
      %v10382 = vsel %vm9913, %v10381, %v10311
      %v10383 = vrot.slane %v10313, 6
      %v10384 = vsel %vm9916, %v10383, %v10382
      %v10385 = vrot.slane %v10314, 5
      %v10386 = vsel %vm9919, %v10385, %v10384
      %v10387 = vrot.slane %v10315, 4
      %v10388 = vsel %vm9922, %v10387, %v10386
      %v10389 = vrot.slane %v10316, 3
      %v10390 = vsel %vm9925, %v10389, %v10388
      %v10391 = vrot.slane %v10317, 2
      %v10392 = vsel %vm9928, %v10391, %v10390
      %v10393 = vrot.slane %v10318, 1
      %v10394 = vsel %vm9931, %v10393, %v10392
      %v10395 = vrot.slane %v10320, 7
      %v10396 = vsel %vm9913, %v10395, %v10319
      %v10397 = vrot.slane %v10321, 6
      %v10398 = vsel %vm9916, %v10397, %v10396
      %v10399 = vrot.slane %v10322, 5
      %v10400 = vsel %vm9919, %v10399, %v10398
      %v10401 = vrot.slane %v10323, 4
      %v10402 = vsel %vm9922, %v10401, %v10400
      %v10403 = vrot.slane %v10324, 3
      %v10404 = vsel %vm9925, %v10403, %v10402
      %v10405 = vrot.slane %v10325, 2
      %v10406 = vsel %vm9928, %v10405, %v10404
      %v10407 = vrot.slane %v10326, 1
      %v10408 = vsel %vm9931, %v10407, %v10406
      %v10409 = vrot.slane %v10328, 7
      %v10410 = vsel %vm9913, %v10409, %v10327
      %v10411 = vrot.slane %v10329, 6
      %v10412 = vsel %vm9916, %v10411, %v10410
      %v10413 = vrot.slane %v10330, 5
      %v10414 = vsel %vm9919, %v10413, %v10412
      %v10415 = vrot.slane %v10331, 4
      %v10416 = vsel %vm9922, %v10415, %v10414
      %v10417 = vrot.slane %v10332, 3
      %v10418 = vsel %vm9925, %v10417, %v10416
      %v10419 = vrot.slane %v10333, 2
      %v10420 = vsel %vm9928, %v10419, %v10418
      %v10421 = vrot.slane %v10334, 1
      %v10422 = vsel %vm9931, %v10421, %v10420
      %10427 = vst.msk [vmem:[%s356] sm:$0xff] %vm395, %v10380
      %10428 = vst.msk [vmem:[%s356 + $0x8] sm:$0xff] %vm395, %v10394
      %10429 = vst.msk [vmem:[%s356 + $0x10] sm:$0xff] %vm395, %v10408
      %10430 = vst.msk [vmem:[%s356 + $0x18] sm:$0xff] %vm395, %v10422
      %s10431 = smul.u32 4, %s20
      %p10432 = scmp.lt.s32.totalorder %s10431, 7
      %s10433 = scalar_select %p10432, %s10431, 7
      %s10434 = smul.addr %s10433, 8
      %s10435 = scalar_lea.vmem %s9, %s10434
      // Predicated region
      $region57: #{tpu_custom_call.1} parent=55 // pred_check
        %p10436 = pneg %p237
      $region58: #{tpu_custom_call.1} parent=55 // pred_check_branch
        %10438 = sbr.rel (%p10436) target = $region60
      $region59: #{tpu_custom_call.1} parent=55 // pred_region
        %s10439 = smul.u32 4, %s20
      $region60: #{tpu_custom_call.1} parent=55 // pred_fallthru
        _
    $region56: #{tpu_custom_call.1} parent=5 // pred_fallthru
      _
    %p10440 = scmp.le.s32.totalorder 2, %s15
    // Predicated region
    $region61: #{tpu_custom_call.1} parent=5 // pred_check
      %p10441 = pneg %p10440
    $region62: #{tpu_custom_call.1} parent=5 // pred_check_branch
      %10443 = sbr.rel (%p10441) target = $region64
    $region63: #{tpu_custom_call.1} parent=5 // pred_region
      %s10444 = ssub.s32 %s15, 2
      // Predicated region
      $region65: #{tpu_custom_call.1} parent=63 // pred_check
        %p10445 = pneg %p243
      $region66: #{tpu_custom_call.1} parent=63 // pred_check_branch
        %10447 = sbr.rel (%p10445) target = $region68
      $region67: #{tpu_custom_call.1} parent=63 // pred_region
        %s10448 = smul.u32 4, %s21
        %p10449 = scmp.lt.s32.totalorder %s10448, 7
        %s10450 = scalar_select %p10449, %s10448, 7
        %s10451 = smul.addr %s10450, 8
        %s10452 = scalar_lea.vmem %s9, %s10451
      $region68: #{tpu_custom_call.1} parent=63 // pred_fallthru
        _
    $region64: #{tpu_custom_call.1} parent=5 // pred_fallthru
      _
  $region6: #{tpu_custom_call.1} parent=0 // loop_footer
    %s19 = sadd.s32 1, %s15
  $region7: #{tpu_custom_call.1} parent=0 // loop_footer_branch
    %14 = sbr.rel target = $region3
  $region8: #{tpu_custom_call.1} parent=0 // loop_exit
    _

</llo_original>
